<compile_context>
chip_gen: v5e
topology: v5e:2x2
jax: 0.10.0
libtpu: 0.0.40
codegen_flags: <defaults>
</compile_context>

<pallas_src>
import functools

import jax
import jax.numpy as jnp
from jax import lax
from jax.experimental import pallas as pl
from jax.experimental.pallas import tpu as pltpu


# --------------------------------------------------------------------------
# Compiler params (generation-aware VMEM budget)
# --------------------------------------------------------------------------
_COMPILER_PARAMS_CACHE = None


def _compiler_params():
    """~3/4 of physical VMEM (96 MiB on v5e/v6e, 48 MiB on v7x), cached."""
    global _COMPILER_PARAMS_CACHE
    if _COMPILER_PARAMS_CACHE is None:
        cap = None
        try:
            cap = int(getattr(pltpu.get_tpu_info(), "vmem_capacity_bytes", 0)) or None
        except Exception:
            cap = None
        if cap is None:
            cap = 64 * 1024 * 1024          # conservative: v7x per-core VMEM
        limit = max(32 * 1024 * 1024, min((cap * 3) // 4, 100 * 1024 * 1024))
        _COMPILER_PARAMS_CACHE = pltpu.CompilerParams(
            dimension_semantics=("parallel",),
            vmem_limit_bytes=limit,
        )
    return _COMPILER_PARAMS_CACHE


def _grid_batch(B):
    """Chunk the batch into 2 grid steps when possible (pipelining / 2nd TC)."""
    return B // 2 if (B % 2 == 0 and B > 1) else B


# --------------------------------------------------------------------------
# In-kernel conv helpers (values, not refs)
# --------------------------------------------------------------------------
def _conv3x3_rows(x, w3, b):
    """3x3 SAME conv as one 3-tap width slab + 3 accumulating MXU matmuls.

    x  : (B, H, W, Cin)   bf16 activation block.
    w3 : (3, 3*Cin, Cout) bf16, grouped by the row (dy) tap, inner order
         (dx, Cin) matching the slab below.
    b  : (1, Cout) f32.
    Returns (B*H*W, Cout) f32 rows ordered (b, y, x).
    """
    B, H, W, Cin = x.shape
    zc = jnp.zeros((B, H, 1, Cin), x.dtype)
    slab = jnp.concatenate(
        [jnp.concatenate([zc, x[:, :, :W - 1, :]], axis=2),   # input col x-1
         x,                                                   # input col x
         jnp.concatenate([x[:, :, 1:, :], zc], axis=2)],      # input col x+1
        axis=-1)                                              # (B, H, W, 3Cin)
    zr = jnp.zeros((B, 1, W, 3 * Cin), x.dtype)
    slab = jnp.concatenate([zr, slab, zr], axis=1)            # (B, H+2, W, 3Cin)
    R = B * H * W
    acc = jnp.dot(slab[:, 0:H].reshape(R, 3 * Cin), w3[0],
                  preferred_element_type=jnp.float32)         # input row y-1
    acc = acc + jnp.dot(slab[:, 1:H + 1].reshape(R, 3 * Cin), w3[1],
                        preferred_element_type=jnp.float32)   # input row y
    acc = acc + jnp.dot(slab[:, 2:H + 2].reshape(R, 3 * Cin), w3[2],
                        preferred_element_type=jnp.float32)   # input row y+1
    return acc + b


def _angular3x3_rows(s, w3, b, an):
    """3x3 SAME conv over the (an, an) angular view grid, no transposes.

    s  : (an*an*P, C) bf16, rows ordered (u, v, pixel) -- each view is a
         contiguous P-row block, so the PyTorch spa<->ang view/transpose pair
         never materializes.
    w3 : (3, 3*C, Cout) bf16 grouped by the u (du) tap, inner order (dv, C).
    Returns (an*an*P, Cout) f32 in the same row order.
    """
    R, C = s.shape
    P = R // (an * an)
    sv = s.reshape(an, an, P, C)
    zv = jnp.zeros((an, 1, P, C), s.dtype)
    slab = jnp.concatenate(
        [jnp.concatenate([zv, sv[:, :an - 1]], axis=1),       # input view v-1
         sv,                                                  # input view v
         jnp.concatenate([sv[:, 1:], zv], axis=1)],           # input view v+1
        axis=-1)                                              # (an, an, P, 3C)
    zu = jnp.zeros((1, an, P, 3 * C), s.dtype)
    slab = jnp.concatenate([zu, slab, zu], axis=0)            # (an+2, an, P, 3C)
    acc = jnp.dot(slab[0:an].reshape(R, 3 * C), w3[0],
                  preferred_element_type=jnp.float32)         # input view u-1
    acc = acc + jnp.dot(slab[1:an + 1].reshape(R, 3 * C), w3[1],
                        preferred_element_type=jnp.float32)   # input view u
    acc = acc + jnp.dot(slab[2:an + 2].reshape(R, 3 * C), w3[2],
                        preferred_element_type=jnp.float32)   # input view u+1
    return acc + b


# --------------------------------------------------------------------------
# Pallas kernels
# --------------------------------------------------------------------------
def _conv3x3_kernel(x_ref, w_ref, b_ref, o_ref, *, relu):
    B, H, W, _ = x_ref.shape
    Cout = o_ref.shape[-1]
    acc = _conv3x3_rows(x_ref[...].astype(jnp.bfloat16), w_ref[...], b_ref[...])
    if relu:
        acc = jnp.maximum(acc, 0.0)
    o_ref[...] = acc.reshape(B, H, W, Cout).astype(o_ref.dtype)


def _conv0_iup_kernel(x_ref, w_ref, b_ref, o0_ref, o1_ref):
    """Fused conv0 (1->64, ReLU, bf16 out) + iup conv (1->4, f32 out)."""
    B, H, W, _ = x_ref.shape
    C0 = o0_ref.shape[-1]
    C1 = o1_ref.shape[-1]
    acc = _conv3x3_rows(x_ref[...].astype(jnp.bfloat16), w_ref[...], b_ref[...])
    o0_ref[...] = jnp.maximum(acc[:, :C0], 0.0).reshape(B, H, W, C0).astype(o0_ref.dtype)
    o1_ref[...] = acc[:, C0:C0 + C1].reshape(B, H, W, C1).astype(o1_ref.dtype)


def _altfilter_kernel(x_ref, sw_ref, sb_ref, aw_ref, ab_ref, o_ref, *, an):
    """L fused AltFilter layers (spatial conv + angular conv each, ReLU'd).

    x_ref / o_ref blocks are (an*an, H, W, C): every angular view of one light
    field, bf16.  The spatial conv folds (views, H, W) into matmul rows; the
    angular conv then works on contiguous P-row view blocks of the result.
    """
    an2, H, W, C = x_ref.shape
    L = sw_ref.shape[0]
    x = x_ref[...].astype(jnp.bfloat16)
    sw = sw_ref[...]
    sb = sb_ref[...]
    aw = aw_ref[...]
    ab = ab_ref[...]
    for l in range(L):
        s = jnp.maximum(_conv3x3_rows(x, sw[l], sb[l]), 0.0)              # (an2*P, C) f32
        a = jnp.maximum(_angular3x3_rows(s.astype(jnp.bfloat16),
                                         aw[l], ab[l], an), 0.0)          # (an2*P, C) f32
        x = a.astype(jnp.bfloat16).reshape(an2, H, W, C)
    o_ref[...] = x.astype(o_ref.dtype)


def _res_kernel(x_ref, iup_ref, w_ref, b_ref, o_ref):
    """Final res conv (64->1) fused with the "+ iup" residual add."""
    B, H, W, _ = x_ref.shape
    acc = _conv3x3_rows(x_ref[...].astype(jnp.bfloat16), w_ref[...], b_ref[...])
    o_ref[...] = acc.reshape(B, H, W, 1) + iup_ref[...]


# --------------------------------------------------------------------------
# pallas_call wrappers
# --------------------------------------------------------------------------
def conv3x3(x, w3, b, *, relu, out_dtype):
    """x: (B,H,W,Cin), w3: (3, 3*Cin, Cout) bf16, b: (1, Cout) f32."""
    B, H, W, Cin = x.shape
    Cout = w3.shape[-1]
    bb = _grid_batch(B)
    return pl.pallas_call(
        functools.partial(_conv3x3_kernel, relu=relu),
        out_shape=jax.ShapeDtypeStruct((B, H, W, Cout), out_dtype),
        grid=(B // bb,),
        in_specs=[
            pl.BlockSpec((bb, H, W, Cin), lambda g: (g, 0, 0, 0)),
            pl.BlockSpec((3, 3 * Cin, Cout), lambda g: (0, 0, 0)),
            pl.BlockSpec((1, Cout), lambda g: (0, 0)),
        ],
        out_specs=pl.BlockSpec((bb, H, W, Cout), lambda g: (g, 0, 0, 0)),
        compiler_params=_compiler_params(),
    )(x, w3, b)


def conv0_iup(lr8, w3, b):
    """Fused conv0 + iup conv; both read the (padded) LR image once."""
    B, H, W, Cin = lr8.shape
    C0, C1 = 64, 4
    bb = _grid_batch(B)
    return pl.pallas_call(
        _conv0_iup_kernel,
        out_shape=(jax.ShapeDtypeStruct((B, H, W, C0), jnp.bfloat16),
                   jax.ShapeDtypeStruct((B, H, W, C1), jnp.float32)),
        grid=(B // bb,),
        in_specs=[
            pl.BlockSpec((bb, H, W, Cin), lambda g: (g, 0, 0, 0)),
            pl.BlockSpec((3, 3 * Cin, C0 + C1), lambda g: (0, 0, 0)),
            pl.BlockSpec((1, C0 + C1), lambda g: (0, 0)),
        ],
        out_specs=(pl.BlockSpec((bb, H, W, C0), lambda g: (g, 0, 0, 0)),
                   pl.BlockSpec((bb, H, W, C1), lambda g: (g, 0, 0, 0))),
        compiler_params=_compiler_params(),
    )(lr8, w3, b)


def altfilter_layers(x, sw, sb, aw, ab, *, an):
    """L fused AltFilter layers; sw/aw: (L, 3, 3C, C) bf16, sb/ab: (L, 1, C)."""
    B, H, W, C = x.shape
    an2 = an * an
    N = B // an2
    L = sw.shape[0]
    return pl.pallas_call(
        functools.partial(_altfilter_kernel, an=an),
        out_shape=jax.ShapeDtypeStruct((B, H, W, C), jnp.bfloat16),
        grid=(N,),
        in_specs=[
            pl.BlockSpec((an2, H, W, C), lambda n: (n, 0, 0, 0)),
            pl.BlockSpec((L, 3, 3 * C, C), lambda n: (0, 0, 0, 0)),
            pl.BlockSpec((L, 1, C), lambda n: (0, 0, 0)),
            pl.BlockSpec((L, 3, 3 * C, C), lambda n: (0, 0, 0, 0)),
            pl.BlockSpec((L, 1, C), lambda n: (0, 0, 0)),
        ],
        out_specs=pl.BlockSpec((an2, H, W, C), lambda n: (n, 0, 0, 0)),
        compiler_params=_compiler_params(),
    )(x, sw, sb, aw, ab)


def res_conv_add(x, iup_hr, w3, b):
    """res conv (64->1) + residual add; x bf16 (B,2h,2w,64), iup_hr f32."""
    B, H, W, Cin = x.shape
    bb = _grid_batch(B)
    return pl.pallas_call(
        _res_kernel,
        out_shape=jax.ShapeDtypeStruct((B, H, W, 1), jnp.float32),
        grid=(B // bb,),
        in_specs=[
            pl.BlockSpec((bb, H, W, Cin), lambda g: (g, 0, 0, 0)),
            pl.BlockSpec((bb, H, W, 1), lambda g: (g, 0, 0, 0)),
            pl.BlockSpec((3, 3 * Cin, 1), lambda g: (0, 0, 0)),
            pl.BlockSpec((1, 1), lambda g: (0, 0)),
        ],
        out_specs=pl.BlockSpec((bb, H, W, 1), lambda g: (g, 0, 0, 0)),
        compiler_params=_compiler_params(),
    )(x, iup_hr, w3, b)


# --------------------------------------------------------------------------
# One-time parameter preprocessing (hoisted out of the forward pass)
# --------------------------------------------------------------------------
def prepare_params(params, n_layers=10):
    def prep_w(w):
        # HWIO (3,3,Cin,Cout) -> (3, 3*Cin, Cout) bf16, grouped by the row tap.
        kh, kw, ci, co = w.shape
        return w.reshape(kh, kw * ci, co).astype(jnp.bfloat16)

    def prep_b(b):
        return b.reshape(1, -1).astype(jnp.float32)

    w0, b0 = params["conv0"]
    wi, bi = params["iup"]
    # Pad Cin 1 -> 8 (input image is zero in the padded channels) and fuse the
    # conv0 / iup output channels into one weight block.
    w0p = jnp.pad(w0, ((0, 0), (0, 0), (0, 7), (0, 0)))
    wip = jnp.pad(wi, ((0, 0), (0, 0), (0, 7), (0, 0)))
    wcat = jnp.concatenate([w0p, wip], axis=3)

    prep = {
        "c0_w": prep_w(wcat),
        "c0_b": jnp.concatenate([b0, bi]).reshape(1, -1).astype(jnp.float32),
        "fup_w": prep_w(params["fup"][0]),
        "fup_b": prep_b(params["fup"][1]),
        "res_w": prep_w(params["res"][0]),
        "res_b": prep_b(params["res"][1]),
        "spa_w": jnp.stack([prep_w(params[f"spa{i}"][0]) for i in range(n_layers)]),
        "spa_b": jnp.stack([prep_b(params[f"spa{i}"][1]) for i in range(n_layers)]),
        "ang_w": jnp.stack([prep_w(params[f"ang{i}"][0]) for i in range(n_layers)]),
        "ang_b": jnp.stack([prep_b(params[f"ang{i}"][1]) for i in range(n_layers)]),
    }
    return prep


# --------------------------------------------------------------------------
# Layout glue (plain JAX) and forward passes
# --------------------------------------------------------------------------
def pixel_shuffle_nhwc(x, r):
    """PyTorch nn.PixelShuffle(r) semantics, NHWC layout."""
    B, H, W, C = x.shape
    c = C // (r * r)
    x = x.reshape(B, H, W, c, r, r)
    x = x.transpose(0, 1, 4, 2, 5, 3)
    return x.reshape(B, H * r, W * r, c)


def net2x_forward(lr, prep, *, an, n_layers=10, layers_per_call=2):
    """lr: (N, an*an, h, w) f32 -> (N, an*an, 2h, 2w) f32.  Pallas path."""
    N, an2, h, w = lr.shape
    B = N * an2
    lr_img = lr.reshape(B, h, w, 1).astype(jnp.float32)
    lr8 = jnp.pad(lr_img, ((0, 0), (0, 0), (0, 0), (0, 7))).astype(jnp.bfloat16)

    x, iup_ph = conv0_iup(lr8, prep["c0_w"], prep["c0_b"])     # bf16 (B,h,w,64), f32 (B,h,w,4)

    j = 0
    while j < n_layers:                                        # 10 AltFilters, 2 per call
        L = min(layers_per_call, n_layers - j)
        x = altfilter_layers(x,
                             prep["spa_w"][j:j + L], prep["spa_b"][j:j + L],
                             prep["ang_w"][j:j + L], prep["ang_b"][j:j + L],
                             an=an)
        j += L

    fup = conv3x3(x, prep["fup_w"], prep["fup_b"], relu=True,
                  out_dtype=jnp.bfloat16)                      # (B, h, w, 256) bf16
    fup_hr = pixel_shuffle_nhwc(fup, 2)                        # (B, 2h, 2w, 64) bf16
    iup_hr = pixel_shuffle_nhwc(iup_ph, 2)                     # (B, 2h, 2w, 1) f32
    sr = res_conv_add(fup_hr, iup_hr, prep["res_w"], prep["res_b"])
    return sr.reshape(N, an2, 2 * h, 2 * w)


def _conv3x3_ref(x, w, b, relu):
    """Matched-precision reference conv: bf16 operands, f32 accumulation."""
    out = lax.conv_general_dilated(
        x.astype(jnp.bfloat16), w.astype(jnp.bfloat16),
        window_strides=(1, 1), padding="SAME",
        dimension_numbers=("NHWC", "HWIO", "NHWC"),
        preferred_element_type=jnp.float32) + b.astype(jnp.float32)
    return jnp.maximum(out, 0.0) if relu else out


def net2x_forward_ref(lr, params, *, an, n_layers=10):
    """Pure-JAX reference following the original PyTorch dataflow, including
    the explicit spa<->ang view/transpose pair (validates the fused layout)."""
    N, an2, h, w = lr.shape
    C = 64
    lr_img = lr.reshape(N * an2, h, w, 1).astype(jnp.float32)
    x = _conv3x3_ref(lr_img, *params["conv0"], True)
    for i in range(n_layers):
        s = _conv3x3_ref(x, *params[f"spa{i}"], True)
        a_in = (s.reshape(N, an, an, h, w, C)
                 .transpose(0, 3, 4, 1, 2, 5)
                 .reshape(N * h * w, an, an, C))
        a = _conv3x3_ref(a_in, *params[f"ang{i}"], True)
        x = (a.reshape(N, h, w, an, an, C)
              .transpose(0, 3, 4, 1, 2, 5)
              .reshape(N * an2, h, w, C))
    fup = jnp.maximum(pixel_shuffle_nhwc(_conv3x3_ref(x, *params["fup"], False), 2), 0.0)
    res = _conv3x3_ref(fup, *params["res"], False)
    iup = pixel_shuffle_nhwc(_conv3x3_ref(lr_img, *params["iup"], False), 2)
    return (res + iup).reshape(N, an2, 2 * h, 2 * w)


# --------------------------------------------------------------------------
# Synthetic weights (HWIO) matching the module's conv shapes
# --------------------------------------------------------------------------
def init_params(key, n_layers=10):
    def conv_init(k, cin, cout, scale):
        kw, kb = jax.random.split(k)
        wgt = jax.random.normal(kw, (3, 3, cin, cout), jnp.float32) * scale
        bias = jax.random.normal(kb, (cout,), jnp.float32) * 0.01
        return wgt, bias

    keys = jax.random.split(key, 4 + 2 * n_layers)
    params = {"conv0": conv_init(keys[0], 1, 64, 0.2)}
    for i in range(n_layers):
        params[f"spa{i}"] = conv_init(keys[1 + 2 * i], 64, 64, 0.05)
        params[f"ang{i}"] = conv_init(keys[2 + 2 * i], 64, 64, 0.05)
    params["fup"] = conv_init(keys[1 + 2 * n_layers], 64, 256, 0.05)
    params["res"] = conv_init(keys[2 + 2 * n_layers], 64, 1, 0.05)
    params["iup"] = conv_init(keys[3 + 2 * n_layers], 1, 4, 0.2)
    return params


if __name__ == "__main__":
    an = 2                          # angular resolution (an2 = 4 views)
    N, h, w = 1, 8, 8
    an2 = an * an

    key = jax.random.PRNGKey(0)
    pkey, xkey = jax.random.split(key)
    params = init_params(pkey)
    prep = prepare_params(params)
    lr = jax.random.normal(xkey, (N, an2, h, w), jnp.float32)

    fwd_pallas = jax.jit(functools.partial(net2x_forward, an=an))
    fwd_ref = jax.jit(functools.partial(net2x_forward_ref, an=an))

    out = jax.block_until_ready(fwd_pallas(lr, prep))
    ref = jax.block_until_ready(fwd_ref(lr, params))

    assert out.shape == (N, an2, 2 * h, 2 * w), out.shape
    assert bool(jnp.all(jnp.isfinite(out)))
    max_err = float(jnp.max(jnp.abs(out - ref)))
    assert max_err < 2e-2, f"mismatch vs reference: {max_err}"
    print("KERNEL_OK")
</pallas_src>

<mosaic_0001>
module attributes {stable_mosaic.version = 11 : i64} {
  func.func @_conv0_iup_kernel(%arg0: i32, %arg1: memref<2x8x8x8xbf16, #tpu.memory_space<vmem>>, %arg2: memref<3x24x68xbf16, #tpu.memory_space<vmem>>, %arg3: memref<1x68xf32, #tpu.memory_space<vmem>>, %arg4: memref<2x8x8x64xbf16, #tpu.memory_space<vmem>>, %arg5: memref<2x8x8x4xf32, #tpu.memory_space<vmem>>) attributes {dimension_semantics = [#tpu.dimension_semantics<parallel>], iteration_bounds = array<i64: 2>, scalar_prefetch = 0 : i64, scratch_operands = 0 : i64, tpu.core_type = #tpu.core_type<tc>, window_params = [{transform_indices = @transform_0, window_bounds = array<i64: 2, 8, 8, 8>}, {pipeline_mode = #tpu.pipeline_mode<synchronous>, transform_indices = @transform_1, window_bounds = array<i64: 3, 24, 68>}, {pipeline_mode = #tpu.pipeline_mode<synchronous>, transform_indices = @transform_2, window_bounds = array<i64: 1, 68>}, {transform_indices = @transform_3, window_bounds = array<i64: 2, 8, 8, 64>}, {transform_indices = @transform_4, window_bounds = array<i64: 2, 8, 8, 4>}]} {
    %c0 = arith.constant 0 : index
    %c0_0 = arith.constant 0 : index
    %c0_1 = arith.constant 0 : index
    %c0_2 = arith.constant 0 : index
    %0 = vector.load %arg1[%c0, %c0_0, %c0_1, %c0_2] : memref<2x8x8x8xbf16, #tpu.memory_space<vmem>>, vector<2x8x8x8xbf16>
    %c0_3 = arith.constant 0 : index
    %c0_4 = arith.constant 0 : index
    %c0_5 = arith.constant 0 : index
    %1 = vector.load %arg2[%c0_3, %c0_4, %c0_5] : memref<3x24x68xbf16, #tpu.memory_space<vmem>>, vector<3x24x68xbf16>
    %c0_6 = arith.constant 0 : index
    %c0_7 = arith.constant 0 : index
    %2 = vector.load %arg3[%c0_6, %c0_7] : memref<1x68xf32, #tpu.memory_space<vmem>>, vector<1x68xf32>
    %cst = arith.constant 0.000000e+00 : bf16
    %3 = vector.broadcast %cst : bf16 to vector<2x8x1x8xbf16>
    %4 = vector.extract_strided_slice %0 {offsets = [0, 0, 0, 0], sizes = [2, 8, 7, 8], strides = [1, 1, 1, 1]} : vector<2x8x8x8xbf16> to vector<2x8x7x8xbf16>
    %5 = tpu.concatenate %3, %4 in 2 : vector<2x8x1x8xbf16>, vector<2x8x7x8xbf16> -> vector<2x8x8x8xbf16>
    %6 = vector.extract_strided_slice %0 {offsets = [0, 0, 1, 0], sizes = [2, 8, 7, 8], strides = [1, 1, 1, 1]} : vector<2x8x8x8xbf16> to vector<2x8x7x8xbf16>
    %7 = tpu.concatenate %6, %3 in 2 : vector<2x8x7x8xbf16>, vector<2x8x1x8xbf16> -> vector<2x8x8x8xbf16>
    %8 = tpu.concatenate %5, %0, %7 in 3 : vector<2x8x8x8xbf16>, vector<2x8x8x8xbf16>, vector<2x8x8x8xbf16> -> vector<2x8x8x24xbf16>
    %cst_8 = arith.constant 0.000000e+00 : bf16
    %9 = vector.broadcast %cst_8 : bf16 to vector<2x1x8x24xbf16>
    %10 = tpu.concatenate %9, %8, %9 in 1 : vector<2x1x8x24xbf16>, vector<2x8x8x24xbf16>, vector<2x1x8x24xbf16> -> vector<2x10x8x24xbf16>
    %11 = vector.extract_strided_slice %10 {offsets = [0, 0, 0, 0], sizes = [2, 8, 8, 24], strides = [1, 1, 1, 1]} : vector<2x10x8x24xbf16> to vector<2x8x8x24xbf16>
    %12 = vector.shape_cast %11 : vector<2x8x8x24xbf16> to vector<128x24xbf16>
    %13 = vector.extract_strided_slice %1 {offsets = [0, 0, 0], sizes = [1, 24, 68], strides = [1, 1, 1]} : vector<3x24x68xbf16> to vector<1x24x68xbf16>
    %14 = vector.shape_cast %13 : vector<1x24x68xbf16> to vector<24x68xbf16>
    %cst_9 = arith.constant dense<0.000000e+00> : vector<128x68xf32>
    %15 = tpu.matmul %12, %14, %cst_9 {dimension_numbers = #tpu.dot_dimension_numbers<[1], [0], [0], [1], [0, 0, 1, 1], [], []>} : vector<128x24xbf16>, vector<24x68xbf16>, vector<128x68xf32> -> vector<128x68xf32>
    %16 = vector.extract_strided_slice %10 {offsets = [0, 1, 0, 0], sizes = [2, 8, 8, 24], strides = [1, 1, 1, 1]} : vector<2x10x8x24xbf16> to vector<2x8x8x24xbf16>
    %17 = vector.shape_cast %16 : vector<2x8x8x24xbf16> to vector<128x24xbf16>
    %18 = vector.extract_strided_slice %1 {offsets = [1, 0, 0], sizes = [1, 24, 68], strides = [1, 1, 1]} : vector<3x24x68xbf16> to vector<1x24x68xbf16>
    %19 = vector.shape_cast %18 : vector<1x24x68xbf16> to vector<24x68xbf16>
    %cst_10 = arith.constant dense<0.000000e+00> : vector<128x68xf32>
    %20 = tpu.matmul %17, %19, %cst_10 {dimension_numbers = #tpu.dot_dimension_numbers<[1], [0], [0], [1], [0, 0, 1, 1], [], []>} : vector<128x24xbf16>, vector<24x68xbf16>, vector<128x68xf32> -> vector<128x68xf32>
    %21 = arith.addf %15, %20 : vector<128x68xf32>
    %22 = vector.extract_strided_slice %10 {offsets = [0, 2, 0, 0], sizes = [2, 8, 8, 24], strides = [1, 1, 1, 1]} : vector<2x10x8x24xbf16> to vector<2x8x8x24xbf16>
    %23 = vector.shape_cast %22 : vector<2x8x8x24xbf16> to vector<128x24xbf16>
    %24 = vector.extract_strided_slice %1 {offsets = [2, 0, 0], sizes = [1, 24, 68], strides = [1, 1, 1]} : vector<3x24x68xbf16> to vector<1x24x68xbf16>
    %25 = vector.shape_cast %24 : vector<1x24x68xbf16> to vector<24x68xbf16>
    %cst_11 = arith.constant dense<0.000000e+00> : vector<128x68xf32>
    %26 = tpu.matmul %23, %25, %cst_11 {dimension_numbers = #tpu.dot_dimension_numbers<[1], [0], [0], [1], [0, 0, 1, 1], [], []>} : vector<128x24xbf16>, vector<24x68xbf16>, vector<128x68xf32> -> vector<128x68xf32>
    %27 = arith.addf %21, %26 : vector<128x68xf32>
    %28 = vector.broadcast %2 : vector<1x68xf32> to vector<128x68xf32>
    %29 = arith.addf %27, %28 : vector<128x68xf32>
    %30 = vector.extract_strided_slice %29 {offsets = [0, 0], sizes = [128, 64], strides = [1, 1]} : vector<128x68xf32> to vector<128x64xf32>
    %cst_12 = arith.constant 0.000000e+00 : f32
    %31 = vector.broadcast %cst_12 : f32 to vector<128x64xf32>
    %32 = arith.maximumf %30, %31 : vector<128x64xf32>
    %33 = vector.shape_cast %32 : vector<128x64xf32> to vector<2x8x8x64xf32>
    %34 = arith.truncf %33 : vector<2x8x8x64xf32> to vector<2x8x8x64xbf16>
    %c0_13 = arith.constant 0 : index
    %c0_14 = arith.constant 0 : index
    %c0_15 = arith.constant 0 : index
    %c0_16 = arith.constant 0 : index
    %35 = vector.load %arg4[%c0_13, %c0_14, %c0_15, %c0_16] : memref<2x8x8x64xbf16, #tpu.memory_space<vmem>>, vector<2x8x8x64xbf16>
    tpu.vector_store %arg4[%c0_13, %c0_14, %c0_15, %c0_16], %34 {strides = array<i32>} : memref<2x8x8x64xbf16, #tpu.memory_space<vmem>>, vector<2x8x8x64xbf16>,
    %36 = vector.extract_strided_slice %29 {offsets = [0, 64], sizes = [128, 4], strides = [1, 1]} : vector<128x68xf32> to vector<128x4xf32>
    %37 = vector.shape_cast %36 : vector<128x4xf32> to vector<2x8x8x4xf32>
    %c0_17 = arith.constant 0 : index
    %c0_18 = arith.constant 0 : index
    %c0_19 = arith.constant 0 : index
    %c0_20 = arith.constant 0 : index
    %38 = vector.load %arg5[%c0_17, %c0_18, %c0_19, %c0_20] : memref<2x8x8x4xf32, #tpu.memory_space<vmem>>, vector<2x8x8x4xf32>
    tpu.vector_store %arg5[%c0_17, %c0_18, %c0_19, %c0_20], %37 {strides = array<i32>} : memref<2x8x8x4xf32, #tpu.memory_space<vmem>>, vector<2x8x8x4xf32>,
    return
  }
  func.func @transform_0(%arg0: i32) -> (i32, i32, i32, i32) {
    %c0_i32 = arith.constant 0 : i32
    %c0_i32_0 = arith.constant 0 : i32
    %c0_i32_1 = arith.constant 0 : i32
    %c0_i32_2 = arith.constant 0 : i32
    return %arg0, %c0_i32, %c0_i32_0, %c0_i32_1 : i32, i32, i32, i32
  }
  func.func @transform_1(%arg0: i32) -> (i32, i32, i32) {
    %c0_i32 = arith.constant 0 : i32
    %c0_i32_0 = arith.constant 0 : i32
    %c0_i32_1 = arith.constant 0 : i32
    %c0_i32_2 = arith.constant 0 : i32
    return %c0_i32, %c0_i32_0, %c0_i32_1 : i32, i32, i32
  }
  func.func @transform_2(%arg0: i32) -> (i32, i32) {
    %c0_i32 = arith.constant 0 : i32
    %c0_i32_0 = arith.constant 0 : i32
    %c0_i32_1 = arith.constant 0 : i32
    return %c0_i32, %c0_i32_0 : i32, i32
  }
  func.func @transform_3(%arg0: i32) -> (i32, i32, i32, i32) {
    %c0_i32 = arith.constant 0 : i32
    %c0_i32_0 = arith.constant 0 : i32
    %c0_i32_1 = arith.constant 0 : i32
    %c0_i32_2 = arith.constant 0 : i32
    return %arg0, %c0_i32, %c0_i32_0, %c0_i32_1 : i32, i32, i32, i32
  }
  func.func @transform_4(%arg0: i32) -> (i32, i32, i32, i32) {
    %c0_i32 = arith.constant 0 : i32
    %c0_i32_0 = arith.constant 0 : i32
    %c0_i32_1 = arith.constant 0 : i32
    %c0_i32_2 = arith.constant 0 : i32
    return %arg0, %c0_i32, %c0_i32_0, %c0_i32_1 : i32, i32, i32, i32
  }
}

module attributes {stable_mosaic.version = 11 : i64} {
  func.func @_altfilter_kernel(%arg0: i32, %arg1: memref<4x8x8x64xbf16, #tpu.memory_space<vmem>>, %arg2: memref<2x3x192x64xbf16, #tpu.memory_space<vmem>>, %arg3: memref<2x1x64xf32, #tpu.memory_space<vmem>>, %arg4: memref<2x3x192x64xbf16, #tpu.memory_space<vmem>>, %arg5: memref<2x1x64xf32, #tpu.memory_space<vmem>>, %arg6: memref<4x8x8x64xbf16, #tpu.memory_space<vmem>>) attributes {dimension_semantics = [#tpu.dimension_semantics<parallel>], iteration_bounds = array<i64: 1>, scalar_prefetch = 0 : i64, scratch_operands = 0 : i64, tpu.core_type = #tpu.core_type<tc>, window_params = [{transform_indices = @transform_0, window_bounds = array<i64: 4, 8, 8, 64>}, {pipeline_mode = #tpu.pipeline_mode<synchronous>, transform_indices = @transform_1, window_bounds = array<i64: 2, 3, 192, 64>}, {pipeline_mode = #tpu.pipeline_mode<synchronous>, transform_indices = @transform_2, window_bounds = array<i64: 2, 1, 64>}, {pipeline_mode = #tpu.pipeline_mode<synchronous>, transform_indices = @transform_3, window_bounds = array<i64: 2, 3, 192, 64>}, {pipeline_mode = #tpu.pipeline_mode<synchronous>, transform_indices = @transform_4, window_bounds = array<i64: 2, 1, 64>}, {transform_indices = @transform_5, window_bounds = array<i64: 4, 8, 8, 64>}]} {
    %c0 = arith.constant 0 : index
    %c0_0 = arith.constant 0 : index
    %c0_1 = arith.constant 0 : index
    %c0_2 = arith.constant 0 : index
    %0 = vector.load %arg1[%c0, %c0_0, %c0_1, %c0_2] : memref<4x8x8x64xbf16, #tpu.memory_space<vmem>>, vector<4x8x8x64xbf16>
    %c0_3 = arith.constant 0 : index
    %c0_4 = arith.constant 0 : index
    %c0_5 = arith.constant 0 : index
    %c0_6 = arith.constant 0 : index
    %1 = vector.load %arg2[%c0_3, %c0_4, %c0_5, %c0_6] : memref<2x3x192x64xbf16, #tpu.memory_space<vmem>>, vector<2x3x192x64xbf16>
    %c0_7 = arith.constant 0 : index
    %c0_8 = arith.constant 0 : index
    %c0_9 = arith.constant 0 : index
    %2 = vector.load %arg3[%c0_7, %c0_8, %c0_9] : memref<2x1x64xf32, #tpu.memory_space<vmem>>, vector<2x1x64xf32>
    %c0_10 = arith.constant 0 : index
    %c0_11 = arith.constant 0 : index
    %c0_12 = arith.constant 0 : index
    %c0_13 = arith.constant 0 : index
    %3 = vector.load %arg4[%c0_10, %c0_11, %c0_12, %c0_13] : memref<2x3x192x64xbf16, #tpu.memory_space<vmem>>, vector<2x3x192x64xbf16>
    %c0_14 = arith.constant 0 : index
    %c0_15 = arith.constant 0 : index
    %c0_16 = arith.constant 0 : index
    %4 = vector.load %arg5[%c0_14, %c0_15, %c0_16] : memref<2x1x64xf32, #tpu.memory_space<vmem>>, vector<2x1x64xf32>
    %5 = vector.extract_strided_slice %1 {offsets = [0, 0, 0, 0], sizes = [1, 3, 192, 64], strides = [1, 1, 1, 1]} : vector<2x3x192x64xbf16> to vector<1x3x192x64xbf16>
    %6 = vector.shape_cast %5 : vector<1x3x192x64xbf16> to vector<3x192x64xbf16>
    %7 = vector.extract_strided_slice %2 {offsets = [0, 0, 0], sizes = [1, 1, 64], strides = [1, 1, 1]} : vector<2x1x64xf32> to vector<1x1x64xf32>
    %8 = vector.shape_cast %7 : vector<1x1x64xf32> to vector<1x64xf32>
    %cst = arith.constant 0.000000e+00 : bf16
    %9 = vector.broadcast %cst : bf16 to vector<4x8x1x64xbf16>
    %10 = vector.extract_strided_slice %0 {offsets = [0, 0, 0, 0], sizes = [4, 8, 7, 64], strides = [1, 1, 1, 1]} : vector<4x8x8x64xbf16> to vector<4x8x7x64xbf16>
    %11 = tpu.concatenate %9, %10 in 2 : vector<4x8x1x64xbf16>, vector<4x8x7x64xbf16> -> vector<4x8x8x64xbf16>
    %12 = vector.extract_strided_slice %0 {offsets = [0, 0, 1, 0], sizes = [4, 8, 7, 64], strides = [1, 1, 1, 1]} : vector<4x8x8x64xbf16> to vector<4x8x7x64xbf16>
    %13 = tpu.concatenate %12, %9 in 2 : vector<4x8x7x64xbf16>, vector<4x8x1x64xbf16> -> vector<4x8x8x64xbf16>
    %14 = tpu.concatenate %11, %0, %13 in 3 : vector<4x8x8x64xbf16>, vector<4x8x8x64xbf16>, vector<4x8x8x64xbf16> -> vector<4x8x8x192xbf16>
    %cst_17 = arith.constant 0.000000e+00 : bf16
    %15 = vector.broadcast %cst_17 : bf16 to vector<4x1x8x192xbf16>
    %16 = tpu.concatenate %15, %14, %15 in 1 : vector<4x1x8x192xbf16>, vector<4x8x8x192xbf16>, vector<4x1x8x192xbf16> -> vector<4x10x8x192xbf16>
    %17 = vector.extract_strided_slice %16 {offsets = [0, 0, 0, 0], sizes = [4, 8, 8, 192], strides = [1, 1, 1, 1]} : vector<4x10x8x192xbf16> to vector<4x8x8x192xbf16>
    %18 = vector.shape_cast %17 : vector<4x8x8x192xbf16> to vector<256x192xbf16>
    %19 = vector.extract_strided_slice %6 {offsets = [0, 0, 0], sizes = [1, 192, 64], strides = [1, 1, 1]} : vector<3x192x64xbf16> to vector<1x192x64xbf16>
    %20 = vector.shape_cast %19 : vector<1x192x64xbf16> to vector<192x64xbf16>
    %cst_18 = arith.constant dense<0.000000e+00> : vector<256x64xf32>
    %21 = tpu.matmul %18, %20, %cst_18 {dimension_numbers = #tpu.dot_dimension_numbers<[1], [0], [0], [1], [0, 0, 1, 1], [], []>} : vector<256x192xbf16>, vector<192x64xbf16>, vector<256x64xf32> -> vector<256x64xf32>
    %22 = vector.extract_strided_slice %16 {offsets = [0, 1, 0, 0], sizes = [4, 8, 8, 192], strides = [1, 1, 1, 1]} : vector<4x10x8x192xbf16> to vector<4x8x8x192xbf16>
    %23 = vector.shape_cast %22 : vector<4x8x8x192xbf16> to vector<256x192xbf16>
    %24 = vector.extract_strided_slice %6 {offsets = [1, 0, 0], sizes = [1, 192, 64], strides = [1, 1, 1]} : vector<3x192x64xbf16> to vector<1x192x64xbf16>
    %25 = vector.shape_cast %24 : vector<1x192x64xbf16> to vector<192x64xbf16>
    %cst_19 = arith.constant dense<0.000000e+00> : vector<256x64xf32>
    %26 = tpu.matmul %23, %25, %cst_19 {dimension_numbers = #tpu.dot_dimension_numbers<[1], [0], [0], [1], [0, 0, 1, 1], [], []>} : vector<256x192xbf16>, vector<192x64xbf16>, vector<256x64xf32> -> vector<256x64xf32>
    %27 = arith.addf %21, %26 : vector<256x64xf32>
    %28 = vector.extract_strided_slice %16 {offsets = [0, 2, 0, 0], sizes = [4, 8, 8, 192], strides = [1, 1, 1, 1]} : vector<4x10x8x192xbf16> to vector<4x8x8x192xbf16>
    %29 = vector.shape_cast %28 : vector<4x8x8x192xbf16> to vector<256x192xbf16>
    %30 = vector.extract_strided_slice %6 {offsets = [2, 0, 0], sizes = [1, 192, 64], strides = [1, 1, 1]} : vector<3x192x64xbf16> to vector<1x192x64xbf16>
    %31 = vector.shape_cast %30 : vector<1x192x64xbf16> to vector<192x64xbf16>
    %cst_20 = arith.constant dense<0.000000e+00> : vector<256x64xf32>
    %32 = tpu.matmul %29, %31, %cst_20 {dimension_numbers = #tpu.dot_dimension_numbers<[1], [0], [0], [1], [0, 0, 1, 1], [], []>} : vector<256x192xbf16>, vector<192x64xbf16>, vector<256x64xf32> -> vector<256x64xf32>
    %33 = arith.addf %27, %32 : vector<256x64xf32>
    %34 = vector.broadcast %8 : vector<1x64xf32> to vector<256x64xf32>
    %35 = arith.addf %33, %34 : vector<256x64xf32>
    %cst_21 = arith.constant 0.000000e+00 : f32
    %36 = vector.broadcast %cst_21 : f32 to vector<256x64xf32>
    %37 = arith.maximumf %35, %36 : vector<256x64xf32>
    %38 = arith.truncf %37 : vector<256x64xf32> to vector<256x64xbf16>
    %39 = vector.extract_strided_slice %3 {offsets = [0, 0, 0, 0], sizes = [1, 3, 192, 64], strides = [1, 1, 1, 1]} : vector<2x3x192x64xbf16> to vector<1x3x192x64xbf16>
    %40 = vector.shape_cast %39 : vector<1x3x192x64xbf16> to vector<3x192x64xbf16>
    %41 = vector.extract_strided_slice %4 {offsets = [0, 0, 0], sizes = [1, 1, 64], strides = [1, 1, 1]} : vector<2x1x64xf32> to vector<1x1x64xf32>
    %42 = vector.shape_cast %41 : vector<1x1x64xf32> to vector<1x64xf32>
    %43 = vector.shape_cast %38 : vector<256x64xbf16> to vector<2x2x64x64xbf16>
    %cst_22 = arith.constant 0.000000e+00 : bf16
    %44 = vector.broadcast %cst_22 : bf16 to vector<2x1x64x64xbf16>
    %45 = vector.extract_strided_slice %43 {offsets = [0, 0, 0, 0], sizes = [2, 1, 64, 64], strides = [1, 1, 1, 1]} : vector<2x2x64x64xbf16> to vector<2x1x64x64xbf16>
    %46 = tpu.concatenate %44, %45 in 1 : vector<2x1x64x64xbf16>, vector<2x1x64x64xbf16> -> vector<2x2x64x64xbf16>
    %47 = vector.extract_strided_slice %43 {offsets = [0, 1, 0, 0], sizes = [2, 1, 64, 64], strides = [1, 1, 1, 1]} : vector<2x2x64x64xbf16> to vector<2x1x64x64xbf16>
    %48 = tpu.concatenate %47, %44 in 1 : vector<2x1x64x64xbf16>, vector<2x1x64x64xbf16> -> vector<2x2x64x64xbf16>
    %49 = tpu.concatenate %46, %43, %48 in 3 : vector<2x2x64x64xbf16>, vector<2x2x64x64xbf16>, vector<2x2x64x64xbf16> -> vector<2x2x64x192xbf16>
    %cst_23 = arith.constant 0.000000e+00 : bf16
    %50 = vector.broadcast %cst_23 : bf16 to vector<1x2x64x192xbf16>
    %51 = tpu.concatenate %50, %49, %50 in 0 : vector<1x2x64x192xbf16>, vector<2x2x64x192xbf16>, vector<1x2x64x192xbf16> -> vector<4x2x64x192xbf16>
    %52 = vector.extract_strided_slice %51 {offsets = [0, 0, 0, 0], sizes = [2, 2, 64, 192], strides = [1, 1, 1, 1]} : vector<4x2x64x192xbf16> to vector<2x2x64x192xbf16>
    %53 = vector.shape_cast %52 : vector<2x2x64x192xbf16> to vector<256x192xbf16>
    %54 = vector.extract_strided_slice %40 {offsets = [0, 0, 0], sizes = [1, 192, 64], strides = [1, 1, 1]} : vector<3x192x64xbf16> to vector<1x192x64xbf16>
    %55 = vector.shape_cast %54 : vector<1x192x64xbf16> to vector<192x64xbf16>
    %cst_24 = arith.constant dense<0.000000e+00> : vector<256x64xf32>
    %56 = tpu.matmul %53, %55, %cst_24 {dimension_numbers = #tpu.dot_dimension_numbers<[1], [0], [0], [1], [0, 0, 1, 1], [], []>} : vector<256x192xbf16>, vector<192x64xbf16>, vector<256x64xf32> -> vector<256x64xf32>
    %57 = vector.extract_strided_slice %51 {offsets = [1, 0, 0, 0], sizes = [2, 2, 64, 192], strides = [1, 1, 1, 1]} : vector<4x2x64x192xbf16> to vector<2x2x64x192xbf16>
    %58 = vector.shape_cast %57 : vector<2x2x64x192xbf16> to vector<256x192xbf16>
    %59 = vector.extract_strided_slice %40 {offsets = [1, 0, 0], sizes = [1, 192, 64], strides = [1, 1, 1]} : vector<3x192x64xbf16> to vector<1x192x64xbf16>
    %60 = vector.shape_cast %59 : vector<1x192x64xbf16> to vector<192x64xbf16>
    %cst_25 = arith.constant dense<0.000000e+00> : vector<256x64xf32>
    %61 = tpu.matmul %58, %60, %cst_25 {dimension_numbers = #tpu.dot_dimension_numbers<[1], [0], [0], [1], [0, 0, 1, 1], [], []>} : vector<256x192xbf16>, vector<192x64xbf16>, vector<256x64xf32> -> vector<256x64xf32>
    %62 = arith.addf %56, %61 : vector<256x64xf32>
    %63 = vector.extract_strided_slice %51 {offsets = [2, 0, 0, 0], sizes = [2, 2, 64, 192], strides = [1, 1, 1, 1]} : vector<4x2x64x192xbf16> to vector<2x2x64x192xbf16>
    %64 = vector.shape_cast %63 : vector<2x2x64x192xbf16> to vector<256x192xbf16>
    %65 = vector.extract_strided_slice %40 {offsets = [2, 0, 0], sizes = [1, 192, 64], strides = [1, 1, 1]} : vector<3x192x64xbf16> to vector<1x192x64xbf16>
    %66 = vector.shape_cast %65 : vector<1x192x64xbf16> to vector<192x64xbf16>
    %cst_26 = arith.constant dense<0.000000e+00> : vector<256x64xf32>
    %67 = tpu.matmul %64, %66, %cst_26 {dimension_numbers = #tpu.dot_dimension_numbers<[1], [0], [0], [1], [0, 0, 1, 1], [], []>} : vector<256x192xbf16>, vector<192x64xbf16>, vector<256x64xf32> -> vector<256x64xf32>
    %68 = arith.addf %62, %67 : vector<256x64xf32>
    %69 = vector.broadcast %42 : vector<1x64xf32> to vector<256x64xf32>
    %70 = arith.addf %68, %69 : vector<256x64xf32>
    %cst_27 = arith.constant 0.000000e+00 : f32
    %71 = vector.broadcast %cst_27 : f32 to vector<256x64xf32>
    %72 = arith.maximumf %70, %71 : vector<256x64xf32>
    %73 = arith.truncf %72 : vector<256x64xf32> to vector<256x64xbf16>
    %74 = vector.shape_cast %73 : vector<256x64xbf16> to vector<4x8x8x64xbf16>
    %75 = vector.extract_strided_slice %1 {offsets = [1, 0, 0, 0], sizes = [1, 3, 192, 64], strides = [1, 1, 1, 1]} : vector<2x3x192x64xbf16> to vector<1x3x192x64xbf16>
    %76 = vector.shape_cast %75 : vector<1x3x192x64xbf16> to vector<3x192x64xbf16>
    %77 = vector.extract_strided_slice %2 {offsets = [1, 0, 0], sizes = [1, 1, 64], strides = [1, 1, 1]} : vector<2x1x64xf32> to vector<1x1x64xf32>
    %78 = vector.shape_cast %77 : vector<1x1x64xf32> to vector<1x64xf32>
    %cst_28 = arith.constant 0.000000e+00 : bf16
    %79 = vector.broadcast %cst_28 : bf16 to vector<4x8x1x64xbf16>
    %80 = vector.extract_strided_slice %74 {offsets = [0, 0, 0, 0], sizes = [4, 8, 7, 64], strides = [1, 1, 1, 1]} : vector<4x8x8x64xbf16> to vector<4x8x7x64xbf16>
    %81 = tpu.concatenate %79, %80 in 2 : vector<4x8x1x64xbf16>, vector<4x8x7x64xbf16> -> vector<4x8x8x64xbf16>
    %82 = vector.extract_strided_slice %74 {offsets = [0, 0, 1, 0], sizes = [4, 8, 7, 64], strides = [1, 1, 1, 1]} : vector<4x8x8x64xbf16> to vector<4x8x7x64xbf16>
    %83 = tpu.concatenate %82, %79 in 2 : vector<4x8x7x64xbf16>, vector<4x8x1x64xbf16> -> vector<4x8x8x64xbf16>
    %84 = tpu.concatenate %81, %74, %83 in 3 : vector<4x8x8x64xbf16>, vector<4x8x8x64xbf16>, vector<4x8x8x64xbf16> -> vector<4x8x8x192xbf16>
    %cst_29 = arith.constant 0.000000e+00 : bf16
    %85 = vector.broadcast %cst_29 : bf16 to vector<4x1x8x192xbf16>
    %86 = tpu.concatenate %85, %84, %85 in 1 : vector<4x1x8x192xbf16>, vector<4x8x8x192xbf16>, vector<4x1x8x192xbf16> -> vector<4x10x8x192xbf16>
    %87 = vector.extract_strided_slice %86 {offsets = [0, 0, 0, 0], sizes = [4, 8, 8, 192], strides = [1, 1, 1, 1]} : vector<4x10x8x192xbf16> to vector<4x8x8x192xbf16>
    %88 = vector.shape_cast %87 : vector<4x8x8x192xbf16> to vector<256x192xbf16>
    %89 = vector.extract_strided_slice %76 {offsets = [0, 0, 0], sizes = [1, 192, 64], strides = [1, 1, 1]} : vector<3x192x64xbf16> to vector<1x192x64xbf16>
    %90 = vector.shape_cast %89 : vector<1x192x64xbf16> to vector<192x64xbf16>
    %cst_30 = arith.constant dense<0.000000e+00> : vector<256x64xf32>
    %91 = tpu.matmul %88, %90, %cst_30 {dimension_numbers = #tpu.dot_dimension_numbers<[1], [0], [0], [1], [0, 0, 1, 1], [], []>} : vector<256x192xbf16>, vector<192x64xbf16>, vector<256x64xf32> -> vector<256x64xf32>
    %92 = vector.extract_strided_slice %86 {offsets = [0, 1, 0, 0], sizes = [4, 8, 8, 192], strides = [1, 1, 1, 1]} : vector<4x10x8x192xbf16> to vector<4x8x8x192xbf16>
    %93 = vector.shape_cast %92 : vector<4x8x8x192xbf16> to vector<256x192xbf16>
    %94 = vector.extract_strided_slice %76 {offsets = [1, 0, 0], sizes = [1, 192, 64], strides = [1, 1, 1]} : vector<3x192x64xbf16> to vector<1x192x64xbf16>
    %95 = vector.shape_cast %94 : vector<1x192x64xbf16> to vector<192x64xbf16>
    %cst_31 = arith.constant dense<0.000000e+00> : vector<256x64xf32>
    %96 = tpu.matmul %93, %95, %cst_31 {dimension_numbers = #tpu.dot_dimension_numbers<[1], [0], [0], [1], [0, 0, 1, 1], [], []>} : vector<256x192xbf16>, vector<192x64xbf16>, vector<256x64xf32> -> vector<256x64xf32>
    %97 = arith.addf %91, %96 : vector<256x64xf32>
    %98 = vector.extract_strided_slice %86 {offsets = [0, 2, 0, 0], sizes = [4, 8, 8, 192], strides = [1, 1, 1, 1]} : vector<4x10x8x192xbf16> to vector<4x8x8x192xbf16>
    %99 = vector.shape_cast %98 : vector<4x8x8x192xbf16> to vector<256x192xbf16>
    %100 = vector.extract_strided_slice %76 {offsets = [2, 0, 0], sizes = [1, 192, 64], strides = [1, 1, 1]} : vector<3x192x64xbf16> to vector<1x192x64xbf16>
    %101 = vector.shape_cast %100 : vector<1x192x64xbf16> to vector<192x64xbf16>
    %cst_32 = arith.constant dense<0.000000e+00> : vector<256x64xf32>
    %102 = tpu.matmul %99, %101, %cst_32 {dimension_numbers = #tpu.dot_dimension_numbers<[1], [0], [0], [1], [0, 0, 1, 1], [], []>} : vector<256x192xbf16>, vector<192x64xbf16>, vector<256x64xf32> -> vector<256x64xf32>
    %103 = arith.addf %97, %102 : vector<256x64xf32>
    %104 = vector.broadcast %78 : vector<1x64xf32> to vector<256x64xf32>
    %105 = arith.addf %103, %104 : vector<256x64xf32>
    %cst_33 = arith.constant 0.000000e+00 : f32
    %106 = vector.broadcast %cst_33 : f32 to vector<256x64xf32>
    %107 = arith.maximumf %105, %106 : vector<256x64xf32>
    %108 = arith.truncf %107 : vector<256x64xf32> to vector<256x64xbf16>
    %109 = vector.extract_strided_slice %3 {offsets = [1, 0, 0, 0], sizes = [1, 3, 192, 64], strides = [1, 1, 1, 1]} : vector<2x3x192x64xbf16> to vector<1x3x192x64xbf16>
    %110 = vector.shape_cast %109 : vector<1x3x192x64xbf16> to vector<3x192x64xbf16>
    %111 = vector.extract_strided_slice %4 {offsets = [1, 0, 0], sizes = [1, 1, 64], strides = [1, 1, 1]} : vector<2x1x64xf32> to vector<1x1x64xf32>
    %112 = vector.shape_cast %111 : vector<1x1x64xf32> to vector<1x64xf32>
    %113 = vector.shape_cast %108 : vector<256x64xbf16> to vector<2x2x64x64xbf16>
    %cst_34 = arith.constant 0.000000e+00 : bf16
    %114 = vector.broadcast %cst_34 : bf16 to vector<2x1x64x64xbf16>
    %115 = vector.extract_strided_slice %113 {offsets = [0, 0, 0, 0], sizes = [2, 1, 64, 64], strides = [1, 1, 1, 1]} : vector<2x2x64x64xbf16> to vector<2x1x64x64xbf16>
    %116 = tpu.concatenate %114, %115 in 1 : vector<2x1x64x64xbf16>, vector<2x1x64x64xbf16> -> vector<2x2x64x64xbf16>
    %117 = vector.extract_strided_slice %113 {offsets = [0, 1, 0, 0], sizes = [2, 1, 64, 64], strides = [1, 1, 1, 1]} : vector<2x2x64x64xbf16> to vector<2x1x64x64xbf16>
    %118 = tpu.concatenate %117, %114 in 1 : vector<2x1x64x64xbf16>, vector<2x1x64x64xbf16> -> vector<2x2x64x64xbf16>
    %119 = tpu.concatenate %116, %113, %118 in 3 : vector<2x2x64x64xbf16>, vector<2x2x64x64xbf16>, vector<2x2x64x64xbf16> -> vector<2x2x64x192xbf16>
    %cst_35 = arith.constant 0.000000e+00 : bf16
    %120 = vector.broadcast %cst_35 : bf16 to vector<1x2x64x192xbf16>
    %121 = tpu.concatenate %120, %119, %120 in 0 : vector<1x2x64x192xbf16>, vector<2x2x64x192xbf16>, vector<1x2x64x192xbf16> -> vector<4x2x64x192xbf16>
    %122 = vector.extract_strided_slice %121 {offsets = [0, 0, 0, 0], sizes = [2, 2, 64, 192], strides = [1, 1, 1, 1]} : vector<4x2x64x192xbf16> to vector<2x2x64x192xbf16>
    %123 = vector.shape_cast %122 : vector<2x2x64x192xbf16> to vector<256x192xbf16>
    %124 = vector.extract_strided_slice %110 {offsets = [0, 0, 0], sizes = [1, 192, 64], strides = [1, 1, 1]} : vector<3x192x64xbf16> to vector<1x192x64xbf16>
    %125 = vector.shape_cast %124 : vector<1x192x64xbf16> to vector<192x64xbf16>
    %cst_36 = arith.constant dense<0.000000e+00> : vector<256x64xf32>
    %126 = tpu.matmul %123, %125, %cst_36 {dimension_numbers = #tpu.dot_dimension_numbers<[1], [0], [0], [1], [0, 0, 1, 1], [], []>} : vector<256x192xbf16>, vector<192x64xbf16>, vector<256x64xf32> -> vector<256x64xf32>
    %127 = vector.extract_strided_slice %121 {offsets = [1, 0, 0, 0], sizes = [2, 2, 64, 192], strides = [1, 1, 1, 1]} : vector<4x2x64x192xbf16> to vector<2x2x64x192xbf16>
    %128 = vector.shape_cast %127 : vector<2x2x64x192xbf16> to vector<256x192xbf16>
    %129 = vector.extract_strided_slice %110 {offsets = [1, 0, 0], sizes = [1, 192, 64], strides = [1, 1, 1]} : vector<3x192x64xbf16> to vector<1x192x64xbf16>
    %130 = vector.shape_cast %129 : vector<1x192x64xbf16> to vector<192x64xbf16>
    %cst_37 = arith.constant dense<0.000000e+00> : vector<256x64xf32>
    %131 = tpu.matmul %128, %130, %cst_37 {dimension_numbers = #tpu.dot_dimension_numbers<[1], [0], [0], [1], [0, 0, 1, 1], [], []>} : vector<256x192xbf16>, vector<192x64xbf16>, vector<256x64xf32> -> vector<256x64xf32>
    %132 = arith.addf %126, %131 : vector<256x64xf32>
    %133 = vector.extract_strided_slice %121 {offsets = [2, 0, 0, 0], sizes = [2, 2, 64, 192], strides = [1, 1, 1, 1]} : vector<4x2x64x192xbf16> to vector<2x2x64x192xbf16>
    %134 = vector.shape_cast %133 : vector<2x2x64x192xbf16> to vector<256x192xbf16>
    %135 = vector.extract_strided_slice %110 {offsets = [2, 0, 0], sizes = [1, 192, 64], strides = [1, 1, 1]} : vector<3x192x64xbf16> to vector<1x192x64xbf16>
    %136 = vector.shape_cast %135 : vector<1x192x64xbf16> to vector<192x64xbf16>
    %cst_38 = arith.constant dense<0.000000e+00> : vector<256x64xf32>
    %137 = tpu.matmul %134, %136, %cst_38 {dimension_numbers = #tpu.dot_dimension_numbers<[1], [0], [0], [1], [0, 0, 1, 1], [], []>} : vector<256x192xbf16>, vector<192x64xbf16>, vector<256x64xf32> -> vector<256x64xf32>
    %138 = arith.addf %132, %137 : vector<256x64xf32>
    %139 = vector.broadcast %112 : vector<1x64xf32> to vector<256x64xf32>
    %140 = arith.addf %138, %139 : vector<256x64xf32>
    %cst_39 = arith.constant 0.000000e+00 : f32
    %141 = vector.broadcast %cst_39 : f32 to vector<256x64xf32>
    %142 = arith.maximumf %140, %141 : vector<256x64xf32>
    %143 = arith.truncf %142 : vector<256x64xf32> to vector<256x64xbf16>
    %144 = vector.shape_cast %143 : vector<256x64xbf16> to vector<4x8x8x64xbf16>
    %c0_40 = arith.constant 0 : index
    %c0_41 = arith.constant 0 : index
    %c0_42 = arith.constant 0 : index
    %c0_43 = arith.constant 0 : index
    %145 = vector.load %arg6[%c0_40, %c0_41, %c0_42, %c0_43] : memref<4x8x8x64xbf16, #tpu.memory_space<vmem>>, vector<4x8x8x64xbf16>
    tpu.vector_store %arg6[%c0_40, %c0_41, %c0_42, %c0_43], %144 {strides = array<i32>} : memref<4x8x8x64xbf16, #tpu.memory_space<vmem>>, vector<4x8x8x64xbf16>,
    return
  }
  func.func @transform_0(%arg0: i32) -> (i32, i32, i32, i32) {
    %c0_i32 = arith.constant 0 : i32
    %c0_i32_0 = arith.constant 0 : i32
    %c0_i32_1 = arith.constant 0 : i32
    %c0_i32_2 = arith.constant 0 : i32
    return %arg0, %c0_i32, %c0_i32_0, %c0_i32_1 : i32, i32, i32, i32
  }
  func.func @transform_1(%arg0: i32) -> (i32, i32, i32, i32) {
    %c0_i32 = arith.constant 0 : i32
    %c0_i32_0 = arith.constant 0 : i32
    %c0_i32_1 = arith.constant 0 : i32
    %c0_i32_2 = arith.constant 0 : i32
    %c0_i32_3 = arith.constant 0 : i32
    return %c0_i32, %c0_i32_0, %c0_i32_1, %c0_i32_2 : i32, i32, i32, i32
  }
  func.func @transform_2(%arg0: i32) -> (i32, i32, i32) {
    %c0_i32 = arith.constant 0 : i32
    %c0_i32_0 = arith.constant 0 : i32
    %c0_i32_1 = arith.constant 0 : i32
    %c0_i32_2 = arith.constant 0 : i32
    return %c0_i32, %c0_i32_0, %c0_i32_1 : i32, i32, i32
  }
  func.func @transform_3(%arg0: i32) -> (i32, i32, i32, i32) {
    %c0_i32 = arith.constant 0 : i32
    %c0_i32_0 = arith.constant 0 : i32
    %c0_i32_1 = arith.constant 0 : i32
    %c0_i32_2 = arith.constant 0 : i32
    %c0_i32_3 = arith.constant 0 : i32
    return %c0_i32, %c0_i32_0, %c0_i32_1, %c0_i32_2 : i32, i32, i32, i32
  }
  func.func @transform_4(%arg0: i32) -> (i32, i32, i32) {
    %c0_i32 = arith.constant 0 : i32
    %c0_i32_0 = arith.constant 0 : i32
    %c0_i32_1 = arith.constant 0 : i32
    %c0_i32_2 = arith.constant 0 : i32
    return %c0_i32, %c0_i32_0, %c0_i32_1 : i32, i32, i32
  }
  func.func @transform_5(%arg0: i32) -> (i32, i32, i32, i32) {
    %c0_i32 = arith.constant 0 : i32
    %c0_i32_0 = arith.constant 0 : i32
    %c0_i32_1 = arith.constant 0 : i32
    %c0_i32_2 = arith.constant 0 : i32
    return %arg0, %c0_i32, %c0_i32_0, %c0_i32_1 : i32, i32, i32, i32
  }
}

module attributes {stable_mosaic.version = 11 : i64} {
  func.func @_conv3x3_kernel(%arg0: i32, %arg1: memref<2x8x8x64xbf16, #tpu.memory_space<vmem>>, %arg2: memref<3x192x256xbf16, #tpu.memory_space<vmem>>, %arg3: memref<1x256xf32, #tpu.memory_space<vmem>>, %arg4: memref<2x8x8x256xbf16, #tpu.memory_space<vmem>>) attributes {dimension_semantics = [#tpu.dimension_semantics<parallel>], iteration_bounds = array<i64: 2>, scalar_prefetch = 0 : i64, scratch_operands = 0 : i64, tpu.core_type = #tpu.core_type<tc>, window_params = [{transform_indices = @transform_0, window_bounds = array<i64: 2, 8, 8, 64>}, {pipeline_mode = #tpu.pipeline_mode<synchronous>, transform_indices = @transform_1, window_bounds = array<i64: 3, 192, 256>}, {pipeline_mode = #tpu.pipeline_mode<synchronous>, transform_indices = @transform_2, window_bounds = array<i64: 1, 256>}, {transform_indices = @transform_3, window_bounds = array<i64: 2, 8, 8, 256>}]} {
    %c0 = arith.constant 0 : index
    %c0_0 = arith.constant 0 : index
    %c0_1 = arith.constant 0 : index
    %c0_2 = arith.constant 0 : index
    %0 = vector.load %arg1[%c0, %c0_0, %c0_1, %c0_2] : memref<2x8x8x64xbf16, #tpu.memory_space<vmem>>, vector<2x8x8x64xbf16>
    %c0_3 = arith.constant 0 : index
    %c0_4 = arith.constant 0 : index
    %c0_5 = arith.constant 0 : index
    %1 = vector.load %arg2[%c0_3, %c0_4, %c0_5] : memref<3x192x256xbf16, #tpu.memory_space<vmem>>, vector<3x192x256xbf16>
    %c0_6 = arith.constant 0 : index
    %c0_7 = arith.constant 0 : index
    %2 = vector.load %arg3[%c0_6, %c0_7] : memref<1x256xf32, #tpu.memory_space<vmem>>, vector<1x256xf32>
    %cst = arith.constant 0.000000e+00 : bf16
    %3 = vector.broadcast %cst : bf16 to vector<2x8x1x64xbf16>
    %4 = vector.extract_strided_slice %0 {offsets = [0, 0, 0, 0], sizes = [2, 8, 7, 64], strides = [1, 1, 1, 1]} : vector<2x8x8x64xbf16> to vector<2x8x7x64xbf16>
    %5 = tpu.concatenate %3, %4 in 2 : vector<2x8x1x64xbf16>, vector<2x8x7x64xbf16> -> vector<2x8x8x64xbf16>
    %6 = vector.extract_strided_slice %0 {offsets = [0, 0, 1, 0], sizes = [2, 8, 7, 64], strides = [1, 1, 1, 1]} : vector<2x8x8x64xbf16> to vector<2x8x7x64xbf16>
    %7 = tpu.concatenate %6, %3 in 2 : vector<2x8x7x64xbf16>, vector<2x8x1x64xbf16> -> vector<2x8x8x64xbf16>
    %8 = tpu.concatenate %5, %0, %7 in 3 : vector<2x8x8x64xbf16>, vector<2x8x8x64xbf16>, vector<2x8x8x64xbf16> -> vector<2x8x8x192xbf16>
    %cst_8 = arith.constant 0.000000e+00 : bf16
    %9 = vector.broadcast %cst_8 : bf16 to vector<2x1x8x192xbf16>
    %10 = tpu.concatenate %9, %8, %9 in 1 : vector<2x1x8x192xbf16>, vector<2x8x8x192xbf16>, vector<2x1x8x192xbf16> -> vector<2x10x8x192xbf16>
    %11 = vector.extract_strided_slice %10 {offsets = [0, 0, 0, 0], sizes = [2, 8, 8, 192], strides = [1, 1, 1, 1]} : vector<2x10x8x192xbf16> to vector<2x8x8x192xbf16>
    %12 = vector.shape_cast %11 : vector<2x8x8x192xbf16> to vector<128x192xbf16>
    %13 = vector.extract_strided_slice %1 {offsets = [0, 0, 0], sizes = [1, 192, 256], strides = [1, 1, 1]} : vector<3x192x256xbf16> to vector<1x192x256xbf16>
    %14 = vector.shape_cast %13 : vector<1x192x256xbf16> to vector<192x256xbf16>
    %cst_9 = arith.constant dense<0.000000e+00> : vector<128x256xf32>
    %15 = tpu.matmul %12, %14, %cst_9 {dimension_numbers = #tpu.dot_dimension_numbers<[1], [0], [0], [1], [0, 0, 1, 1], [], []>} : vector<128x192xbf16>, vector<192x256xbf16>, vector<128x256xf32> -> vector<128x256xf32>
    %16 = vector.extract_strided_slice %10 {offsets = [0, 1, 0, 0], sizes = [2, 8, 8, 192], strides = [1, 1, 1, 1]} : vector<2x10x8x192xbf16> to vector<2x8x8x192xbf16>
    %17 = vector.shape_cast %16 : vector<2x8x8x192xbf16> to vector<128x192xbf16>
    %18 = vector.extract_strided_slice %1 {offsets = [1, 0, 0], sizes = [1, 192, 256], strides = [1, 1, 1]} : vector<3x192x256xbf16> to vector<1x192x256xbf16>
    %19 = vector.shape_cast %18 : vector<1x192x256xbf16> to vector<192x256xbf16>
    %cst_10 = arith.constant dense<0.000000e+00> : vector<128x256xf32>
    %20 = tpu.matmul %17, %19, %cst_10 {dimension_numbers = #tpu.dot_dimension_numbers<[1], [0], [0], [1], [0, 0, 1, 1], [], []>} : vector<128x192xbf16>, vector<192x256xbf16>, vector<128x256xf32> -> vector<128x256xf32>
    %21 = arith.addf %15, %20 : vector<128x256xf32>
    %22 = vector.extract_strided_slice %10 {offsets = [0, 2, 0, 0], sizes = [2, 8, 8, 192], strides = [1, 1, 1, 1]} : vector<2x10x8x192xbf16> to vector<2x8x8x192xbf16>
    %23 = vector.shape_cast %22 : vector<2x8x8x192xbf16> to vector<128x192xbf16>
    %24 = vector.extract_strided_slice %1 {offsets = [2, 0, 0], sizes = [1, 192, 256], strides = [1, 1, 1]} : vector<3x192x256xbf16> to vector<1x192x256xbf16>
    %25 = vector.shape_cast %24 : vector<1x192x256xbf16> to vector<192x256xbf16>
    %cst_11 = arith.constant dense<0.000000e+00> : vector<128x256xf32>
    %26 = tpu.matmul %23, %25, %cst_11 {dimension_numbers = #tpu.dot_dimension_numbers<[1], [0], [0], [1], [0, 0, 1, 1], [], []>} : vector<128x192xbf16>, vector<192x256xbf16>, vector<128x256xf32> -> vector<128x256xf32>
    %27 = arith.addf %21, %26 : vector<128x256xf32>
    %28 = vector.broadcast %2 : vector<1x256xf32> to vector<128x256xf32>
    %29 = arith.addf %27, %28 : vector<128x256xf32>
    %cst_12 = arith.constant 0.000000e+00 : f32
    %30 = vector.broadcast %cst_12 : f32 to vector<128x256xf32>
    %31 = arith.maximumf %29, %30 : vector<128x256xf32>
    %32 = vector.shape_cast %31 : vector<128x256xf32> to vector<2x8x8x256xf32>
    %33 = arith.truncf %32 : vector<2x8x8x256xf32> to vector<2x8x8x256xbf16>
    %c0_13 = arith.constant 0 : index
    %c0_14 = arith.constant 0 : index
    %c0_15 = arith.constant 0 : index
    %c0_16 = arith.constant 0 : index
    %34 = vector.load %arg4[%c0_13, %c0_14, %c0_15, %c0_16] : memref<2x8x8x256xbf16, #tpu.memory_space<vmem>>, vector<2x8x8x256xbf16>
    tpu.vector_store %arg4[%c0_13, %c0_14, %c0_15, %c0_16], %33 {strides = array<i32>} : memref<2x8x8x256xbf16, #tpu.memory_space<vmem>>, vector<2x8x8x256xbf16>,
    return
  }
  func.func @transform_0(%arg0: i32) -> (i32, i32, i32, i32) {
    %c0_i32 = arith.constant 0 : i32
    %c0_i32_0 = arith.constant 0 : i32
    %c0_i32_1 = arith.constant 0 : i32
    %c0_i32_2 = arith.constant 0 : i32
    return %arg0, %c0_i32, %c0_i32_0, %c0_i32_1 : i32, i32, i32, i32
  }
  func.func @transform_1(%arg0: i32) -> (i32, i32, i32) {
    %c0_i32 = arith.constant 0 : i32
    %c0_i32_0 = arith.constant 0 : i32
    %c0_i32_1 = arith.constant 0 : i32
    %c0_i32_2 = arith.constant 0 : i32
    return %c0_i32, %c0_i32_0, %c0_i32_1 : i32, i32, i32
  }
  func.func @transform_2(%arg0: i32) -> (i32, i32) {
    %c0_i32 = arith.constant 0 : i32
    %c0_i32_0 = arith.constant 0 : i32
    %c0_i32_1 = arith.constant 0 : i32
    return %c0_i32, %c0_i32_0 : i32, i32
  }
  func.func @transform_3(%arg0: i32) -> (i32, i32, i32, i32) {
    %c0_i32 = arith.constant 0 : i32
    %c0_i32_0 = arith.constant 0 : i32
    %c0_i32_1 = arith.constant 0 : i32
    %c0_i32_2 = arith.constant 0 : i32
    return %arg0, %c0_i32, %c0_i32_0, %c0_i32_1 : i32, i32, i32, i32
  }
}

module attributes {stable_mosaic.version = 11 : i64} {
  func.func @_res_kernel(%arg0: i32, %arg1: memref<2x16x16x64xbf16, #tpu.memory_space<vmem>>, %arg2: memref<2x16x16x1xf32, #tpu.memory_space<vmem>>, %arg3: memref<3x192x1xbf16, #tpu.memory_space<vmem>>, %arg4: memref<1x1xf32, #tpu.memory_space<vmem>>, %arg5: memref<2x16x16x1xf32, #tpu.memory_space<vmem>>) attributes {dimension_semantics = [#tpu.dimension_semantics<parallel>], iteration_bounds = array<i64: 2>, scalar_prefetch = 0 : i64, scratch_operands = 0 : i64, tpu.core_type = #tpu.core_type<tc>, window_params = [{transform_indices = @transform_0, window_bounds = array<i64: 2, 16, 16, 64>}, {transform_indices = @transform_1, window_bounds = array<i64: 2, 16, 16, 1>}, {pipeline_mode = #tpu.pipeline_mode<synchronous>, transform_indices = @transform_2, window_bounds = array<i64: 3, 192, 1>}, {pipeline_mode = #tpu.pipeline_mode<synchronous>, transform_indices = @transform_3, window_bounds = array<i64: 1, 1>}, {transform_indices = @transform_4, window_bounds = array<i64: 2, 16, 16, 1>}]} {
    %c0 = arith.constant 0 : index
    %c0_0 = arith.constant 0 : index
    %c0_1 = arith.constant 0 : index
    %c0_2 = arith.constant 0 : index
    %0 = vector.load %arg1[%c0, %c0_0, %c0_1, %c0_2] : memref<2x16x16x64xbf16, #tpu.memory_space<vmem>>, vector<2x16x16x64xbf16>
    %c0_3 = arith.constant 0 : index
    %c0_4 = arith.constant 0 : index
    %c0_5 = arith.constant 0 : index
    %1 = vector.load %arg3[%c0_3, %c0_4, %c0_5] : memref<3x192x1xbf16, #tpu.memory_space<vmem>>, vector<3x192x1xbf16>
    %c0_6 = arith.constant 0 : index
    %c0_7 = arith.constant 0 : index
    %2 = vector.load %arg4[%c0_6, %c0_7] : memref<1x1xf32, #tpu.memory_space<vmem>>, vector<1x1xf32>
    %cst = arith.constant 0.000000e+00 : bf16
    %3 = vector.broadcast %cst : bf16 to vector<2x16x1x64xbf16>
    %4 = vector.extract_strided_slice %0 {offsets = [0, 0, 0, 0], sizes = [2, 16, 15, 64], strides = [1, 1, 1, 1]} : vector<2x16x16x64xbf16> to vector<2x16x15x64xbf16>
    %5 = tpu.concatenate %3, %4 in 2 : vector<2x16x1x64xbf16>, vector<2x16x15x64xbf16> -> vector<2x16x16x64xbf16>
    %6 = vector.extract_strided_slice %0 {offsets = [0, 0, 1, 0], sizes = [2, 16, 15, 64], strides = [1, 1, 1, 1]} : vector<2x16x16x64xbf16> to vector<2x16x15x64xbf16>
    %7 = tpu.concatenate %6, %3 in 2 : vector<2x16x15x64xbf16>, vector<2x16x1x64xbf16> -> vector<2x16x16x64xbf16>
    %8 = tpu.concatenate %5, %0, %7 in 3 : vector<2x16x16x64xbf16>, vector<2x16x16x64xbf16>, vector<2x16x16x64xbf16> -> vector<2x16x16x192xbf16>
    %cst_8 = arith.constant 0.000000e+00 : bf16
    %9 = vector.broadcast %cst_8 : bf16 to vector<2x1x16x192xbf16>
    %10 = tpu.concatenate %9, %8, %9 in 1 : vector<2x1x16x192xbf16>, vector<2x16x16x192xbf16>, vector<2x1x16x192xbf16> -> vector<2x18x16x192xbf16>
    %11 = vector.extract_strided_slice %10 {offsets = [0, 0, 0, 0], sizes = [2, 16, 16, 192], strides = [1, 1, 1, 1]} : vector<2x18x16x192xbf16> to vector<2x16x16x192xbf16>
    %12 = vector.shape_cast %11 : vector<2x16x16x192xbf16> to vector<512x192xbf16>
    %13 = vector.extract_strided_slice %1 {offsets = [0, 0, 0], sizes = [1, 192, 1], strides = [1, 1, 1]} : vector<3x192x1xbf16> to vector<1x192x1xbf16>
    %14 = vector.shape_cast %13 : vector<1x192x1xbf16> to vector<192x1xbf16>
    %cst_9 = arith.constant dense<0.000000e+00> : vector<512x1xf32>
    %15 = tpu.matmul %12, %14, %cst_9 {dimension_numbers = #tpu.dot_dimension_numbers<[1], [0], [0], [1], [0, 0, 1, 1], [], []>} : vector<512x192xbf16>, vector<192x1xbf16>, vector<512x1xf32> -> vector<512x1xf32>
    %16 = vector.extract_strided_slice %10 {offsets = [0, 1, 0, 0], sizes = [2, 16, 16, 192], strides = [1, 1, 1, 1]} : vector<2x18x16x192xbf16> to vector<2x16x16x192xbf16>
    %17 = vector.shape_cast %16 : vector<2x16x16x192xbf16> to vector<512x192xbf16>
    %18 = vector.extract_strided_slice %1 {offsets = [1, 0, 0], sizes = [1, 192, 1], strides = [1, 1, 1]} : vector<3x192x1xbf16> to vector<1x192x1xbf16>
    %19 = vector.shape_cast %18 : vector<1x192x1xbf16> to vector<192x1xbf16>
    %cst_10 = arith.constant dense<0.000000e+00> : vector<512x1xf32>
    %20 = tpu.matmul %17, %19, %cst_10 {dimension_numbers = #tpu.dot_dimension_numbers<[1], [0], [0], [1], [0, 0, 1, 1], [], []>} : vector<512x192xbf16>, vector<192x1xbf16>, vector<512x1xf32> -> vector<512x1xf32>
    %21 = arith.addf %15, %20 : vector<512x1xf32>
    %22 = vector.extract_strided_slice %10 {offsets = [0, 2, 0, 0], sizes = [2, 16, 16, 192], strides = [1, 1, 1, 1]} : vector<2x18x16x192xbf16> to vector<2x16x16x192xbf16>
    %23 = vector.shape_cast %22 : vector<2x16x16x192xbf16> to vector<512x192xbf16>
    %24 = vector.extract_strided_slice %1 {offsets = [2, 0, 0], sizes = [1, 192, 1], strides = [1, 1, 1]} : vector<3x192x1xbf16> to vector<1x192x1xbf16>
    %25 = vector.shape_cast %24 : vector<1x192x1xbf16> to vector<192x1xbf16>
    %cst_11 = arith.constant dense<0.000000e+00> : vector<512x1xf32>
    %26 = tpu.matmul %23, %25, %cst_11 {dimension_numbers = #tpu.dot_dimension_numbers<[1], [0], [0], [1], [0, 0, 1, 1], [], []>} : vector<512x192xbf16>, vector<192x1xbf16>, vector<512x1xf32> -> vector<512x1xf32>
    %27 = arith.addf %21, %26 : vector<512x1xf32>
    %28 = vector.broadcast %2 : vector<1x1xf32> to vector<512x1xf32>
    %29 = arith.addf %27, %28 : vector<512x1xf32>
    %30 = vector.shape_cast %29 : vector<512x1xf32> to vector<2x16x16x1xf32>
    %c0_12 = arith.constant 0 : index
    %c0_13 = arith.constant 0 : index
    %c0_14 = arith.constant 0 : index
    %c0_15 = arith.constant 0 : index
    %31 = vector.load %arg2[%c0_12, %c0_13, %c0_14, %c0_15] : memref<2x16x16x1xf32, #tpu.memory_space<vmem>>, vector<2x16x16x1xf32>
    %32 = arith.addf %30, %31 : vector<2x16x16x1xf32>
    %c0_16 = arith.constant 0 : index
    %c0_17 = arith.constant 0 : index
    %c0_18 = arith.constant 0 : index
    %c0_19 = arith.constant 0 : index
    %33 = vector.load %arg5[%c0_16, %c0_17, %c0_18, %c0_19] : memref<2x16x16x1xf32, #tpu.memory_space<vmem>>, vector<2x16x16x1xf32>
    tpu.vector_store %arg5[%c0_16, %c0_17, %c0_18, %c0_19], %32 {strides = array<i32>} : memref<2x16x16x1xf32, #tpu.memory_space<vmem>>, vector<2x16x16x1xf32>,
    return
  }
  func.func @transform_0(%arg0: i32) -> (i32, i32, i32, i32) {
    %c0_i32 = arith.constant 0 : i32
    %c0_i32_0 = arith.constant 0 : i32
    %c0_i32_1 = arith.constant 0 : i32
    %c0_i32_2 = arith.constant 0 : i32
    return %arg0, %c0_i32, %c0_i32_0, %c0_i32_1 : i32, i32, i32, i32
  }
  func.func @transform_1(%arg0: i32) -> (i32, i32, i32, i32) {
    %c0_i32 = arith.constant 0 : i32
    %c0_i32_0 = arith.constant 0 : i32
    %c0_i32_1 = arith.constant 0 : i32
    %c0_i32_2 = arith.constant 0 : i32
    return %arg0, %c0_i32, %c0_i32_0, %c0_i32_1 : i32, i32, i32, i32
  }
  func.func @transform_2(%arg0: i32) -> (i32, i32, i32) {
    %c0_i32 = arith.constant 0 : i32
    %c0_i32_0 = arith.constant 0 : i32
    %c0_i32_1 = arith.constant 0 : i32
    %c0_i32_2 = arith.constant 0 : i32
    return %c0_i32, %c0_i32_0, %c0_i32_1 : i32, i32, i32
  }
  func.func @transform_3(%arg0: i32) -> (i32, i32) {
    %c0_i32 = arith.constant 0 : i32
    %c0_i32_0 = arith.constant 0 : i32
    %c0_i32_1 = arith.constant 0 : i32
    return %c0_i32, %c0_i32_0 : i32, i32
  }
  func.func @transform_4(%arg0: i32) -> (i32, i32, i32, i32) {
    %c0_i32 = arith.constant 0 : i32
    %c0_i32_0 = arith.constant 0 : i32
    %c0_i32_1 = arith.constant 0 : i32
    %c0_i32_2 = arith.constant 0 : i32
    return %arg0, %c0_i32, %c0_i32_0, %c0_i32_1 : i32, i32, i32, i32
  }
}

</mosaic_0001>

<llo_original>
// kernel: net2x_forward.8
$region0: #{net2x_forward.8}
  #allocation0 [shape = 'u32[]', space=smem, size = 0x4, offset = 0x4, fixed_abs, tag = 'smem constant byte address 0x4 - core index']
  #allocation1 [shape = 'u32[72,128]{1,0:T(1,128)}', space=vmem, size = 0x9000, scoped, tag = 'internal scratch']
  %s0 = inlined_call_operand.vmem [shape: bf16[4,8,8,8], index: 0, kind: input, shape index: {}]
  %s1 = inlined_call_operand.vmem [shape: bf16[3,24,68], index: 1, kind: input, shape index: {}]
  %s2 = inlined_call_operand.vmem [shape: f32[1,68], index: 2, kind: input, shape index: {}]
  %s3 = inlined_call_operand.vmem [shape: bf16[4,8,8,64], index: 3, kind: output, shape index: {0}]
  %s4 = inlined_call_operand.vmem [shape: f32[4,8,8,4], index: 4, kind: output, shape index: {1}]
  %5 = xla_tuple %s3, %s4
  %s6 = sld [smem:[#allocation0]]
  $region53: #{net2x_forward.8} parent=0
    _
  %s8 = ssub.s32 1, %s6
  %s9 = scalar_select 0, %s8, %s6
  loop: start=0, step=1, limit=4
  $region2: #{net2x_forward.8} parent=0 // loop_pre_header
    _
  $region3: #{net2x_forward.8} parent=0 // loop_header
    %s11 = sphi 0, %s15
    %p12 = scmp.ge.s32.totalorder %s11, 4
    %s21 = sphi 0, %s23
    %s24 = sphi 0, %s21
    %s25 = sphi 0, %s24
    %s41 = sphi 0, %s25
    %s45 = sphi 0, %s45
    %s47 = sphi 0, %s45
    %s48 = sphi 0, %s47
    %s62 = sphi 0, %s48
    %s66 = sphi 0, %s66
    %s68 = sphi 0, %s66
    %s69 = sphi 0, %s68
    %s83 = sphi 0, %s69
    %s89 = sphi 0, %s91
    %s92 = sphi 0, %s89
    %s93 = sphi 0, %s92
    %s109 = sphi 0, %s93
    %s115 = sphi 0, %s117
    %s118 = sphi 0, %s115
    %s119 = sphi 0, %s118
    %s135 = sphi 0, %s119
  $region4: #{net2x_forward.8} parent=0 // loop_header_branch
    %14 = sbr.rel (%p12) target = $region8
  $region5: #{net2x_forward.8} parent=0 // loop_body
    %s16 = ssub.s32 %s11, 1
    %s17 = ssub.s32 %s11, 2
    %s18 = sadd.s32 %s11, 1
    %s19 = ssub.s32 %s11, %s18
    %p20 = scmp.eq.s32.totalorder %s19, 0
    %s22 = sadd.s32 %s21, 1
    %s23 = scalar_select %p20, %s21, %s22
    %p26 = pneg %p20
    %p27 = scmp.eq.s32.totalorder %s11, 1
    %p28 = por %p26, %p27
    %p29 = scmp.ne.s32.totalorder %s21, %s24
    %p30 = scmp.eq.s32.totalorder %s11, 0
    %p31 = por %p29, %p30
    %p32 = scmp.ne.s32.totalorder %s21, %s24
    %p33 = scmp.eq.s32.totalorder %s16, 1
    %p34 = por %p32, %p33
    %p35 = scmp.ne.s32.totalorder %s24, %s25
    %p36 = scmp.eq.s32.totalorder %s16, 0
    %p37 = por %p35, %p36
    %p38 = scmp.ne.s32.totalorder %s24, %s25
    %p39 = scmp.eq.s32.totalorder %s17, 1
    %p40 = por %p38, %p39
    %p42 = scmp.ne.s32.totalorder %s25, %s41
    %p43 = scmp.eq.s32.totalorder %s17, 0
    %p44 = por %p42, %p43
    %s46 = sadd.s32 %s45, 1
    %p49 = scmp.eq.s32.totalorder %s11, 1
    %p50 = scmp.ne.s32.totalorder %s45, %s47
    %p51 = scmp.eq.s32.totalorder %s11, 0
    %p52 = por %p50, %p51
    %p53 = scmp.ne.s32.totalorder %s45, %s47
    %p54 = scmp.eq.s32.totalorder %s16, 1
    %p55 = por %p53, %p54
    %p56 = scmp.ne.s32.totalorder %s47, %s48
    %p57 = scmp.eq.s32.totalorder %s16, 0
    %p58 = por %p56, %p57
    %p59 = scmp.ne.s32.totalorder %s47, %s48
    %p60 = scmp.eq.s32.totalorder %s17, 1
    %p61 = por %p59, %p60
    %p63 = scmp.ne.s32.totalorder %s48, %s62
    %p64 = scmp.eq.s32.totalorder %s17, 0
    %p65 = por %p63, %p64
    %s67 = sadd.s32 %s66, 1
    %p70 = scmp.eq.s32.totalorder %s11, 1
    %p71 = scmp.ne.s32.totalorder %s66, %s68
    %p72 = scmp.eq.s32.totalorder %s11, 0
    %p73 = por %p71, %p72
    %p74 = scmp.ne.s32.totalorder %s66, %s68
    %p75 = scmp.eq.s32.totalorder %s16, 1
    %p76 = por %p74, %p75
    %p77 = scmp.ne.s32.totalorder %s68, %s69
    %p78 = scmp.eq.s32.totalorder %s16, 0
    %p79 = por %p77, %p78
    %p80 = scmp.ne.s32.totalorder %s68, %s69
    %p81 = scmp.eq.s32.totalorder %s17, 1
    %p82 = por %p80, %p81
    %p84 = scmp.ne.s32.totalorder %s69, %s83
    %p85 = scmp.eq.s32.totalorder %s17, 0
    %p86 = por %p84, %p85
    %s87 = ssub.s32 %s11, %s18
    %p88 = scmp.eq.s32.totalorder %s87, 0
    %s90 = sadd.s32 %s89, 1
    %s91 = scalar_select %p88, %s89, %s90
    %p94 = pneg %p88
    %p95 = scmp.eq.s32.totalorder %s11, 1
    %p96 = por %p94, %p95
    %p97 = scmp.ne.s32.totalorder %s89, %s92
    %p98 = scmp.eq.s32.totalorder %s11, 0
    %p99 = por %p97, %p98
    %p100 = scmp.ne.s32.totalorder %s89, %s92
    %p101 = scmp.eq.s32.totalorder %s16, 1
    %p102 = por %p100, %p101
    %p103 = scmp.ne.s32.totalorder %s92, %s93
    %p104 = scmp.eq.s32.totalorder %s16, 0
    %p105 = por %p103, %p104
    %p106 = scmp.ne.s32.totalorder %s92, %s93
    %p107 = scmp.eq.s32.totalorder %s17, 1
    %p108 = por %p106, %p107
    %p110 = scmp.ne.s32.totalorder %s93, %s109
    %p111 = scmp.eq.s32.totalorder %s17, 0
    %p112 = por %p110, %p111
    %s113 = ssub.s32 %s11, %s18
    %p114 = scmp.eq.s32.totalorder %s113, 0
    %s116 = sadd.s32 %s115, 1
    %s117 = scalar_select %p114, %s115, %s116
    %p120 = pneg %p114
    %p121 = scmp.eq.s32.totalorder %s11, 1
    %p122 = por %p120, %p121
    %p123 = scmp.ne.s32.totalorder %s115, %s118
    %p124 = scmp.eq.s32.totalorder %s11, 0
    %p125 = por %p123, %p124
    %p126 = scmp.ne.s32.totalorder %s115, %s118
    %p127 = scmp.eq.s32.totalorder %s16, 1
    %p128 = por %p126, %p127
    %p129 = scmp.ne.s32.totalorder %s118, %s119
    %p130 = scmp.eq.s32.totalorder %s16, 0
    %p131 = por %p129, %p130
    %p132 = scmp.ne.s32.totalorder %s118, %s119
    %p133 = scmp.eq.s32.totalorder %s17, 1
    %p134 = por %p132, %p133
    %p136 = scmp.ne.s32.totalorder %s119, %s135
    %p137 = scmp.eq.s32.totalorder %s17, 0
    %p138 = por %p136, %p137
    %p139 = scmp.le.s32.totalorder 1, %s11
    %p140 = scmp.lt.s32.totalorder %s11, 3
    %p141 = pnand %p139, %p140
    %p142 = pneg %p141
    // Predicated region
    $region9: #{net2x_forward.8} parent=5 // pred_check
      _
    $region10: #{net2x_forward.8} parent=5 // pred_check_branch
      %144 = sbr.rel (%p141) target = $region12
    $region11: #{net2x_forward.8} parent=5 // pred_region
      %s145 = ssub.s32 %s11, 1
      // Predicated region
      $region13: #{net2x_forward.8} parent=11 // pred_check
        %p146 = pneg %p58
      $region14: #{net2x_forward.8} parent=11 // pred_check_branch
        %148 = sbr.rel (%p146) target = $region16
      $region15: #{net2x_forward.8} parent=11 // pred_region
        _
      $region16: #{net2x_forward.8} parent=11 // pred_fallthru
        _
      // Predicated region
      $region17: #{net2x_forward.8} parent=11 // pred_check
        %p149 = pneg %p79
      $region18: #{net2x_forward.8} parent=11 // pred_check_branch
        %151 = sbr.rel (%p149) target = $region20
      $region19: #{net2x_forward.8} parent=11 // pred_region
        _
      $region20: #{net2x_forward.8} parent=11 // pred_fallthru
        _
    $region12: #{net2x_forward.8} parent=5 // pred_fallthru
      _
    %p152 = scmp.lt.s32.totalorder %s11, 2
    // Predicated region
    $region21: #{net2x_forward.8} parent=5 // pred_check
      %p153 = pneg %p152
    $region22: #{net2x_forward.8} parent=5 // pred_check_branch
      %155 = sbr.rel (%p153) target = $region24
    $region23: #{net2x_forward.8} parent=5 // pred_region
      // Predicated region
      $region25: #{net2x_forward.8} parent=23 // pred_check
        %p156 = pneg %p31
      $region26: #{net2x_forward.8} parent=23 // pred_check_branch
        %158 = sbr.rel (%p156) target = $region28
      $region27: #{net2x_forward.8} parent=23 // pred_region
        %s159 = smul.u32 2, %s11
        %p160 = scmp.lt.s32.totalorder %s159, 3
        %s161 = scalar_select %p160, %s159, 3
        %s162 = smul.addr %s161, 8
        %s163 = smul.addr %s162, 4
        %s164 = scalar_lea.vmem %s0, %s163
        %s165 = smul.u32 2, %s11
      $region28: #{net2x_forward.8} parent=23 // pred_fallthru
        _
    $region24: #{net2x_forward.8} parent=5 // pred_fallthru
      _
    %p166 = scmp.le.s32.totalorder 1, %s11
    %p167 = scmp.lt.s32.totalorder %s11, 3
    %p168 = pnand %p166, %p167
    %p169 = pneg %p168
    // Predicated region
    $region29: #{net2x_forward.8} parent=5 // pred_check
      _
    $region30: #{net2x_forward.8} parent=5 // pred_check_branch
      %171 = sbr.rel (%p168) target = $region32
    $region31: #{net2x_forward.8} parent=5 // pred_region
      %s172 = ssub.s32 %s11, 1
      %s173 = smul.u32 2, %s16
      %p174 = scmp.lt.s32.totalorder %s173, 3
      %s175 = scalar_select %p174, %s173, 3
      %s176 = smul.addr %s175, 8
      %s177 = smul.addr %s176, 4
      %s178 = scalar_lea.vmem %s0, %s177
      %p179 = pneg %p37
      %p180 = pneg %p34
      %p181 = pneg %p58
      %p182 = pneg %p55
      %p183 = pneg %p79
      %p184 = pneg %p76
      %p185 = pneg %p105
      %p186 = pneg %p102
      %s187 = smul.u32 2, %s16
      %p188 = scmp.lt.s32.totalorder %s187, 3
      %s189 = scalar_select %p188, %s187, 3
      %s190 = smul.addr %s189, 8
      %s191 = smul.addr %s190, 4
      %s192 = scalar_lea.vmem %s3, %s191
      %p193 = pneg %p131
      %p194 = pneg %p128
      %s195 = smul.u32 2, %s16
      %p196 = scmp.lt.s32.totalorder %s195, 3
      %s197 = scalar_select %p196, %s195, 3
      %s198 = smul.addr %s197, 8
      %s199 = smul.addr %s198, 8
      %s200 = scalar_lea.vmem %s4, %s199
      %s201 = smul.u32 2, %s16
      %p202 = scmp.lt.s32.totalorder %s201, 3
      %s203 = scalar_select %p202, %s201, 3
      %s204 = smul.addr %s203, 8
      %s205 = smul.addr %s204, 4
      %s206 = scalar_lea.vmem %s0, %s205
      %s207 = smul.u32 2, %s16
      %s208 = smul.u32 2, %s16
      %p209 = scmp.lt.s32.totalorder %s208, 3
      %s210 = scalar_select %p209, %s208, 3
      %s211 = smul.addr %s210, 8
      %s212 = smul.addr %s211, 4
      %s213 = scalar_lea.vmem %s3, %s212
      %s214 = smul.u32 2, %s16
      %s215 = smul.u32 2, %s16
      %p216 = scmp.lt.s32.totalorder %s215, 3
      %s217 = scalar_select %p216, %s215, 3
      %s218 = smul.addr %s217, 8
      %s219 = smul.addr %s218, 8
      %s220 = scalar_lea.vmem %s4, %s219
      %s221 = smul.u32 2, %s16
      %v223 = vld [vmem:[%s206] sm:$0xf]
      %v224 = vld [vmem:[%s206 + $0x4] sm:$0xf]
      %v225 = vld [vmem:[%s206 + $0x8] sm:$0xf]
      %v226 = vld [vmem:[%s206 + $0xc] sm:$0xf]
      %v227 = vld [vmem:[%s206 + $0x10] sm:$0xf]
      %v228 = vld [vmem:[%s206 + $0x14] sm:$0xf]
      %v229 = vld [vmem:[%s206 + $0x18] sm:$0xf]
      %v230 = vld [vmem:[%s206 + $0x1c] sm:$0xf]
      %v231 = vld [vmem:[%s206 + $0x20] sm:$0xf]
      %v232 = vld [vmem:[%s206 + $0x24] sm:$0xf]
      %v233 = vld [vmem:[%s206 + $0x28] sm:$0xf]
      %v234 = vld [vmem:[%s206 + $0x2c] sm:$0xf]
      %v235 = vld [vmem:[%s206 + $0x30] sm:$0xf]
      %v236 = vld [vmem:[%s206 + $0x34] sm:$0xf]
      %v237 = vld [vmem:[%s206 + $0x38] sm:$0xf]
      %v238 = vld [vmem:[%s206 + $0x3c] sm:$0xf]
      %v239 = vld [vmem:[%s1] sm:$0xf]
      %v240 = vld [vmem:[%s1 + $0x4] sm:$0xf]
      %v241 = vld [vmem:[%s1 + $0x8] sm:$0xf]
      %v242 = vld [vmem:[%s1 + $0xc] sm:$0xf]
      %v243 = vld [vmem:[%s1 + $0x10] sm:$0xf]
      %v244 = vld [vmem:[%s1 + $0x14] sm:$0xf]
      %v245 = vld [vmem:[%s1 + $0x18] sm:$0xf]
      %v246 = vld [vmem:[%s1 + $0x1c] sm:$0xf]
      %v247 = vld [vmem:[%s1 + $0x20] sm:$0xf]
      %v248 = vld [vmem:[%s2] sm:$0x1]
      %v265 = vunpack.c.l.b16 %v223
      %v266 = vunpack.c.l.b16 %v224
      %v267 = vunpack.c.l.b16 %v225
      %v268 = vunpack.c.l.b16 %v226
      %v269 = vunpack.c.l.b16 %v227
      %v270 = vunpack.c.l.b16 %v228
      %v271 = vunpack.c.l.b16 %v229
      %v272 = vunpack.c.l.b16 %v230
      %v273 = vunpack.c.l.b16 %v231
      %v274 = vunpack.c.l.b16 %v232
      %v275 = vunpack.c.l.b16 %v233
      %v276 = vunpack.c.l.b16 %v234
      %v277 = vunpack.c.l.b16 %v235
      %v278 = vunpack.c.l.b16 %v236
      %v279 = vunpack.c.l.b16 %v237
      %v280 = vunpack.c.l.b16 %v238
      %v281 = vpack.c.b16 %v265, %v265
      %v282 = vpack.c.b16 %v266, %v266
      %v283 = vpack.c.b16 %v267, %v267
      %v284 = vpack.c.b16 %v268, %v268
      %v285 = vpack.c.b16 %v269, %v269
      %v286 = vpack.c.b16 %v270, %v270
      %v287 = vpack.c.b16 %v271, %v271
      %v288 = vpack.c.b16 %v272, %v272
      %v289 = vpack.c.b16 %v273, %v273
      %v290 = vpack.c.b16 %v274, %v274
      %v291 = vpack.c.b16 %v275, %v275
      %v292 = vpack.c.b16 %v276, %v276
      %v293 = vpack.c.b16 %v277, %v277
      %v294 = vpack.c.b16 %v278, %v278
      %v295 = vpack.c.b16 %v279, %v279
      %v296 = vpack.c.b16 %v280, %v280
      %v298 = vshrl.u32 %v281, 16
      %v300 = vrot.slane %v298, 7
      %v301 = vshll.u32 %v281, 16
      %v303 = vor.u32 %v300, %v301
      %v305 = vshrl.u32 %v282, 16
      %v307 = vrot.slane %v305, 7
      %v308 = vshll.u32 %v282, 16
      %v310 = vor.u32 %v307, %v308
      %v312 = vshrl.u32 %v283, 16
      %v314 = vrot.slane %v312, 7
      %v315 = vshll.u32 %v283, 16
      %v317 = vor.u32 %v314, %v315
      %v319 = vshrl.u32 %v284, 16
      %v321 = vrot.slane %v319, 7
      %v322 = vshll.u32 %v284, 16
      %v324 = vor.u32 %v321, %v322
      %v326 = vshrl.u32 %v285, 16
      %v328 = vrot.slane %v326, 7
      %v329 = vshll.u32 %v285, 16
      %v331 = vor.u32 %v328, %v329
      %v333 = vshrl.u32 %v286, 16
      %v335 = vrot.slane %v333, 7
      %v336 = vshll.u32 %v286, 16
      %v338 = vor.u32 %v335, %v336
      %v340 = vshrl.u32 %v287, 16
      %v342 = vrot.slane %v340, 7
      %v343 = vshll.u32 %v287, 16
      %v345 = vor.u32 %v342, %v343
      %v347 = vshrl.u32 %v288, 16
      %v349 = vrot.slane %v347, 7
      %v350 = vshll.u32 %v288, 16
      %v352 = vor.u32 %v349, %v350
      %v354 = vshrl.u32 %v289, 16
      %v356 = vrot.slane %v354, 7
      %v357 = vshll.u32 %v289, 16
      %v359 = vor.u32 %v356, %v357
      %v361 = vshrl.u32 %v290, 16
      %v363 = vrot.slane %v361, 7
      %v364 = vshll.u32 %v290, 16
      %v366 = vor.u32 %v363, %v364
      %v368 = vshrl.u32 %v291, 16
      %v370 = vrot.slane %v368, 7
      %v371 = vshll.u32 %v291, 16
      %v373 = vor.u32 %v370, %v371
      %v375 = vshrl.u32 %v292, 16
      %v377 = vrot.slane %v375, 7
      %v378 = vshll.u32 %v292, 16
      %v380 = vor.u32 %v377, %v378
      %v382 = vshrl.u32 %v293, 16
      %v384 = vrot.slane %v382, 7
      %v385 = vshll.u32 %v293, 16
      %v387 = vor.u32 %v384, %v385
      %v389 = vshrl.u32 %v294, 16
      %v391 = vrot.slane %v389, 7
      %v392 = vshll.u32 %v294, 16
      %v394 = vor.u32 %v391, %v392
      %v396 = vshrl.u32 %v295, 16
      %v398 = vrot.slane %v396, 7
      %v399 = vshll.u32 %v295, 16
      %v401 = vor.u32 %v398, %v399
      %v403 = vshrl.u32 %v296, 16
      %v405 = vrot.slane %v403, 7
      %v406 = vshll.u32 %v296, 16
      %v408 = vor.u32 %v405, %v406
      %vm425 = vcmask 1040384
      %vm426 = vsmask.f32 256
      %vm427 = vmand %vm425, %vm426
      %v428 = vsel %vm427, 0, %v303
      %v429 = vsel %vm427, 0, %v310
      %v430 = vsel %vm427, 0, %v317
      %v431 = vsel %vm427, 0, %v324
      %v432 = vsel %vm427, 0, %v331
      %v433 = vsel %vm427, 0, %v338
      %v434 = vsel %vm427, 0, %v345
      %v435 = vsel %vm427, 0, %v352
      %v436 = vsel %vm427, 0, %v359
      %v437 = vsel %vm427, 0, %v366
      %v438 = vsel %vm427, 0, %v373
      %v439 = vsel %vm427, 0, %v380
      %v440 = vsel %vm427, 0, %v387
      %v441 = vsel %vm427, 0, %v394
      %v442 = vsel %vm427, 0, %v401
      %v443 = vsel %vm427, 0, %v408
      %v444 = vrot.slane %v301, 1
      %v445 = vor.u32 %v298, %v444
      %v446 = vrot.slane %v308, 1
      %v447 = vor.u32 %v305, %v446
      %v448 = vrot.slane %v315, 1
      %v449 = vor.u32 %v312, %v448
      %v450 = vrot.slane %v322, 1
      %v451 = vor.u32 %v319, %v450
      %v452 = vrot.slane %v329, 1
      %v453 = vor.u32 %v326, %v452
      %v454 = vrot.slane %v336, 1
      %v455 = vor.u32 %v333, %v454
      %v456 = vrot.slane %v343, 1
      %v457 = vor.u32 %v340, %v456
      %v458 = vrot.slane %v350, 1
      %v459 = vor.u32 %v347, %v458
      %v460 = vrot.slane %v357, 1
      %v461 = vor.u32 %v354, %v460
      %v462 = vrot.slane %v364, 1
      %v463 = vor.u32 %v361, %v462
      %v464 = vrot.slane %v371, 1
      %v465 = vor.u32 %v368, %v464
      %v466 = vrot.slane %v378, 1
      %v467 = vor.u32 %v375, %v466
      %v468 = vrot.slane %v385, 1
      %v469 = vor.u32 %v382, %v468
      %v470 = vrot.slane %v392, 1
      %v471 = vor.u32 %v389, %v470
      %v472 = vrot.slane %v399, 1
      %v473 = vor.u32 %v396, %v472
      %v474 = vrot.slane %v406, 1
      %v475 = vor.u32 %v403, %v474
      %vm492 = vcmask 1043456
      %vm493 = vsmask.f32 3328
      %vm494 = vmand %vm492, %vm493
      %v495 = vsel %vm494, %v445, 0
      %v496 = vsel %vm494, %v447, 0
      %v497 = vsel %vm494, %v449, 0
      %v498 = vsel %vm494, %v451, 0
      %v499 = vsel %vm494, %v453, 0
      %v500 = vsel %vm494, %v455, 0
      %v501 = vsel %vm494, %v457, 0
      %v502 = vsel %vm494, %v459, 0
      %v503 = vsel %vm494, %v461, 0
      %v504 = vsel %vm494, %v463, 0
      %v505 = vsel %vm494, %v465, 0
      %v506 = vsel %vm494, %v467, 0
      %v507 = vsel %vm494, %v469, 0
      %v508 = vsel %vm494, %v471, 0
      %v509 = vsel %vm494, %v473, 0
      %v510 = vsel %vm494, %v475, 0
      %511 = vrot.lane.b32.xlu0 %v281, 8
      %v512 = vpop.permute.xlu0 %511
      %513 = vrot.lane.b32.xlu0 %v282, 8
      %v514 = vpop.permute.xlu0 %513
      %515 = vrot.lane.b32.xlu0 %v283, 8
      %v516 = vpop.permute.xlu0 %515
      %517 = vrot.lane.b32.xlu0 %v284, 8
      %v518 = vpop.permute.xlu0 %517
      %519 = vrot.lane.b32.xlu0 %v285, 8
      %v520 = vpop.permute.xlu0 %519
      %521 = vrot.lane.b32.xlu0 %v286, 8
      %v522 = vpop.permute.xlu0 %521
      %523 = vrot.lane.b32.xlu0 %v287, 8
      %v524 = vpop.permute.xlu0 %523
      %525 = vrot.lane.b32.xlu0 %v288, 8
      %v526 = vpop.permute.xlu0 %525
      %527 = vrot.lane.b32.xlu0 %v289, 8
      %v528 = vpop.permute.xlu0 %527
      %529 = vrot.lane.b32.xlu0 %v290, 8
      %v530 = vpop.permute.xlu0 %529
      %531 = vrot.lane.b32.xlu0 %v291, 8
      %v532 = vpop.permute.xlu0 %531
      %533 = vrot.lane.b32.xlu0 %v292, 8
      %v534 = vpop.permute.xlu0 %533
      %535 = vrot.lane.b32.xlu0 %v293, 8
      %v536 = vpop.permute.xlu0 %535
      %537 = vrot.lane.b32.xlu0 %v294, 8
      %v538 = vpop.permute.xlu0 %537
      %539 = vrot.lane.b32.xlu0 %v295, 8
      %v540 = vpop.permute.xlu0 %539
      %541 = vrot.lane.b32.xlu0 %v296, 8
      %v542 = vpop.permute.xlu0 %541
      %559 = vrot.lane.b32.xlu0 %v495, 16
      %v560 = vpop.permute.xlu0 %559
      %561 = vrot.lane.b32.xlu0 %v496, 16
      %v562 = vpop.permute.xlu0 %561
      %563 = vrot.lane.b32.xlu0 %v497, 16
      %v564 = vpop.permute.xlu0 %563
      %565 = vrot.lane.b32.xlu0 %v498, 16
      %v566 = vpop.permute.xlu0 %565
      %567 = vrot.lane.b32.xlu0 %v499, 16
      %v568 = vpop.permute.xlu0 %567
      %569 = vrot.lane.b32.xlu0 %v500, 16
      %v570 = vpop.permute.xlu0 %569
      %571 = vrot.lane.b32.xlu0 %v501, 16
      %v572 = vpop.permute.xlu0 %571
      %573 = vrot.lane.b32.xlu0 %v502, 16
      %v574 = vpop.permute.xlu0 %573
      %575 = vrot.lane.b32.xlu0 %v503, 16
      %v576 = vpop.permute.xlu0 %575
      %577 = vrot.lane.b32.xlu0 %v504, 16
      %v578 = vpop.permute.xlu0 %577
      %579 = vrot.lane.b32.xlu0 %v505, 16
      %v580 = vpop.permute.xlu0 %579
      %581 = vrot.lane.b32.xlu0 %v506, 16
      %v582 = vpop.permute.xlu0 %581
      %583 = vrot.lane.b32.xlu0 %v507, 16
      %v584 = vpop.permute.xlu0 %583
      %585 = vrot.lane.b32.xlu0 %v508, 16
      %v586 = vpop.permute.xlu0 %585
      %587 = vrot.lane.b32.xlu0 %v509, 16
      %v588 = vpop.permute.xlu0 %587
      %589 = vrot.lane.b32.xlu0 %v510, 16
      %v590 = vpop.permute.xlu0 %589
      %vm591 = vcmask 64512
      %v594 = vsel %vm591, %v428, %v512
      %v597 = vsel %vm591, %v429, %v514
      %v600 = vsel %vm591, %v430, %v516
      %v603 = vsel %vm591, %v431, %v518
      %v606 = vsel %vm591, %v432, %v520
      %v609 = vsel %vm591, %v433, %v522
      %v612 = vsel %vm591, %v434, %v524
      %v615 = vsel %vm591, %v435, %v526
      %v618 = vsel %vm591, %v436, %v528
      %v621 = vsel %vm591, %v437, %v530
      %v624 = vsel %vm591, %v438, %v532
      %v627 = vsel %vm591, %v439, %v534
      %v630 = vsel %vm591, %v440, %v536
      %v633 = vsel %vm591, %v441, %v538
      %v636 = vsel %vm591, %v442, %v540
      %v639 = vsel %vm591, %v443, %v542
      %vm640 = vcmask 130048
      %v642 = vsel %vm640, %v594, %v560
      %v644 = vsel %vm640, %v597, %v562
      %v646 = vsel %vm640, %v600, %v564
      %v648 = vsel %vm640, %v603, %v566
      %v650 = vsel %vm640, %v606, %v568
      %v652 = vsel %vm640, %v609, %v570
      %v654 = vsel %vm640, %v612, %v572
      %v656 = vsel %vm640, %v615, %v574
      %v658 = vsel %vm640, %v618, %v576
      %v660 = vsel %vm640, %v621, %v578
      %v662 = vsel %vm640, %v624, %v580
      %v664 = vsel %vm640, %v627, %v582
      %v666 = vsel %vm640, %v630, %v584
      %v668 = vsel %vm640, %v633, %v586
      %v670 = vsel %vm640, %v636, %v588
      %v672 = vsel %vm640, %v639, %v590
      %v689 = vunpack.c.l.b16 %v642
      %v690 = vunpack.c.l.b16 %v644
      %v691 = vunpack.c.l.b16 %v646
      %v692 = vunpack.c.l.b16 %v648
      %v693 = vunpack.c.l.b16 %v650
      %v694 = vunpack.c.l.b16 %v652
      %v695 = vunpack.c.l.b16 %v654
      %v696 = vunpack.c.l.b16 %v656
      %v697 = vunpack.c.l.b16 %v658
      %v698 = vunpack.c.l.b16 %v660
      %v699 = vunpack.c.l.b16 %v662
      %v700 = vunpack.c.l.b16 %v664
      %v701 = vunpack.c.l.b16 %v666
      %v702 = vunpack.c.l.b16 %v668
      %v703 = vunpack.c.l.b16 %v670
      %v704 = vunpack.c.l.b16 %v672
      %v705 = vpack.c.b16 %v690, %v689
      %v706 = vpack.c.b16 %v692, %v691
      %v707 = vpack.c.b16 %v694, %v693
      %v708 = vpack.c.b16 %v696, %v695
      %v709 = vpack.c.b16 %v698, %v697
      %v710 = vpack.c.b16 %v700, %v699
      %v711 = vpack.c.b16 %v702, %v701
      %v712 = vpack.c.b16 %v704, %v703
      %v716 = vunpack.c.l.b16 %v242
      %v717 = vunpack.c.l.b16 %v243
      %v718 = vunpack.c.l.b16 %v244
      %v719 = vpack.c.b16 %v717, %v716
      %v720 = vpack.c.b16 %v718, %v718
      %vm722 = vcmask 195584
      %v724 = vsel %vm722, %v705, 0
      %v727 = vsel %vm722, %v706, 0
      %v730 = vsel %vm722, %v707, 0
      %v733 = vsel %vm722, %v708, 0
      %v736 = vsel %vm722, %v709, 0
      %v739 = vsel %vm722, %v710, 0
      %v742 = vsel %vm722, %v711, 0
      %v745 = vsel %vm722, %v712, 0
      %vm747 = vcmask 1043456
      %v749 = vsel %vm747, %v720, 0
      %751 = vmatpush.bf16.msra.mxu0 0
      %752 = vmatpush.bf16.msra.mxu0 0
      %753 = vmatpush.bf16.msra.mxu0 0
      %754 = vmatpush.bf16.msra.mxu0 0
      %755 = vmatpush.bf16.msra.mxu0 0
      %756 = vmatpush.bf16.msra.mxu0 0
      %757 = vmatpush.bf16.msra.mxu0 %v749
      %758 = vmatpush.bf16.msra.mxu0 %v719
      %759 = vmatmul.bf16.gmra.mxu0 %v724
      %v760 = vpop.f32.mrf.mxu0
      %v761 = vadd.f32 0.0, %v760
      %v762 = vpop.f32.mrf.mxu0
      %v763 = vadd.f32 0.0, %v762
      %764 = vmatmul.bf16.gmra.mxu0 %v727
      %v765 = vpop.f32.mrf.mxu0
      %v766 = vadd.f32 0.0, %v765
      %v767 = vpop.f32.mrf.mxu0
      %v768 = vadd.f32 0.0, %v767
      %769 = vmatmul.bf16.gmra.mxu0 %v730
      %v770 = vpop.f32.mrf.mxu0
      %v771 = vadd.f32 0.0, %v770
      %v772 = vpop.f32.mrf.mxu0
      %v773 = vadd.f32 0.0, %v772
      %774 = vmatmul.bf16.gmra.mxu0 %v733
      %v775 = vpop.f32.mrf.mxu0
      %v776 = vadd.f32 0.0, %v775
      %v777 = vpop.f32.mrf.mxu0
      %v778 = vadd.f32 0.0, %v777
      %779 = vmatmul.bf16.gmra.mxu0 %v736
      %v780 = vpop.f32.mrf.mxu0
      %v781 = vadd.f32 0.0, %v780
      %v782 = vpop.f32.mrf.mxu0
      %v783 = vadd.f32 0.0, %v782
      %784 = vmatmul.bf16.gmra.mxu0 %v739
      %v785 = vpop.f32.mrf.mxu0
      %v786 = vadd.f32 0.0, %v785
      %v787 = vpop.f32.mrf.mxu0
      %v788 = vadd.f32 0.0, %v787
      %789 = vmatmul.bf16.gmra.mxu0 %v742
      %v790 = vpop.f32.mrf.mxu0
      %v791 = vadd.f32 0.0, %v790
      %v792 = vpop.f32.mrf.mxu0
      %v793 = vadd.f32 0.0, %v792
      %794 = vmatmul.bf16.gmra.mxu0 %v745
      %v795 = vpop.f32.mrf.mxu0
      %v796 = vadd.f32 0.0, %v795
      %v797 = vpop.f32.mrf.mxu0
      %v798 = vadd.f32 0.0, %v797
      %799 = vdwg.mxu0
      %v801 = vunpack.c.l.b16 0
      %v802 = vpack.c.b16 %v689, %v801
      %v803 = vpack.c.b16 %v691, %v690
      %v804 = vpack.c.b16 %v693, %v692
      %v805 = vpack.c.b16 %v695, %v694
      %v806 = vpack.c.b16 %v697, %v801
      %v807 = vpack.c.b16 %v699, %v698
      %v808 = vpack.c.b16 %v701, %v700
      %v809 = vpack.c.b16 %v703, %v702
      %v813 = vunpack.c.l.b16 %v239
      %v814 = vunpack.c.l.b16 %v240
      %v815 = vunpack.c.l.b16 %v241
      %v816 = vpack.c.b16 %v814, %v813
      %v817 = vpack.c.b16 %v815, %v815
      %v820 = vsel %vm722, %v802, 0
      %v823 = vsel %vm722, %v803, 0
      %v826 = vsel %vm722, %v804, 0
      %v829 = vsel %vm722, %v805, 0
      %v832 = vsel %vm722, %v806, 0
      %v835 = vsel %vm722, %v807, 0
      %v838 = vsel %vm722, %v808, 0
      %v841 = vsel %vm722, %v809, 0
      %v844 = vsel %vm747, %v817, 0
      %846 = vmatpush.bf16.msra.mxu0 0
      %847 = vmatpush.bf16.msra.mxu0 0
      %848 = vmatpush.bf16.msra.mxu0 0
      %849 = vmatpush.bf16.msra.mxu0 0
      %850 = vmatpush.bf16.msra.mxu0 0
      %851 = vmatpush.bf16.msra.mxu0 0
      %852 = vmatpush.bf16.msra.mxu0 %v844
      %853 = vmatpush.bf16.msra.mxu0 %v816
      %854 = vmatmul.bf16.gmra.mxu0 %v820
      %v855 = vpop.f32.mrf.mxu0
      %v856 = vadd.f32 %v761, %v855
      %v857 = vpop.f32.mrf.mxu0
      %v858 = vadd.f32 %v763, %v857
      %859 = vmatmul.bf16.gmra.mxu0 %v823
      %v860 = vpop.f32.mrf.mxu0
      %v861 = vadd.f32 %v766, %v860
      %v862 = vpop.f32.mrf.mxu0
      %v863 = vadd.f32 %v768, %v862
      %864 = vmatmul.bf16.gmra.mxu0 %v826
      %v865 = vpop.f32.mrf.mxu0
      %v866 = vadd.f32 %v771, %v865
      %v867 = vpop.f32.mrf.mxu0
      %v868 = vadd.f32 %v773, %v867
      %869 = vmatmul.bf16.gmra.mxu0 %v829
      %v870 = vpop.f32.mrf.mxu0
      %v871 = vadd.f32 %v776, %v870
      %v872 = vpop.f32.mrf.mxu0
      %v873 = vadd.f32 %v778, %v872
      %874 = vmatmul.bf16.gmra.mxu0 %v832
      %v875 = vpop.f32.mrf.mxu0
      %v876 = vadd.f32 %v781, %v875
      %v877 = vpop.f32.mrf.mxu0
      %v878 = vadd.f32 %v783, %v877
      %879 = vmatmul.bf16.gmra.mxu0 %v835
      %v880 = vpop.f32.mrf.mxu0
      %v881 = vadd.f32 %v786, %v880
      %v882 = vpop.f32.mrf.mxu0
      %v883 = vadd.f32 %v788, %v882
      %884 = vmatmul.bf16.gmra.mxu0 %v838
      %v885 = vpop.f32.mrf.mxu0
      %v886 = vadd.f32 %v791, %v885
      %v887 = vpop.f32.mrf.mxu0
      %v888 = vadd.f32 %v793, %v887
      %889 = vmatmul.bf16.gmra.mxu0 %v841
      %v890 = vpop.f32.mrf.mxu0
      %v891 = vadd.f32 %v796, %v890
      %v892 = vpop.f32.mrf.mxu0
      %v893 = vadd.f32 %v798, %v892
      %894 = vdwg.mxu0
      %v895 = vpack.c.b16 %v801, %v696
      %v896 = vpack.c.b16 %v801, %v704
      %v900 = vunpack.c.l.b16 %v245
      %v901 = vunpack.c.l.b16 %v246
      %v902 = vunpack.c.l.b16 %v247
      %v903 = vpack.c.b16 %v901, %v900
      %v904 = vpack.c.b16 %v902, %v902
      %v907 = vsel %vm722, %v895, 0
      %v910 = vsel %vm722, %v896, 0
      %v913 = vsel %vm747, %v904, 0
      %915 = vmatpush.bf16.msra.mxu0 0
      %916 = vmatpush.bf16.msra.mxu0 0
      %917 = vmatpush.bf16.msra.mxu0 0
      %918 = vmatpush.bf16.msra.mxu0 0
      %919 = vmatpush.bf16.msra.mxu0 0
      %920 = vmatpush.bf16.msra.mxu0 0
      %921 = vmatpush.bf16.msra.mxu0 %v913
      %922 = vmatpush.bf16.msra.mxu0 %v903
      %923 = vmatmul.bf16.gmra.mxu0 %v823
      %v924 = vpop.f32.mrf.mxu0
      %v925 = vadd.f32 0.0, %v924
      %v926 = vpop.f32.mrf.mxu0
      %v927 = vadd.f32 0.0, %v926
      %928 = vmatmul.bf16.gmra.mxu0 %v826
      %v929 = vpop.f32.mrf.mxu0
      %v930 = vadd.f32 0.0, %v929
      %v931 = vpop.f32.mrf.mxu0
      %v932 = vadd.f32 0.0, %v931
      %933 = vmatmul.bf16.gmra.mxu0 %v829
      %v934 = vpop.f32.mrf.mxu0
      %v935 = vadd.f32 0.0, %v934
      %v936 = vpop.f32.mrf.mxu0
      %v937 = vadd.f32 0.0, %v936
      %938 = vmatmul.bf16.gmra.mxu0 %v907
      %v939 = vpop.f32.mrf.mxu0
      %v940 = vadd.f32 0.0, %v939
      %v941 = vpop.f32.mrf.mxu0
      %v942 = vadd.f32 0.0, %v941
      %943 = vmatmul.bf16.gmra.mxu0 %v835
      %v944 = vpop.f32.mrf.mxu0
      %v945 = vadd.f32 0.0, %v944
      %v946 = vpop.f32.mrf.mxu0
      %v947 = vadd.f32 0.0, %v946
      %948 = vmatmul.bf16.gmra.mxu0 %v838
      %v949 = vpop.f32.mrf.mxu0
      %v950 = vadd.f32 0.0, %v949
      %v951 = vpop.f32.mrf.mxu0
      %v952 = vadd.f32 0.0, %v951
      %953 = vmatmul.bf16.gmra.mxu0 %v841
      %v954 = vpop.f32.mrf.mxu0
      %v955 = vadd.f32 0.0, %v954
      %v956 = vpop.f32.mrf.mxu0
      %v957 = vadd.f32 0.0, %v956
      %958 = vmatmul.bf16.gmra.mxu0 %v910
      %v959 = vpop.f32.mrf.mxu0
      %v960 = vadd.f32 0.0, %v959
      %v961 = vpop.f32.mrf.mxu0
      %v962 = vadd.f32 0.0, %v961
      %963 = vdwg.mxu0
      %v964 = vadd.f32 %v856, %v925
      %v965 = vadd.f32 %v858, %v927
      %v966 = vadd.f32 %v861, %v930
      %v967 = vadd.f32 %v863, %v932
      %v968 = vadd.f32 %v866, %v935
      %v969 = vadd.f32 %v868, %v937
      %v970 = vadd.f32 %v871, %v940
      %v971 = vadd.f32 %v873, %v942
      %v972 = vadd.f32 %v876, %v945
      %v973 = vadd.f32 %v878, %v947
      %v974 = vadd.f32 %v881, %v950
      %v975 = vadd.f32 %v883, %v952
      %v976 = vadd.f32 %v886, %v955
      %v977 = vadd.f32 %v888, %v957
      %v978 = vadd.f32 %v891, %v960
      %v979 = vadd.f32 %v893, %v962
      %v981 = vperm.slane %v248, 0
      %v983 = vadd.f32 %v964, %v981
      %v984 = vadd.f32 %v965, %v981
      %v985 = vadd.f32 %v966, %v981
      %v986 = vadd.f32 %v967, %v981
      %v987 = vadd.f32 %v968, %v981
      %v988 = vadd.f32 %v969, %v981
      %v989 = vadd.f32 %v970, %v981
      %v990 = vadd.f32 %v971, %v981
      %v991 = vadd.f32 %v972, %v981
      %v992 = vadd.f32 %v973, %v981
      %v993 = vadd.f32 %v974, %v981
      %v994 = vadd.f32 %v975, %v981
      %v995 = vadd.f32 %v976, %v981
      %v996 = vadd.f32 %v977, %v981
      %v997 = vadd.f32 %v978, %v981
      %v998 = vadd.f32 %v979, %v981
      %v999 = vmax.f32 %v983, 0.0
      %v1000 = vmax.f32 %v984, 0.0
      %v1001 = vmax.f32 %v985, 0.0
      %v1002 = vmax.f32 %v986, 0.0
      %v1003 = vmax.f32 %v987, 0.0
      %v1004 = vmax.f32 %v988, 0.0
      %v1005 = vmax.f32 %v989, 0.0
      %v1006 = vmax.f32 %v990, 0.0
      %v1007 = vmax.f32 %v991, 0.0
      %v1008 = vmax.f32 %v992, 0.0
      %v1009 = vmax.f32 %v993, 0.0
      %v1010 = vmax.f32 %v994, 0.0
      %v1011 = vmax.f32 %v995, 0.0
      %v1012 = vmax.f32 %v996, 0.0
      %v1013 = vmax.f32 %v997, 0.0
      %v1014 = vmax.f32 %v998, 0.0
      %v1015 = vpack.c.bf16 %v999, %v999
      %v1016 = vpack.c.bf16 %v1000, %v1000
      %v1017 = vpack.c.bf16 %v1001, %v1001
      %v1018 = vpack.c.bf16 %v1002, %v1002
      %v1019 = vpack.c.bf16 %v1003, %v1003
      %v1020 = vpack.c.bf16 %v1004, %v1004
      %v1021 = vpack.c.bf16 %v1005, %v1005
      %v1022 = vpack.c.bf16 %v1006, %v1006
      %v1023 = vpack.c.bf16 %v1007, %v1007
      %v1024 = vpack.c.bf16 %v1008, %v1008
      %v1025 = vpack.c.bf16 %v1009, %v1009
      %v1026 = vpack.c.bf16 %v1010, %v1010
      %v1027 = vpack.c.bf16 %v1011, %v1011
      %v1028 = vpack.c.bf16 %v1012, %v1012
      %v1029 = vpack.c.bf16 %v1013, %v1013
      %v1030 = vpack.c.bf16 %v1014, %v1014
      %vm1031 = vcmask 519168
      %1032 = vst.msk [vmem:[%s213] sm:$0xf] %vm1031, %v1015
      %1033 = vst.msk [vmem:[%s213 + $0x4] sm:$0xf] %vm1031, %v1016
      %1034 = vst.msk [vmem:[%s213 + $0x8] sm:$0xf] %vm1031, %v1017
      %1035 = vst.msk [vmem:[%s213 + $0xc] sm:$0xf] %vm1031, %v1018
      %1036 = vst.msk [vmem:[%s213 + $0x10] sm:$0xf] %vm1031, %v1019
      %1037 = vst.msk [vmem:[%s213 + $0x14] sm:$0xf] %vm1031, %v1020
      %1038 = vst.msk [vmem:[%s213 + $0x18] sm:$0xf] %vm1031, %v1021
      %1039 = vst.msk [vmem:[%s213 + $0x1c] sm:$0xf] %vm1031, %v1022
      %1040 = vst.msk [vmem:[%s213 + $0x20] sm:$0xf] %vm1031, %v1023
      %1041 = vst.msk [vmem:[%s213 + $0x24] sm:$0xf] %vm1031, %v1024
      %1042 = vst.msk [vmem:[%s213 + $0x28] sm:$0xf] %vm1031, %v1025
      %1043 = vst.msk [vmem:[%s213 + $0x2c] sm:$0xf] %vm1031, %v1026
      %1044 = vst.msk [vmem:[%s213 + $0x30] sm:$0xf] %vm1031, %v1027
      %1045 = vst.msk [vmem:[%s213 + $0x34] sm:$0xf] %vm1031, %v1028
      %1046 = vst.msk [vmem:[%s213 + $0x38] sm:$0xf] %vm1031, %v1029
      %1047 = vst.msk [vmem:[%s213 + $0x3c] sm:$0xf] %vm1031, %v1030
      %1064 = vrot.lane.b32.xlu0 %v983, 64
      %v1065 = vpop.permute.xlu0 %1064
      %1066 = vrot.lane.b32.xlu0 %v984, 64
      %v1067 = vpop.permute.xlu0 %1066
      %1068 = vrot.lane.b32.xlu0 %v985, 64
      %v1069 = vpop.permute.xlu0 %1068
      %1070 = vrot.lane.b32.xlu0 %v986, 64
      %v1071 = vpop.permute.xlu0 %1070
      %1072 = vrot.lane.b32.xlu0 %v987, 64
      %v1073 = vpop.permute.xlu0 %1072
      %1074 = vrot.lane.b32.xlu0 %v988, 64
      %v1075 = vpop.permute.xlu0 %1074
      %1076 = vrot.lane.b32.xlu0 %v989, 64
      %v1077 = vpop.permute.xlu0 %1076
      %1078 = vrot.lane.b32.xlu0 %v990, 64
      %v1079 = vpop.permute.xlu0 %1078
      %1080 = vrot.lane.b32.xlu0 %v991, 64
      %v1081 = vpop.permute.xlu0 %1080
      %1082 = vrot.lane.b32.xlu0 %v992, 64
      %v1083 = vpop.permute.xlu0 %1082
      %1084 = vrot.lane.b32.xlu0 %v993, 64
      %v1085 = vpop.permute.xlu0 %1084
      %1086 = vrot.lane.b32.xlu0 %v994, 64
      %v1087 = vpop.permute.xlu0 %1086
      %1088 = vrot.lane.b32.xlu0 %v995, 64
      %v1089 = vpop.permute.xlu0 %1088
      %1090 = vrot.lane.b32.xlu0 %v996, 64
      %v1091 = vpop.permute.xlu0 %1090
      %1092 = vrot.lane.b32.xlu0 %v997, 64
      %v1093 = vpop.permute.xlu0 %1092
      %1094 = vrot.lane.b32.xlu0 %v998, 64
      %v1095 = vpop.permute.xlu0 %1094
      %vm1112 = vcmask 31744
      %1113 = vst.msk [vmem:[%s220] sm:$0xff] %vm1112, %v1065
      %1114 = vst.msk [vmem:[%s220 + $0x8] sm:$0xff] %vm1112, %v1067
      %1115 = vst.msk [vmem:[%s220 + $0x10] sm:$0xff] %vm1112, %v1069
      %1116 = vst.msk [vmem:[%s220 + $0x18] sm:$0xff] %vm1112, %v1071
      %1117 = vst.msk [vmem:[%s220 + $0x20] sm:$0xff] %vm1112, %v1073
      %1118 = vst.msk [vmem:[%s220 + $0x28] sm:$0xff] %vm1112, %v1075
      %1119 = vst.msk [vmem:[%s220 + $0x30] sm:$0xff] %vm1112, %v1077
      %1120 = vst.msk [vmem:[%s220 + $0x38] sm:$0xff] %vm1112, %v1079
      %1121 = vst.msk [vmem:[%s220 + $0x40] sm:$0xff] %vm1112, %v1081
      %1122 = vst.msk [vmem:[%s220 + $0x48] sm:$0xff] %vm1112, %v1083
      %1123 = vst.msk [vmem:[%s220 + $0x50] sm:$0xff] %vm1112, %v1085
      %1124 = vst.msk [vmem:[%s220 + $0x58] sm:$0xff] %vm1112, %v1087
      %1125 = vst.msk [vmem:[%s220 + $0x60] sm:$0xff] %vm1112, %v1089
      %1126 = vst.msk [vmem:[%s220 + $0x68] sm:$0xff] %vm1112, %v1091
      %1127 = vst.msk [vmem:[%s220 + $0x70] sm:$0xff] %vm1112, %v1093
      %1128 = vst.msk [vmem:[%s220 + $0x78] sm:$0xff] %vm1112, %v1095
      %s1129 = smul.u32 2, %s16
      %p1130 = scmp.lt.s32.totalorder %s1129, 3
      %s1131 = scalar_select %p1130, %s1129, 3
      %s1132 = smul.addr %s1131, 8
      %s1133 = smul.addr %s1132, 4
      %s1134 = scalar_lea.vmem %s3, %s1133
      %s1135 = smul.u32 2, %s16
      %p1136 = scmp.lt.s32.totalorder %s1135, 3
      %s1137 = scalar_select %p1136, %s1135, 3
      %s1138 = smul.addr %s1137, 8
      %s1139 = smul.addr %s1138, 8
      %s1140 = scalar_lea.vmem %s4, %s1139
      // Predicated region
      $region33: #{net2x_forward.8} parent=31 // pred_check
        %p1141 = pneg %p102
      $region34: #{net2x_forward.8} parent=31 // pred_check_branch
        %1143 = sbr.rel (%p1141) target = $region36
      $region35: #{net2x_forward.8} parent=31 // pred_region
        %s1144 = smul.u32 2, %s16
      $region36: #{net2x_forward.8} parent=31 // pred_fallthru
        _
      // Predicated region
      $region37: #{net2x_forward.8} parent=31 // pred_check
        %p1145 = pneg %p128
      $region38: #{net2x_forward.8} parent=31 // pred_check_branch
        %1147 = sbr.rel (%p1145) target = $region40
      $region39: #{net2x_forward.8} parent=31 // pred_region
        %s1148 = smul.u32 2, %s16
      $region40: #{net2x_forward.8} parent=31 // pred_fallthru
        _
    $region32: #{net2x_forward.8} parent=5 // pred_fallthru
      _
    %p1149 = scmp.le.s32.totalorder 2, %s11
    // Predicated region
    $region41: #{net2x_forward.8} parent=5 // pred_check
      %p1150 = pneg %p1149
    $region42: #{net2x_forward.8} parent=5 // pred_check_branch
      %1152 = sbr.rel (%p1150) target = $region44
    $region43: #{net2x_forward.8} parent=5 // pred_region
      %s1153 = ssub.s32 %s11, 2
      // Predicated region
      $region45: #{net2x_forward.8} parent=43 // pred_check
        %p1154 = pneg %p108
      $region46: #{net2x_forward.8} parent=43 // pred_check_branch
        %1156 = sbr.rel (%p1154) target = $region48
      $region47: #{net2x_forward.8} parent=43 // pred_region
        %s1157 = smul.u32 2, %s17
        %p1158 = scmp.lt.s32.totalorder %s1157, 3
        %s1159 = scalar_select %p1158, %s1157, 3
        %s1160 = smul.addr %s1159, 8
        %s1161 = smul.addr %s1160, 4
        %s1162 = scalar_lea.vmem %s3, %s1161
      $region48: #{net2x_forward.8} parent=43 // pred_fallthru
        _
      // Predicated region
      $region49: #{net2x_forward.8} parent=43 // pred_check
        %p1163 = pneg %p134
      $region50: #{net2x_forward.8} parent=43 // pred_check_branch
        %1165 = sbr.rel (%p1163) target = $region52
      $region51: #{net2x_forward.8} parent=43 // pred_region
        %s1166 = smul.u32 2, %s17
        %p1167 = scmp.lt.s32.totalorder %s1166, 3
        %s1168 = scalar_select %p1167, %s1166, 3
        %s1169 = smul.addr %s1168, 8
        %s1170 = smul.addr %s1169, 8
        %s1171 = scalar_lea.vmem %s4, %s1170
      $region52: #{net2x_forward.8} parent=43 // pred_fallthru
        _
    $region44: #{net2x_forward.8} parent=5 // pred_fallthru
      _
  $region6: #{net2x_forward.8} parent=0 // loop_footer
    %s15 = sadd.s32 1, %s11
  $region7: #{net2x_forward.8} parent=0 // loop_footer_branch
    %10 = sbr.rel target = $region3
  $region8: #{net2x_forward.8} parent=0 // loop_exit
    _

// kernel: net2x_forward.14
$region0: #{net2x_forward.14}
  #allocation0 [shape = 'u32[]', space=smem, size = 0x4, offset = 0x4, fixed_abs, tag = 'smem constant byte address 0x4 - core index']
  #allocation1 [shape = 'u32[72,128]{1,0:T(1,128)}', space=vmem, size = 0x9000, scoped, tag = 'internal scratch']
  %s0 = inlined_call_operand.vmem [shape: bf16[4,8,8,64], index: 0, kind: input, shape index: {}]
  %s1 = inlined_call_operand.vmem [shape: bf16[3,192,256], index: 1, kind: input, shape index: {}]
  %s2 = inlined_call_operand.vmem [shape: f32[1,256], index: 2, kind: input, shape index: {}]
  %s3 = inlined_call_operand.vmem [shape: bf16[4,8,8,256], index: 3, kind: output, shape index: {}]
  %s4 = sld [smem:[#allocation0]]
  $region45: #{net2x_forward.14} parent=0
    _
  %s6 = ssub.s32 1, %s4
  %s7 = scalar_select 0, %s6, %s4
  loop: start=0, step=1, limit=4
  $region2: #{net2x_forward.14} parent=0 // loop_pre_header
    _
  $region3: #{net2x_forward.14} parent=0 // loop_header
    %s9 = sphi 0, %s13
    %p10 = scmp.ge.s32.totalorder %s9, 4
    %s19 = sphi 0, %s21
    %s22 = sphi 0, %s19
    %s23 = sphi 0, %s22
    %s39 = sphi 0, %s23
    %s43 = sphi 0, %s43
    %s45 = sphi 0, %s43
    %s46 = sphi 0, %s45
    %s60 = sphi 0, %s46
    %s64 = sphi 0, %s64
    %s66 = sphi 0, %s64
    %s67 = sphi 0, %s66
    %s81 = sphi 0, %s67
    %s87 = sphi 0, %s89
    %s90 = sphi 0, %s87
    %s91 = sphi 0, %s90
    %s107 = sphi 0, %s91
  $region4: #{net2x_forward.14} parent=0 // loop_header_branch
    %12 = sbr.rel (%p10) target = $region8
  $region5: #{net2x_forward.14} parent=0 // loop_body
    %s14 = ssub.s32 %s9, 1
    %s15 = ssub.s32 %s9, 2
    %s16 = sadd.s32 %s9, 1
    %s17 = ssub.s32 %s9, %s16
    %p18 = scmp.eq.s32.totalorder %s17, 0
    %s20 = sadd.s32 %s19, 1
    %s21 = scalar_select %p18, %s19, %s20
    %p24 = pneg %p18
    %p25 = scmp.eq.s32.totalorder %s9, 1
    %p26 = por %p24, %p25
    %p27 = scmp.ne.s32.totalorder %s19, %s22
    %p28 = scmp.eq.s32.totalorder %s9, 0
    %p29 = por %p27, %p28
    %p30 = scmp.ne.s32.totalorder %s19, %s22
    %p31 = scmp.eq.s32.totalorder %s14, 1
    %p32 = por %p30, %p31
    %p33 = scmp.ne.s32.totalorder %s22, %s23
    %p34 = scmp.eq.s32.totalorder %s14, 0
    %p35 = por %p33, %p34
    %p36 = scmp.ne.s32.totalorder %s22, %s23
    %p37 = scmp.eq.s32.totalorder %s15, 1
    %p38 = por %p36, %p37
    %p40 = scmp.ne.s32.totalorder %s23, %s39
    %p41 = scmp.eq.s32.totalorder %s15, 0
    %p42 = por %p40, %p41
    %s44 = sadd.s32 %s43, 1
    %p47 = scmp.eq.s32.totalorder %s9, 1
    %p48 = scmp.ne.s32.totalorder %s43, %s45
    %p49 = scmp.eq.s32.totalorder %s9, 0
    %p50 = por %p48, %p49
    %p51 = scmp.ne.s32.totalorder %s43, %s45
    %p52 = scmp.eq.s32.totalorder %s14, 1
    %p53 = por %p51, %p52
    %p54 = scmp.ne.s32.totalorder %s45, %s46
    %p55 = scmp.eq.s32.totalorder %s14, 0
    %p56 = por %p54, %p55
    %p57 = scmp.ne.s32.totalorder %s45, %s46
    %p58 = scmp.eq.s32.totalorder %s15, 1
    %p59 = por %p57, %p58
    %p61 = scmp.ne.s32.totalorder %s46, %s60
    %p62 = scmp.eq.s32.totalorder %s15, 0
    %p63 = por %p61, %p62
    %s65 = sadd.s32 %s64, 1
    %p68 = scmp.eq.s32.totalorder %s9, 1
    %p69 = scmp.ne.s32.totalorder %s64, %s66
    %p70 = scmp.eq.s32.totalorder %s9, 0
    %p71 = por %p69, %p70
    %p72 = scmp.ne.s32.totalorder %s64, %s66
    %p73 = scmp.eq.s32.totalorder %s14, 1
    %p74 = por %p72, %p73
    %p75 = scmp.ne.s32.totalorder %s66, %s67
    %p76 = scmp.eq.s32.totalorder %s14, 0
    %p77 = por %p75, %p76
    %p78 = scmp.ne.s32.totalorder %s66, %s67
    %p79 = scmp.eq.s32.totalorder %s15, 1
    %p80 = por %p78, %p79
    %p82 = scmp.ne.s32.totalorder %s67, %s81
    %p83 = scmp.eq.s32.totalorder %s15, 0
    %p84 = por %p82, %p83
    %s85 = ssub.s32 %s9, %s16
    %p86 = scmp.eq.s32.totalorder %s85, 0
    %s88 = sadd.s32 %s87, 1
    %s89 = scalar_select %p86, %s87, %s88
    %p92 = pneg %p86
    %p93 = scmp.eq.s32.totalorder %s9, 1
    %p94 = por %p92, %p93
    %p95 = scmp.ne.s32.totalorder %s87, %s90
    %p96 = scmp.eq.s32.totalorder %s9, 0
    %p97 = por %p95, %p96
    %p98 = scmp.ne.s32.totalorder %s87, %s90
    %p99 = scmp.eq.s32.totalorder %s14, 1
    %p100 = por %p98, %p99
    %p101 = scmp.ne.s32.totalorder %s90, %s91
    %p102 = scmp.eq.s32.totalorder %s14, 0
    %p103 = por %p101, %p102
    %p104 = scmp.ne.s32.totalorder %s90, %s91
    %p105 = scmp.eq.s32.totalorder %s15, 1
    %p106 = por %p104, %p105
    %p108 = scmp.ne.s32.totalorder %s91, %s107
    %p109 = scmp.eq.s32.totalorder %s15, 0
    %p110 = por %p108, %p109
    %p111 = scmp.le.s32.totalorder 1, %s9
    %p112 = scmp.lt.s32.totalorder %s9, 3
    %p113 = pnand %p111, %p112
    %p114 = pneg %p113
    // Predicated region
    $region9: #{net2x_forward.14} parent=5 // pred_check
      _
    $region10: #{net2x_forward.14} parent=5 // pred_check_branch
      %116 = sbr.rel (%p113) target = $region12
    $region11: #{net2x_forward.14} parent=5 // pred_region
      %s117 = ssub.s32 %s9, 1
      // Predicated region
      $region13: #{net2x_forward.14} parent=11 // pred_check
        %p118 = pneg %p56
      $region14: #{net2x_forward.14} parent=11 // pred_check_branch
        %120 = sbr.rel (%p118) target = $region16
      $region15: #{net2x_forward.14} parent=11 // pred_region
        _
      $region16: #{net2x_forward.14} parent=11 // pred_fallthru
        _
      // Predicated region
      $region17: #{net2x_forward.14} parent=11 // pred_check
        %p121 = pneg %p77
      $region18: #{net2x_forward.14} parent=11 // pred_check_branch
        %123 = sbr.rel (%p121) target = $region20
      $region19: #{net2x_forward.14} parent=11 // pred_region
        _
      $region20: #{net2x_forward.14} parent=11 // pred_fallthru
        _
    $region12: #{net2x_forward.14} parent=5 // pred_fallthru
      _
    %p124 = scmp.lt.s32.totalorder %s9, 2
    // Predicated region
    $region21: #{net2x_forward.14} parent=5 // pred_check
      %p125 = pneg %p124
    $region22: #{net2x_forward.14} parent=5 // pred_check_branch
      %127 = sbr.rel (%p125) target = $region24
    $region23: #{net2x_forward.14} parent=5 // pred_region
      // Predicated region
      $region25: #{net2x_forward.14} parent=23 // pred_check
        %p128 = pneg %p29
      $region26: #{net2x_forward.14} parent=23 // pred_check_branch
        %130 = sbr.rel (%p128) target = $region28
      $region27: #{net2x_forward.14} parent=23 // pred_region
        %s131 = smul.u32 2, %s9
        %p132 = scmp.lt.s32.totalorder %s131, 3
        %s133 = scalar_select %p132, %s131, 3
        %s134 = smul.addr %s133, 8
        %s135 = smul.addr %s134, 4
        %s136 = scalar_lea.vmem %s0, %s135
        %s137 = smul.u32 2, %s9
      $region28: #{net2x_forward.14} parent=23 // pred_fallthru
        _
    $region24: #{net2x_forward.14} parent=5 // pred_fallthru
      _
    %p138 = scmp.le.s32.totalorder 1, %s9
    %p139 = scmp.lt.s32.totalorder %s9, 3
    %p140 = pnand %p138, %p139
    %p141 = pneg %p140
    // Predicated region
    $region29: #{net2x_forward.14} parent=5 // pred_check
      _
    $region30: #{net2x_forward.14} parent=5 // pred_check_branch
      %143 = sbr.rel (%p140) target = $region32
    $region31: #{net2x_forward.14} parent=5 // pred_region
      %s144 = ssub.s32 %s9, 1
      %s145 = smul.u32 2, %s14
      %p146 = scmp.lt.s32.totalorder %s145, 3
      %s147 = scalar_select %p146, %s145, 3
      %s148 = smul.addr %s147, 8
      %s149 = smul.addr %s148, 4
      %s150 = scalar_lea.vmem %s0, %s149
      %p151 = pneg %p35
      %p152 = pneg %p32
      %p153 = pneg %p56
      %p154 = pneg %p53
      %p155 = pneg %p77
      %p156 = pneg %p74
      %p157 = pneg %p103
      %p158 = pneg %p100
      %s159 = smul.u32 2, %s14
      %p160 = scmp.lt.s32.totalorder %s159, 3
      %s161 = scalar_select %p160, %s159, 3
      %s162 = smul.addr %s161, 16
      %s163 = smul.addr %s162, 4
      %s164 = scalar_lea.vmem %s3, %s163
      %s165 = smul.u32 2, %s14
      %p166 = scmp.lt.s32.totalorder %s165, 3
      %s167 = scalar_select %p166, %s165, 3
      %s168 = smul.addr %s167, 8
      %s169 = smul.addr %s168, 4
      %s170 = scalar_lea.vmem %s0, %s169
      %s171 = smul.u32 2, %s14
      %s172 = smul.u32 2, %s14
      %p173 = scmp.lt.s32.totalorder %s172, 3
      %s174 = scalar_select %p173, %s172, 3
      %s175 = smul.addr %s174, 16
      %s176 = smul.addr %s175, 4
      %s177 = scalar_lea.vmem %s3, %s176
      %s178 = smul.u32 2, %s14
      %v180 = vld [vmem:[%s170] sm:$0xf]
      %v181 = vld [vmem:[%s170 + $0x4] sm:$0xf]
      %v182 = vld [vmem:[%s170 + $0x8] sm:$0xf]
      %v183 = vld [vmem:[%s170 + $0xc] sm:$0xf]
      %v184 = vld [vmem:[%s170 + $0x10] sm:$0xf]
      %v185 = vld [vmem:[%s170 + $0x14] sm:$0xf]
      %v186 = vld [vmem:[%s170 + $0x18] sm:$0xf]
      %v187 = vld [vmem:[%s170 + $0x1c] sm:$0xf]
      %v188 = vld [vmem:[%s170 + $0x20] sm:$0xf]
      %v189 = vld [vmem:[%s170 + $0x24] sm:$0xf]
      %v190 = vld [vmem:[%s170 + $0x28] sm:$0xf]
      %v191 = vld [vmem:[%s170 + $0x2c] sm:$0xf]
      %v192 = vld [vmem:[%s170 + $0x30] sm:$0xf]
      %v193 = vld [vmem:[%s170 + $0x34] sm:$0xf]
      %v194 = vld [vmem:[%s170 + $0x38] sm:$0xf]
      %v195 = vld [vmem:[%s170 + $0x3c] sm:$0xf]
      %v196 = vld [vmem:[%s1] sm:$0xff]
      %v197 = vld [vmem:[%s1 + $0x8] sm:$0xff]
      %v198 = vld [vmem:[%s1 + $0x10] sm:$0xff]
      %v199 = vld [vmem:[%s1 + $0x18] sm:$0xff]
      %v200 = vld [vmem:[%s1 + $0x20] sm:$0xff]
      %v201 = vld [vmem:[%s1 + $0x28] sm:$0xff]
      %v202 = vld [vmem:[%s1 + $0x30] sm:$0xff]
      %v203 = vld [vmem:[%s1 + $0x38] sm:$0xff]
      %v204 = vld [vmem:[%s1 + $0x40] sm:$0xff]
      %v205 = vld [vmem:[%s1 + $0x48] sm:$0xff]
      %v206 = vld [vmem:[%s1 + $0x50] sm:$0xff]
      %v207 = vld [vmem:[%s1 + $0x58] sm:$0xff]
      %v208 = vld [vmem:[%s1 + $0x60] sm:$0xff]
      %v209 = vld [vmem:[%s1 + $0x68] sm:$0xff]
      %v210 = vld [vmem:[%s1 + $0x70] sm:$0xff]
      %v211 = vld [vmem:[%s1 + $0x78] sm:$0xff]
      %v212 = vld [vmem:[%s1 + $0x80] sm:$0xff]
      %v213 = vld [vmem:[%s1 + $0x88] sm:$0xff]
      %v214 = vld [vmem:[%s1 + $0x90] sm:$0xff]
      %v215 = vld [vmem:[%s1 + $0x98] sm:$0xff]
      %v216 = vld [vmem:[%s1 + $0xa0] sm:$0xff]
      %v217 = vld [vmem:[%s1 + $0xa8] sm:$0xff]
      %v218 = vld [vmem:[%s1 + $0xb0] sm:$0xff]
      %v219 = vld [vmem:[%s1 + $0xb8] sm:$0xff]
      %v220 = vld [vmem:[%s1 + $0xc0] sm:$0xff]
      %v221 = vld [vmem:[%s1 + $0xc8] sm:$0xff]
      %v222 = vld [vmem:[%s1 + $0xd0] sm:$0xff]
      %v223 = vld [vmem:[%s1 + $0xd8] sm:$0xff]
      %v224 = vld [vmem:[%s1 + $0xe0] sm:$0xff]
      %v225 = vld [vmem:[%s1 + $0xe8] sm:$0xff]
      %v226 = vld [vmem:[%s1 + $0xf0] sm:$0xff]
      %v227 = vld [vmem:[%s1 + $0xf8] sm:$0xff]
      %v228 = vld [vmem:[%s1 + $0x100] sm:$0xff]
      %v229 = vld [vmem:[%s1 + $0x108] sm:$0xff]
      %v230 = vld [vmem:[%s1 + $0x110] sm:$0xff]
      %v231 = vld [vmem:[%s1 + $0x118] sm:$0xff]
      %v232 = vld [vmem:[%s1 + $0x120] sm:$0xff]
      %v233 = vld [vmem:[%s1 + $0x128] sm:$0xff]
      %v234 = vld [vmem:[%s1 + $0x130] sm:$0xff]
      %v235 = vld [vmem:[%s1 + $0x138] sm:$0xff]
      %v236 = vld [vmem:[%s1 + $0x140] sm:$0xff]
      %v237 = vld [vmem:[%s1 + $0x148] sm:$0xff]
      %v238 = vld [vmem:[%s1 + $0x150] sm:$0xff]
      %v239 = vld [vmem:[%s1 + $0x158] sm:$0xff]
      %v240 = vld [vmem:[%s1 + $0x160] sm:$0xff]
      %v241 = vld [vmem:[%s1 + $0x168] sm:$0xff]
      %v242 = vld [vmem:[%s1 + $0x170] sm:$0xff]
      %v243 = vld [vmem:[%s1 + $0x178] sm:$0xff]
      %v244 = vld [vmem:[%s1 + $0x180] sm:$0xff]
      %v245 = vld [vmem:[%s1 + $0x188] sm:$0xff]
      %v246 = vld [vmem:[%s1 + $0x190] sm:$0xff]
      %v247 = vld [vmem:[%s1 + $0x198] sm:$0xff]
      %v248 = vld [vmem:[%s1 + $0x1a0] sm:$0xff]
      %v249 = vld [vmem:[%s1 + $0x1a8] sm:$0xff]
      %v250 = vld [vmem:[%s1 + $0x1b0] sm:$0xff]
      %v251 = vld [vmem:[%s1 + $0x1b8] sm:$0xff]
      %v252 = vld [vmem:[%s1 + $0x1c0] sm:$0xff]
      %v253 = vld [vmem:[%s1 + $0x1c8] sm:$0xff]
      %v254 = vld [vmem:[%s1 + $0x1d0] sm:$0xff]
      %v255 = vld [vmem:[%s1 + $0x1d8] sm:$0xff]
      %v256 = vld [vmem:[%s1 + $0x1e0] sm:$0xff]
      %v257 = vld [vmem:[%s1 + $0x1e8] sm:$0xff]
      %v258 = vld [vmem:[%s1 + $0x1f0] sm:$0xff]
      %v259 = vld [vmem:[%s1 + $0x1f8] sm:$0xff]
      %v260 = vld [vmem:[%s1 + $0x200] sm:$0xff]
      %v261 = vld [vmem:[%s1 + $0x208] sm:$0xff]
      %v262 = vld [vmem:[%s1 + $0x210] sm:$0xff]
      %v263 = vld [vmem:[%s1 + $0x218] sm:$0xff]
      %v264 = vld [vmem:[%s1 + $0x220] sm:$0xff]
      %v265 = vld [vmem:[%s1 + $0x228] sm:$0xff]
      %v266 = vld [vmem:[%s1 + $0x230] sm:$0xff]
      %v267 = vld [vmem:[%s1 + $0x238] sm:$0xff]
      %v268 = vld [vmem:[%s2] sm:$0x3]
      %v285 = vunpack.c.l.b16 %v180
      %v286 = vunpack.c.l.b16 %v181
      %v287 = vunpack.c.l.b16 %v182
      %v288 = vunpack.c.l.b16 %v183
      %v289 = vunpack.c.l.b16 %v184
      %v290 = vunpack.c.l.b16 %v185
      %v291 = vunpack.c.l.b16 %v186
      %v292 = vunpack.c.l.b16 %v187
      %v293 = vunpack.c.l.b16 %v188
      %v294 = vunpack.c.l.b16 %v189
      %v295 = vunpack.c.l.b16 %v190
      %v296 = vunpack.c.l.b16 %v191
      %v297 = vunpack.c.l.b16 %v192
      %v298 = vunpack.c.l.b16 %v193
      %v299 = vunpack.c.l.b16 %v194
      %v300 = vunpack.c.l.b16 %v195
      %v301 = vpack.c.b16 %v285, %v285
      %v302 = vpack.c.b16 %v286, %v286
      %v303 = vpack.c.b16 %v287, %v287
      %v304 = vpack.c.b16 %v288, %v288
      %v305 = vpack.c.b16 %v289, %v289
      %v306 = vpack.c.b16 %v290, %v290
      %v307 = vpack.c.b16 %v291, %v291
      %v308 = vpack.c.b16 %v292, %v292
      %v309 = vpack.c.b16 %v293, %v293
      %v310 = vpack.c.b16 %v294, %v294
      %v311 = vpack.c.b16 %v295, %v295
      %v312 = vpack.c.b16 %v296, %v296
      %v313 = vpack.c.b16 %v297, %v297
      %v314 = vpack.c.b16 %v298, %v298
      %v315 = vpack.c.b16 %v299, %v299
      %v316 = vpack.c.b16 %v300, %v300
      %v318 = vshrl.u32 %v301, 16
      %v320 = vrot.slane %v318, 7
      %v321 = vshll.u32 %v301, 16
      %v323 = vor.u32 %v320, %v321
      %v325 = vshrl.u32 %v302, 16
      %v327 = vrot.slane %v325, 7
      %v328 = vshll.u32 %v302, 16
      %v330 = vor.u32 %v327, %v328
      %v332 = vshrl.u32 %v303, 16
      %v334 = vrot.slane %v332, 7
      %v335 = vshll.u32 %v303, 16
      %v337 = vor.u32 %v334, %v335
      %v339 = vshrl.u32 %v304, 16
      %v341 = vrot.slane %v339, 7
      %v342 = vshll.u32 %v304, 16
      %v344 = vor.u32 %v341, %v342
      %v346 = vshrl.u32 %v305, 16
      %v348 = vrot.slane %v346, 7
      %v349 = vshll.u32 %v305, 16
      %v351 = vor.u32 %v348, %v349
      %v353 = vshrl.u32 %v306, 16
      %v355 = vrot.slane %v353, 7
      %v356 = vshll.u32 %v306, 16
      %v358 = vor.u32 %v355, %v356
      %v360 = vshrl.u32 %v307, 16
      %v362 = vrot.slane %v360, 7
      %v363 = vshll.u32 %v307, 16
      %v365 = vor.u32 %v362, %v363
      %v367 = vshrl.u32 %v308, 16
      %v369 = vrot.slane %v367, 7
      %v370 = vshll.u32 %v308, 16
      %v372 = vor.u32 %v369, %v370
      %v374 = vshrl.u32 %v309, 16
      %v376 = vrot.slane %v374, 7
      %v377 = vshll.u32 %v309, 16
      %v379 = vor.u32 %v376, %v377
      %v381 = vshrl.u32 %v310, 16
      %v383 = vrot.slane %v381, 7
      %v384 = vshll.u32 %v310, 16
      %v386 = vor.u32 %v383, %v384
      %v388 = vshrl.u32 %v311, 16
      %v390 = vrot.slane %v388, 7
      %v391 = vshll.u32 %v311, 16
      %v393 = vor.u32 %v390, %v391
      %v395 = vshrl.u32 %v312, 16
      %v397 = vrot.slane %v395, 7
      %v398 = vshll.u32 %v312, 16
      %v400 = vor.u32 %v397, %v398
      %v402 = vshrl.u32 %v313, 16
      %v404 = vrot.slane %v402, 7
      %v405 = vshll.u32 %v313, 16
      %v407 = vor.u32 %v404, %v405
      %v409 = vshrl.u32 %v314, 16
      %v411 = vrot.slane %v409, 7
      %v412 = vshll.u32 %v314, 16
      %v414 = vor.u32 %v411, %v412
      %v416 = vshrl.u32 %v315, 16
      %v418 = vrot.slane %v416, 7
      %v419 = vshll.u32 %v315, 16
      %v421 = vor.u32 %v418, %v419
      %v423 = vshrl.u32 %v316, 16
      %v425 = vrot.slane %v423, 7
      %v426 = vshll.u32 %v316, 16
      %v428 = vor.u32 %v425, %v426
      %vm445 = vcmask 1040384
      %vm446 = vsmask.f32 256
      %vm447 = vmand %vm445, %vm446
      %v448 = vsel %vm447, 0, %v323
      %v449 = vsel %vm447, 0, %v330
      %v450 = vsel %vm447, 0, %v337
      %v451 = vsel %vm447, 0, %v344
      %v452 = vsel %vm447, 0, %v351
      %v453 = vsel %vm447, 0, %v358
      %v454 = vsel %vm447, 0, %v365
      %v455 = vsel %vm447, 0, %v372
      %v456 = vsel %vm447, 0, %v379
      %v457 = vsel %vm447, 0, %v386
      %v458 = vsel %vm447, 0, %v393
      %v459 = vsel %vm447, 0, %v400
      %v460 = vsel %vm447, 0, %v407
      %v461 = vsel %vm447, 0, %v414
      %v462 = vsel %vm447, 0, %v421
      %v463 = vsel %vm447, 0, %v428
      %v464 = vrot.slane %v321, 1
      %v465 = vor.u32 %v318, %v464
      %v466 = vrot.slane %v328, 1
      %v467 = vor.u32 %v325, %v466
      %v468 = vrot.slane %v335, 1
      %v469 = vor.u32 %v332, %v468
      %v470 = vrot.slane %v342, 1
      %v471 = vor.u32 %v339, %v470
      %v472 = vrot.slane %v349, 1
      %v473 = vor.u32 %v346, %v472
      %v474 = vrot.slane %v356, 1
      %v475 = vor.u32 %v353, %v474
      %v476 = vrot.slane %v363, 1
      %v477 = vor.u32 %v360, %v476
      %v478 = vrot.slane %v370, 1
      %v479 = vor.u32 %v367, %v478
      %v480 = vrot.slane %v377, 1
      %v481 = vor.u32 %v374, %v480
      %v482 = vrot.slane %v384, 1
      %v483 = vor.u32 %v381, %v482
      %v484 = vrot.slane %v391, 1
      %v485 = vor.u32 %v388, %v484
      %v486 = vrot.slane %v398, 1
      %v487 = vor.u32 %v395, %v486
      %v488 = vrot.slane %v405, 1
      %v489 = vor.u32 %v402, %v488
      %v490 = vrot.slane %v412, 1
      %v491 = vor.u32 %v409, %v490
      %v492 = vrot.slane %v419, 1
      %v493 = vor.u32 %v416, %v492
      %v494 = vrot.slane %v426, 1
      %v495 = vor.u32 %v423, %v494
      %vm512 = vcmask 1043456
      %vm513 = vsmask.f32 3328
      %vm514 = vmand %vm512, %vm513
      %v515 = vsel %vm514, %v465, 0
      %v516 = vsel %vm514, %v467, 0
      %v517 = vsel %vm514, %v469, 0
      %v518 = vsel %vm514, %v471, 0
      %v519 = vsel %vm514, %v473, 0
      %v520 = vsel %vm514, %v475, 0
      %v521 = vsel %vm514, %v477, 0
      %v522 = vsel %vm514, %v479, 0
      %v523 = vsel %vm514, %v481, 0
      %v524 = vsel %vm514, %v483, 0
      %v525 = vsel %vm514, %v485, 0
      %v526 = vsel %vm514, %v487, 0
      %v527 = vsel %vm514, %v489, 0
      %v528 = vsel %vm514, %v491, 0
      %v529 = vsel %vm514, %v493, 0
      %v530 = vsel %vm514, %v495, 0
      %531 = vrot.lane.b32.xlu0 %v301, 64
      %v532 = vpop.permute.xlu0 %531
      %533 = vrot.lane.b32.xlu0 %v302, 64
      %v534 = vpop.permute.xlu0 %533
      %535 = vrot.lane.b32.xlu0 %v303, 64
      %v536 = vpop.permute.xlu0 %535
      %537 = vrot.lane.b32.xlu0 %v304, 64
      %v538 = vpop.permute.xlu0 %537
      %539 = vrot.lane.b32.xlu0 %v305, 64
      %v540 = vpop.permute.xlu0 %539
      %541 = vrot.lane.b32.xlu0 %v306, 64
      %v542 = vpop.permute.xlu0 %541
      %543 = vrot.lane.b32.xlu0 %v307, 64
      %v544 = vpop.permute.xlu0 %543
      %545 = vrot.lane.b32.xlu0 %v308, 64
      %v546 = vpop.permute.xlu0 %545
      %547 = vrot.lane.b32.xlu0 %v309, 64
      %v548 = vpop.permute.xlu0 %547
      %549 = vrot.lane.b32.xlu0 %v310, 64
      %v550 = vpop.permute.xlu0 %549
      %551 = vrot.lane.b32.xlu0 %v311, 64
      %v552 = vpop.permute.xlu0 %551
      %553 = vrot.lane.b32.xlu0 %v312, 64
      %v554 = vpop.permute.xlu0 %553
      %555 = vrot.lane.b32.xlu0 %v313, 64
      %v556 = vpop.permute.xlu0 %555
      %557 = vrot.lane.b32.xlu0 %v314, 64
      %v558 = vpop.permute.xlu0 %557
      %559 = vrot.lane.b32.xlu0 %v315, 64
      %v560 = vpop.permute.xlu0 %559
      %561 = vrot.lane.b32.xlu0 %v316, 64
      %v562 = vpop.permute.xlu0 %561
      %vm563 = vcmask 523264
      %v566 = vsel %vm563, %v448, %v532
      %v569 = vsel %vm563, %v449, %v534
      %v572 = vsel %vm563, %v450, %v536
      %v575 = vsel %vm563, %v451, %v538
      %v578 = vsel %vm563, %v452, %v540
      %v581 = vsel %vm563, %v453, %v542
      %v584 = vsel %vm563, %v454, %v544
      %v587 = vsel %vm563, %v455, %v546
      %v590 = vsel %vm563, %v456, %v548
      %v593 = vsel %vm563, %v457, %v550
      %v596 = vsel %vm563, %v458, %v552
      %v599 = vsel %vm563, %v459, %v554
      %v602 = vsel %vm563, %v460, %v556
      %v605 = vsel %vm563, %v461, %v558
      %v608 = vsel %vm563, %v462, %v560
      %v611 = vsel %vm563, %v463, %v562
      %v641 = vunpack.c.l.b16 0
      %v642 = vunpack.c.l.b16 %v566
      %v643 = vunpack.c.l.b16 %v515
      %v644 = vunpack.c.l.b16 %v569
      %v645 = vunpack.c.l.b16 %v516
      %v646 = vunpack.c.l.b16 %v572
      %v647 = vunpack.c.l.b16 %v517
      %v648 = vunpack.c.l.b16 %v575
      %v649 = vunpack.c.l.b16 %v518
      %v650 = vunpack.c.l.b16 %v578
      %v651 = vunpack.c.l.b16 %v519
      %v652 = vunpack.c.l.b16 %v581
      %v653 = vunpack.c.l.b16 %v520
      %v654 = vunpack.c.l.b16 %v584
      %v655 = vunpack.c.l.b16 %v521
      %v656 = vunpack.c.l.b16 %v590
      %v657 = vunpack.c.l.b16 %v523
      %v658 = vunpack.c.l.b16 %v593
      %v659 = vunpack.c.l.b16 %v524
      %v660 = vunpack.c.l.b16 %v596
      %v661 = vunpack.c.l.b16 %v525
      %v662 = vunpack.c.l.b16 %v599
      %v663 = vunpack.c.l.b16 %v526
      %v664 = vunpack.c.l.b16 %v602
      %v665 = vunpack.c.l.b16 %v527
      %v666 = vunpack.c.l.b16 %v605
      %v667 = vunpack.c.l.b16 %v528
      %v668 = vunpack.c.l.b16 %v608
      %v669 = vunpack.c.l.b16 %v529
      %v674 = vunpack.c.l.b16 %v587
      %v675 = vunpack.c.l.b16 %v522
      %v676 = vunpack.c.l.b16 %v611
      %v677 = vunpack.c.l.b16 %v530
      %v678 = vpack.c.b16 %v644, %v642
      %v679 = vpack.c.b16 %v645, %v643
      %v680 = vpack.c.b16 %v648, %v646
      %v681 = vpack.c.b16 %v649, %v647
      %v682 = vpack.c.b16 %v652, %v650
      %v683 = vpack.c.b16 %v653, %v651
      %v684 = vpack.c.b16 %v674, %v654
      %v685 = vpack.c.b16 %v675, %v655
      %v686 = vpack.c.b16 %v658, %v656
      %v687 = vpack.c.b16 %v659, %v657
      %v688 = vpack.c.b16 %v662, %v660
      %v689 = vpack.c.b16 %v663, %v661
      %v690 = vpack.c.b16 %v666, %v664
      %v691 = vpack.c.b16 %v667, %v665
      %v692 = vpack.c.b16 %v676, %v668
      %v693 = vpack.c.b16 %v677, %v669
      %v726 = vunpack.c.l.b16 %v220
      %v727 = vunpack.c.h.b16 %v220
      %v728 = vunpack.c.l.b16 %v221
      %v729 = vunpack.c.h.b16 %v221
      %v730 = vunpack.c.l.b16 %v222
      %v731 = vunpack.c.h.b16 %v222
      %v732 = vunpack.c.l.b16 %v223
      %v733 = vunpack.c.h.b16 %v223
      %v734 = vunpack.c.l.b16 %v224
      %v735 = vunpack.c.h.b16 %v224
      %v736 = vunpack.c.l.b16 %v225
      %v737 = vunpack.c.h.b16 %v225
      %v738 = vunpack.c.l.b16 %v226
      %v739 = vunpack.c.h.b16 %v226
      %v740 = vunpack.c.l.b16 %v227
      %v741 = vunpack.c.h.b16 %v227
      %v742 = vunpack.c.l.b16 %v228
      %v743 = vunpack.c.h.b16 %v228
      %v744 = vunpack.c.l.b16 %v229
      %v745 = vunpack.c.h.b16 %v229
      %v746 = vunpack.c.l.b16 %v230
      %v747 = vunpack.c.h.b16 %v230
      %v748 = vunpack.c.l.b16 %v231
      %v749 = vunpack.c.h.b16 %v231
      %v750 = vunpack.c.l.b16 %v232
      %v751 = vunpack.c.h.b16 %v232
      %v752 = vunpack.c.l.b16 %v233
      %v753 = vunpack.c.h.b16 %v233
      %v754 = vunpack.c.l.b16 %v234
      %v755 = vunpack.c.h.b16 %v234
      %v756 = vunpack.c.l.b16 %v235
      %v757 = vunpack.c.h.b16 %v235
      %v758 = vunpack.c.l.b16 %v236
      %v759 = vunpack.c.h.b16 %v236
      %v760 = vunpack.c.l.b16 %v237
      %v761 = vunpack.c.h.b16 %v237
      %v762 = vunpack.c.l.b16 %v238
      %v763 = vunpack.c.h.b16 %v238
      %v764 = vunpack.c.l.b16 %v239
      %v765 = vunpack.c.h.b16 %v239
      %v766 = vunpack.c.l.b16 %v240
      %v767 = vunpack.c.h.b16 %v240
      %v768 = vunpack.c.l.b16 %v241
      %v769 = vunpack.c.h.b16 %v241
      %v770 = vunpack.c.l.b16 %v242
      %v771 = vunpack.c.h.b16 %v242
      %v772 = vunpack.c.l.b16 %v243
      %v773 = vunpack.c.h.b16 %v243
      %v774 = vpack.c.b16 %v728, %v726
      %v775 = vpack.c.b16 %v729, %v727
      %v776 = vpack.c.b16 %v732, %v730
      %v777 = vpack.c.b16 %v733, %v731
      %v778 = vpack.c.b16 %v736, %v734
      %v779 = vpack.c.b16 %v737, %v735
      %v780 = vpack.c.b16 %v740, %v738
      %v781 = vpack.c.b16 %v741, %v739
      %v782 = vpack.c.b16 %v744, %v742
      %v783 = vpack.c.b16 %v745, %v743
      %v784 = vpack.c.b16 %v748, %v746
      %v785 = vpack.c.b16 %v749, %v747
      %v786 = vpack.c.b16 %v752, %v750
      %v787 = vpack.c.b16 %v753, %v751
      %v788 = vpack.c.b16 %v756, %v754
      %v789 = vpack.c.b16 %v757, %v755
      %v790 = vpack.c.b16 %v760, %v758
      %v791 = vpack.c.b16 %v761, %v759
      %v792 = vpack.c.b16 %v764, %v762
      %v793 = vpack.c.b16 %v765, %v763
      %v794 = vpack.c.b16 %v768, %v766
      %v795 = vpack.c.b16 %v769, %v767
      %v796 = vpack.c.b16 %v772, %v770
      %v797 = vpack.c.b16 %v773, %v771
      %v823 = vsel %vm563, %v679, 0
      %v826 = vsel %vm563, %v681, 0
      %v829 = vsel %vm563, %v683, 0
      %v832 = vsel %vm563, %v685, 0
      %v835 = vsel %vm563, %v687, 0
      %v838 = vsel %vm563, %v689, 0
      %v841 = vsel %vm563, %v691, 0
      %v844 = vsel %vm563, %v693, 0
      %846 = vmatpush.bf16.msra.mxu0 %v788
      %847 = vmatpush.bf16.msra.mxu0 %v786
      %848 = vmatpush.bf16.msra.mxu0 %v784
      %849 = vmatpush.bf16.msra.mxu0 %v782
      %850 = vmatpush.bf16.msra.mxu0 %v780
      %851 = vmatpush.bf16.msra.mxu0 %v778
      %852 = vmatpush.bf16.msra.mxu0 %v776
      %853 = vmatpush.bf16.msra.mxu0 %v774
      %854 = vmatmul.bf16.gmra.mxu0 %v678
      %v855 = vpop.f32.mrf.mxu0
      %v856 = vadd.f32 0.0, %v855
      %v857 = vpop.f32.mrf.mxu0
      %v858 = vadd.f32 0.0, %v857
      %859 = vmatmul.bf16.gmra.mxu0 %v680
      %v860 = vpop.f32.mrf.mxu0
      %v861 = vadd.f32 0.0, %v860
      %v862 = vpop.f32.mrf.mxu0
      %v863 = vadd.f32 0.0, %v862
      %864 = vmatmul.bf16.gmra.mxu0 %v682
      %v865 = vpop.f32.mrf.mxu0
      %v866 = vadd.f32 0.0, %v865
      %v867 = vpop.f32.mrf.mxu0
      %v868 = vadd.f32 0.0, %v867
      %869 = vmatmul.bf16.gmra.mxu0 %v684
      %v870 = vpop.f32.mrf.mxu0
      %v871 = vadd.f32 0.0, %v870
      %v872 = vpop.f32.mrf.mxu0
      %v873 = vadd.f32 0.0, %v872
      %874 = vmatmul.bf16.gmra.mxu0 %v686
      %v875 = vpop.f32.mrf.mxu0
      %v876 = vadd.f32 0.0, %v875
      %v877 = vpop.f32.mrf.mxu0
      %v878 = vadd.f32 0.0, %v877
      %879 = vmatmul.bf16.gmra.mxu0 %v688
      %v880 = vpop.f32.mrf.mxu0
      %v881 = vadd.f32 0.0, %v880
      %v882 = vpop.f32.mrf.mxu0
      %v883 = vadd.f32 0.0, %v882
      %884 = vmatmul.bf16.gmra.mxu0 %v690
      %v885 = vpop.f32.mrf.mxu0
      %v886 = vadd.f32 0.0, %v885
      %v887 = vpop.f32.mrf.mxu0
      %v888 = vadd.f32 0.0, %v887
      %889 = vmatmul.bf16.gmra.mxu0 %v692
      %v890 = vpop.f32.mrf.mxu0
      %v891 = vadd.f32 0.0, %v890
      %v892 = vpop.f32.mrf.mxu0
      %v893 = vadd.f32 0.0, %v892
      %894 = vdwg.mxu0
      %895 = vmatpush.bf16.msra.mxu0 0
      %896 = vmatpush.bf16.msra.mxu0 0
      %897 = vmatpush.bf16.msra.mxu0 0
      %898 = vmatpush.bf16.msra.mxu0 0
      %899 = vmatpush.bf16.msra.mxu0 %v796
      %900 = vmatpush.bf16.msra.mxu0 %v794
      %901 = vmatpush.bf16.msra.mxu0 %v792
      %902 = vmatpush.bf16.msra.mxu0 %v790
      %903 = vmatmul.bf16.gmra.mxu0 %v823
      %v904 = vpop.f32.mrf.mxu0
      %v905 = vadd.f32 %v856, %v904
      %v906 = vpop.f32.mrf.mxu0
      %v907 = vadd.f32 %v858, %v906
      %908 = vmatmul.bf16.gmra.mxu0 %v826
      %v909 = vpop.f32.mrf.mxu0
      %v910 = vadd.f32 %v861, %v909
      %v911 = vpop.f32.mrf.mxu0
      %v912 = vadd.f32 %v863, %v911
      %913 = vmatmul.bf16.gmra.mxu0 %v829
      %v914 = vpop.f32.mrf.mxu0
      %v915 = vadd.f32 %v866, %v914
      %v916 = vpop.f32.mrf.mxu0
      %v917 = vadd.f32 %v868, %v916
      %918 = vmatmul.bf16.gmra.mxu0 %v832
      %v919 = vpop.f32.mrf.mxu0
      %v920 = vadd.f32 %v871, %v919
      %v921 = vpop.f32.mrf.mxu0
      %v922 = vadd.f32 %v873, %v921
      %923 = vmatmul.bf16.gmra.mxu0 %v835
      %v924 = vpop.f32.mrf.mxu0
      %v925 = vadd.f32 %v876, %v924
      %v926 = vpop.f32.mrf.mxu0
      %v927 = vadd.f32 %v878, %v926
      %928 = vmatmul.bf16.gmra.mxu0 %v838
      %v929 = vpop.f32.mrf.mxu0
      %v930 = vadd.f32 %v881, %v929
      %v931 = vpop.f32.mrf.mxu0
      %v932 = vadd.f32 %v883, %v931
      %933 = vmatmul.bf16.gmra.mxu0 %v841
      %v934 = vpop.f32.mrf.mxu0
      %v935 = vadd.f32 %v886, %v934
      %v936 = vpop.f32.mrf.mxu0
      %v937 = vadd.f32 %v888, %v936
      %938 = vmatmul.bf16.gmra.mxu0 %v844
      %v939 = vpop.f32.mrf.mxu0
      %v940 = vadd.f32 %v891, %v939
      %v941 = vpop.f32.mrf.mxu0
      %v942 = vadd.f32 %v893, %v941
      %943 = vdwg.mxu0
      %944 = vmatpush.bf16.msra.mxu0 %v789
      %945 = vmatpush.bf16.msra.mxu0 %v787
      %946 = vmatpush.bf16.msra.mxu0 %v785
      %947 = vmatpush.bf16.msra.mxu0 %v783
      %948 = vmatpush.bf16.msra.mxu0 %v781
      %949 = vmatpush.bf16.msra.mxu0 %v779
      %950 = vmatpush.bf16.msra.mxu0 %v777
      %951 = vmatpush.bf16.msra.mxu0 %v775
      %952 = vmatmul.bf16.gmra.mxu0 %v678
      %v953 = vpop.f32.mrf.mxu0
      %v954 = vadd.f32 0.0, %v953
      %v955 = vpop.f32.mrf.mxu0
      %v956 = vadd.f32 0.0, %v955
      %957 = vmatmul.bf16.gmra.mxu0 %v680
      %v958 = vpop.f32.mrf.mxu0
      %v959 = vadd.f32 0.0, %v958
      %v960 = vpop.f32.mrf.mxu0
      %v961 = vadd.f32 0.0, %v960
      %962 = vmatmul.bf16.gmra.mxu0 %v682
      %v963 = vpop.f32.mrf.mxu0
      %v964 = vadd.f32 0.0, %v963
      %v965 = vpop.f32.mrf.mxu0
      %v966 = vadd.f32 0.0, %v965
      %967 = vmatmul.bf16.gmra.mxu0 %v684
      %v968 = vpop.f32.mrf.mxu0
      %v969 = vadd.f32 0.0, %v968
      %v970 = vpop.f32.mrf.mxu0
      %v971 = vadd.f32 0.0, %v970
      %972 = vmatmul.bf16.gmra.mxu0 %v686
      %v973 = vpop.f32.mrf.mxu0
      %v974 = vadd.f32 0.0, %v973
      %v975 = vpop.f32.mrf.mxu0
      %v976 = vadd.f32 0.0, %v975
      %977 = vmatmul.bf16.gmra.mxu0 %v688
      %v978 = vpop.f32.mrf.mxu0
      %v979 = vadd.f32 0.0, %v978
      %v980 = vpop.f32.mrf.mxu0
      %v981 = vadd.f32 0.0, %v980
      %982 = vmatmul.bf16.gmra.mxu0 %v690
      %v983 = vpop.f32.mrf.mxu0
      %v984 = vadd.f32 0.0, %v983
      %v985 = vpop.f32.mrf.mxu0
      %v986 = vadd.f32 0.0, %v985
      %987 = vmatmul.bf16.gmra.mxu0 %v692
      %v988 = vpop.f32.mrf.mxu0
      %v989 = vadd.f32 0.0, %v988
      %v990 = vpop.f32.mrf.mxu0
      %v991 = vadd.f32 0.0, %v990
      %992 = vdwg.mxu0
      %993 = vmatpush.bf16.msra.mxu0 0
      %994 = vmatpush.bf16.msra.mxu0 0
      %995 = vmatpush.bf16.msra.mxu0 0
      %996 = vmatpush.bf16.msra.mxu0 0
      %997 = vmatpush.bf16.msra.mxu0 %v797
      %998 = vmatpush.bf16.msra.mxu0 %v795
      %999 = vmatpush.bf16.msra.mxu0 %v793
      %1000 = vmatpush.bf16.msra.mxu0 %v791
      %1001 = vmatmul.bf16.gmra.mxu0 %v823
      %v1002 = vpop.f32.mrf.mxu0
      %v1003 = vadd.f32 %v954, %v1002
      %v1004 = vpop.f32.mrf.mxu0
      %v1005 = vadd.f32 %v956, %v1004
      %1006 = vmatmul.bf16.gmra.mxu0 %v826
      %v1007 = vpop.f32.mrf.mxu0
      %v1008 = vadd.f32 %v959, %v1007
      %v1009 = vpop.f32.mrf.mxu0
      %v1010 = vadd.f32 %v961, %v1009
      %1011 = vmatmul.bf16.gmra.mxu0 %v829
      %v1012 = vpop.f32.mrf.mxu0
      %v1013 = vadd.f32 %v964, %v1012
      %v1014 = vpop.f32.mrf.mxu0
      %v1015 = vadd.f32 %v966, %v1014
      %1016 = vmatmul.bf16.gmra.mxu0 %v832
      %v1017 = vpop.f32.mrf.mxu0
      %v1018 = vadd.f32 %v969, %v1017
      %v1019 = vpop.f32.mrf.mxu0
      %v1020 = vadd.f32 %v971, %v1019
      %1021 = vmatmul.bf16.gmra.mxu0 %v835
      %v1022 = vpop.f32.mrf.mxu0
      %v1023 = vadd.f32 %v974, %v1022
      %v1024 = vpop.f32.mrf.mxu0
      %v1025 = vadd.f32 %v976, %v1024
      %1026 = vmatmul.bf16.gmra.mxu0 %v838
      %v1027 = vpop.f32.mrf.mxu0
      %v1028 = vadd.f32 %v979, %v1027
      %v1029 = vpop.f32.mrf.mxu0
      %v1030 = vadd.f32 %v981, %v1029
      %1031 = vmatmul.bf16.gmra.mxu0 %v841
      %v1032 = vpop.f32.mrf.mxu0
      %v1033 = vadd.f32 %v984, %v1032
      %v1034 = vpop.f32.mrf.mxu0
      %v1035 = vadd.f32 %v986, %v1034
      %1036 = vmatmul.bf16.gmra.mxu0 %v844
      %v1037 = vpop.f32.mrf.mxu0
      %v1038 = vadd.f32 %v989, %v1037
      %v1039 = vpop.f32.mrf.mxu0
      %v1040 = vadd.f32 %v991, %v1039
      %1041 = vdwg.mxu0
      %v1042 = vpack.c.b16 %v642, %v641
      %v1043 = vpack.c.b16 %v643, %v641
      %v1044 = vpack.c.b16 %v646, %v644
      %v1045 = vpack.c.b16 %v647, %v645
      %v1046 = vpack.c.b16 %v650, %v648
      %v1047 = vpack.c.b16 %v651, %v649
      %v1048 = vpack.c.b16 %v654, %v652
      %v1049 = vpack.c.b16 %v655, %v653
      %v1050 = vpack.c.b16 %v656, %v641
      %v1051 = vpack.c.b16 %v657, %v641
      %v1052 = vpack.c.b16 %v660, %v658
      %v1053 = vpack.c.b16 %v661, %v659
      %v1054 = vpack.c.b16 %v664, %v662
      %v1055 = vpack.c.b16 %v665, %v663
      %v1056 = vpack.c.b16 %v668, %v666
      %v1057 = vpack.c.b16 %v669, %v667
      %v1090 = vunpack.c.l.b16 %v196
      %v1091 = vunpack.c.h.b16 %v196
      %v1092 = vunpack.c.l.b16 %v197
      %v1093 = vunpack.c.h.b16 %v197
      %v1094 = vunpack.c.l.b16 %v198
      %v1095 = vunpack.c.h.b16 %v198
      %v1096 = vunpack.c.l.b16 %v199
      %v1097 = vunpack.c.h.b16 %v199
      %v1098 = vunpack.c.l.b16 %v200
      %v1099 = vunpack.c.h.b16 %v200
      %v1100 = vunpack.c.l.b16 %v201
      %v1101 = vunpack.c.h.b16 %v201
      %v1102 = vunpack.c.l.b16 %v202
      %v1103 = vunpack.c.h.b16 %v202
      %v1104 = vunpack.c.l.b16 %v203
      %v1105 = vunpack.c.h.b16 %v203
      %v1106 = vunpack.c.l.b16 %v204
      %v1107 = vunpack.c.h.b16 %v204
      %v1108 = vunpack.c.l.b16 %v205
      %v1109 = vunpack.c.h.b16 %v205
      %v1110 = vunpack.c.l.b16 %v206
      %v1111 = vunpack.c.h.b16 %v206
      %v1112 = vunpack.c.l.b16 %v207
      %v1113 = vunpack.c.h.b16 %v207
      %v1114 = vunpack.c.l.b16 %v208
      %v1115 = vunpack.c.h.b16 %v208
      %v1116 = vunpack.c.l.b16 %v209
      %v1117 = vunpack.c.h.b16 %v209
      %v1118 = vunpack.c.l.b16 %v210
      %v1119 = vunpack.c.h.b16 %v210
      %v1120 = vunpack.c.l.b16 %v211
      %v1121 = vunpack.c.h.b16 %v211
      %v1122 = vunpack.c.l.b16 %v212
      %v1123 = vunpack.c.h.b16 %v212
      %v1124 = vunpack.c.l.b16 %v213
      %v1125 = vunpack.c.h.b16 %v213
      %v1126 = vunpack.c.l.b16 %v214
      %v1127 = vunpack.c.h.b16 %v214
      %v1128 = vunpack.c.l.b16 %v215
      %v1129 = vunpack.c.h.b16 %v215
      %v1130 = vunpack.c.l.b16 %v216
      %v1131 = vunpack.c.h.b16 %v216
      %v1132 = vunpack.c.l.b16 %v217
      %v1133 = vunpack.c.h.b16 %v217
      %v1134 = vunpack.c.l.b16 %v218
      %v1135 = vunpack.c.h.b16 %v218
      %v1136 = vunpack.c.l.b16 %v219
      %v1137 = vunpack.c.h.b16 %v219
      %v1138 = vpack.c.b16 %v1092, %v1090
      %v1139 = vpack.c.b16 %v1093, %v1091
      %v1140 = vpack.c.b16 %v1096, %v1094
      %v1141 = vpack.c.b16 %v1097, %v1095
      %v1142 = vpack.c.b16 %v1100, %v1098
      %v1143 = vpack.c.b16 %v1101, %v1099
      %v1144 = vpack.c.b16 %v1104, %v1102
      %v1145 = vpack.c.b16 %v1105, %v1103
      %v1146 = vpack.c.b16 %v1108, %v1106
      %v1147 = vpack.c.b16 %v1109, %v1107
      %v1148 = vpack.c.b16 %v1112, %v1110
      %v1149 = vpack.c.b16 %v1113, %v1111
      %v1150 = vpack.c.b16 %v1116, %v1114
      %v1151 = vpack.c.b16 %v1117, %v1115
      %v1152 = vpack.c.b16 %v1120, %v1118
      %v1153 = vpack.c.b16 %v1121, %v1119
      %v1154 = vpack.c.b16 %v1124, %v1122
      %v1155 = vpack.c.b16 %v1125, %v1123
      %v1156 = vpack.c.b16 %v1128, %v1126
      %v1157 = vpack.c.b16 %v1129, %v1127
      %v1158 = vpack.c.b16 %v1132, %v1130
      %v1159 = vpack.c.b16 %v1133, %v1131
      %v1160 = vpack.c.b16 %v1136, %v1134
      %v1161 = vpack.c.b16 %v1137, %v1135
      %v1187 = vsel %vm563, %v1043, 0
      %v1190 = vsel %vm563, %v1045, 0
      %v1193 = vsel %vm563, %v1047, 0
      %v1196 = vsel %vm563, %v1049, 0
      %v1199 = vsel %vm563, %v1051, 0
      %v1202 = vsel %vm563, %v1053, 0
      %v1205 = vsel %vm563, %v1055, 0
      %v1208 = vsel %vm563, %v1057, 0
      %1210 = vmatpush.bf16.msra.mxu0 %v1152
      %1211 = vmatpush.bf16.msra.mxu0 %v1150
      %1212 = vmatpush.bf16.msra.mxu0 %v1148
      %1213 = vmatpush.bf16.msra.mxu0 %v1146
      %1214 = vmatpush.bf16.msra.mxu0 %v1144
      %1215 = vmatpush.bf16.msra.mxu0 %v1142
      %1216 = vmatpush.bf16.msra.mxu0 %v1140
      %1217 = vmatpush.bf16.msra.mxu0 %v1138
      %1218 = vmatmul.bf16.gmra.mxu0 %v1042
      %v1219 = vpop.f32.mrf.mxu0
      %v1220 = vadd.f32 %v905, %v1219
      %v1221 = vpop.f32.mrf.mxu0
      %v1222 = vadd.f32 %v907, %v1221
      %1223 = vmatmul.bf16.gmra.mxu0 %v1044
      %v1224 = vpop.f32.mrf.mxu0
      %v1225 = vadd.f32 %v910, %v1224
      %v1226 = vpop.f32.mrf.mxu0
      %v1227 = vadd.f32 %v912, %v1226
      %1228 = vmatmul.bf16.gmra.mxu0 %v1046
      %v1229 = vpop.f32.mrf.mxu0
      %v1230 = vadd.f32 %v915, %v1229
      %v1231 = vpop.f32.mrf.mxu0
      %v1232 = vadd.f32 %v917, %v1231
      %1233 = vmatmul.bf16.gmra.mxu0 %v1048
      %v1234 = vpop.f32.mrf.mxu0
      %v1235 = vadd.f32 %v920, %v1234
      %v1236 = vpop.f32.mrf.mxu0
      %v1237 = vadd.f32 %v922, %v1236
      %1238 = vmatmul.bf16.gmra.mxu0 %v1050
      %v1239 = vpop.f32.mrf.mxu0
      %v1240 = vadd.f32 %v925, %v1239
      %v1241 = vpop.f32.mrf.mxu0
      %v1242 = vadd.f32 %v927, %v1241
      %1243 = vmatmul.bf16.gmra.mxu0 %v1052
      %v1244 = vpop.f32.mrf.mxu0
      %v1245 = vadd.f32 %v930, %v1244
      %v1246 = vpop.f32.mrf.mxu0
      %v1247 = vadd.f32 %v932, %v1246
      %1248 = vmatmul.bf16.gmra.mxu0 %v1054
      %v1249 = vpop.f32.mrf.mxu0
      %v1250 = vadd.f32 %v935, %v1249
      %v1251 = vpop.f32.mrf.mxu0
      %v1252 = vadd.f32 %v937, %v1251
      %1253 = vmatmul.bf16.gmra.mxu0 %v1056
      %v1254 = vpop.f32.mrf.mxu0
      %v1255 = vadd.f32 %v940, %v1254
      %v1256 = vpop.f32.mrf.mxu0
      %v1257 = vadd.f32 %v942, %v1256
      %1258 = vdwg.mxu0
      %1259 = vmatpush.bf16.msra.mxu0 0
      %1260 = vmatpush.bf16.msra.mxu0 0
      %1261 = vmatpush.bf16.msra.mxu0 0
      %1262 = vmatpush.bf16.msra.mxu0 0
      %1263 = vmatpush.bf16.msra.mxu0 %v1160
      %1264 = vmatpush.bf16.msra.mxu0 %v1158
      %1265 = vmatpush.bf16.msra.mxu0 %v1156
      %1266 = vmatpush.bf16.msra.mxu0 %v1154
      %1267 = vmatmul.bf16.gmra.mxu0 %v1187
      %v1268 = vpop.f32.mrf.mxu0
      %v1269 = vadd.f32 %v1220, %v1268
      %v1270 = vpop.f32.mrf.mxu0
      %v1271 = vadd.f32 %v1222, %v1270
      %1272 = vmatmul.bf16.gmra.mxu0 %v1190
      %v1273 = vpop.f32.mrf.mxu0
      %v1274 = vadd.f32 %v1225, %v1273
      %v1275 = vpop.f32.mrf.mxu0
      %v1276 = vadd.f32 %v1227, %v1275
      %1277 = vmatmul.bf16.gmra.mxu0 %v1193
      %v1278 = vpop.f32.mrf.mxu0
      %v1279 = vadd.f32 %v1230, %v1278
      %v1280 = vpop.f32.mrf.mxu0
      %v1281 = vadd.f32 %v1232, %v1280
      %1282 = vmatmul.bf16.gmra.mxu0 %v1196
      %v1283 = vpop.f32.mrf.mxu0
      %v1284 = vadd.f32 %v1235, %v1283
      %v1285 = vpop.f32.mrf.mxu0
      %v1286 = vadd.f32 %v1237, %v1285
      %1287 = vmatmul.bf16.gmra.mxu0 %v1199
      %v1288 = vpop.f32.mrf.mxu0
      %v1289 = vadd.f32 %v1240, %v1288
      %v1290 = vpop.f32.mrf.mxu0
      %v1291 = vadd.f32 %v1242, %v1290
      %1292 = vmatmul.bf16.gmra.mxu0 %v1202
      %v1293 = vpop.f32.mrf.mxu0
      %v1294 = vadd.f32 %v1245, %v1293
      %v1295 = vpop.f32.mrf.mxu0
      %v1296 = vadd.f32 %v1247, %v1295
      %1297 = vmatmul.bf16.gmra.mxu0 %v1205
      %v1298 = vpop.f32.mrf.mxu0
      %v1299 = vadd.f32 %v1250, %v1298
      %v1300 = vpop.f32.mrf.mxu0
      %v1301 = vadd.f32 %v1252, %v1300
      %1302 = vmatmul.bf16.gmra.mxu0 %v1208
      %v1303 = vpop.f32.mrf.mxu0
      %v1304 = vadd.f32 %v1255, %v1303
      %v1305 = vpop.f32.mrf.mxu0
      %v1306 = vadd.f32 %v1257, %v1305
      %1307 = vdwg.mxu0
      %1308 = vmatpush.bf16.msra.mxu0 %v1153
      %1309 = vmatpush.bf16.msra.mxu0 %v1151
      %1310 = vmatpush.bf16.msra.mxu0 %v1149
      %1311 = vmatpush.bf16.msra.mxu0 %v1147
      %1312 = vmatpush.bf16.msra.mxu0 %v1145
      %1313 = vmatpush.bf16.msra.mxu0 %v1143
      %1314 = vmatpush.bf16.msra.mxu0 %v1141
      %1315 = vmatpush.bf16.msra.mxu0 %v1139
      %1316 = vmatmul.bf16.gmra.mxu0 %v1042
      %v1317 = vpop.f32.mrf.mxu0
      %v1318 = vadd.f32 %v1003, %v1317
      %v1319 = vpop.f32.mrf.mxu0
      %v1320 = vadd.f32 %v1005, %v1319
      %1321 = vmatmul.bf16.gmra.mxu0 %v1044
      %v1322 = vpop.f32.mrf.mxu0
      %v1323 = vadd.f32 %v1008, %v1322
      %v1324 = vpop.f32.mrf.mxu0
      %v1325 = vadd.f32 %v1010, %v1324
      %1326 = vmatmul.bf16.gmra.mxu0 %v1046
      %v1327 = vpop.f32.mrf.mxu0
      %v1328 = vadd.f32 %v1013, %v1327
      %v1329 = vpop.f32.mrf.mxu0
      %v1330 = vadd.f32 %v1015, %v1329
      %1331 = vmatmul.bf16.gmra.mxu0 %v1048
      %v1332 = vpop.f32.mrf.mxu0
      %v1333 = vadd.f32 %v1018, %v1332
      %v1334 = vpop.f32.mrf.mxu0
      %v1335 = vadd.f32 %v1020, %v1334
      %1336 = vmatmul.bf16.gmra.mxu0 %v1050
      %v1337 = vpop.f32.mrf.mxu0
      %v1338 = vadd.f32 %v1023, %v1337
      %v1339 = vpop.f32.mrf.mxu0
      %v1340 = vadd.f32 %v1025, %v1339
      %1341 = vmatmul.bf16.gmra.mxu0 %v1052
      %v1342 = vpop.f32.mrf.mxu0
      %v1343 = vadd.f32 %v1028, %v1342
      %v1344 = vpop.f32.mrf.mxu0
      %v1345 = vadd.f32 %v1030, %v1344
      %1346 = vmatmul.bf16.gmra.mxu0 %v1054
      %v1347 = vpop.f32.mrf.mxu0
      %v1348 = vadd.f32 %v1033, %v1347
      %v1349 = vpop.f32.mrf.mxu0
      %v1350 = vadd.f32 %v1035, %v1349
      %1351 = vmatmul.bf16.gmra.mxu0 %v1056
      %v1352 = vpop.f32.mrf.mxu0
      %v1353 = vadd.f32 %v1038, %v1352
      %v1354 = vpop.f32.mrf.mxu0
      %v1355 = vadd.f32 %v1040, %v1354
      %1356 = vdwg.mxu0
      %1357 = vmatpush.bf16.msra.mxu0 0
      %1358 = vmatpush.bf16.msra.mxu0 0
      %1359 = vmatpush.bf16.msra.mxu0 0
      %1360 = vmatpush.bf16.msra.mxu0 0
      %1361 = vmatpush.bf16.msra.mxu0 %v1161
      %1362 = vmatpush.bf16.msra.mxu0 %v1159
      %1363 = vmatpush.bf16.msra.mxu0 %v1157
      %1364 = vmatpush.bf16.msra.mxu0 %v1155
      %1365 = vmatmul.bf16.gmra.mxu0 %v1187
      %v1366 = vpop.f32.mrf.mxu0
      %v1367 = vadd.f32 %v1318, %v1366
      %v1368 = vpop.f32.mrf.mxu0
      %v1369 = vadd.f32 %v1320, %v1368
      %1370 = vmatmul.bf16.gmra.mxu0 %v1190
      %v1371 = vpop.f32.mrf.mxu0
      %v1372 = vadd.f32 %v1323, %v1371
      %v1373 = vpop.f32.mrf.mxu0
      %v1374 = vadd.f32 %v1325, %v1373
      %1375 = vmatmul.bf16.gmra.mxu0 %v1193
      %v1376 = vpop.f32.mrf.mxu0
      %v1377 = vadd.f32 %v1328, %v1376
      %v1378 = vpop.f32.mrf.mxu0
      %v1379 = vadd.f32 %v1330, %v1378
      %1380 = vmatmul.bf16.gmra.mxu0 %v1196
      %v1381 = vpop.f32.mrf.mxu0
      %v1382 = vadd.f32 %v1333, %v1381
      %v1383 = vpop.f32.mrf.mxu0
      %v1384 = vadd.f32 %v1335, %v1383
      %1385 = vmatmul.bf16.gmra.mxu0 %v1199
      %v1386 = vpop.f32.mrf.mxu0
      %v1387 = vadd.f32 %v1338, %v1386
      %v1388 = vpop.f32.mrf.mxu0
      %v1389 = vadd.f32 %v1340, %v1388
      %1390 = vmatmul.bf16.gmra.mxu0 %v1202
      %v1391 = vpop.f32.mrf.mxu0
      %v1392 = vadd.f32 %v1343, %v1391
      %v1393 = vpop.f32.mrf.mxu0
      %v1394 = vadd.f32 %v1345, %v1393
      %1395 = vmatmul.bf16.gmra.mxu0 %v1205
      %v1396 = vpop.f32.mrf.mxu0
      %v1397 = vadd.f32 %v1348, %v1396
      %v1398 = vpop.f32.mrf.mxu0
      %v1399 = vadd.f32 %v1350, %v1398
      %1400 = vmatmul.bf16.gmra.mxu0 %v1208
      %v1401 = vpop.f32.mrf.mxu0
      %v1402 = vadd.f32 %v1353, %v1401
      %v1403 = vpop.f32.mrf.mxu0
      %v1404 = vadd.f32 %v1355, %v1403
      %1405 = vdwg.mxu0
      %v1406 = vpack.c.b16 %v641, %v674
      %v1407 = vpack.c.b16 %v641, %v675
      %v1408 = vpack.c.b16 %v641, %v676
      %v1409 = vpack.c.b16 %v641, %v677
      %v1436 = vunpack.c.l.b16 %v244
      %v1437 = vunpack.c.h.b16 %v244
      %v1438 = vunpack.c.l.b16 %v245
      %v1439 = vunpack.c.h.b16 %v245
      %v1440 = vunpack.c.l.b16 %v246
      %v1441 = vunpack.c.h.b16 %v246
      %v1442 = vunpack.c.l.b16 %v247
      %v1443 = vunpack.c.h.b16 %v247
      %v1444 = vunpack.c.l.b16 %v248
      %v1445 = vunpack.c.h.b16 %v248
      %v1446 = vunpack.c.l.b16 %v249
      %v1447 = vunpack.c.h.b16 %v249
      %v1448 = vunpack.c.l.b16 %v250
      %v1449 = vunpack.c.h.b16 %v250
      %v1450 = vunpack.c.l.b16 %v251
      %v1451 = vunpack.c.h.b16 %v251
      %v1452 = vunpack.c.l.b16 %v252
      %v1453 = vunpack.c.h.b16 %v252
      %v1454 = vunpack.c.l.b16 %v253
      %v1455 = vunpack.c.h.b16 %v253
      %v1456 = vunpack.c.l.b16 %v254
      %v1457 = vunpack.c.h.b16 %v254
      %v1458 = vunpack.c.l.b16 %v255
      %v1459 = vunpack.c.h.b16 %v255
      %v1460 = vunpack.c.l.b16 %v256
      %v1461 = vunpack.c.h.b16 %v256
      %v1462 = vunpack.c.l.b16 %v257
      %v1463 = vunpack.c.h.b16 %v257
      %v1464 = vunpack.c.l.b16 %v258
      %v1465 = vunpack.c.h.b16 %v258
      %v1466 = vunpack.c.l.b16 %v259
      %v1467 = vunpack.c.h.b16 %v259
      %v1468 = vunpack.c.l.b16 %v260
      %v1469 = vunpack.c.h.b16 %v260
      %v1470 = vunpack.c.l.b16 %v261
      %v1471 = vunpack.c.h.b16 %v261
      %v1472 = vunpack.c.l.b16 %v262
      %v1473 = vunpack.c.h.b16 %v262
      %v1474 = vunpack.c.l.b16 %v263
      %v1475 = vunpack.c.h.b16 %v263
      %v1476 = vunpack.c.l.b16 %v264
      %v1477 = vunpack.c.h.b16 %v264
      %v1478 = vunpack.c.l.b16 %v265
      %v1479 = vunpack.c.h.b16 %v265
      %v1480 = vunpack.c.l.b16 %v266
      %v1481 = vunpack.c.h.b16 %v266
      %v1482 = vunpack.c.l.b16 %v267
      %v1483 = vunpack.c.h.b16 %v267
      %v1484 = vpack.c.b16 %v1438, %v1436
      %v1485 = vpack.c.b16 %v1439, %v1437
      %v1486 = vpack.c.b16 %v1442, %v1440
      %v1487 = vpack.c.b16 %v1443, %v1441
      %v1488 = vpack.c.b16 %v1446, %v1444
      %v1489 = vpack.c.b16 %v1447, %v1445
      %v1490 = vpack.c.b16 %v1450, %v1448
      %v1491 = vpack.c.b16 %v1451, %v1449
      %v1492 = vpack.c.b16 %v1454, %v1452
      %v1493 = vpack.c.b16 %v1455, %v1453
      %v1494 = vpack.c.b16 %v1458, %v1456
      %v1495 = vpack.c.b16 %v1459, %v1457
      %v1496 = vpack.c.b16 %v1462, %v1460
      %v1497 = vpack.c.b16 %v1463, %v1461
      %v1498 = vpack.c.b16 %v1466, %v1464
      %v1499 = vpack.c.b16 %v1467, %v1465
      %v1500 = vpack.c.b16 %v1470, %v1468
      %v1501 = vpack.c.b16 %v1471, %v1469
      %v1502 = vpack.c.b16 %v1474, %v1472
      %v1503 = vpack.c.b16 %v1475, %v1473
      %v1504 = vpack.c.b16 %v1478, %v1476
      %v1505 = vpack.c.b16 %v1479, %v1477
      %v1506 = vpack.c.b16 %v1482, %v1480
      %v1507 = vpack.c.b16 %v1483, %v1481
      %v1533 = vsel %vm563, %v1407, 0
      %v1536 = vsel %vm563, %v1409, 0
      %1538 = vmatpush.bf16.msra.mxu0 %v1498
      %1539 = vmatpush.bf16.msra.mxu0 %v1496
      %1540 = vmatpush.bf16.msra.mxu0 %v1494
      %1541 = vmatpush.bf16.msra.mxu0 %v1492
      %1542 = vmatpush.bf16.msra.mxu0 %v1490
      %1543 = vmatpush.bf16.msra.mxu0 %v1488
      %1544 = vmatpush.bf16.msra.mxu0 %v1486
      %1545 = vmatpush.bf16.msra.mxu0 %v1484
      %1546 = vmatmul.bf16.gmra.mxu0 %v1044
      %v1547 = vpop.f32.mrf.mxu0
      %v1548 = vadd.f32 0.0, %v1547
      %v1549 = vpop.f32.mrf.mxu0
      %v1550 = vadd.f32 0.0, %v1549
      %1551 = vmatmul.bf16.gmra.mxu0 %v1046
      %v1552 = vpop.f32.mrf.mxu0
      %v1553 = vadd.f32 0.0, %v1552
      %v1554 = vpop.f32.mrf.mxu0
      %v1555 = vadd.f32 0.0, %v1554
      %1556 = vmatmul.bf16.gmra.mxu0 %v1048
      %v1557 = vpop.f32.mrf.mxu0
      %v1558 = vadd.f32 0.0, %v1557
      %v1559 = vpop.f32.mrf.mxu0
      %v1560 = vadd.f32 0.0, %v1559
      %1561 = vmatmul.bf16.gmra.mxu0 %v1406
      %v1562 = vpop.f32.mrf.mxu0
      %v1563 = vadd.f32 0.0, %v1562
      %v1564 = vpop.f32.mrf.mxu0
      %v1565 = vadd.f32 0.0, %v1564
      %1566 = vmatmul.bf16.gmra.mxu0 %v1052
      %v1567 = vpop.f32.mrf.mxu0
      %v1568 = vadd.f32 0.0, %v1567
      %v1569 = vpop.f32.mrf.mxu0
      %v1570 = vadd.f32 0.0, %v1569
      %1571 = vmatmul.bf16.gmra.mxu0 %v1054
      %v1572 = vpop.f32.mrf.mxu0
      %v1573 = vadd.f32 0.0, %v1572
      %v1574 = vpop.f32.mrf.mxu0
      %v1575 = vadd.f32 0.0, %v1574
      %1576 = vmatmul.bf16.gmra.mxu0 %v1056
      %v1577 = vpop.f32.mrf.mxu0
      %v1578 = vadd.f32 0.0, %v1577
      %v1579 = vpop.f32.mrf.mxu0
      %v1580 = vadd.f32 0.0, %v1579
      %1581 = vmatmul.bf16.gmra.mxu0 %v1408
      %v1582 = vpop.f32.mrf.mxu0
      %v1583 = vadd.f32 0.0, %v1582
      %v1584 = vpop.f32.mrf.mxu0
      %v1585 = vadd.f32 0.0, %v1584
      %1586 = vdwg.mxu0
      %1587 = vmatpush.bf16.msra.mxu0 0
      %1588 = vmatpush.bf16.msra.mxu0 0
      %1589 = vmatpush.bf16.msra.mxu0 0
      %1590 = vmatpush.bf16.msra.mxu0 0
      %1591 = vmatpush.bf16.msra.mxu0 %v1506
      %1592 = vmatpush.bf16.msra.mxu0 %v1504
      %1593 = vmatpush.bf16.msra.mxu0 %v1502
      %1594 = vmatpush.bf16.msra.mxu0 %v1500
      %1595 = vmatmul.bf16.gmra.mxu0 %v1190
      %v1596 = vpop.f32.mrf.mxu0
      %v1597 = vadd.f32 %v1548, %v1596
      %v1598 = vpop.f32.mrf.mxu0
      %v1599 = vadd.f32 %v1550, %v1598
      %1600 = vmatmul.bf16.gmra.mxu0 %v1193
      %v1601 = vpop.f32.mrf.mxu0
      %v1602 = vadd.f32 %v1553, %v1601
      %v1603 = vpop.f32.mrf.mxu0
      %v1604 = vadd.f32 %v1555, %v1603
      %1605 = vmatmul.bf16.gmra.mxu0 %v1196
      %v1606 = vpop.f32.mrf.mxu0
      %v1607 = vadd.f32 %v1558, %v1606
      %v1608 = vpop.f32.mrf.mxu0
      %v1609 = vadd.f32 %v1560, %v1608
      %1610 = vmatmul.bf16.gmra.mxu0 %v1533
      %v1611 = vpop.f32.mrf.mxu0
      %v1612 = vadd.f32 %v1563, %v1611
      %v1613 = vpop.f32.mrf.mxu0
      %v1614 = vadd.f32 %v1565, %v1613
      %1615 = vmatmul.bf16.gmra.mxu0 %v1202
      %v1616 = vpop.f32.mrf.mxu0
      %v1617 = vadd.f32 %v1568, %v1616
      %v1618 = vpop.f32.mrf.mxu0
      %v1619 = vadd.f32 %v1570, %v1618
      %1620 = vmatmul.bf16.gmra.mxu0 %v1205
      %v1621 = vpop.f32.mrf.mxu0
      %v1622 = vadd.f32 %v1573, %v1621
      %v1623 = vpop.f32.mrf.mxu0
      %v1624 = vadd.f32 %v1575, %v1623
      %1625 = vmatmul.bf16.gmra.mxu0 %v1208
      %v1626 = vpop.f32.mrf.mxu0
      %v1627 = vadd.f32 %v1578, %v1626
      %v1628 = vpop.f32.mrf.mxu0
      %v1629 = vadd.f32 %v1580, %v1628
      %1630 = vmatmul.bf16.gmra.mxu0 %v1536
      %v1631 = vpop.f32.mrf.mxu0
      %v1632 = vadd.f32 %v1583, %v1631
      %v1633 = vpop.f32.mrf.mxu0
      %v1634 = vadd.f32 %v1585, %v1633
      %1635 = vdwg.mxu0
      %1636 = vmatpush.bf16.msra.mxu0 %v1499
      %1637 = vmatpush.bf16.msra.mxu0 %v1497
      %1638 = vmatpush.bf16.msra.mxu0 %v1495
      %1639 = vmatpush.bf16.msra.mxu0 %v1493
      %1640 = vmatpush.bf16.msra.mxu0 %v1491
      %1641 = vmatpush.bf16.msra.mxu0 %v1489
      %1642 = vmatpush.bf16.msra.mxu0 %v1487
      %1643 = vmatpush.bf16.msra.mxu0 %v1485
      %1644 = vmatmul.bf16.gmra.mxu0 %v1044
      %v1645 = vpop.f32.mrf.mxu0
      %v1646 = vadd.f32 0.0, %v1645
      %v1647 = vpop.f32.mrf.mxu0
      %v1648 = vadd.f32 0.0, %v1647
      %1649 = vmatmul.bf16.gmra.mxu0 %v1046
      %v1650 = vpop.f32.mrf.mxu0
      %v1651 = vadd.f32 0.0, %v1650
      %v1652 = vpop.f32.mrf.mxu0
      %v1653 = vadd.f32 0.0, %v1652
      %1654 = vmatmul.bf16.gmra.mxu0 %v1048
      %v1655 = vpop.f32.mrf.mxu0
      %v1656 = vadd.f32 0.0, %v1655
      %v1657 = vpop.f32.mrf.mxu0
      %v1658 = vadd.f32 0.0, %v1657
      %1659 = vmatmul.bf16.gmra.mxu0 %v1406
      %v1660 = vpop.f32.mrf.mxu0
      %v1661 = vadd.f32 0.0, %v1660
      %v1662 = vpop.f32.mrf.mxu0
      %v1663 = vadd.f32 0.0, %v1662
      %1664 = vmatmul.bf16.gmra.mxu0 %v1052
      %v1665 = vpop.f32.mrf.mxu0
      %v1666 = vadd.f32 0.0, %v1665
      %v1667 = vpop.f32.mrf.mxu0
      %v1668 = vadd.f32 0.0, %v1667
      %1669 = vmatmul.bf16.gmra.mxu0 %v1054
      %v1670 = vpop.f32.mrf.mxu0
      %v1671 = vadd.f32 0.0, %v1670
      %v1672 = vpop.f32.mrf.mxu0
      %v1673 = vadd.f32 0.0, %v1672
      %1674 = vmatmul.bf16.gmra.mxu0 %v1056
      %v1675 = vpop.f32.mrf.mxu0
      %v1676 = vadd.f32 0.0, %v1675
      %v1677 = vpop.f32.mrf.mxu0
      %v1678 = vadd.f32 0.0, %v1677
      %1679 = vmatmul.bf16.gmra.mxu0 %v1408
      %v1680 = vpop.f32.mrf.mxu0
      %v1681 = vadd.f32 0.0, %v1680
      %v1682 = vpop.f32.mrf.mxu0
      %v1683 = vadd.f32 0.0, %v1682
      %1684 = vdwg.mxu0
      %1685 = vmatpush.bf16.msra.mxu0 0
      %1686 = vmatpush.bf16.msra.mxu0 0
      %1687 = vmatpush.bf16.msra.mxu0 0
      %1688 = vmatpush.bf16.msra.mxu0 0
      %1689 = vmatpush.bf16.msra.mxu0 %v1507
      %1690 = vmatpush.bf16.msra.mxu0 %v1505
      %1691 = vmatpush.bf16.msra.mxu0 %v1503
      %1692 = vmatpush.bf16.msra.mxu0 %v1501
      %1693 = vmatmul.bf16.gmra.mxu0 %v1190
      %v1694 = vpop.f32.mrf.mxu0
      %v1695 = vadd.f32 %v1646, %v1694
      %v1696 = vpop.f32.mrf.mxu0
      %v1697 = vadd.f32 %v1648, %v1696
      %1698 = vmatmul.bf16.gmra.mxu0 %v1193
      %v1699 = vpop.f32.mrf.mxu0
      %v1700 = vadd.f32 %v1651, %v1699
      %v1701 = vpop.f32.mrf.mxu0
      %v1702 = vadd.f32 %v1653, %v1701
      %1703 = vmatmul.bf16.gmra.mxu0 %v1196
      %v1704 = vpop.f32.mrf.mxu0
      %v1705 = vadd.f32 %v1656, %v1704
      %v1706 = vpop.f32.mrf.mxu0
      %v1707 = vadd.f32 %v1658, %v1706
      %1708 = vmatmul.bf16.gmra.mxu0 %v1533
      %v1709 = vpop.f32.mrf.mxu0
      %v1710 = vadd.f32 %v1661, %v1709
      %v1711 = vpop.f32.mrf.mxu0
      %v1712 = vadd.f32 %v1663, %v1711
      %1713 = vmatmul.bf16.gmra.mxu0 %v1202
      %v1714 = vpop.f32.mrf.mxu0
      %v1715 = vadd.f32 %v1666, %v1714
      %v1716 = vpop.f32.mrf.mxu0
      %v1717 = vadd.f32 %v1668, %v1716
      %1718 = vmatmul.bf16.gmra.mxu0 %v1205
      %v1719 = vpop.f32.mrf.mxu0
      %v1720 = vadd.f32 %v1671, %v1719
      %v1721 = vpop.f32.mrf.mxu0
      %v1722 = vadd.f32 %v1673, %v1721
      %1723 = vmatmul.bf16.gmra.mxu0 %v1208
      %v1724 = vpop.f32.mrf.mxu0
      %v1725 = vadd.f32 %v1676, %v1724
      %v1726 = vpop.f32.mrf.mxu0
      %v1727 = vadd.f32 %v1678, %v1726
      %1728 = vmatmul.bf16.gmra.mxu0 %v1536
      %v1729 = vpop.f32.mrf.mxu0
      %v1730 = vadd.f32 %v1681, %v1729
      %v1731 = vpop.f32.mrf.mxu0
      %v1732 = vadd.f32 %v1683, %v1731
      %1733 = vdwg.mxu0
      %v1734 = vadd.f32 %v1269, %v1597
      %v1735 = vadd.f32 %v1367, %v1695
      %v1736 = vadd.f32 %v1271, %v1599
      %v1737 = vadd.f32 %v1369, %v1697
      %v1738 = vadd.f32 %v1274, %v1602
      %v1739 = vadd.f32 %v1372, %v1700
      %v1740 = vadd.f32 %v1276, %v1604
      %v1741 = vadd.f32 %v1374, %v1702
      %v1742 = vadd.f32 %v1279, %v1607
      %v1743 = vadd.f32 %v1377, %v1705
      %v1744 = vadd.f32 %v1281, %v1609
      %v1745 = vadd.f32 %v1379, %v1707
      %v1746 = vadd.f32 %v1284, %v1612
      %v1747 = vadd.f32 %v1382, %v1710
      %v1748 = vadd.f32 %v1286, %v1614
      %v1749 = vadd.f32 %v1384, %v1712
      %v1750 = vadd.f32 %v1289, %v1617
      %v1751 = vadd.f32 %v1387, %v1715
      %v1752 = vadd.f32 %v1291, %v1619
      %v1753 = vadd.f32 %v1389, %v1717
      %v1754 = vadd.f32 %v1294, %v1622
      %v1755 = vadd.f32 %v1392, %v1720
      %v1756 = vadd.f32 %v1296, %v1624
      %v1757 = vadd.f32 %v1394, %v1722
      %v1758 = vadd.f32 %v1299, %v1627
      %v1759 = vadd.f32 %v1397, %v1725
      %v1760 = vadd.f32 %v1301, %v1629
      %v1761 = vadd.f32 %v1399, %v1727
      %v1762 = vadd.f32 %v1304, %v1632
      %v1763 = vadd.f32 %v1402, %v1730
      %v1764 = vadd.f32 %v1306, %v1634
      %v1765 = vadd.f32 %v1404, %v1732
      %v1767 = vperm.slane %v268, 0
      %v1768 = vperm.slane %v268, 1
      %v1771 = vadd.f32 %v1734, %v1767
      %v1772 = vadd.f32 %v1735, %v1768
      %v1773 = vadd.f32 %v1736, %v1767
      %v1774 = vadd.f32 %v1737, %v1768
      %v1775 = vadd.f32 %v1738, %v1767
      %v1776 = vadd.f32 %v1739, %v1768
      %v1777 = vadd.f32 %v1740, %v1767
      %v1778 = vadd.f32 %v1741, %v1768
      %v1779 = vadd.f32 %v1742, %v1767
      %v1780 = vadd.f32 %v1743, %v1768
      %v1781 = vadd.f32 %v1744, %v1767
      %v1782 = vadd.f32 %v1745, %v1768
      %v1783 = vadd.f32 %v1746, %v1767
      %v1784 = vadd.f32 %v1747, %v1768
      %v1785 = vadd.f32 %v1748, %v1767
      %v1786 = vadd.f32 %v1749, %v1768
      %v1787 = vadd.f32 %v1750, %v1767
      %v1788 = vadd.f32 %v1751, %v1768
      %v1789 = vadd.f32 %v1752, %v1767
      %v1790 = vadd.f32 %v1753, %v1768
      %v1791 = vadd.f32 %v1754, %v1767
      %v1792 = vadd.f32 %v1755, %v1768
      %v1793 = vadd.f32 %v1756, %v1767
      %v1794 = vadd.f32 %v1757, %v1768
      %v1795 = vadd.f32 %v1758, %v1767
      %v1796 = vadd.f32 %v1759, %v1768
      %v1797 = vadd.f32 %v1760, %v1767
      %v1798 = vadd.f32 %v1761, %v1768
      %v1799 = vadd.f32 %v1762, %v1767
      %v1800 = vadd.f32 %v1763, %v1768
      %v1801 = vadd.f32 %v1764, %v1767
      %v1802 = vadd.f32 %v1765, %v1768
      %v1803 = vmax.f32 %v1771, 0.0
      %v1804 = vmax.f32 %v1772, 0.0
      %v1805 = vmax.f32 %v1773, 0.0
      %v1806 = vmax.f32 %v1774, 0.0
      %v1807 = vmax.f32 %v1775, 0.0
      %v1808 = vmax.f32 %v1776, 0.0
      %v1809 = vmax.f32 %v1777, 0.0
      %v1810 = vmax.f32 %v1778, 0.0
      %v1811 = vmax.f32 %v1779, 0.0
      %v1812 = vmax.f32 %v1780, 0.0
      %v1813 = vmax.f32 %v1781, 0.0
      %v1814 = vmax.f32 %v1782, 0.0
      %v1815 = vmax.f32 %v1783, 0.0
      %v1816 = vmax.f32 %v1784, 0.0
      %v1817 = vmax.f32 %v1785, 0.0
      %v1818 = vmax.f32 %v1786, 0.0
      %v1819 = vmax.f32 %v1787, 0.0
      %v1820 = vmax.f32 %v1788, 0.0
      %v1821 = vmax.f32 %v1789, 0.0
      %v1822 = vmax.f32 %v1790, 0.0
      %v1823 = vmax.f32 %v1791, 0.0
      %v1824 = vmax.f32 %v1792, 0.0
      %v1825 = vmax.f32 %v1793, 0.0
      %v1826 = vmax.f32 %v1794, 0.0
      %v1827 = vmax.f32 %v1795, 0.0
      %v1828 = vmax.f32 %v1796, 0.0
      %v1829 = vmax.f32 %v1797, 0.0
      %v1830 = vmax.f32 %v1798, 0.0
      %v1831 = vmax.f32 %v1799, 0.0
      %v1832 = vmax.f32 %v1800, 0.0
      %v1833 = vmax.f32 %v1801, 0.0
      %v1834 = vmax.f32 %v1802, 0.0
      %v1835 = vpack.c.bf16 %v1804, %v1803
      %v1836 = vpack.c.bf16 %v1806, %v1805
      %v1837 = vpack.c.bf16 %v1808, %v1807
      %v1838 = vpack.c.bf16 %v1810, %v1809
      %v1839 = vpack.c.bf16 %v1812, %v1811
      %v1840 = vpack.c.bf16 %v1814, %v1813
      %v1841 = vpack.c.bf16 %v1816, %v1815
      %v1842 = vpack.c.bf16 %v1818, %v1817
      %v1843 = vpack.c.bf16 %v1820, %v1819
      %v1844 = vpack.c.bf16 %v1822, %v1821
      %v1845 = vpack.c.bf16 %v1824, %v1823
      %v1846 = vpack.c.bf16 %v1826, %v1825
      %v1847 = vpack.c.bf16 %v1828, %v1827
      %v1848 = vpack.c.bf16 %v1830, %v1829
      %v1849 = vpack.c.bf16 %v1832, %v1831
      %v1850 = vpack.c.bf16 %v1834, %v1833
      %1851 = vst [vmem:[%s177] sm:$0xff] %v1835
      %1852 = vst [vmem:[%s177 + $0x8] sm:$0xff] %v1836
      %1853 = vst [vmem:[%s177 + $0x10] sm:$0xff] %v1837
      %1854 = vst [vmem:[%s177 + $0x18] sm:$0xff] %v1838
      %1855 = vst [vmem:[%s177 + $0x20] sm:$0xff] %v1839
      %1856 = vst [vmem:[%s177 + $0x28] sm:$0xff] %v1840
      %1857 = vst [vmem:[%s177 + $0x30] sm:$0xff] %v1841
      %1858 = vst [vmem:[%s177 + $0x38] sm:$0xff] %v1842
      %1859 = vst [vmem:[%s177 + $0x40] sm:$0xff] %v1843
      %1860 = vst [vmem:[%s177 + $0x48] sm:$0xff] %v1844
      %1861 = vst [vmem:[%s177 + $0x50] sm:$0xff] %v1845
      %1862 = vst [vmem:[%s177 + $0x58] sm:$0xff] %v1846
      %1863 = vst [vmem:[%s177 + $0x60] sm:$0xff] %v1847
      %1864 = vst [vmem:[%s177 + $0x68] sm:$0xff] %v1848
      %1865 = vst [vmem:[%s177 + $0x70] sm:$0xff] %v1849
      %1866 = vst [vmem:[%s177 + $0x78] sm:$0xff] %v1850
      %s1867 = smul.u32 2, %s14
      %p1868 = scmp.lt.s32.totalorder %s1867, 3
      %s1869 = scalar_select %p1868, %s1867, 3
      %s1870 = smul.addr %s1869, 16
      %s1871 = smul.addr %s1870, 4
      %s1872 = scalar_lea.vmem %s3, %s1871
      // Predicated region
      $region33: #{net2x_forward.14} parent=31 // pred_check
        %p1873 = pneg %p100
      $region34: #{net2x_forward.14} parent=31 // pred_check_branch
        %1875 = sbr.rel (%p1873) target = $region36
      $region35: #{net2x_forward.14} parent=31 // pred_region
        %s1876 = smul.u32 2, %s14
      $region36: #{net2x_forward.14} parent=31 // pred_fallthru
        _
    $region32: #{net2x_forward.14} parent=5 // pred_fallthru
      _
    %p1877 = scmp.le.s32.totalorder 2, %s9
    // Predicated region
    $region37: #{net2x_forward.14} parent=5 // pred_check
      %p1878 = pneg %p1877
    $region38: #{net2x_forward.14} parent=5 // pred_check_branch
      %1880 = sbr.rel (%p1878) target = $region40
    $region39: #{net2x_forward.14} parent=5 // pred_region
      %s1881 = ssub.s32 %s9, 2
      // Predicated region
      $region41: #{net2x_forward.14} parent=39 // pred_check
        %p1882 = pneg %p106
      $region42: #{net2x_forward.14} parent=39 // pred_check_branch
        %1884 = sbr.rel (%p1882) target = $region44
      $region43: #{net2x_forward.14} parent=39 // pred_region
        %s1885 = smul.u32 2, %s15
        %p1886 = scmp.lt.s32.totalorder %s1885, 3
        %s1887 = scalar_select %p1886, %s1885, 3
        %s1888 = smul.addr %s1887, 16
        %s1889 = smul.addr %s1888, 4
        %s1890 = scalar_lea.vmem %s3, %s1889
      $region44: #{net2x_forward.14} parent=39 // pred_fallthru
        _
    $region40: #{net2x_forward.14} parent=5 // pred_fallthru
      _
  $region6: #{net2x_forward.14} parent=0 // loop_footer
    %s13 = sadd.s32 1, %s9
  $region7: #{net2x_forward.14} parent=0 // loop_footer_branch
    %8 = sbr.rel target = $region3
  $region8: #{net2x_forward.14} parent=0 // loop_exit
    _

// kernel: net2x_forward.9
$region0: #{net2x_forward.9}
  #allocation0 [shape = 'u32[]', space=smem, size = 0x4, offset = 0x4, fixed_abs, tag = 'smem constant byte address 0x4 - core index']
  #allocation1 [shape = 'u32[72,128]{1,0:T(1,128)}', space=vmem, size = 0x9000, scoped, tag = 'internal scratch']
  %s0 = inlined_call_operand.vmem [shape: bf16[4,8,8,64], index: 0, kind: input, shape index: {}]
  %s1 = inlined_call_operand.vmem [shape: bf16[2,3,192,64], index: 1, kind: input, shape index: {}]
  %s2 = inlined_call_operand.vmem [shape: f32[2,1,64], index: 2, kind: input, shape index: {}]
  %s3 = inlined_call_operand.vmem [shape: bf16[2,3,192,64], index: 3, kind: input, shape index: {}]
  %s4 = inlined_call_operand.vmem [shape: f32[2,1,64], index: 4, kind: input, shape index: {}]
  %s5 = inlined_call_operand.vmem [shape: bf16[4,8,8,64], index: 5, kind: output, shape index: {}]
  %s6 = sld [smem:[#allocation0]]
  $region30: #{net2x_forward.9} parent=0
    _
  %s8 = ssub.s32 1, %s6
  %s9 = scalar_select 0, %s8, %s6
  // Predicated region
  $region2: #{net2x_forward.9} parent=0 // pred_check
    _
  $region3: #{net2x_forward.9} parent=0 // pred_check_branch
    %11 = sbr.rel (0) target = $region5
  $region4: #{net2x_forward.9} parent=0 // pred_region
    _
  $region5: #{net2x_forward.9} parent=0 // pred_fallthru
    _
  // Predicated region
  $region6: #{net2x_forward.9} parent=0 // pred_check
    _
  $region7: #{net2x_forward.9} parent=0 // pred_check_branch
    %13 = sbr.rel (0) target = $region9
  $region8: #{net2x_forward.9} parent=0 // pred_region
    _
  $region9: #{net2x_forward.9} parent=0 // pred_fallthru
    _
  // Predicated region
  $region10: #{net2x_forward.9} parent=0 // pred_check
    _
  $region11: #{net2x_forward.9} parent=0 // pred_check_branch
    %15 = sbr.rel (0) target = $region13
  $region12: #{net2x_forward.9} parent=0 // pred_region
    _
  $region13: #{net2x_forward.9} parent=0 // pred_fallthru
    _
  // Predicated region
  $region14: #{net2x_forward.9} parent=0 // pred_check
    _
  $region15: #{net2x_forward.9} parent=0 // pred_check_branch
    %17 = sbr.rel (0) target = $region17
  $region16: #{net2x_forward.9} parent=0 // pred_region
    _
  $region17: #{net2x_forward.9} parent=0 // pred_fallthru
    _
  // Predicated region
  $region18: #{net2x_forward.9} parent=0 // pred_check
    _
  $region19: #{net2x_forward.9} parent=0 // pred_check_branch
    %19 = sbr.rel (0) target = $region21
  $region20: #{net2x_forward.9} parent=0 // pred_region
    _
  $region21: #{net2x_forward.9} parent=0 // pred_fallthru
    _
  %v21 = vld [vmem:[%s0] sm:$0xf]
  %v22 = vld [vmem:[%s0 + $0x4] sm:$0xf]
  %v23 = vld [vmem:[%s0 + $0x8] sm:$0xf]
  %v24 = vld [vmem:[%s0 + $0xc] sm:$0xf]
  %v25 = vld [vmem:[%s0 + $0x10] sm:$0xf]
  %v26 = vld [vmem:[%s0 + $0x14] sm:$0xf]
  %v27 = vld [vmem:[%s0 + $0x18] sm:$0xf]
  %v28 = vld [vmem:[%s0 + $0x1c] sm:$0xf]
  %v29 = vld [vmem:[%s0 + $0x20] sm:$0xf]
  %v30 = vld [vmem:[%s0 + $0x24] sm:$0xf]
  %v31 = vld [vmem:[%s0 + $0x28] sm:$0xf]
  %v32 = vld [vmem:[%s0 + $0x2c] sm:$0xf]
  %v33 = vld [vmem:[%s0 + $0x30] sm:$0xf]
  %v34 = vld [vmem:[%s0 + $0x34] sm:$0xf]
  %v35 = vld [vmem:[%s0 + $0x38] sm:$0xf]
  %v36 = vld [vmem:[%s0 + $0x3c] sm:$0xf]
  %v37 = vld [vmem:[%s0 + $0x40] sm:$0xf]
  %v38 = vld [vmem:[%s0 + $0x44] sm:$0xf]
  %v39 = vld [vmem:[%s0 + $0x48] sm:$0xf]
  %v40 = vld [vmem:[%s0 + $0x4c] sm:$0xf]
  %v41 = vld [vmem:[%s0 + $0x50] sm:$0xf]
  %v42 = vld [vmem:[%s0 + $0x54] sm:$0xf]
  %v43 = vld [vmem:[%s0 + $0x58] sm:$0xf]
  %v44 = vld [vmem:[%s0 + $0x5c] sm:$0xf]
  %v45 = vld [vmem:[%s0 + $0x60] sm:$0xf]
  %v46 = vld [vmem:[%s0 + $0x64] sm:$0xf]
  %v47 = vld [vmem:[%s0 + $0x68] sm:$0xf]
  %v48 = vld [vmem:[%s0 + $0x6c] sm:$0xf]
  %v49 = vld [vmem:[%s0 + $0x70] sm:$0xf]
  %v50 = vld [vmem:[%s0 + $0x74] sm:$0xf]
  %v51 = vld [vmem:[%s0 + $0x78] sm:$0xf]
  %v52 = vld [vmem:[%s0 + $0x7c] sm:$0xf]
  %v53 = vld [vmem:[%s1] sm:$0xf]
  %v54 = vld [vmem:[%s1 + $0x4] sm:$0xf]
  %v55 = vld [vmem:[%s1 + $0x8] sm:$0xf]
  %v56 = vld [vmem:[%s1 + $0xc] sm:$0xf]
  %v57 = vld [vmem:[%s1 + $0x10] sm:$0xf]
  %v58 = vld [vmem:[%s1 + $0x14] sm:$0xf]
  %v59 = vld [vmem:[%s1 + $0x18] sm:$0xf]
  %v60 = vld [vmem:[%s1 + $0x1c] sm:$0xf]
  %v61 = vld [vmem:[%s1 + $0x20] sm:$0xf]
  %v62 = vld [vmem:[%s1 + $0x24] sm:$0xf]
  %v63 = vld [vmem:[%s1 + $0x28] sm:$0xf]
  %v64 = vld [vmem:[%s1 + $0x2c] sm:$0xf]
  %v65 = vld [vmem:[%s1 + $0x30] sm:$0xf]
  %v66 = vld [vmem:[%s1 + $0x34] sm:$0xf]
  %v67 = vld [vmem:[%s1 + $0x38] sm:$0xf]
  %v68 = vld [vmem:[%s1 + $0x3c] sm:$0xf]
  %v69 = vld [vmem:[%s1 + $0x40] sm:$0xf]
  %v70 = vld [vmem:[%s1 + $0x44] sm:$0xf]
  %v71 = vld [vmem:[%s1 + $0x48] sm:$0xf]
  %v72 = vld [vmem:[%s1 + $0x4c] sm:$0xf]
  %v73 = vld [vmem:[%s1 + $0x50] sm:$0xf]
  %v74 = vld [vmem:[%s1 + $0x54] sm:$0xf]
  %v75 = vld [vmem:[%s1 + $0x58] sm:$0xf]
  %v76 = vld [vmem:[%s1 + $0x5c] sm:$0xf]
  %v77 = vld [vmem:[%s1 + $0x60] sm:$0xf]
  %v78 = vld [vmem:[%s1 + $0x64] sm:$0xf]
  %v79 = vld [vmem:[%s1 + $0x68] sm:$0xf]
  %v80 = vld [vmem:[%s1 + $0x6c] sm:$0xf]
  %v81 = vld [vmem:[%s1 + $0x70] sm:$0xf]
  %v82 = vld [vmem:[%s1 + $0x74] sm:$0xf]
  %v83 = vld [vmem:[%s1 + $0x78] sm:$0xf]
  %v84 = vld [vmem:[%s1 + $0x7c] sm:$0xf]
  %v85 = vld [vmem:[%s1 + $0x80] sm:$0xf]
  %v86 = vld [vmem:[%s1 + $0x84] sm:$0xf]
  %v87 = vld [vmem:[%s1 + $0x88] sm:$0xf]
  %v88 = vld [vmem:[%s1 + $0x8c] sm:$0xf]
  %v89 = vld [vmem:[%s1 + $0x90] sm:$0xf]
  %v90 = vld [vmem:[%s1 + $0x94] sm:$0xf]
  %v91 = vld [vmem:[%s1 + $0x98] sm:$0xf]
  %v92 = vld [vmem:[%s1 + $0x9c] sm:$0xf]
  %v93 = vld [vmem:[%s1 + $0xa0] sm:$0xf]
  %v94 = vld [vmem:[%s1 + $0xa4] sm:$0xf]
  %v95 = vld [vmem:[%s1 + $0xa8] sm:$0xf]
  %v96 = vld [vmem:[%s1 + $0xac] sm:$0xf]
  %v97 = vld [vmem:[%s1 + $0xb0] sm:$0xf]
  %v98 = vld [vmem:[%s1 + $0xb4] sm:$0xf]
  %v99 = vld [vmem:[%s1 + $0xb8] sm:$0xf]
  %v100 = vld [vmem:[%s1 + $0xbc] sm:$0xf]
  %v101 = vld [vmem:[%s1 + $0xc0] sm:$0xf]
  %v102 = vld [vmem:[%s1 + $0xc4] sm:$0xf]
  %v103 = vld [vmem:[%s1 + $0xc8] sm:$0xf]
  %v104 = vld [vmem:[%s1 + $0xcc] sm:$0xf]
  %v105 = vld [vmem:[%s1 + $0xd0] sm:$0xf]
  %v106 = vld [vmem:[%s1 + $0xd4] sm:$0xf]
  %v107 = vld [vmem:[%s1 + $0xd8] sm:$0xf]
  %v108 = vld [vmem:[%s1 + $0xdc] sm:$0xf]
  %v109 = vld [vmem:[%s1 + $0xe0] sm:$0xf]
  %v110 = vld [vmem:[%s1 + $0xe4] sm:$0xf]
  %v111 = vld [vmem:[%s1 + $0xe8] sm:$0xf]
  %v112 = vld [vmem:[%s1 + $0xec] sm:$0xf]
  %v113 = vld [vmem:[%s1 + $0xf0] sm:$0xf]
  %v114 = vld [vmem:[%s1 + $0xf4] sm:$0xf]
  %v115 = vld [vmem:[%s1 + $0xf8] sm:$0xf]
  %v116 = vld [vmem:[%s1 + $0xfc] sm:$0xf]
  %v117 = vld [vmem:[%s1 + $0x100] sm:$0xf]
  %v118 = vld [vmem:[%s1 + $0x104] sm:$0xf]
  %v119 = vld [vmem:[%s1 + $0x108] sm:$0xf]
  %v120 = vld [vmem:[%s1 + $0x10c] sm:$0xf]
  %v121 = vld [vmem:[%s1 + $0x110] sm:$0xf]
  %v122 = vld [vmem:[%s1 + $0x114] sm:$0xf]
  %v123 = vld [vmem:[%s1 + $0x118] sm:$0xf]
  %v124 = vld [vmem:[%s1 + $0x11c] sm:$0xf]
  %v125 = vld [vmem:[%s1 + $0x120] sm:$0xf]
  %v126 = vld [vmem:[%s1 + $0x124] sm:$0xf]
  %v127 = vld [vmem:[%s1 + $0x128] sm:$0xf]
  %v128 = vld [vmem:[%s1 + $0x12c] sm:$0xf]
  %v129 = vld [vmem:[%s1 + $0x130] sm:$0xf]
  %v130 = vld [vmem:[%s1 + $0x134] sm:$0xf]
  %v131 = vld [vmem:[%s1 + $0x138] sm:$0xf]
  %v132 = vld [vmem:[%s1 + $0x13c] sm:$0xf]
  %v133 = vld [vmem:[%s1 + $0x140] sm:$0xf]
  %v134 = vld [vmem:[%s1 + $0x144] sm:$0xf]
  %v135 = vld [vmem:[%s1 + $0x148] sm:$0xf]
  %v136 = vld [vmem:[%s1 + $0x14c] sm:$0xf]
  %v137 = vld [vmem:[%s1 + $0x150] sm:$0xf]
  %v138 = vld [vmem:[%s1 + $0x154] sm:$0xf]
  %v139 = vld [vmem:[%s1 + $0x158] sm:$0xf]
  %v140 = vld [vmem:[%s1 + $0x15c] sm:$0xf]
  %v141 = vld [vmem:[%s1 + $0x160] sm:$0xf]
  %v142 = vld [vmem:[%s1 + $0x164] sm:$0xf]
  %v143 = vld [vmem:[%s1 + $0x168] sm:$0xf]
  %v144 = vld [vmem:[%s1 + $0x16c] sm:$0xf]
  %v145 = vld [vmem:[%s1 + $0x170] sm:$0xf]
  %v146 = vld [vmem:[%s1 + $0x174] sm:$0xf]
  %v147 = vld [vmem:[%s1 + $0x178] sm:$0xf]
  %v148 = vld [vmem:[%s1 + $0x17c] sm:$0xf]
  %v149 = vld [vmem:[%s1 + $0x180] sm:$0xf]
  %v150 = vld [vmem:[%s1 + $0x184] sm:$0xf]
  %v151 = vld [vmem:[%s1 + $0x188] sm:$0xf]
  %v152 = vld [vmem:[%s1 + $0x18c] sm:$0xf]
  %v153 = vld [vmem:[%s1 + $0x190] sm:$0xf]
  %v154 = vld [vmem:[%s1 + $0x194] sm:$0xf]
  %v155 = vld [vmem:[%s1 + $0x198] sm:$0xf]
  %v156 = vld [vmem:[%s1 + $0x19c] sm:$0xf]
  %v157 = vld [vmem:[%s1 + $0x1a0] sm:$0xf]
  %v158 = vld [vmem:[%s1 + $0x1a4] sm:$0xf]
  %v159 = vld [vmem:[%s1 + $0x1a8] sm:$0xf]
  %v160 = vld [vmem:[%s1 + $0x1ac] sm:$0xf]
  %v161 = vld [vmem:[%s1 + $0x1b0] sm:$0xf]
  %v162 = vld [vmem:[%s1 + $0x1b4] sm:$0xf]
  %v163 = vld [vmem:[%s1 + $0x1b8] sm:$0xf]
  %v164 = vld [vmem:[%s1 + $0x1bc] sm:$0xf]
  %v165 = vld [vmem:[%s1 + $0x1c0] sm:$0xf]
  %v166 = vld [vmem:[%s1 + $0x1c4] sm:$0xf]
  %v167 = vld [vmem:[%s1 + $0x1c8] sm:$0xf]
  %v168 = vld [vmem:[%s1 + $0x1cc] sm:$0xf]
  %v169 = vld [vmem:[%s1 + $0x1d0] sm:$0xf]
  %v170 = vld [vmem:[%s1 + $0x1d4] sm:$0xf]
  %v171 = vld [vmem:[%s1 + $0x1d8] sm:$0xf]
  %v172 = vld [vmem:[%s1 + $0x1dc] sm:$0xf]
  %v173 = vld [vmem:[%s1 + $0x1e0] sm:$0xf]
  %v174 = vld [vmem:[%s1 + $0x1e4] sm:$0xf]
  %v175 = vld [vmem:[%s1 + $0x1e8] sm:$0xf]
  %v176 = vld [vmem:[%s1 + $0x1ec] sm:$0xf]
  %v177 = vld [vmem:[%s1 + $0x1f0] sm:$0xf]
  %v178 = vld [vmem:[%s1 + $0x1f4] sm:$0xf]
  %v179 = vld [vmem:[%s1 + $0x1f8] sm:$0xf]
  %v180 = vld [vmem:[%s1 + $0x1fc] sm:$0xf]
  %v181 = vld [vmem:[%s1 + $0x200] sm:$0xf]
  %v182 = vld [vmem:[%s1 + $0x204] sm:$0xf]
  %v183 = vld [vmem:[%s1 + $0x208] sm:$0xf]
  %v184 = vld [vmem:[%s1 + $0x20c] sm:$0xf]
  %v185 = vld [vmem:[%s1 + $0x210] sm:$0xf]
  %v186 = vld [vmem:[%s1 + $0x214] sm:$0xf]
  %v187 = vld [vmem:[%s1 + $0x218] sm:$0xf]
  %v188 = vld [vmem:[%s1 + $0x21c] sm:$0xf]
  %v189 = vld [vmem:[%s1 + $0x220] sm:$0xf]
  %v190 = vld [vmem:[%s1 + $0x224] sm:$0xf]
  %v191 = vld [vmem:[%s1 + $0x228] sm:$0xf]
  %v192 = vld [vmem:[%s1 + $0x22c] sm:$0xf]
  %v193 = vld [vmem:[%s1 + $0x230] sm:$0xf]
  %v194 = vld [vmem:[%s1 + $0x234] sm:$0xf]
  %v195 = vld [vmem:[%s1 + $0x238] sm:$0xf]
  %v196 = vld [vmem:[%s1 + $0x23c] sm:$0xf]
  %v197 = vld [vmem:[%s2] sm:$0x1]
  %v198 = vld [vmem:[%s2 + $0x1] sm:$0x1]
  %v199 = vld [vmem:[%s3] sm:$0xf]
  %v200 = vld [vmem:[%s3 + $0x4] sm:$0xf]
  %v201 = vld [vmem:[%s3 + $0x8] sm:$0xf]
  %v202 = vld [vmem:[%s3 + $0xc] sm:$0xf]
  %v203 = vld [vmem:[%s3 + $0x10] sm:$0xf]
  %v204 = vld [vmem:[%s3 + $0x14] sm:$0xf]
  %v205 = vld [vmem:[%s3 + $0x18] sm:$0xf]
  %v206 = vld [vmem:[%s3 + $0x1c] sm:$0xf]
  %v207 = vld [vmem:[%s3 + $0x20] sm:$0xf]
  %v208 = vld [vmem:[%s3 + $0x24] sm:$0xf]
  %v209 = vld [vmem:[%s3 + $0x28] sm:$0xf]
  %v210 = vld [vmem:[%s3 + $0x2c] sm:$0xf]
  %v211 = vld [vmem:[%s3 + $0x30] sm:$0xf]
  %v212 = vld [vmem:[%s3 + $0x34] sm:$0xf]
  %v213 = vld [vmem:[%s3 + $0x38] sm:$0xf]
  %v214 = vld [vmem:[%s3 + $0x3c] sm:$0xf]
  %v215 = vld [vmem:[%s3 + $0x40] sm:$0xf]
  %v216 = vld [vmem:[%s3 + $0x44] sm:$0xf]
  %v217 = vld [vmem:[%s3 + $0x48] sm:$0xf]
  %v218 = vld [vmem:[%s3 + $0x4c] sm:$0xf]
  %v219 = vld [vmem:[%s3 + $0x50] sm:$0xf]
  %v220 = vld [vmem:[%s3 + $0x54] sm:$0xf]
  %v221 = vld [vmem:[%s3 + $0x58] sm:$0xf]
  %v222 = vld [vmem:[%s3 + $0x5c] sm:$0xf]
  %v223 = vld [vmem:[%s3 + $0x60] sm:$0xf]
  %v224 = vld [vmem:[%s3 + $0x64] sm:$0xf]
  %v225 = vld [vmem:[%s3 + $0x68] sm:$0xf]
  %v226 = vld [vmem:[%s3 + $0x6c] sm:$0xf]
  %v227 = vld [vmem:[%s3 + $0x70] sm:$0xf]
  %v228 = vld [vmem:[%s3 + $0x74] sm:$0xf]
  %v229 = vld [vmem:[%s3 + $0x78] sm:$0xf]
  %v230 = vld [vmem:[%s3 + $0x7c] sm:$0xf]
  %v231 = vld [vmem:[%s3 + $0x80] sm:$0xf]
  %v232 = vld [vmem:[%s3 + $0x84] sm:$0xf]
  %v233 = vld [vmem:[%s3 + $0x88] sm:$0xf]
  %v234 = vld [vmem:[%s3 + $0x8c] sm:$0xf]
  %v235 = vld [vmem:[%s3 + $0x90] sm:$0xf]
  %v236 = vld [vmem:[%s3 + $0x94] sm:$0xf]
  %v237 = vld [vmem:[%s3 + $0x98] sm:$0xf]
  %v238 = vld [vmem:[%s3 + $0x9c] sm:$0xf]
  %v239 = vld [vmem:[%s3 + $0xa0] sm:$0xf]
  %v240 = vld [vmem:[%s3 + $0xa4] sm:$0xf]
  %v241 = vld [vmem:[%s3 + $0xa8] sm:$0xf]
  %v242 = vld [vmem:[%s3 + $0xac] sm:$0xf]
  %v243 = vld [vmem:[%s3 + $0xb0] sm:$0xf]
  %v244 = vld [vmem:[%s3 + $0xb4] sm:$0xf]
  %v245 = vld [vmem:[%s3 + $0xb8] sm:$0xf]
  %v246 = vld [vmem:[%s3 + $0xbc] sm:$0xf]
  %v247 = vld [vmem:[%s3 + $0xc0] sm:$0xf]
  %v248 = vld [vmem:[%s3 + $0xc4] sm:$0xf]
  %v249 = vld [vmem:[%s3 + $0xc8] sm:$0xf]
  %v250 = vld [vmem:[%s3 + $0xcc] sm:$0xf]
  %v251 = vld [vmem:[%s3 + $0xd0] sm:$0xf]
  %v252 = vld [vmem:[%s3 + $0xd4] sm:$0xf]
  %v253 = vld [vmem:[%s3 + $0xd8] sm:$0xf]
  %v254 = vld [vmem:[%s3 + $0xdc] sm:$0xf]
  %v255 = vld [vmem:[%s3 + $0xe0] sm:$0xf]
  %v256 = vld [vmem:[%s3 + $0xe4] sm:$0xf]
  %v257 = vld [vmem:[%s3 + $0xe8] sm:$0xf]
  %v258 = vld [vmem:[%s3 + $0xec] sm:$0xf]
  %v259 = vld [vmem:[%s3 + $0xf0] sm:$0xf]
  %v260 = vld [vmem:[%s3 + $0xf4] sm:$0xf]
  %v261 = vld [vmem:[%s3 + $0xf8] sm:$0xf]
  %v262 = vld [vmem:[%s3 + $0xfc] sm:$0xf]
  %v263 = vld [vmem:[%s3 + $0x100] sm:$0xf]
  %v264 = vld [vmem:[%s3 + $0x104] sm:$0xf]
  %v265 = vld [vmem:[%s3 + $0x108] sm:$0xf]
  %v266 = vld [vmem:[%s3 + $0x10c] sm:$0xf]
  %v267 = vld [vmem:[%s3 + $0x110] sm:$0xf]
  %v268 = vld [vmem:[%s3 + $0x114] sm:$0xf]
  %v269 = vld [vmem:[%s3 + $0x118] sm:$0xf]
  %v270 = vld [vmem:[%s3 + $0x11c] sm:$0xf]
  %v271 = vld [vmem:[%s3 + $0x120] sm:$0xf]
  %v272 = vld [vmem:[%s3 + $0x124] sm:$0xf]
  %v273 = vld [vmem:[%s3 + $0x128] sm:$0xf]
  %v274 = vld [vmem:[%s3 + $0x12c] sm:$0xf]
  %v275 = vld [vmem:[%s3 + $0x130] sm:$0xf]
  %v276 = vld [vmem:[%s3 + $0x134] sm:$0xf]
  %v277 = vld [vmem:[%s3 + $0x138] sm:$0xf]
  %v278 = vld [vmem:[%s3 + $0x13c] sm:$0xf]
  %v279 = vld [vmem:[%s3 + $0x140] sm:$0xf]
  %v280 = vld [vmem:[%s3 + $0x144] sm:$0xf]
  %v281 = vld [vmem:[%s3 + $0x148] sm:$0xf]
  %v282 = vld [vmem:[%s3 + $0x14c] sm:$0xf]
  %v283 = vld [vmem:[%s3 + $0x150] sm:$0xf]
  %v284 = vld [vmem:[%s3 + $0x154] sm:$0xf]
  %v285 = vld [vmem:[%s3 + $0x158] sm:$0xf]
  %v286 = vld [vmem:[%s3 + $0x15c] sm:$0xf]
  %v287 = vld [vmem:[%s3 + $0x160] sm:$0xf]
  %v288 = vld [vmem:[%s3 + $0x164] sm:$0xf]
  %v289 = vld [vmem:[%s3 + $0x168] sm:$0xf]
  %v290 = vld [vmem:[%s3 + $0x16c] sm:$0xf]
  %v291 = vld [vmem:[%s3 + $0x170] sm:$0xf]
  %v292 = vld [vmem:[%s3 + $0x174] sm:$0xf]
  %v293 = vld [vmem:[%s3 + $0x178] sm:$0xf]
  %v294 = vld [vmem:[%s3 + $0x17c] sm:$0xf]
  %v295 = vld [vmem:[%s3 + $0x180] sm:$0xf]
  %v296 = vld [vmem:[%s3 + $0x184] sm:$0xf]
  %v297 = vld [vmem:[%s3 + $0x188] sm:$0xf]
  %v298 = vld [vmem:[%s3 + $0x18c] sm:$0xf]
  %v299 = vld [vmem:[%s3 + $0x190] sm:$0xf]
  %v300 = vld [vmem:[%s3 + $0x194] sm:$0xf]
  %v301 = vld [vmem:[%s3 + $0x198] sm:$0xf]
  %v302 = vld [vmem:[%s3 + $0x19c] sm:$0xf]
  %v303 = vld [vmem:[%s3 + $0x1a0] sm:$0xf]
  %v304 = vld [vmem:[%s3 + $0x1a4] sm:$0xf]
  %v305 = vld [vmem:[%s3 + $0x1a8] sm:$0xf]
  %v306 = vld [vmem:[%s3 + $0x1ac] sm:$0xf]
  %v307 = vld [vmem:[%s3 + $0x1b0] sm:$0xf]
  %v308 = vld [vmem:[%s3 + $0x1b4] sm:$0xf]
  %v309 = vld [vmem:[%s3 + $0x1b8] sm:$0xf]
  %v310 = vld [vmem:[%s3 + $0x1bc] sm:$0xf]
  %v311 = vld [vmem:[%s3 + $0x1c0] sm:$0xf]
  %v312 = vld [vmem:[%s3 + $0x1c4] sm:$0xf]
  %v313 = vld [vmem:[%s3 + $0x1c8] sm:$0xf]
  %v314 = vld [vmem:[%s3 + $0x1cc] sm:$0xf]
  %v315 = vld [vmem:[%s3 + $0x1d0] sm:$0xf]
  %v316 = vld [vmem:[%s3 + $0x1d4] sm:$0xf]
  %v317 = vld [vmem:[%s3 + $0x1d8] sm:$0xf]
  %v318 = vld [vmem:[%s3 + $0x1dc] sm:$0xf]
  %v319 = vld [vmem:[%s3 + $0x1e0] sm:$0xf]
  %v320 = vld [vmem:[%s3 + $0x1e4] sm:$0xf]
  %v321 = vld [vmem:[%s3 + $0x1e8] sm:$0xf]
  %v322 = vld [vmem:[%s3 + $0x1ec] sm:$0xf]
  %v323 = vld [vmem:[%s3 + $0x1f0] sm:$0xf]
  %v324 = vld [vmem:[%s3 + $0x1f4] sm:$0xf]
  %v325 = vld [vmem:[%s3 + $0x1f8] sm:$0xf]
  %v326 = vld [vmem:[%s3 + $0x1fc] sm:$0xf]
  %v327 = vld [vmem:[%s3 + $0x200] sm:$0xf]
  %v328 = vld [vmem:[%s3 + $0x204] sm:$0xf]
  %v329 = vld [vmem:[%s3 + $0x208] sm:$0xf]
  %v330 = vld [vmem:[%s3 + $0x20c] sm:$0xf]
  %v331 = vld [vmem:[%s3 + $0x210] sm:$0xf]
  %v332 = vld [vmem:[%s3 + $0x214] sm:$0xf]
  %v333 = vld [vmem:[%s3 + $0x218] sm:$0xf]
  %v334 = vld [vmem:[%s3 + $0x21c] sm:$0xf]
  %v335 = vld [vmem:[%s3 + $0x220] sm:$0xf]
  %v336 = vld [vmem:[%s3 + $0x224] sm:$0xf]
  %v337 = vld [vmem:[%s3 + $0x228] sm:$0xf]
  %v338 = vld [vmem:[%s3 + $0x22c] sm:$0xf]
  %v339 = vld [vmem:[%s3 + $0x230] sm:$0xf]
  %v340 = vld [vmem:[%s3 + $0x234] sm:$0xf]
  %v341 = vld [vmem:[%s3 + $0x238] sm:$0xf]
  %v342 = vld [vmem:[%s3 + $0x23c] sm:$0xf]
  %v343 = vld [vmem:[%s4] sm:$0x1]
  %v344 = vld [vmem:[%s4 + $0x1] sm:$0x1]
  %v377 = vunpack.c.l.b16 %v21
  %v378 = vunpack.c.l.b16 %v22
  %v379 = vunpack.c.l.b16 %v23
  %v380 = vunpack.c.l.b16 %v24
  %v381 = vunpack.c.l.b16 %v25
  %v382 = vunpack.c.l.b16 %v26
  %v383 = vunpack.c.l.b16 %v27
  %v384 = vunpack.c.l.b16 %v28
  %v385 = vunpack.c.l.b16 %v29
  %v386 = vunpack.c.l.b16 %v30
  %v387 = vunpack.c.l.b16 %v31
  %v388 = vunpack.c.l.b16 %v32
  %v389 = vunpack.c.l.b16 %v33
  %v390 = vunpack.c.l.b16 %v34
  %v391 = vunpack.c.l.b16 %v35
  %v392 = vunpack.c.l.b16 %v36
  %v393 = vunpack.c.l.b16 %v37
  %v394 = vunpack.c.l.b16 %v38
  %v395 = vunpack.c.l.b16 %v39
  %v396 = vunpack.c.l.b16 %v40
  %v397 = vunpack.c.l.b16 %v41
  %v398 = vunpack.c.l.b16 %v42
  %v399 = vunpack.c.l.b16 %v43
  %v400 = vunpack.c.l.b16 %v44
  %v401 = vunpack.c.l.b16 %v45
  %v402 = vunpack.c.l.b16 %v46
  %v403 = vunpack.c.l.b16 %v47
  %v404 = vunpack.c.l.b16 %v48
  %v405 = vunpack.c.l.b16 %v49
  %v406 = vunpack.c.l.b16 %v50
  %v407 = vunpack.c.l.b16 %v51
  %v408 = vunpack.c.l.b16 %v52
  %v409 = vpack.c.b16 %v377, %v377
  %v410 = vpack.c.b16 %v378, %v378
  %v411 = vpack.c.b16 %v379, %v379
  %v412 = vpack.c.b16 %v380, %v380
  %v413 = vpack.c.b16 %v381, %v381
  %v414 = vpack.c.b16 %v382, %v382
  %v415 = vpack.c.b16 %v383, %v383
  %v416 = vpack.c.b16 %v384, %v384
  %v417 = vpack.c.b16 %v385, %v385
  %v418 = vpack.c.b16 %v386, %v386
  %v419 = vpack.c.b16 %v387, %v387
  %v420 = vpack.c.b16 %v388, %v388
  %v421 = vpack.c.b16 %v389, %v389
  %v422 = vpack.c.b16 %v390, %v390
  %v423 = vpack.c.b16 %v391, %v391
  %v424 = vpack.c.b16 %v392, %v392
  %v425 = vpack.c.b16 %v393, %v393
  %v426 = vpack.c.b16 %v394, %v394
  %v427 = vpack.c.b16 %v395, %v395
  %v428 = vpack.c.b16 %v396, %v396
  %v429 = vpack.c.b16 %v397, %v397
  %v430 = vpack.c.b16 %v398, %v398
  %v431 = vpack.c.b16 %v399, %v399
  %v432 = vpack.c.b16 %v400, %v400
  %v433 = vpack.c.b16 %v401, %v401
  %v434 = vpack.c.b16 %v402, %v402
  %v435 = vpack.c.b16 %v403, %v403
  %v436 = vpack.c.b16 %v404, %v404
  %v437 = vpack.c.b16 %v405, %v405
  %v438 = vpack.c.b16 %v406, %v406
  %v439 = vpack.c.b16 %v407, %v407
  %v440 = vpack.c.b16 %v408, %v408
  %v442 = vshrl.u32 %v409, 16
  %v444 = vrot.slane %v442, 7
  %v445 = vshll.u32 %v409, 16
  %v447 = vor.u32 %v444, %v445
  %v449 = vshrl.u32 %v410, 16
  %v451 = vrot.slane %v449, 7
  %v452 = vshll.u32 %v410, 16
  %v454 = vor.u32 %v451, %v452
  %v456 = vshrl.u32 %v411, 16
  %v458 = vrot.slane %v456, 7
  %v459 = vshll.u32 %v411, 16
  %v461 = vor.u32 %v458, %v459
  %v463 = vshrl.u32 %v412, 16
  %v465 = vrot.slane %v463, 7
  %v466 = vshll.u32 %v412, 16
  %v468 = vor.u32 %v465, %v466
  %v470 = vshrl.u32 %v413, 16
  %v472 = vrot.slane %v470, 7
  %v473 = vshll.u32 %v413, 16
  %v475 = vor.u32 %v472, %v473
  %v477 = vshrl.u32 %v414, 16
  %v479 = vrot.slane %v477, 7
  %v480 = vshll.u32 %v414, 16
  %v482 = vor.u32 %v479, %v480
  %v484 = vshrl.u32 %v415, 16
  %v486 = vrot.slane %v484, 7
  %v487 = vshll.u32 %v415, 16
  %v489 = vor.u32 %v486, %v487
  %v491 = vshrl.u32 %v416, 16
  %v493 = vrot.slane %v491, 7
  %v494 = vshll.u32 %v416, 16
  %v496 = vor.u32 %v493, %v494
  %v498 = vshrl.u32 %v417, 16
  %v500 = vrot.slane %v498, 7
  %v501 = vshll.u32 %v417, 16
  %v503 = vor.u32 %v500, %v501
  %v505 = vshrl.u32 %v418, 16
  %v507 = vrot.slane %v505, 7
  %v508 = vshll.u32 %v418, 16
  %v510 = vor.u32 %v507, %v508
  %v512 = vshrl.u32 %v419, 16
  %v514 = vrot.slane %v512, 7
  %v515 = vshll.u32 %v419, 16
  %v517 = vor.u32 %v514, %v515
  %v519 = vshrl.u32 %v420, 16
  %v521 = vrot.slane %v519, 7
  %v522 = vshll.u32 %v420, 16
  %v524 = vor.u32 %v521, %v522
  %v526 = vshrl.u32 %v421, 16
  %v528 = vrot.slane %v526, 7
  %v529 = vshll.u32 %v421, 16
  %v531 = vor.u32 %v528, %v529
  %v533 = vshrl.u32 %v422, 16
  %v535 = vrot.slane %v533, 7
  %v536 = vshll.u32 %v422, 16
  %v538 = vor.u32 %v535, %v536
  %v540 = vshrl.u32 %v423, 16
  %v542 = vrot.slane %v540, 7
  %v543 = vshll.u32 %v423, 16
  %v545 = vor.u32 %v542, %v543
  %v547 = vshrl.u32 %v424, 16
  %v549 = vrot.slane %v547, 7
  %v550 = vshll.u32 %v424, 16
  %v552 = vor.u32 %v549, %v550
  %v554 = vshrl.u32 %v425, 16
  %v556 = vrot.slane %v554, 7
  %v557 = vshll.u32 %v425, 16
  %v559 = vor.u32 %v556, %v557
  %v561 = vshrl.u32 %v426, 16
  %v563 = vrot.slane %v561, 7
  %v564 = vshll.u32 %v426, 16
  %v566 = vor.u32 %v563, %v564
  %v568 = vshrl.u32 %v427, 16
  %v570 = vrot.slane %v568, 7
  %v571 = vshll.u32 %v427, 16
  %v573 = vor.u32 %v570, %v571
  %v575 = vshrl.u32 %v428, 16
  %v577 = vrot.slane %v575, 7
  %v578 = vshll.u32 %v428, 16
  %v580 = vor.u32 %v577, %v578
  %v582 = vshrl.u32 %v429, 16
  %v584 = vrot.slane %v582, 7
  %v585 = vshll.u32 %v429, 16
  %v587 = vor.u32 %v584, %v585
  %v589 = vshrl.u32 %v430, 16
  %v591 = vrot.slane %v589, 7
  %v592 = vshll.u32 %v430, 16
  %v594 = vor.u32 %v591, %v592
  %v596 = vshrl.u32 %v431, 16
  %v598 = vrot.slane %v596, 7
  %v599 = vshll.u32 %v431, 16
  %v601 = vor.u32 %v598, %v599
  %v603 = vshrl.u32 %v432, 16
  %v605 = vrot.slane %v603, 7
  %v606 = vshll.u32 %v432, 16
  %v608 = vor.u32 %v605, %v606
  %v610 = vshrl.u32 %v433, 16
  %v612 = vrot.slane %v610, 7
  %v613 = vshll.u32 %v433, 16
  %v615 = vor.u32 %v612, %v613
  %v617 = vshrl.u32 %v434, 16
  %v619 = vrot.slane %v617, 7
  %v620 = vshll.u32 %v434, 16
  %v622 = vor.u32 %v619, %v620
  %v624 = vshrl.u32 %v435, 16
  %v626 = vrot.slane %v624, 7
  %v627 = vshll.u32 %v435, 16
  %v629 = vor.u32 %v626, %v627
  %v631 = vshrl.u32 %v436, 16
  %v633 = vrot.slane %v631, 7
  %v634 = vshll.u32 %v436, 16
  %v636 = vor.u32 %v633, %v634
  %v638 = vshrl.u32 %v437, 16
  %v640 = vrot.slane %v638, 7
  %v641 = vshll.u32 %v437, 16
  %v643 = vor.u32 %v640, %v641
  %v645 = vshrl.u32 %v438, 16
  %v647 = vrot.slane %v645, 7
  %v648 = vshll.u32 %v438, 16
  %v650 = vor.u32 %v647, %v648
  %v652 = vshrl.u32 %v439, 16
  %v654 = vrot.slane %v652, 7
  %v655 = vshll.u32 %v439, 16
  %v657 = vor.u32 %v654, %v655
  %v659 = vshrl.u32 %v440, 16
  %v661 = vrot.slane %v659, 7
  %v662 = vshll.u32 %v440, 16
  %v664 = vor.u32 %v661, %v662
  %vm697 = vcmask 1040384
  %vm698 = vsmask.f32 256
  %vm699 = vmand %vm697, %vm698
  %v700 = vsel %vm699, 0, %v447
  %v701 = vsel %vm699, 0, %v454
  %v702 = vsel %vm699, 0, %v461
  %v703 = vsel %vm699, 0, %v468
  %v704 = vsel %vm699, 0, %v475
  %v705 = vsel %vm699, 0, %v482
  %v706 = vsel %vm699, 0, %v489
  %v707 = vsel %vm699, 0, %v496
  %v708 = vsel %vm699, 0, %v503
  %v709 = vsel %vm699, 0, %v510
  %v710 = vsel %vm699, 0, %v517
  %v711 = vsel %vm699, 0, %v524
  %v712 = vsel %vm699, 0, %v531
  %v713 = vsel %vm699, 0, %v538
  %v714 = vsel %vm699, 0, %v545
  %v715 = vsel %vm699, 0, %v552
  %v716 = vsel %vm699, 0, %v559
  %v717 = vsel %vm699, 0, %v566
  %v718 = vsel %vm699, 0, %v573
  %v719 = vsel %vm699, 0, %v580
  %v720 = vsel %vm699, 0, %v587
  %v721 = vsel %vm699, 0, %v594
  %v722 = vsel %vm699, 0, %v601
  %v723 = vsel %vm699, 0, %v608
  %v724 = vsel %vm699, 0, %v615
  %v725 = vsel %vm699, 0, %v622
  %v726 = vsel %vm699, 0, %v629
  %v727 = vsel %vm699, 0, %v636
  %v728 = vsel %vm699, 0, %v643
  %v729 = vsel %vm699, 0, %v650
  %v730 = vsel %vm699, 0, %v657
  %v731 = vsel %vm699, 0, %v664
  %v732 = vrot.slane %v445, 1
  %v733 = vor.u32 %v442, %v732
  %v734 = vrot.slane %v452, 1
  %v735 = vor.u32 %v449, %v734
  %v736 = vrot.slane %v459, 1
  %v737 = vor.u32 %v456, %v736
  %v738 = vrot.slane %v466, 1
  %v739 = vor.u32 %v463, %v738
  %v740 = vrot.slane %v473, 1
  %v741 = vor.u32 %v470, %v740
  %v742 = vrot.slane %v480, 1
  %v743 = vor.u32 %v477, %v742
  %v744 = vrot.slane %v487, 1
  %v745 = vor.u32 %v484, %v744
  %v746 = vrot.slane %v494, 1
  %v747 = vor.u32 %v491, %v746
  %v748 = vrot.slane %v501, 1
  %v749 = vor.u32 %v498, %v748
  %v750 = vrot.slane %v508, 1
  %v751 = vor.u32 %v505, %v750
  %v752 = vrot.slane %v515, 1
  %v753 = vor.u32 %v512, %v752
  %v754 = vrot.slane %v522, 1
  %v755 = vor.u32 %v519, %v754
  %v756 = vrot.slane %v529, 1
  %v757 = vor.u32 %v526, %v756
  %v758 = vrot.slane %v536, 1
  %v759 = vor.u32 %v533, %v758
  %v760 = vrot.slane %v543, 1
  %v761 = vor.u32 %v540, %v760
  %v762 = vrot.slane %v550, 1
  %v763 = vor.u32 %v547, %v762
  %v764 = vrot.slane %v557, 1
  %v765 = vor.u32 %v554, %v764
  %v766 = vrot.slane %v564, 1
  %v767 = vor.u32 %v561, %v766
  %v768 = vrot.slane %v571, 1
  %v769 = vor.u32 %v568, %v768
  %v770 = vrot.slane %v578, 1
  %v771 = vor.u32 %v575, %v770
  %v772 = vrot.slane %v585, 1
  %v773 = vor.u32 %v582, %v772
  %v774 = vrot.slane %v592, 1
  %v775 = vor.u32 %v589, %v774
  %v776 = vrot.slane %v599, 1
  %v777 = vor.u32 %v596, %v776
  %v778 = vrot.slane %v606, 1
  %v779 = vor.u32 %v603, %v778
  %v780 = vrot.slane %v613, 1
  %v781 = vor.u32 %v610, %v780
  %v782 = vrot.slane %v620, 1
  %v783 = vor.u32 %v617, %v782
  %v784 = vrot.slane %v627, 1
  %v785 = vor.u32 %v624, %v784
  %v786 = vrot.slane %v634, 1
  %v787 = vor.u32 %v631, %v786
  %v788 = vrot.slane %v641, 1
  %v789 = vor.u32 %v638, %v788
  %v790 = vrot.slane %v648, 1
  %v791 = vor.u32 %v645, %v790
  %v792 = vrot.slane %v655, 1
  %v793 = vor.u32 %v652, %v792
  %v794 = vrot.slane %v662, 1
  %v795 = vor.u32 %v659, %v794
  %vm828 = vcmask 1043456
  %vm829 = vsmask.f32 3328
  %vm830 = vmand %vm828, %vm829
  %v831 = vsel %vm830, %v733, 0
  %v832 = vsel %vm830, %v735, 0
  %v833 = vsel %vm830, %v737, 0
  %v834 = vsel %vm830, %v739, 0
  %v835 = vsel %vm830, %v741, 0
  %v836 = vsel %vm830, %v743, 0
  %v837 = vsel %vm830, %v745, 0
  %v838 = vsel %vm830, %v747, 0
  %v839 = vsel %vm830, %v749, 0
  %v840 = vsel %vm830, %v751, 0
  %v841 = vsel %vm830, %v753, 0
  %v842 = vsel %vm830, %v755, 0
  %v843 = vsel %vm830, %v757, 0
  %v844 = vsel %vm830, %v759, 0
  %v845 = vsel %vm830, %v761, 0
  %v846 = vsel %vm830, %v763, 0
  %v847 = vsel %vm830, %v765, 0
  %v848 = vsel %vm830, %v767, 0
  %v849 = vsel %vm830, %v769, 0
  %v850 = vsel %vm830, %v771, 0
  %v851 = vsel %vm830, %v773, 0
  %v852 = vsel %vm830, %v775, 0
  %v853 = vsel %vm830, %v777, 0
  %v854 = vsel %vm830, %v779, 0
  %v855 = vsel %vm830, %v781, 0
  %v856 = vsel %vm830, %v783, 0
  %v857 = vsel %vm830, %v785, 0
  %v858 = vsel %vm830, %v787, 0
  %v859 = vsel %vm830, %v789, 0
  %v860 = vsel %vm830, %v791, 0
  %v861 = vsel %vm830, %v793, 0
  %v862 = vsel %vm830, %v795, 0
  %863 = vrot.lane.b32.xlu0 %v409, 64
  %v864 = vpop.permute.xlu0 %863
  %865 = vrot.lane.b32.xlu0 %v410, 64
  %v866 = vpop.permute.xlu0 %865
  %867 = vrot.lane.b32.xlu0 %v411, 64
  %v868 = vpop.permute.xlu0 %867
  %869 = vrot.lane.b32.xlu0 %v412, 64
  %v870 = vpop.permute.xlu0 %869
  %871 = vrot.lane.b32.xlu0 %v413, 64
  %v872 = vpop.permute.xlu0 %871
  %873 = vrot.lane.b32.xlu0 %v414, 64
  %v874 = vpop.permute.xlu0 %873
  %875 = vrot.lane.b32.xlu0 %v415, 64
  %v876 = vpop.permute.xlu0 %875
  %877 = vrot.lane.b32.xlu0 %v416, 64
  %v878 = vpop.permute.xlu0 %877
  %879 = vrot.lane.b32.xlu0 %v417, 64
  %v880 = vpop.permute.xlu0 %879
  %881 = vrot.lane.b32.xlu0 %v418, 64
  %v882 = vpop.permute.xlu0 %881
  %883 = vrot.lane.b32.xlu0 %v419, 64
  %v884 = vpop.permute.xlu0 %883
  %885 = vrot.lane.b32.xlu0 %v420, 64
  %v886 = vpop.permute.xlu0 %885
  %887 = vrot.lane.b32.xlu0 %v421, 64
  %v888 = vpop.permute.xlu0 %887
  %889 = vrot.lane.b32.xlu0 %v422, 64
  %v890 = vpop.permute.xlu0 %889
  %891 = vrot.lane.b32.xlu0 %v423, 64
  %v892 = vpop.permute.xlu0 %891
  %893 = vrot.lane.b32.xlu0 %v424, 64
  %v894 = vpop.permute.xlu0 %893
  %895 = vrot.lane.b32.xlu0 %v425, 64
  %v896 = vpop.permute.xlu0 %895
  %897 = vrot.lane.b32.xlu0 %v426, 64
  %v898 = vpop.permute.xlu0 %897
  %899 = vrot.lane.b32.xlu0 %v427, 64
  %v900 = vpop.permute.xlu0 %899
  %901 = vrot.lane.b32.xlu0 %v428, 64
  %v902 = vpop.permute.xlu0 %901
  %903 = vrot.lane.b32.xlu0 %v429, 64
  %v904 = vpop.permute.xlu0 %903
  %905 = vrot.lane.b32.xlu0 %v430, 64
  %v906 = vpop.permute.xlu0 %905
  %907 = vrot.lane.b32.xlu0 %v431, 64
  %v908 = vpop.permute.xlu0 %907
  %909 = vrot.lane.b32.xlu0 %v432, 64
  %v910 = vpop.permute.xlu0 %909
  %911 = vrot.lane.b32.xlu0 %v433, 64
  %v912 = vpop.permute.xlu0 %911
  %913 = vrot.lane.b32.xlu0 %v434, 64
  %v914 = vpop.permute.xlu0 %913
  %915 = vrot.lane.b32.xlu0 %v435, 64
  %v916 = vpop.permute.xlu0 %915
  %917 = vrot.lane.b32.xlu0 %v436, 64
  %v918 = vpop.permute.xlu0 %917
  %919 = vrot.lane.b32.xlu0 %v437, 64
  %v920 = vpop.permute.xlu0 %919
  %921 = vrot.lane.b32.xlu0 %v438, 64
  %v922 = vpop.permute.xlu0 %921
  %923 = vrot.lane.b32.xlu0 %v439, 64
  %v924 = vpop.permute.xlu0 %923
  %925 = vrot.lane.b32.xlu0 %v440, 64
  %v926 = vpop.permute.xlu0 %925
  %vm927 = vcmask 523264
  %v930 = vsel %vm927, %v700, %v864
  %v933 = vsel %vm927, %v701, %v866
  %v936 = vsel %vm927, %v702, %v868
  %v939 = vsel %vm927, %v703, %v870
  %v942 = vsel %vm927, %v704, %v872
  %v945 = vsel %vm927, %v705, %v874
  %v948 = vsel %vm927, %v706, %v876
  %v951 = vsel %vm927, %v707, %v878
  %v954 = vsel %vm927, %v708, %v880
  %v957 = vsel %vm927, %v709, %v882
  %v960 = vsel %vm927, %v710, %v884
  %v963 = vsel %vm927, %v711, %v886
  %v966 = vsel %vm927, %v712, %v888
  %v969 = vsel %vm927, %v713, %v890
  %v972 = vsel %vm927, %v714, %v892
  %v975 = vsel %vm927, %v715, %v894
  %v978 = vsel %vm927, %v716, %v896
  %v981 = vsel %vm927, %v717, %v898
  %v984 = vsel %vm927, %v718, %v900
  %v987 = vsel %vm927, %v719, %v902
  %v990 = vsel %vm927, %v720, %v904
  %v993 = vsel %vm927, %v721, %v906
  %v996 = vsel %vm927, %v722, %v908
  %v999 = vsel %vm927, %v723, %v910
  %v1002 = vsel %vm927, %v724, %v912
  %v1005 = vsel %vm927, %v725, %v914
  %v1008 = vsel %vm927, %v726, %v916
  %v1011 = vsel %vm927, %v727, %v918
  %v1014 = vsel %vm927, %v728, %v920
  %v1017 = vsel %vm927, %v729, %v922
  %v1020 = vsel %vm927, %v730, %v924
  %v1023 = vsel %vm927, %v731, %v926
  %v1081 = vunpack.c.l.b16 0
  %v1082 = vunpack.c.l.b16 %v930
  %v1083 = vunpack.c.l.b16 %v831
  %v1084 = vunpack.c.l.b16 %v933
  %v1085 = vunpack.c.l.b16 %v832
  %v1086 = vunpack.c.l.b16 %v936
  %v1087 = vunpack.c.l.b16 %v833
  %v1088 = vunpack.c.l.b16 %v939
  %v1089 = vunpack.c.l.b16 %v834
  %v1090 = vunpack.c.l.b16 %v942
  %v1091 = vunpack.c.l.b16 %v835
  %v1092 = vunpack.c.l.b16 %v945
  %v1093 = vunpack.c.l.b16 %v836
  %v1094 = vunpack.c.l.b16 %v948
  %v1095 = vunpack.c.l.b16 %v837
  %v1096 = vunpack.c.l.b16 %v954
  %v1097 = vunpack.c.l.b16 %v839
  %v1098 = vunpack.c.l.b16 %v957
  %v1099 = vunpack.c.l.b16 %v840
  %v1100 = vunpack.c.l.b16 %v960
  %v1101 = vunpack.c.l.b16 %v841
  %v1102 = vunpack.c.l.b16 %v963
  %v1103 = vunpack.c.l.b16 %v842
  %v1104 = vunpack.c.l.b16 %v966
  %v1105 = vunpack.c.l.b16 %v843
  %v1106 = vunpack.c.l.b16 %v969
  %v1107 = vunpack.c.l.b16 %v844
  %v1108 = vunpack.c.l.b16 %v972
  %v1109 = vunpack.c.l.b16 %v845
  %v1110 = vunpack.c.l.b16 %v978
  %v1111 = vunpack.c.l.b16 %v847
  %v1112 = vunpack.c.l.b16 %v981
  %v1113 = vunpack.c.l.b16 %v848
  %v1114 = vunpack.c.l.b16 %v984
  %v1115 = vunpack.c.l.b16 %v849
  %v1116 = vunpack.c.l.b16 %v987
  %v1117 = vunpack.c.l.b16 %v850
  %v1118 = vunpack.c.l.b16 %v990
  %v1119 = vunpack.c.l.b16 %v851
  %v1120 = vunpack.c.l.b16 %v993
  %v1121 = vunpack.c.l.b16 %v852
  %v1122 = vunpack.c.l.b16 %v996
  %v1123 = vunpack.c.l.b16 %v853
  %v1124 = vunpack.c.l.b16 %v1002
  %v1125 = vunpack.c.l.b16 %v855
  %v1126 = vunpack.c.l.b16 %v1005
  %v1127 = vunpack.c.l.b16 %v856
  %v1128 = vunpack.c.l.b16 %v1008
  %v1129 = vunpack.c.l.b16 %v857
  %v1130 = vunpack.c.l.b16 %v1011
  %v1131 = vunpack.c.l.b16 %v858
  %v1132 = vunpack.c.l.b16 %v1014
  %v1133 = vunpack.c.l.b16 %v859
  %v1134 = vunpack.c.l.b16 %v1017
  %v1135 = vunpack.c.l.b16 %v860
  %v1136 = vunpack.c.l.b16 %v1020
  %v1137 = vunpack.c.l.b16 %v861
  %v1146 = vunpack.c.l.b16 %v951
  %v1147 = vunpack.c.l.b16 %v838
  %v1148 = vunpack.c.l.b16 %v975
  %v1149 = vunpack.c.l.b16 %v846
  %v1150 = vunpack.c.l.b16 %v999
  %v1151 = vunpack.c.l.b16 %v854
  %v1152 = vunpack.c.l.b16 %v1023
  %v1153 = vunpack.c.l.b16 %v862
  %v1154 = vpack.c.b16 %v1084, %v1082
  %v1155 = vpack.c.b16 %v1085, %v1083
  %v1156 = vpack.c.b16 %v1088, %v1086
  %v1157 = vpack.c.b16 %v1089, %v1087
  %v1158 = vpack.c.b16 %v1092, %v1090
  %v1159 = vpack.c.b16 %v1093, %v1091
  %v1160 = vpack.c.b16 %v1146, %v1094
  %v1161 = vpack.c.b16 %v1147, %v1095
  %v1162 = vpack.c.b16 %v1098, %v1096
  %v1163 = vpack.c.b16 %v1099, %v1097
  %v1164 = vpack.c.b16 %v1102, %v1100
  %v1165 = vpack.c.b16 %v1103, %v1101
  %v1166 = vpack.c.b16 %v1106, %v1104
  %v1167 = vpack.c.b16 %v1107, %v1105
  %v1168 = vpack.c.b16 %v1148, %v1108
  %v1169 = vpack.c.b16 %v1149, %v1109
  %v1170 = vpack.c.b16 %v1112, %v1110
  %v1171 = vpack.c.b16 %v1113, %v1111
  %v1172 = vpack.c.b16 %v1116, %v1114
  %v1173 = vpack.c.b16 %v1117, %v1115
  %v1174 = vpack.c.b16 %v1120, %v1118
  %v1175 = vpack.c.b16 %v1121, %v1119
  %v1176 = vpack.c.b16 %v1150, %v1122
  %v1177 = vpack.c.b16 %v1151, %v1123
  %v1178 = vpack.c.b16 %v1126, %v1124
  %v1179 = vpack.c.b16 %v1127, %v1125
  %v1180 = vpack.c.b16 %v1130, %v1128
  %v1181 = vpack.c.b16 %v1131, %v1129
  %v1182 = vpack.c.b16 %v1134, %v1132
  %v1183 = vpack.c.b16 %v1135, %v1133
  %v1184 = vpack.c.b16 %v1152, %v1136
  %v1185 = vpack.c.b16 %v1153, %v1137
  %v1226 = vunpack.c.l.b16 %v77
  %v1227 = vunpack.c.l.b16 %v78
  %v1228 = vunpack.c.l.b16 %v79
  %v1229 = vunpack.c.l.b16 %v80
  %v1230 = vunpack.c.l.b16 %v81
  %v1231 = vunpack.c.l.b16 %v82
  %v1232 = vunpack.c.l.b16 %v83
  %v1233 = vunpack.c.l.b16 %v84
  %v1234 = vunpack.c.l.b16 %v85
  %v1235 = vunpack.c.l.b16 %v86
  %v1236 = vunpack.c.l.b16 %v87
  %v1237 = vunpack.c.l.b16 %v88
  %v1238 = vunpack.c.l.b16 %v89
  %v1239 = vunpack.c.l.b16 %v90
  %v1240 = vunpack.c.l.b16 %v91
  %v1241 = vunpack.c.l.b16 %v92
  %v1242 = vunpack.c.l.b16 %v93
  %v1243 = vunpack.c.l.b16 %v94
  %v1244 = vunpack.c.l.b16 %v95
  %v1245 = vunpack.c.l.b16 %v96
  %v1246 = vunpack.c.l.b16 %v97
  %v1247 = vunpack.c.l.b16 %v98
  %v1248 = vunpack.c.l.b16 %v99
  %v1249 = vunpack.c.l.b16 %v100
  %v1250 = vpack.c.b16 %v1227, %v1226
  %v1251 = vpack.c.b16 %v1229, %v1228
  %v1252 = vpack.c.b16 %v1231, %v1230
  %v1253 = vpack.c.b16 %v1233, %v1232
  %v1254 = vpack.c.b16 %v1235, %v1234
  %v1255 = vpack.c.b16 %v1237, %v1236
  %v1256 = vpack.c.b16 %v1239, %v1238
  %v1257 = vpack.c.b16 %v1241, %v1240
  %v1258 = vpack.c.b16 %v1243, %v1242
  %v1259 = vpack.c.b16 %v1245, %v1244
  %v1260 = vpack.c.b16 %v1247, %v1246
  %v1261 = vpack.c.b16 %v1249, %v1248
  %v1275 = vsel %vm927, %v1155, 0
  %v1278 = vsel %vm927, %v1157, 0
  %v1281 = vsel %vm927, %v1159, 0
  %v1284 = vsel %vm927, %v1161, 0
  %v1287 = vsel %vm927, %v1163, 0
  %v1290 = vsel %vm927, %v1165, 0
  %v1293 = vsel %vm927, %v1167, 0
  %v1296 = vsel %vm927, %v1169, 0
  %v1299 = vsel %vm927, %v1171, 0
  %v1302 = vsel %vm927, %v1173, 0
  %v1305 = vsel %vm927, %v1175, 0
  %v1308 = vsel %vm927, %v1177, 0
  %v1311 = vsel %vm927, %v1179, 0
  %v1314 = vsel %vm927, %v1181, 0
  %v1317 = vsel %vm927, %v1183, 0
  %v1320 = vsel %vm927, %v1185, 0
  %1322 = vmatpush.bf16.msra.mxu0 %v1257
  %1323 = vmatpush.bf16.msra.mxu0 %v1256
  %1324 = vmatpush.bf16.msra.mxu0 %v1255
  %1325 = vmatpush.bf16.msra.mxu0 %v1254
  %1326 = vmatpush.bf16.msra.mxu0 %v1253
  %1327 = vmatpush.bf16.msra.mxu0 %v1252
  %1328 = vmatpush.bf16.msra.mxu0 %v1251
  %1329 = vmatpush.bf16.msra.mxu0 %v1250
  %1330 = vmatmul.bf16.gmra.mxu0 %v1154
  %v1331 = vpop.f32.mrf.mxu0
  %v1332 = vadd.f32 0.0, %v1331
  %v1333 = vpop.f32.mrf.mxu0
  %v1334 = vadd.f32 0.0, %v1333
  %1335 = vmatmul.bf16.gmra.mxu0 %v1156
  %v1336 = vpop.f32.mrf.mxu0
  %v1337 = vadd.f32 0.0, %v1336
  %v1338 = vpop.f32.mrf.mxu0
  %v1339 = vadd.f32 0.0, %v1338
  %1340 = vmatmul.bf16.gmra.mxu0 %v1158
  %v1341 = vpop.f32.mrf.mxu0
  %v1342 = vadd.f32 0.0, %v1341
  %v1343 = vpop.f32.mrf.mxu0
  %v1344 = vadd.f32 0.0, %v1343
  %1345 = vmatmul.bf16.gmra.mxu0 %v1160
  %v1346 = vpop.f32.mrf.mxu0
  %v1347 = vadd.f32 0.0, %v1346
  %v1348 = vpop.f32.mrf.mxu0
  %v1349 = vadd.f32 0.0, %v1348
  %1350 = vmatmul.bf16.gmra.mxu0 %v1162
  %v1351 = vpop.f32.mrf.mxu0
  %v1352 = vadd.f32 0.0, %v1351
  %v1353 = vpop.f32.mrf.mxu0
  %v1354 = vadd.f32 0.0, %v1353
  %1355 = vmatmul.bf16.gmra.mxu0 %v1164
  %v1356 = vpop.f32.mrf.mxu0
  %v1357 = vadd.f32 0.0, %v1356
  %v1358 = vpop.f32.mrf.mxu0
  %v1359 = vadd.f32 0.0, %v1358
  %1360 = vmatmul.bf16.gmra.mxu0 %v1166
  %v1361 = vpop.f32.mrf.mxu0
  %v1362 = vadd.f32 0.0, %v1361
  %v1363 = vpop.f32.mrf.mxu0
  %v1364 = vadd.f32 0.0, %v1363
  %1365 = vmatmul.bf16.gmra.mxu0 %v1168
  %v1366 = vpop.f32.mrf.mxu0
  %v1367 = vadd.f32 0.0, %v1366
  %v1368 = vpop.f32.mrf.mxu0
  %v1369 = vadd.f32 0.0, %v1368
  %1370 = vmatmul.bf16.gmra.mxu0 %v1170
  %v1371 = vpop.f32.mrf.mxu0
  %v1372 = vadd.f32 0.0, %v1371
  %v1373 = vpop.f32.mrf.mxu0
  %v1374 = vadd.f32 0.0, %v1373
  %1375 = vmatmul.bf16.gmra.mxu0 %v1172
  %v1376 = vpop.f32.mrf.mxu0
  %v1377 = vadd.f32 0.0, %v1376
  %v1378 = vpop.f32.mrf.mxu0
  %v1379 = vadd.f32 0.0, %v1378
  %1380 = vmatmul.bf16.gmra.mxu0 %v1174
  %v1381 = vpop.f32.mrf.mxu0
  %v1382 = vadd.f32 0.0, %v1381
  %v1383 = vpop.f32.mrf.mxu0
  %v1384 = vadd.f32 0.0, %v1383
  %1385 = vmatmul.bf16.gmra.mxu0 %v1176
  %v1386 = vpop.f32.mrf.mxu0
  %v1387 = vadd.f32 0.0, %v1386
  %v1388 = vpop.f32.mrf.mxu0
  %v1389 = vadd.f32 0.0, %v1388
  %1390 = vmatmul.bf16.gmra.mxu0 %v1178
  %v1391 = vpop.f32.mrf.mxu0
  %v1392 = vadd.f32 0.0, %v1391
  %v1393 = vpop.f32.mrf.mxu0
  %v1394 = vadd.f32 0.0, %v1393
  %1395 = vmatmul.bf16.gmra.mxu0 %v1180
  %v1396 = vpop.f32.mrf.mxu0
  %v1397 = vadd.f32 0.0, %v1396
  %v1398 = vpop.f32.mrf.mxu0
  %v1399 = vadd.f32 0.0, %v1398
  %1400 = vmatmul.bf16.gmra.mxu0 %v1182
  %v1401 = vpop.f32.mrf.mxu0
  %v1402 = vadd.f32 0.0, %v1401
  %v1403 = vpop.f32.mrf.mxu0
  %v1404 = vadd.f32 0.0, %v1403
  %1405 = vmatmul.bf16.gmra.mxu0 %v1184
  %v1406 = vpop.f32.mrf.mxu0
  %v1407 = vadd.f32 0.0, %v1406
  %v1408 = vpop.f32.mrf.mxu0
  %v1409 = vadd.f32 0.0, %v1408
  %1410 = vdwg.mxu0
  %1411 = vmatpush.bf16.msra.mxu0 0
  %1412 = vmatpush.bf16.msra.mxu0 0
  %1413 = vmatpush.bf16.msra.mxu0 0
  %1414 = vmatpush.bf16.msra.mxu0 0
  %1415 = vmatpush.bf16.msra.mxu0 %v1261
  %1416 = vmatpush.bf16.msra.mxu0 %v1260
  %1417 = vmatpush.bf16.msra.mxu0 %v1259
  %1418 = vmatpush.bf16.msra.mxu0 %v1258
  %1419 = vmatmul.bf16.gmra.mxu0 %v1275
  %v1420 = vpop.f32.mrf.mxu0
  %v1421 = vadd.f32 %v1332, %v1420
  %v1422 = vpop.f32.mrf.mxu0
  %v1423 = vadd.f32 %v1334, %v1422
  %1424 = vmatmul.bf16.gmra.mxu0 %v1278
  %v1425 = vpop.f32.mrf.mxu0
  %v1426 = vadd.f32 %v1337, %v1425
  %v1427 = vpop.f32.mrf.mxu0
  %v1428 = vadd.f32 %v1339, %v1427
  %1429 = vmatmul.bf16.gmra.mxu0 %v1281
  %v1430 = vpop.f32.mrf.mxu0
  %v1431 = vadd.f32 %v1342, %v1430
  %v1432 = vpop.f32.mrf.mxu0
  %v1433 = vadd.f32 %v1344, %v1432
  %1434 = vmatmul.bf16.gmra.mxu0 %v1284
  %v1435 = vpop.f32.mrf.mxu0
  %v1436 = vadd.f32 %v1347, %v1435
  %v1437 = vpop.f32.mrf.mxu0
  %v1438 = vadd.f32 %v1349, %v1437
  %1439 = vmatmul.bf16.gmra.mxu0 %v1287
  %v1440 = vpop.f32.mrf.mxu0
  %v1441 = vadd.f32 %v1352, %v1440
  %v1442 = vpop.f32.mrf.mxu0
  %v1443 = vadd.f32 %v1354, %v1442
  %1444 = vmatmul.bf16.gmra.mxu0 %v1290
  %v1445 = vpop.f32.mrf.mxu0
  %v1446 = vadd.f32 %v1357, %v1445
  %v1447 = vpop.f32.mrf.mxu0
  %v1448 = vadd.f32 %v1359, %v1447
  %1449 = vmatmul.bf16.gmra.mxu0 %v1293
  %v1450 = vpop.f32.mrf.mxu0
  %v1451 = vadd.f32 %v1362, %v1450
  %v1452 = vpop.f32.mrf.mxu0
  %v1453 = vadd.f32 %v1364, %v1452
  %1454 = vmatmul.bf16.gmra.mxu0 %v1296
  %v1455 = vpop.f32.mrf.mxu0
  %v1456 = vadd.f32 %v1367, %v1455
  %v1457 = vpop.f32.mrf.mxu0
  %v1458 = vadd.f32 %v1369, %v1457
  %1459 = vmatmul.bf16.gmra.mxu0 %v1299
  %v1460 = vpop.f32.mrf.mxu0
  %v1461 = vadd.f32 %v1372, %v1460
  %v1462 = vpop.f32.mrf.mxu0
  %v1463 = vadd.f32 %v1374, %v1462
  %1464 = vmatmul.bf16.gmra.mxu0 %v1302
  %v1465 = vpop.f32.mrf.mxu0
  %v1466 = vadd.f32 %v1377, %v1465
  %v1467 = vpop.f32.mrf.mxu0
  %v1468 = vadd.f32 %v1379, %v1467
  %1469 = vmatmul.bf16.gmra.mxu0 %v1305
  %v1470 = vpop.f32.mrf.mxu0
  %v1471 = vadd.f32 %v1382, %v1470
  %v1472 = vpop.f32.mrf.mxu0
  %v1473 = vadd.f32 %v1384, %v1472
  %1474 = vmatmul.bf16.gmra.mxu0 %v1308
  %v1475 = vpop.f32.mrf.mxu0
  %v1476 = vadd.f32 %v1387, %v1475
  %v1477 = vpop.f32.mrf.mxu0
  %v1478 = vadd.f32 %v1389, %v1477
  %1479 = vmatmul.bf16.gmra.mxu0 %v1311
  %v1480 = vpop.f32.mrf.mxu0
  %v1481 = vadd.f32 %v1392, %v1480
  %v1482 = vpop.f32.mrf.mxu0
  %v1483 = vadd.f32 %v1394, %v1482
  %1484 = vmatmul.bf16.gmra.mxu0 %v1314
  %v1485 = vpop.f32.mrf.mxu0
  %v1486 = vadd.f32 %v1397, %v1485
  %v1487 = vpop.f32.mrf.mxu0
  %v1488 = vadd.f32 %v1399, %v1487
  %1489 = vmatmul.bf16.gmra.mxu0 %v1317
  %v1490 = vpop.f32.mrf.mxu0
  %v1491 = vadd.f32 %v1402, %v1490
  %v1492 = vpop.f32.mrf.mxu0
  %v1493 = vadd.f32 %v1404, %v1492
  %1494 = vmatmul.bf16.gmra.mxu0 %v1320
  %v1495 = vpop.f32.mrf.mxu0
  %v1496 = vadd.f32 %v1407, %v1495
  %v1497 = vpop.f32.mrf.mxu0
  %v1498 = vadd.f32 %v1409, %v1497
  %1499 = vdwg.mxu0
  %v1500 = vpack.c.b16 %v1082, %v1081
  %v1501 = vpack.c.b16 %v1083, %v1081
  %v1502 = vpack.c.b16 %v1086, %v1084
  %v1503 = vpack.c.b16 %v1087, %v1085
  %v1504 = vpack.c.b16 %v1090, %v1088
  %v1505 = vpack.c.b16 %v1091, %v1089
  %v1506 = vpack.c.b16 %v1094, %v1092
  %v1507 = vpack.c.b16 %v1095, %v1093
  %v1508 = vpack.c.b16 %v1096, %v1081
  %v1509 = vpack.c.b16 %v1097, %v1081
  %v1510 = vpack.c.b16 %v1100, %v1098
  %v1511 = vpack.c.b16 %v1101, %v1099
  %v1512 = vpack.c.b16 %v1104, %v1102
  %v1513 = vpack.c.b16 %v1105, %v1103
  %v1514 = vpack.c.b16 %v1108, %v1106
  %v1515 = vpack.c.b16 %v1109, %v1107
  %v1516 = vpack.c.b16 %v1110, %v1081
  %v1517 = vpack.c.b16 %v1111, %v1081
  %v1518 = vpack.c.b16 %v1114, %v1112
  %v1519 = vpack.c.b16 %v1115, %v1113
  %v1520 = vpack.c.b16 %v1118, %v1116
  %v1521 = vpack.c.b16 %v1119, %v1117
  %v1522 = vpack.c.b16 %v1122, %v1120
  %v1523 = vpack.c.b16 %v1123, %v1121
  %v1524 = vpack.c.b16 %v1124, %v1081
  %v1525 = vpack.c.b16 %v1125, %v1081
  %v1526 = vpack.c.b16 %v1128, %v1126
  %v1527 = vpack.c.b16 %v1129, %v1127
  %v1528 = vpack.c.b16 %v1132, %v1130
  %v1529 = vpack.c.b16 %v1133, %v1131
  %v1530 = vpack.c.b16 %v1136, %v1134
  %v1531 = vpack.c.b16 %v1137, %v1135
  %v1572 = vunpack.c.l.b16 %v53
  %v1573 = vunpack.c.l.b16 %v54
  %v1574 = vunpack.c.l.b16 %v55
  %v1575 = vunpack.c.l.b16 %v56
  %v1576 = vunpack.c.l.b16 %v57
  %v1577 = vunpack.c.l.b16 %v58
  %v1578 = vunpack.c.l.b16 %v59
  %v1579 = vunpack.c.l.b16 %v60
  %v1580 = vunpack.c.l.b16 %v61
  %v1581 = vunpack.c.l.b16 %v62
  %v1582 = vunpack.c.l.b16 %v63
  %v1583 = vunpack.c.l.b16 %v64
  %v1584 = vunpack.c.l.b16 %v65
  %v1585 = vunpack.c.l.b16 %v66
  %v1586 = vunpack.c.l.b16 %v67
  %v1587 = vunpack.c.l.b16 %v68
  %v1588 = vunpack.c.l.b16 %v69
  %v1589 = vunpack.c.l.b16 %v70
  %v1590 = vunpack.c.l.b16 %v71
  %v1591 = vunpack.c.l.b16 %v72
  %v1592 = vunpack.c.l.b16 %v73
  %v1593 = vunpack.c.l.b16 %v74
  %v1594 = vunpack.c.l.b16 %v75
  %v1595 = vunpack.c.l.b16 %v76
  %v1596 = vpack.c.b16 %v1573, %v1572
  %v1597 = vpack.c.b16 %v1575, %v1574
  %v1598 = vpack.c.b16 %v1577, %v1576
  %v1599 = vpack.c.b16 %v1579, %v1578
  %v1600 = vpack.c.b16 %v1581, %v1580
  %v1601 = vpack.c.b16 %v1583, %v1582
  %v1602 = vpack.c.b16 %v1585, %v1584
  %v1603 = vpack.c.b16 %v1587, %v1586
  %v1604 = vpack.c.b16 %v1589, %v1588
  %v1605 = vpack.c.b16 %v1591, %v1590
  %v1606 = vpack.c.b16 %v1593, %v1592
  %v1607 = vpack.c.b16 %v1595, %v1594
  %v1621 = vsel %vm927, %v1501, 0
  %v1624 = vsel %vm927, %v1503, 0
  %v1627 = vsel %vm927, %v1505, 0
  %v1630 = vsel %vm927, %v1507, 0
  %v1633 = vsel %vm927, %v1509, 0
  %v1636 = vsel %vm927, %v1511, 0
  %v1639 = vsel %vm927, %v1513, 0
  %v1642 = vsel %vm927, %v1515, 0
  %v1645 = vsel %vm927, %v1517, 0
  %v1648 = vsel %vm927, %v1519, 0
  %v1651 = vsel %vm927, %v1521, 0
  %v1654 = vsel %vm927, %v1523, 0
  %v1657 = vsel %vm927, %v1525, 0
  %v1660 = vsel %vm927, %v1527, 0
  %v1663 = vsel %vm927, %v1529, 0
  %v1666 = vsel %vm927, %v1531, 0
  %1668 = vmatpush.bf16.msra.mxu0 %v1603
  %1669 = vmatpush.bf16.msra.mxu0 %v1602
  %1670 = vmatpush.bf16.msra.mxu0 %v1601
  %1671 = vmatpush.bf16.msra.mxu0 %v1600
  %1672 = vmatpush.bf16.msra.mxu0 %v1599
  %1673 = vmatpush.bf16.msra.mxu0 %v1598
  %1674 = vmatpush.bf16.msra.mxu0 %v1597
  %1675 = vmatpush.bf16.msra.mxu0 %v1596
  %1676 = vmatmul.bf16.gmra.mxu0 %v1500
  %v1677 = vpop.f32.mrf.mxu0
  %v1678 = vadd.f32 %v1421, %v1677
  %v1679 = vpop.f32.mrf.mxu0
  %v1680 = vadd.f32 %v1423, %v1679
  %1681 = vmatmul.bf16.gmra.mxu0 %v1502
  %v1682 = vpop.f32.mrf.mxu0
  %v1683 = vadd.f32 %v1426, %v1682
  %v1684 = vpop.f32.mrf.mxu0
  %v1685 = vadd.f32 %v1428, %v1684
  %1686 = vmatmul.bf16.gmra.mxu0 %v1504
  %v1687 = vpop.f32.mrf.mxu0
  %v1688 = vadd.f32 %v1431, %v1687
  %v1689 = vpop.f32.mrf.mxu0
  %v1690 = vadd.f32 %v1433, %v1689
  %1691 = vmatmul.bf16.gmra.mxu0 %v1506
  %v1692 = vpop.f32.mrf.mxu0
  %v1693 = vadd.f32 %v1436, %v1692
  %v1694 = vpop.f32.mrf.mxu0
  %v1695 = vadd.f32 %v1438, %v1694
  %1696 = vmatmul.bf16.gmra.mxu0 %v1508
  %v1697 = vpop.f32.mrf.mxu0
  %v1698 = vadd.f32 %v1441, %v1697
  %v1699 = vpop.f32.mrf.mxu0
  %v1700 = vadd.f32 %v1443, %v1699
  %1701 = vmatmul.bf16.gmra.mxu0 %v1510
  %v1702 = vpop.f32.mrf.mxu0
  %v1703 = vadd.f32 %v1446, %v1702
  %v1704 = vpop.f32.mrf.mxu0
  %v1705 = vadd.f32 %v1448, %v1704
  %1706 = vmatmul.bf16.gmra.mxu0 %v1512
  %v1707 = vpop.f32.mrf.mxu0
  %v1708 = vadd.f32 %v1451, %v1707
  %v1709 = vpop.f32.mrf.mxu0
  %v1710 = vadd.f32 %v1453, %v1709
  %1711 = vmatmul.bf16.gmra.mxu0 %v1514
  %v1712 = vpop.f32.mrf.mxu0
  %v1713 = vadd.f32 %v1456, %v1712
  %v1714 = vpop.f32.mrf.mxu0
  %v1715 = vadd.f32 %v1458, %v1714
  %1716 = vmatmul.bf16.gmra.mxu0 %v1516
  %v1717 = vpop.f32.mrf.mxu0
  %v1718 = vadd.f32 %v1461, %v1717
  %v1719 = vpop.f32.mrf.mxu0
  %v1720 = vadd.f32 %v1463, %v1719
  %1721 = vmatmul.bf16.gmra.mxu0 %v1518
  %v1722 = vpop.f32.mrf.mxu0
  %v1723 = vadd.f32 %v1466, %v1722
  %v1724 = vpop.f32.mrf.mxu0
  %v1725 = vadd.f32 %v1468, %v1724
  %1726 = vmatmul.bf16.gmra.mxu0 %v1520
  %v1727 = vpop.f32.mrf.mxu0
  %v1728 = vadd.f32 %v1471, %v1727
  %v1729 = vpop.f32.mrf.mxu0
  %v1730 = vadd.f32 %v1473, %v1729
  %1731 = vmatmul.bf16.gmra.mxu0 %v1522
  %v1732 = vpop.f32.mrf.mxu0
  %v1733 = vadd.f32 %v1476, %v1732
  %v1734 = vpop.f32.mrf.mxu0
  %v1735 = vadd.f32 %v1478, %v1734
  %1736 = vmatmul.bf16.gmra.mxu0 %v1524
  %v1737 = vpop.f32.mrf.mxu0
  %v1738 = vadd.f32 %v1481, %v1737
  %v1739 = vpop.f32.mrf.mxu0
  %v1740 = vadd.f32 %v1483, %v1739
  %1741 = vmatmul.bf16.gmra.mxu0 %v1526
  %v1742 = vpop.f32.mrf.mxu0
  %v1743 = vadd.f32 %v1486, %v1742
  %v1744 = vpop.f32.mrf.mxu0
  %v1745 = vadd.f32 %v1488, %v1744
  %1746 = vmatmul.bf16.gmra.mxu0 %v1528
  %v1747 = vpop.f32.mrf.mxu0
  %v1748 = vadd.f32 %v1491, %v1747
  %v1749 = vpop.f32.mrf.mxu0
  %v1750 = vadd.f32 %v1493, %v1749
  %1751 = vmatmul.bf16.gmra.mxu0 %v1530
  %v1752 = vpop.f32.mrf.mxu0
  %v1753 = vadd.f32 %v1496, %v1752
  %v1754 = vpop.f32.mrf.mxu0
  %v1755 = vadd.f32 %v1498, %v1754
  %1756 = vdwg.mxu0
  %1757 = vmatpush.bf16.msra.mxu0 0
  %1758 = vmatpush.bf16.msra.mxu0 0
  %1759 = vmatpush.bf16.msra.mxu0 0
  %1760 = vmatpush.bf16.msra.mxu0 0
  %1761 = vmatpush.bf16.msra.mxu0 %v1607
  %1762 = vmatpush.bf16.msra.mxu0 %v1606
  %1763 = vmatpush.bf16.msra.mxu0 %v1605
  %1764 = vmatpush.bf16.msra.mxu0 %v1604
  %1765 = vmatmul.bf16.gmra.mxu0 %v1621
  %v1766 = vpop.f32.mrf.mxu0
  %v1767 = vadd.f32 %v1678, %v1766
  %v1768 = vpop.f32.mrf.mxu0
  %v1769 = vadd.f32 %v1680, %v1768
  %1770 = vmatmul.bf16.gmra.mxu0 %v1624
  %v1771 = vpop.f32.mrf.mxu0
  %v1772 = vadd.f32 %v1683, %v1771
  %v1773 = vpop.f32.mrf.mxu0
  %v1774 = vadd.f32 %v1685, %v1773
  %1775 = vmatmul.bf16.gmra.mxu0 %v1627
  %v1776 = vpop.f32.mrf.mxu0
  %v1777 = vadd.f32 %v1688, %v1776
  %v1778 = vpop.f32.mrf.mxu0
  %v1779 = vadd.f32 %v1690, %v1778
  %1780 = vmatmul.bf16.gmra.mxu0 %v1630
  %v1781 = vpop.f32.mrf.mxu0
  %v1782 = vadd.f32 %v1693, %v1781
  %v1783 = vpop.f32.mrf.mxu0
  %v1784 = vadd.f32 %v1695, %v1783
  %1785 = vmatmul.bf16.gmra.mxu0 %v1633
  %v1786 = vpop.f32.mrf.mxu0
  %v1787 = vadd.f32 %v1698, %v1786
  %v1788 = vpop.f32.mrf.mxu0
  %v1789 = vadd.f32 %v1700, %v1788
  %1790 = vmatmul.bf16.gmra.mxu0 %v1636
  %v1791 = vpop.f32.mrf.mxu0
  %v1792 = vadd.f32 %v1703, %v1791
  %v1793 = vpop.f32.mrf.mxu0
  %v1794 = vadd.f32 %v1705, %v1793
  %1795 = vmatmul.bf16.gmra.mxu0 %v1639
  %v1796 = vpop.f32.mrf.mxu0
  %v1797 = vadd.f32 %v1708, %v1796
  %v1798 = vpop.f32.mrf.mxu0
  %v1799 = vadd.f32 %v1710, %v1798
  %1800 = vmatmul.bf16.gmra.mxu0 %v1642
  %v1801 = vpop.f32.mrf.mxu0
  %v1802 = vadd.f32 %v1713, %v1801
  %v1803 = vpop.f32.mrf.mxu0
  %v1804 = vadd.f32 %v1715, %v1803
  %1805 = vmatmul.bf16.gmra.mxu0 %v1645
  %v1806 = vpop.f32.mrf.mxu0
  %v1807 = vadd.f32 %v1718, %v1806
  %v1808 = vpop.f32.mrf.mxu0
  %v1809 = vadd.f32 %v1720, %v1808
  %1810 = vmatmul.bf16.gmra.mxu0 %v1648
  %v1811 = vpop.f32.mrf.mxu0
  %v1812 = vadd.f32 %v1723, %v1811
  %v1813 = vpop.f32.mrf.mxu0
  %v1814 = vadd.f32 %v1725, %v1813
  %1815 = vmatmul.bf16.gmra.mxu0 %v1651
  %v1816 = vpop.f32.mrf.mxu0
  %v1817 = vadd.f32 %v1728, %v1816
  %v1818 = vpop.f32.mrf.mxu0
  %v1819 = vadd.f32 %v1730, %v1818
  %1820 = vmatmul.bf16.gmra.mxu0 %v1654
  %v1821 = vpop.f32.mrf.mxu0
  %v1822 = vadd.f32 %v1733, %v1821
  %v1823 = vpop.f32.mrf.mxu0
  %v1824 = vadd.f32 %v1735, %v1823
  %1825 = vmatmul.bf16.gmra.mxu0 %v1657
  %v1826 = vpop.f32.mrf.mxu0
  %v1827 = vadd.f32 %v1738, %v1826
  %v1828 = vpop.f32.mrf.mxu0
  %v1829 = vadd.f32 %v1740, %v1828
  %1830 = vmatmul.bf16.gmra.mxu0 %v1660
  %v1831 = vpop.f32.mrf.mxu0
  %v1832 = vadd.f32 %v1743, %v1831
  %v1833 = vpop.f32.mrf.mxu0
  %v1834 = vadd.f32 %v1745, %v1833
  %1835 = vmatmul.bf16.gmra.mxu0 %v1663
  %v1836 = vpop.f32.mrf.mxu0
  %v1837 = vadd.f32 %v1748, %v1836
  %v1838 = vpop.f32.mrf.mxu0
  %v1839 = vadd.f32 %v1750, %v1838
  %1840 = vmatmul.bf16.gmra.mxu0 %v1666
  %v1841 = vpop.f32.mrf.mxu0
  %v1842 = vadd.f32 %v1753, %v1841
  %v1843 = vpop.f32.mrf.mxu0
  %v1844 = vadd.f32 %v1755, %v1843
  %1845 = vdwg.mxu0
  %v1846 = vpack.c.b16 %v1081, %v1146
  %v1847 = vpack.c.b16 %v1081, %v1147
  %v1848 = vpack.c.b16 %v1081, %v1148
  %v1849 = vpack.c.b16 %v1081, %v1149
  %v1850 = vpack.c.b16 %v1081, %v1150
  %v1851 = vpack.c.b16 %v1081, %v1151
  %v1852 = vpack.c.b16 %v1081, %v1152
  %v1853 = vpack.c.b16 %v1081, %v1153
  %v1882 = vunpack.c.l.b16 %v101
  %v1883 = vunpack.c.l.b16 %v102
  %v1884 = vunpack.c.l.b16 %v103
  %v1885 = vunpack.c.l.b16 %v104
  %v1886 = vunpack.c.l.b16 %v105
  %v1887 = vunpack.c.l.b16 %v106
  %v1888 = vunpack.c.l.b16 %v107
  %v1889 = vunpack.c.l.b16 %v108
  %v1890 = vunpack.c.l.b16 %v109
  %v1891 = vunpack.c.l.b16 %v110
  %v1892 = vunpack.c.l.b16 %v111
  %v1893 = vunpack.c.l.b16 %v112
  %v1894 = vunpack.c.l.b16 %v113
  %v1895 = vunpack.c.l.b16 %v114
  %v1896 = vunpack.c.l.b16 %v115
  %v1897 = vunpack.c.l.b16 %v116
  %v1898 = vunpack.c.l.b16 %v117
  %v1899 = vunpack.c.l.b16 %v118
  %v1900 = vunpack.c.l.b16 %v119
  %v1901 = vunpack.c.l.b16 %v120
  %v1902 = vunpack.c.l.b16 %v121
  %v1903 = vunpack.c.l.b16 %v122
  %v1904 = vunpack.c.l.b16 %v123
  %v1905 = vunpack.c.l.b16 %v124
  %v1906 = vpack.c.b16 %v1883, %v1882
  %v1907 = vpack.c.b16 %v1885, %v1884
  %v1908 = vpack.c.b16 %v1887, %v1886
  %v1909 = vpack.c.b16 %v1889, %v1888
  %v1910 = vpack.c.b16 %v1891, %v1890
  %v1911 = vpack.c.b16 %v1893, %v1892
  %v1912 = vpack.c.b16 %v1895, %v1894
  %v1913 = vpack.c.b16 %v1897, %v1896
  %v1914 = vpack.c.b16 %v1899, %v1898
  %v1915 = vpack.c.b16 %v1901, %v1900
  %v1916 = vpack.c.b16 %v1903, %v1902
  %v1917 = vpack.c.b16 %v1905, %v1904
  %v1931 = vsel %vm927, %v1847, 0
  %v1934 = vsel %vm927, %v1849, 0
  %v1937 = vsel %vm927, %v1851, 0
  %v1940 = vsel %vm927, %v1853, 0
  %1942 = vmatpush.bf16.msra.mxu0 %v1913
  %1943 = vmatpush.bf16.msra.mxu0 %v1912
  %1944 = vmatpush.bf16.msra.mxu0 %v1911
  %1945 = vmatpush.bf16.msra.mxu0 %v1910
  %1946 = vmatpush.bf16.msra.mxu0 %v1909
  %1947 = vmatpush.bf16.msra.mxu0 %v1908
  %1948 = vmatpush.bf16.msra.mxu0 %v1907
  %1949 = vmatpush.bf16.msra.mxu0 %v1906
  %1950 = vmatmul.bf16.gmra.mxu0 %v1502
  %v1951 = vpop.f32.mrf.mxu0
  %v1952 = vadd.f32 0.0, %v1951
  %v1953 = vpop.f32.mrf.mxu0
  %v1954 = vadd.f32 0.0, %v1953
  %1955 = vmatmul.bf16.gmra.mxu0 %v1504
  %v1956 = vpop.f32.mrf.mxu0
  %v1957 = vadd.f32 0.0, %v1956
  %v1958 = vpop.f32.mrf.mxu0
  %v1959 = vadd.f32 0.0, %v1958
  %1960 = vmatmul.bf16.gmra.mxu0 %v1506
  %v1961 = vpop.f32.mrf.mxu0
  %v1962 = vadd.f32 0.0, %v1961
  %v1963 = vpop.f32.mrf.mxu0
  %v1964 = vadd.f32 0.0, %v1963
  %1965 = vmatmul.bf16.gmra.mxu0 %v1846
  %v1966 = vpop.f32.mrf.mxu0
  %v1967 = vadd.f32 0.0, %v1966
  %v1968 = vpop.f32.mrf.mxu0
  %v1969 = vadd.f32 0.0, %v1968
  %1970 = vmatmul.bf16.gmra.mxu0 %v1510
  %v1971 = vpop.f32.mrf.mxu0
  %v1972 = vadd.f32 0.0, %v1971
  %v1973 = vpop.f32.mrf.mxu0
  %v1974 = vadd.f32 0.0, %v1973
  %1975 = vmatmul.bf16.gmra.mxu0 %v1512
  %v1976 = vpop.f32.mrf.mxu0
  %v1977 = vadd.f32 0.0, %v1976
  %v1978 = vpop.f32.mrf.mxu0
  %v1979 = vadd.f32 0.0, %v1978
  %1980 = vmatmul.bf16.gmra.mxu0 %v1514
  %v1981 = vpop.f32.mrf.mxu0
  %v1982 = vadd.f32 0.0, %v1981
  %v1983 = vpop.f32.mrf.mxu0
  %v1984 = vadd.f32 0.0, %v1983
  %1985 = vmatmul.bf16.gmra.mxu0 %v1848
  %v1986 = vpop.f32.mrf.mxu0
  %v1987 = vadd.f32 0.0, %v1986
  %v1988 = vpop.f32.mrf.mxu0
  %v1989 = vadd.f32 0.0, %v1988
  %1990 = vmatmul.bf16.gmra.mxu0 %v1518
  %v1991 = vpop.f32.mrf.mxu0
  %v1992 = vadd.f32 0.0, %v1991
  %v1993 = vpop.f32.mrf.mxu0
  %v1994 = vadd.f32 0.0, %v1993
  %1995 = vmatmul.bf16.gmra.mxu0 %v1520
  %v1996 = vpop.f32.mrf.mxu0
  %v1997 = vadd.f32 0.0, %v1996
  %v1998 = vpop.f32.mrf.mxu0
  %v1999 = vadd.f32 0.0, %v1998
  %2000 = vmatmul.bf16.gmra.mxu0 %v1522
  %v2001 = vpop.f32.mrf.mxu0
  %v2002 = vadd.f32 0.0, %v2001
  %v2003 = vpop.f32.mrf.mxu0
  %v2004 = vadd.f32 0.0, %v2003
  %2005 = vmatmul.bf16.gmra.mxu0 %v1850
  %v2006 = vpop.f32.mrf.mxu0
  %v2007 = vadd.f32 0.0, %v2006
  %v2008 = vpop.f32.mrf.mxu0
  %v2009 = vadd.f32 0.0, %v2008
  %2010 = vmatmul.bf16.gmra.mxu0 %v1526
  %v2011 = vpop.f32.mrf.mxu0
  %v2012 = vadd.f32 0.0, %v2011
  %v2013 = vpop.f32.mrf.mxu0
  %v2014 = vadd.f32 0.0, %v2013
  %2015 = vmatmul.bf16.gmra.mxu0 %v1528
  %v2016 = vpop.f32.mrf.mxu0
  %v2017 = vadd.f32 0.0, %v2016
  %v2018 = vpop.f32.mrf.mxu0
  %v2019 = vadd.f32 0.0, %v2018
  %2020 = vmatmul.bf16.gmra.mxu0 %v1530
  %v2021 = vpop.f32.mrf.mxu0
  %v2022 = vadd.f32 0.0, %v2021
  %v2023 = vpop.f32.mrf.mxu0
  %v2024 = vadd.f32 0.0, %v2023
  %2025 = vmatmul.bf16.gmra.mxu0 %v1852
  %v2026 = vpop.f32.mrf.mxu0
  %v2027 = vadd.f32 0.0, %v2026
  %v2028 = vpop.f32.mrf.mxu0
  %v2029 = vadd.f32 0.0, %v2028
  %2030 = vdwg.mxu0
  %2031 = vmatpush.bf16.msra.mxu0 0
  %2032 = vmatpush.bf16.msra.mxu0 0
  %2033 = vmatpush.bf16.msra.mxu0 0
  %2034 = vmatpush.bf16.msra.mxu0 0
  %2035 = vmatpush.bf16.msra.mxu0 %v1917
  %2036 = vmatpush.bf16.msra.mxu0 %v1916
  %2037 = vmatpush.bf16.msra.mxu0 %v1915
  %2038 = vmatpush.bf16.msra.mxu0 %v1914
  %2039 = vmatmul.bf16.gmra.mxu0 %v1624
  %v2040 = vpop.f32.mrf.mxu0
  %v2041 = vadd.f32 %v1952, %v2040
  %v2042 = vpop.f32.mrf.mxu0
  %v2043 = vadd.f32 %v1954, %v2042
  %2044 = vmatmul.bf16.gmra.mxu0 %v1627
  %v2045 = vpop.f32.mrf.mxu0
  %v2046 = vadd.f32 %v1957, %v2045
  %v2047 = vpop.f32.mrf.mxu0
  %v2048 = vadd.f32 %v1959, %v2047
  %2049 = vmatmul.bf16.gmra.mxu0 %v1630
  %v2050 = vpop.f32.mrf.mxu0
  %v2051 = vadd.f32 %v1962, %v2050
  %v2052 = vpop.f32.mrf.mxu0
  %v2053 = vadd.f32 %v1964, %v2052
  %2054 = vmatmul.bf16.gmra.mxu0 %v1931
  %v2055 = vpop.f32.mrf.mxu0
  %v2056 = vadd.f32 %v1967, %v2055
  %v2057 = vpop.f32.mrf.mxu0
  %v2058 = vadd.f32 %v1969, %v2057
  %2059 = vmatmul.bf16.gmra.mxu0 %v1636
  %v2060 = vpop.f32.mrf.mxu0
  %v2061 = vadd.f32 %v1972, %v2060
  %v2062 = vpop.f32.mrf.mxu0
  %v2063 = vadd.f32 %v1974, %v2062
  %2064 = vmatmul.bf16.gmra.mxu0 %v1639
  %v2065 = vpop.f32.mrf.mxu0
  %v2066 = vadd.f32 %v1977, %v2065
  %v2067 = vpop.f32.mrf.mxu0
  %v2068 = vadd.f32 %v1979, %v2067
  %2069 = vmatmul.bf16.gmra.mxu0 %v1642
  %v2070 = vpop.f32.mrf.mxu0
  %v2071 = vadd.f32 %v1982, %v2070
  %v2072 = vpop.f32.mrf.mxu0
  %v2073 = vadd.f32 %v1984, %v2072
  %2074 = vmatmul.bf16.gmra.mxu0 %v1934
  %v2075 = vpop.f32.mrf.mxu0
  %v2076 = vadd.f32 %v1987, %v2075
  %v2077 = vpop.f32.mrf.mxu0
  %v2078 = vadd.f32 %v1989, %v2077
  %2079 = vmatmul.bf16.gmra.mxu0 %v1648
  %v2080 = vpop.f32.mrf.mxu0
  %v2081 = vadd.f32 %v1992, %v2080
  %v2082 = vpop.f32.mrf.mxu0
  %v2083 = vadd.f32 %v1994, %v2082
  %2084 = vmatmul.bf16.gmra.mxu0 %v1651
  %v2085 = vpop.f32.mrf.mxu0
  %v2086 = vadd.f32 %v1997, %v2085
  %v2087 = vpop.f32.mrf.mxu0
  %v2088 = vadd.f32 %v1999, %v2087
  %2089 = vmatmul.bf16.gmra.mxu0 %v1654
  %v2090 = vpop.f32.mrf.mxu0
  %v2091 = vadd.f32 %v2002, %v2090
  %v2092 = vpop.f32.mrf.mxu0
  %v2093 = vadd.f32 %v2004, %v2092
  %2094 = vmatmul.bf16.gmra.mxu0 %v1937
  %v2095 = vpop.f32.mrf.mxu0
  %v2096 = vadd.f32 %v2007, %v2095
  %v2097 = vpop.f32.mrf.mxu0
  %v2098 = vadd.f32 %v2009, %v2097
  %2099 = vmatmul.bf16.gmra.mxu0 %v1660
  %v2100 = vpop.f32.mrf.mxu0
  %v2101 = vadd.f32 %v2012, %v2100
  %v2102 = vpop.f32.mrf.mxu0
  %v2103 = vadd.f32 %v2014, %v2102
  %2104 = vmatmul.bf16.gmra.mxu0 %v1663
  %v2105 = vpop.f32.mrf.mxu0
  %v2106 = vadd.f32 %v2017, %v2105
  %v2107 = vpop.f32.mrf.mxu0
  %v2108 = vadd.f32 %v2019, %v2107
  %2109 = vmatmul.bf16.gmra.mxu0 %v1666
  %v2110 = vpop.f32.mrf.mxu0
  %v2111 = vadd.f32 %v2022, %v2110
  %v2112 = vpop.f32.mrf.mxu0
  %v2113 = vadd.f32 %v2024, %v2112
  %2114 = vmatmul.bf16.gmra.mxu0 %v1940
  %v2115 = vpop.f32.mrf.mxu0
  %v2116 = vadd.f32 %v2027, %v2115
  %v2117 = vpop.f32.mrf.mxu0
  %v2118 = vadd.f32 %v2029, %v2117
  %2119 = vdwg.mxu0
  %v2120 = vadd.f32 %v1767, %v2041
  %v2121 = vadd.f32 %v1769, %v2043
  %v2122 = vadd.f32 %v1772, %v2046
  %v2123 = vadd.f32 %v1774, %v2048
  %v2124 = vadd.f32 %v1777, %v2051
  %v2125 = vadd.f32 %v1779, %v2053
  %v2126 = vadd.f32 %v1782, %v2056
  %v2127 = vadd.f32 %v1784, %v2058
  %v2128 = vadd.f32 %v1787, %v2061
  %v2129 = vadd.f32 %v1789, %v2063
  %v2130 = vadd.f32 %v1792, %v2066
  %v2131 = vadd.f32 %v1794, %v2068
  %v2132 = vadd.f32 %v1797, %v2071
  %v2133 = vadd.f32 %v1799, %v2073
  %v2134 = vadd.f32 %v1802, %v2076
  %v2135 = vadd.f32 %v1804, %v2078
  %v2136 = vadd.f32 %v1807, %v2081
  %v2137 = vadd.f32 %v1809, %v2083
  %v2138 = vadd.f32 %v1812, %v2086
  %v2139 = vadd.f32 %v1814, %v2088
  %v2140 = vadd.f32 %v1817, %v2091
  %v2141 = vadd.f32 %v1819, %v2093
  %v2142 = vadd.f32 %v1822, %v2096
  %v2143 = vadd.f32 %v1824, %v2098
  %v2144 = vadd.f32 %v1827, %v2101
  %v2145 = vadd.f32 %v1829, %v2103
  %v2146 = vadd.f32 %v1832, %v2106
  %v2147 = vadd.f32 %v1834, %v2108
  %v2148 = vadd.f32 %v1837, %v2111
  %v2149 = vadd.f32 %v1839, %v2113
  %v2150 = vadd.f32 %v1842, %v2116
  %v2151 = vadd.f32 %v1844, %v2118
  %v2153 = vperm.slane %v197, 0
  %v2155 = vadd.f32 %v2120, %v2153
  %v2156 = vadd.f32 %v2121, %v2153
  %v2157 = vadd.f32 %v2122, %v2153
  %v2158 = vadd.f32 %v2123, %v2153
  %v2159 = vadd.f32 %v2124, %v2153
  %v2160 = vadd.f32 %v2125, %v2153
  %v2161 = vadd.f32 %v2126, %v2153
  %v2162 = vadd.f32 %v2127, %v2153
  %v2163 = vadd.f32 %v2128, %v2153
  %v2164 = vadd.f32 %v2129, %v2153
  %v2165 = vadd.f32 %v2130, %v2153
  %v2166 = vadd.f32 %v2131, %v2153
  %v2167 = vadd.f32 %v2132, %v2153
  %v2168 = vadd.f32 %v2133, %v2153
  %v2169 = vadd.f32 %v2134, %v2153
  %v2170 = vadd.f32 %v2135, %v2153
  %v2171 = vadd.f32 %v2136, %v2153
  %v2172 = vadd.f32 %v2137, %v2153
  %v2173 = vadd.f32 %v2138, %v2153
  %v2174 = vadd.f32 %v2139, %v2153
  %v2175 = vadd.f32 %v2140, %v2153
  %v2176 = vadd.f32 %v2141, %v2153
  %v2177 = vadd.f32 %v2142, %v2153
  %v2178 = vadd.f32 %v2143, %v2153
  %v2179 = vadd.f32 %v2144, %v2153
  %v2180 = vadd.f32 %v2145, %v2153
  %v2181 = vadd.f32 %v2146, %v2153
  %v2182 = vadd.f32 %v2147, %v2153
  %v2183 = vadd.f32 %v2148, %v2153
  %v2184 = vadd.f32 %v2149, %v2153
  %v2185 = vadd.f32 %v2150, %v2153
  %v2186 = vadd.f32 %v2151, %v2153
  %v2187 = vmax.f32 %v2155, 0.0
  %v2188 = vmax.f32 %v2156, 0.0
  %v2189 = vmax.f32 %v2157, 0.0
  %v2190 = vmax.f32 %v2158, 0.0
  %v2191 = vmax.f32 %v2159, 0.0
  %v2192 = vmax.f32 %v2160, 0.0
  %v2193 = vmax.f32 %v2161, 0.0
  %v2194 = vmax.f32 %v2162, 0.0
  %v2195 = vmax.f32 %v2163, 0.0
  %v2196 = vmax.f32 %v2164, 0.0
  %v2197 = vmax.f32 %v2165, 0.0
  %v2198 = vmax.f32 %v2166, 0.0
  %v2199 = vmax.f32 %v2167, 0.0
  %v2200 = vmax.f32 %v2168, 0.0
  %v2201 = vmax.f32 %v2169, 0.0
  %v2202 = vmax.f32 %v2170, 0.0
  %v2203 = vmax.f32 %v2171, 0.0
  %v2204 = vmax.f32 %v2172, 0.0
  %v2205 = vmax.f32 %v2173, 0.0
  %v2206 = vmax.f32 %v2174, 0.0
  %v2207 = vmax.f32 %v2175, 0.0
  %v2208 = vmax.f32 %v2176, 0.0
  %v2209 = vmax.f32 %v2177, 0.0
  %v2210 = vmax.f32 %v2178, 0.0
  %v2211 = vmax.f32 %v2179, 0.0
  %v2212 = vmax.f32 %v2180, 0.0
  %v2213 = vmax.f32 %v2181, 0.0
  %v2214 = vmax.f32 %v2182, 0.0
  %v2215 = vmax.f32 %v2183, 0.0
  %v2216 = vmax.f32 %v2184, 0.0
  %v2217 = vmax.f32 %v2185, 0.0
  %v2218 = vmax.f32 %v2186, 0.0
  %v2219 = vpack.c.bf16 %v2187, %v2187
  %v2220 = vpack.c.bf16 %v2188, %v2188
  %v2221 = vpack.c.bf16 %v2189, %v2189
  %v2222 = vpack.c.bf16 %v2190, %v2190
  %v2223 = vpack.c.bf16 %v2191, %v2191
  %v2224 = vpack.c.bf16 %v2192, %v2192
  %v2225 = vpack.c.bf16 %v2193, %v2193
  %v2226 = vpack.c.bf16 %v2194, %v2194
  %v2227 = vpack.c.bf16 %v2195, %v2195
  %v2228 = vpack.c.bf16 %v2196, %v2196
  %v2229 = vpack.c.bf16 %v2197, %v2197
  %v2230 = vpack.c.bf16 %v2198, %v2198
  %v2231 = vpack.c.bf16 %v2199, %v2199
  %v2232 = vpack.c.bf16 %v2200, %v2200
  %v2233 = vpack.c.bf16 %v2201, %v2201
  %v2234 = vpack.c.bf16 %v2202, %v2202
  %v2235 = vpack.c.bf16 %v2203, %v2203
  %v2236 = vpack.c.bf16 %v2204, %v2204
  %v2237 = vpack.c.bf16 %v2205, %v2205
  %v2238 = vpack.c.bf16 %v2206, %v2206
  %v2239 = vpack.c.bf16 %v2207, %v2207
  %v2240 = vpack.c.bf16 %v2208, %v2208
  %v2241 = vpack.c.bf16 %v2209, %v2209
  %v2242 = vpack.c.bf16 %v2210, %v2210
  %v2243 = vpack.c.bf16 %v2211, %v2211
  %v2244 = vpack.c.bf16 %v2212, %v2212
  %v2245 = vpack.c.bf16 %v2213, %v2213
  %v2246 = vpack.c.bf16 %v2214, %v2214
  %v2247 = vpack.c.bf16 %v2215, %v2215
  %v2248 = vpack.c.bf16 %v2216, %v2216
  %v2249 = vpack.c.bf16 %v2217, %v2217
  %v2250 = vpack.c.bf16 %v2218, %v2218
  %v2267 = vunpack.c.l.b16 %v2219
  %v2268 = vunpack.c.l.b16 %v2220
  %v2269 = vunpack.c.l.b16 %v2221
  %v2270 = vunpack.c.l.b16 %v2222
  %v2271 = vunpack.c.l.b16 %v2223
  %v2272 = vunpack.c.l.b16 %v2224
  %v2273 = vunpack.c.l.b16 %v2225
  %v2274 = vunpack.c.l.b16 %v2226
  %v2275 = vunpack.c.l.b16 %v2235
  %v2276 = vunpack.c.l.b16 %v2236
  %v2277 = vunpack.c.l.b16 %v2237
  %v2278 = vunpack.c.l.b16 %v2238
  %v2279 = vunpack.c.l.b16 %v2239
  %v2280 = vunpack.c.l.b16 %v2240
  %v2281 = vunpack.c.l.b16 %v2241
  %v2282 = vunpack.c.l.b16 %v2242
  %v2283 = vpack.c.b16 %v2268, %v2267
  %v2284 = vpack.c.b16 %v2270, %v2269
  %v2285 = vpack.c.b16 %v2272, %v2271
  %v2286 = vpack.c.b16 %v2274, %v2273
  %v2287 = vpack.c.b16 %v2276, %v2275
  %v2288 = vpack.c.b16 %v2278, %v2277
  %v2289 = vpack.c.b16 %v2280, %v2279
  %v2290 = vpack.c.b16 %v2282, %v2281
  %v2307 = vunpack.c.l.b16 %v2227
  %v2308 = vunpack.c.l.b16 %v2228
  %v2309 = vunpack.c.l.b16 %v2229
  %v2310 = vunpack.c.l.b16 %v2230
  %v2311 = vunpack.c.l.b16 %v2231
  %v2312 = vunpack.c.l.b16 %v2232
  %v2313 = vunpack.c.l.b16 %v2233
  %v2314 = vunpack.c.l.b16 %v2234
  %v2315 = vunpack.c.l.b16 %v2243
  %v2316 = vunpack.c.l.b16 %v2244
  %v2317 = vunpack.c.l.b16 %v2245
  %v2318 = vunpack.c.l.b16 %v2246
  %v2319 = vunpack.c.l.b16 %v2247
  %v2320 = vunpack.c.l.b16 %v2248
  %v2321 = vunpack.c.l.b16 %v2249
  %v2322 = vunpack.c.l.b16 %v2250
  %v2323 = vpack.c.b16 %v2308, %v2307
  %v2324 = vpack.c.b16 %v2310, %v2309
  %v2325 = vpack.c.b16 %v2312, %v2311
  %v2326 = vpack.c.b16 %v2314, %v2313
  %v2327 = vpack.c.b16 %v2316, %v2315
  %v2328 = vpack.c.b16 %v2318, %v2317
  %v2329 = vpack.c.b16 %v2320, %v2319
  %v2330 = vpack.c.b16 %v2322, %v2321
  %2331 = vrot.lane.b32.xlu0 %v2283, 64
  %v2332 = vpop.permute.xlu0 %2331
  %2333 = vrot.lane.b32.xlu0 %v2284, 64
  %v2334 = vpop.permute.xlu0 %2333
  %2335 = vrot.lane.b32.xlu0 %v2285, 64
  %v2336 = vpop.permute.xlu0 %2335
  %2337 = vrot.lane.b32.xlu0 %v2286, 64
  %v2338 = vpop.permute.xlu0 %2337
  %2339 = vrot.lane.b32.xlu0 %v2323, 64
  %v2340 = vpop.permute.xlu0 %2339
  %2341 = vrot.lane.b32.xlu0 %v2324, 64
  %v2342 = vpop.permute.xlu0 %2341
  %2343 = vrot.lane.b32.xlu0 %v2325, 64
  %v2344 = vpop.permute.xlu0 %2343
  %2345 = vrot.lane.b32.xlu0 %v2326, 64
  %v2346 = vpop.permute.xlu0 %2345
  %2347 = vrot.lane.b32.xlu0 %v2287, 64
  %v2348 = vpop.permute.xlu0 %2347
  %2349 = vrot.lane.b32.xlu0 %v2288, 64
  %v2350 = vpop.permute.xlu0 %2349
  %2351 = vrot.lane.b32.xlu0 %v2289, 64
  %v2352 = vpop.permute.xlu0 %2351
  %2353 = vrot.lane.b32.xlu0 %v2290, 64
  %v2354 = vpop.permute.xlu0 %2353
  %2355 = vrot.lane.b32.xlu0 %v2327, 64
  %v2356 = vpop.permute.xlu0 %2355
  %2357 = vrot.lane.b32.xlu0 %v2328, 64
  %v2358 = vpop.permute.xlu0 %2357
  %2359 = vrot.lane.b32.xlu0 %v2329, 64
  %v2360 = vpop.permute.xlu0 %2359
  %2361 = vrot.lane.b32.xlu0 %v2330, 64
  %v2362 = vpop.permute.xlu0 %2361
  %v2363 = vpack.c.b16 %v1081, %v1081
  %v2366 = vsel %vm927, 0, %v2332
  %v2369 = vsel %vm927, 0, %v2334
  %v2372 = vsel %vm927, 0, %v2336
  %v2375 = vsel %vm927, 0, %v2338
  %v2379 = vsel %vm927, %v2283, %v2340
  %v2383 = vsel %vm927, %v2284, %v2342
  %v2387 = vsel %vm927, %v2285, %v2344
  %v2391 = vsel %vm927, %v2286, %v2346
  %v2394 = vsel %vm927, 0, %v2348
  %v2397 = vsel %vm927, 0, %v2350
  %v2400 = vsel %vm927, 0, %v2352
  %v2403 = vsel %vm927, 0, %v2354
  %v2407 = vsel %vm927, %v2287, %v2356
  %v2411 = vsel %vm927, %v2288, %v2358
  %v2415 = vsel %vm927, %v2289, %v2360
  %v2419 = vsel %vm927, %v2290, %v2362
  %v2445 = vunpack.c.l.b16 %v223
  %v2446 = vunpack.c.l.b16 %v224
  %v2447 = vunpack.c.l.b16 %v225
  %v2448 = vunpack.c.l.b16 %v226
  %v2449 = vunpack.c.l.b16 %v227
  %v2450 = vunpack.c.l.b16 %v228
  %v2451 = vunpack.c.l.b16 %v229
  %v2452 = vunpack.c.l.b16 %v230
  %v2453 = vunpack.c.l.b16 %v231
  %v2454 = vunpack.c.l.b16 %v232
  %v2455 = vunpack.c.l.b16 %v233
  %v2456 = vunpack.c.l.b16 %v234
  %v2457 = vunpack.c.l.b16 %v235
  %v2458 = vunpack.c.l.b16 %v236
  %v2459 = vunpack.c.l.b16 %v237
  %v2460 = vunpack.c.l.b16 %v238
  %v2461 = vunpack.c.l.b16 %v239
  %v2462 = vunpack.c.l.b16 %v240
  %v2463 = vunpack.c.l.b16 %v241
  %v2464 = vunpack.c.l.b16 %v242
  %v2465 = vunpack.c.l.b16 %v243
  %v2466 = vunpack.c.l.b16 %v244
  %v2467 = vunpack.c.l.b16 %v245
  %v2468 = vunpack.c.l.b16 %v246
  %v2469 = vpack.c.b16 %v2446, %v2445
  %v2470 = vpack.c.b16 %v2448, %v2447
  %v2471 = vpack.c.b16 %v2450, %v2449
  %v2472 = vpack.c.b16 %v2452, %v2451
  %v2473 = vpack.c.b16 %v2454, %v2453
  %v2474 = vpack.c.b16 %v2456, %v2455
  %v2475 = vpack.c.b16 %v2458, %v2457
  %v2476 = vpack.c.b16 %v2460, %v2459
  %v2477 = vpack.c.b16 %v2462, %v2461
  %v2478 = vpack.c.b16 %v2464, %v2463
  %v2479 = vpack.c.b16 %v2466, %v2465
  %v2480 = vpack.c.b16 %v2468, %v2467
  %v2494 = vsel %vm927, %v2323, 0
  %v2497 = vsel %vm927, %v2324, 0
  %v2500 = vsel %vm927, %v2325, 0
  %v2503 = vsel %vm927, %v2326, 0
  %v2506 = vsel %vm927, %v2363, 0
  %v2509 = vsel %vm927, %v2327, 0
  %v2512 = vsel %vm927, %v2328, 0
  %v2515 = vsel %vm927, %v2329, 0
  %v2518 = vsel %vm927, %v2330, 0
  %2520 = vmatpush.bf16.msra.mxu0 %v2476
  %2521 = vmatpush.bf16.msra.mxu0 %v2475
  %2522 = vmatpush.bf16.msra.mxu0 %v2474
  %2523 = vmatpush.bf16.msra.mxu0 %v2473
  %2524 = vmatpush.bf16.msra.mxu0 %v2472
  %2525 = vmatpush.bf16.msra.mxu0 %v2471
  %2526 = vmatpush.bf16.msra.mxu0 %v2470
  %2527 = vmatpush.bf16.msra.mxu0 %v2469
  %2528 = vmatmul.bf16.gmra.mxu0 %v2366
  %v2529 = vpop.f32.mrf.mxu0
  %v2530 = vadd.f32 0.0, %v2529
  %v2531 = vpop.f32.mrf.mxu0
  %v2532 = vadd.f32 0.0, %v2531
  %2533 = vmatmul.bf16.gmra.mxu0 %v2369
  %v2534 = vpop.f32.mrf.mxu0
  %v2535 = vadd.f32 0.0, %v2534
  %v2536 = vpop.f32.mrf.mxu0
  %v2537 = vadd.f32 0.0, %v2536
  %2538 = vmatmul.bf16.gmra.mxu0 %v2372
  %v2539 = vpop.f32.mrf.mxu0
  %v2540 = vadd.f32 0.0, %v2539
  %v2541 = vpop.f32.mrf.mxu0
  %v2542 = vadd.f32 0.0, %v2541
  %2543 = vmatmul.bf16.gmra.mxu0 %v2375
  %v2544 = vpop.f32.mrf.mxu0
  %v2545 = vadd.f32 0.0, %v2544
  %v2546 = vpop.f32.mrf.mxu0
  %v2547 = vadd.f32 0.0, %v2546
  %2548 = vmatmul.bf16.gmra.mxu0 %v2379
  %v2549 = vpop.f32.mrf.mxu0
  %v2550 = vadd.f32 0.0, %v2549
  %v2551 = vpop.f32.mrf.mxu0
  %v2552 = vadd.f32 0.0, %v2551
  %2553 = vmatmul.bf16.gmra.mxu0 %v2383
  %v2554 = vpop.f32.mrf.mxu0
  %v2555 = vadd.f32 0.0, %v2554
  %v2556 = vpop.f32.mrf.mxu0
  %v2557 = vadd.f32 0.0, %v2556
  %2558 = vmatmul.bf16.gmra.mxu0 %v2387
  %v2559 = vpop.f32.mrf.mxu0
  %v2560 = vadd.f32 0.0, %v2559
  %v2561 = vpop.f32.mrf.mxu0
  %v2562 = vadd.f32 0.0, %v2561
  %2563 = vmatmul.bf16.gmra.mxu0 %v2391
  %v2564 = vpop.f32.mrf.mxu0
  %v2565 = vadd.f32 0.0, %v2564
  %v2566 = vpop.f32.mrf.mxu0
  %v2567 = vadd.f32 0.0, %v2566
  %2568 = vmatmul.bf16.gmra.mxu0 %v2394
  %v2569 = vpop.f32.mrf.mxu0
  %v2570 = vadd.f32 0.0, %v2569
  %v2571 = vpop.f32.mrf.mxu0
  %v2572 = vadd.f32 0.0, %v2571
  %2573 = vmatmul.bf16.gmra.mxu0 %v2397
  %v2574 = vpop.f32.mrf.mxu0
  %v2575 = vadd.f32 0.0, %v2574
  %v2576 = vpop.f32.mrf.mxu0
  %v2577 = vadd.f32 0.0, %v2576
  %2578 = vmatmul.bf16.gmra.mxu0 %v2400
  %v2579 = vpop.f32.mrf.mxu0
  %v2580 = vadd.f32 0.0, %v2579
  %v2581 = vpop.f32.mrf.mxu0
  %v2582 = vadd.f32 0.0, %v2581
  %2583 = vmatmul.bf16.gmra.mxu0 %v2403
  %v2584 = vpop.f32.mrf.mxu0
  %v2585 = vadd.f32 0.0, %v2584
  %v2586 = vpop.f32.mrf.mxu0
  %v2587 = vadd.f32 0.0, %v2586
  %2588 = vmatmul.bf16.gmra.mxu0 %v2407
  %v2589 = vpop.f32.mrf.mxu0
  %v2590 = vadd.f32 0.0, %v2589
  %v2591 = vpop.f32.mrf.mxu0
  %v2592 = vadd.f32 0.0, %v2591
  %2593 = vmatmul.bf16.gmra.mxu0 %v2411
  %v2594 = vpop.f32.mrf.mxu0
  %v2595 = vadd.f32 0.0, %v2594
  %v2596 = vpop.f32.mrf.mxu0
  %v2597 = vadd.f32 0.0, %v2596
  %2598 = vmatmul.bf16.gmra.mxu0 %v2415
  %v2599 = vpop.f32.mrf.mxu0
  %v2600 = vadd.f32 0.0, %v2599
  %v2601 = vpop.f32.mrf.mxu0
  %v2602 = vadd.f32 0.0, %v2601
  %2603 = vmatmul.bf16.gmra.mxu0 %v2419
  %v2604 = vpop.f32.mrf.mxu0
  %v2605 = vadd.f32 0.0, %v2604
  %v2606 = vpop.f32.mrf.mxu0
  %v2607 = vadd.f32 0.0, %v2606
  %2608 = vdwg.mxu0
  %2609 = vmatpush.bf16.msra.mxu0 0
  %2610 = vmatpush.bf16.msra.mxu0 0
  %2611 = vmatpush.bf16.msra.mxu0 0
  %2612 = vmatpush.bf16.msra.mxu0 0
  %2613 = vmatpush.bf16.msra.mxu0 %v2480
  %2614 = vmatpush.bf16.msra.mxu0 %v2479
  %2615 = vmatpush.bf16.msra.mxu0 %v2478
  %2616 = vmatpush.bf16.msra.mxu0 %v2477
  %2617 = vmatmul.bf16.gmra.mxu0 %v2494
  %v2618 = vpop.f32.mrf.mxu0
  %v2619 = vadd.f32 %v2530, %v2618
  %v2620 = vpop.f32.mrf.mxu0
  %v2621 = vadd.f32 %v2532, %v2620
  %2622 = vmatmul.bf16.gmra.mxu0 %v2497
  %v2623 = vpop.f32.mrf.mxu0
  %v2624 = vadd.f32 %v2535, %v2623
  %v2625 = vpop.f32.mrf.mxu0
  %v2626 = vadd.f32 %v2537, %v2625
  %2627 = vmatmul.bf16.gmra.mxu0 %v2500
  %v2628 = vpop.f32.mrf.mxu0
  %v2629 = vadd.f32 %v2540, %v2628
  %v2630 = vpop.f32.mrf.mxu0
  %v2631 = vadd.f32 %v2542, %v2630
  %2632 = vmatmul.bf16.gmra.mxu0 %v2503
  %v2633 = vpop.f32.mrf.mxu0
  %v2634 = vadd.f32 %v2545, %v2633
  %v2635 = vpop.f32.mrf.mxu0
  %v2636 = vadd.f32 %v2547, %v2635
  %2637 = vmatmul.bf16.gmra.mxu0 %v2506
  %v2638 = vpop.f32.mrf.mxu0
  %v2639 = vadd.f32 %v2550, %v2638
  %v2640 = vpop.f32.mrf.mxu0
  %v2641 = vadd.f32 %v2552, %v2640
  %2642 = vmatmul.bf16.gmra.mxu0 %v2506
  %v2643 = vpop.f32.mrf.mxu0
  %v2644 = vadd.f32 %v2555, %v2643
  %v2645 = vpop.f32.mrf.mxu0
  %v2646 = vadd.f32 %v2557, %v2645
  %2647 = vmatmul.bf16.gmra.mxu0 %v2506
  %v2648 = vpop.f32.mrf.mxu0
  %v2649 = vadd.f32 %v2560, %v2648
  %v2650 = vpop.f32.mrf.mxu0
  %v2651 = vadd.f32 %v2562, %v2650
  %2652 = vmatmul.bf16.gmra.mxu0 %v2506
  %v2653 = vpop.f32.mrf.mxu0
  %v2654 = vadd.f32 %v2565, %v2653
  %v2655 = vpop.f32.mrf.mxu0
  %v2656 = vadd.f32 %v2567, %v2655
  %2657 = vmatmul.bf16.gmra.mxu0 %v2509
  %v2658 = vpop.f32.mrf.mxu0
  %v2659 = vadd.f32 %v2570, %v2658
  %v2660 = vpop.f32.mrf.mxu0
  %v2661 = vadd.f32 %v2572, %v2660
  %2662 = vmatmul.bf16.gmra.mxu0 %v2512
  %v2663 = vpop.f32.mrf.mxu0
  %v2664 = vadd.f32 %v2575, %v2663
  %v2665 = vpop.f32.mrf.mxu0
  %v2666 = vadd.f32 %v2577, %v2665
  %2667 = vmatmul.bf16.gmra.mxu0 %v2515
  %v2668 = vpop.f32.mrf.mxu0
  %v2669 = vadd.f32 %v2580, %v2668
  %v2670 = vpop.f32.mrf.mxu0
  %v2671 = vadd.f32 %v2582, %v2670
  %2672 = vmatmul.bf16.gmra.mxu0 %v2518
  %v2673 = vpop.f32.mrf.mxu0
  %v2674 = vadd.f32 %v2585, %v2673
  %v2675 = vpop.f32.mrf.mxu0
  %v2676 = vadd.f32 %v2587, %v2675
  %2677 = vmatmul.bf16.gmra.mxu0 %v2506
  %v2678 = vpop.f32.mrf.mxu0
  %v2679 = vadd.f32 %v2590, %v2678
  %v2680 = vpop.f32.mrf.mxu0
  %v2681 = vadd.f32 %v2592, %v2680
  %2682 = vmatmul.bf16.gmra.mxu0 %v2506
  %v2683 = vpop.f32.mrf.mxu0
  %v2684 = vadd.f32 %v2595, %v2683
  %v2685 = vpop.f32.mrf.mxu0
  %v2686 = vadd.f32 %v2597, %v2685
  %2687 = vmatmul.bf16.gmra.mxu0 %v2506
  %v2688 = vpop.f32.mrf.mxu0
  %v2689 = vadd.f32 %v2600, %v2688
  %v2690 = vpop.f32.mrf.mxu0
  %v2691 = vadd.f32 %v2602, %v2690
  %2692 = vmatmul.bf16.gmra.mxu0 %v2506
  %v2693 = vpop.f32.mrf.mxu0
  %v2694 = vadd.f32 %v2605, %v2693
  %v2695 = vpop.f32.mrf.mxu0
  %v2696 = vadd.f32 %v2607, %v2695
  %2697 = vdwg.mxu0
  %v2722 = vunpack.c.l.b16 %v199
  %v2723 = vunpack.c.l.b16 %v200
  %v2724 = vunpack.c.l.b16 %v201
  %v2725 = vunpack.c.l.b16 %v202
  %v2726 = vunpack.c.l.b16 %v203
  %v2727 = vunpack.c.l.b16 %v204
  %v2728 = vunpack.c.l.b16 %v205
  %v2729 = vunpack.c.l.b16 %v206
  %v2730 = vunpack.c.l.b16 %v207
  %v2731 = vunpack.c.l.b16 %v208
  %v2732 = vunpack.c.l.b16 %v209
  %v2733 = vunpack.c.l.b16 %v210
  %v2734 = vunpack.c.l.b16 %v211
  %v2735 = vunpack.c.l.b16 %v212
  %v2736 = vunpack.c.l.b16 %v213
  %v2737 = vunpack.c.l.b16 %v214
  %v2738 = vunpack.c.l.b16 %v215
  %v2739 = vunpack.c.l.b16 %v216
  %v2740 = vunpack.c.l.b16 %v217
  %v2741 = vunpack.c.l.b16 %v218
  %v2742 = vunpack.c.l.b16 %v219
  %v2743 = vunpack.c.l.b16 %v220
  %v2744 = vunpack.c.l.b16 %v221
  %v2745 = vunpack.c.l.b16 %v222
  %v2746 = vpack.c.b16 %v2723, %v2722
  %v2747 = vpack.c.b16 %v2725, %v2724
  %v2748 = vpack.c.b16 %v2727, %v2726
  %v2749 = vpack.c.b16 %v2729, %v2728
  %v2750 = vpack.c.b16 %v2731, %v2730
  %v2751 = vpack.c.b16 %v2733, %v2732
  %v2752 = vpack.c.b16 %v2735, %v2734
  %v2753 = vpack.c.b16 %v2737, %v2736
  %v2754 = vpack.c.b16 %v2739, %v2738
  %v2755 = vpack.c.b16 %v2741, %v2740
  %v2756 = vpack.c.b16 %v2743, %v2742
  %v2757 = vpack.c.b16 %v2745, %v2744
  %v2770 = vsel %vm927, 0, 0
  %2772 = vmatpush.bf16.msra.mxu0 %v2753
  %2773 = vmatpush.bf16.msra.mxu0 %v2752
  %2774 = vmatpush.bf16.msra.mxu0 %v2751
  %2775 = vmatpush.bf16.msra.mxu0 %v2750
  %2776 = vmatpush.bf16.msra.mxu0 %v2749
  %2777 = vmatpush.bf16.msra.mxu0 %v2748
  %2778 = vmatpush.bf16.msra.mxu0 %v2747
  %2779 = vmatpush.bf16.msra.mxu0 %v2746
  %2780 = vmatmul.bf16.gmra.mxu0 0
  %v2781 = vpop.f32.mrf.mxu0
  %v2782 = vadd.f32 %v2619, %v2781
  %v2783 = vpop.f32.mrf.mxu0
  %v2784 = vadd.f32 %v2621, %v2783
  %2785 = vmatmul.bf16.gmra.mxu0 0
  %v2786 = vpop.f32.mrf.mxu0
  %v2787 = vadd.f32 %v2624, %v2786
  %v2788 = vpop.f32.mrf.mxu0
  %v2789 = vadd.f32 %v2626, %v2788
  %2790 = vmatmul.bf16.gmra.mxu0 0
  %v2791 = vpop.f32.mrf.mxu0
  %v2792 = vadd.f32 %v2629, %v2791
  %v2793 = vpop.f32.mrf.mxu0
  %v2794 = vadd.f32 %v2631, %v2793
  %2795 = vmatmul.bf16.gmra.mxu0 0
  %v2796 = vpop.f32.mrf.mxu0
  %v2797 = vadd.f32 %v2634, %v2796
  %v2798 = vpop.f32.mrf.mxu0
  %v2799 = vadd.f32 %v2636, %v2798
  %2800 = vmatmul.bf16.gmra.mxu0 0
  %v2801 = vpop.f32.mrf.mxu0
  %v2802 = vadd.f32 %v2639, %v2801
  %v2803 = vpop.f32.mrf.mxu0
  %v2804 = vadd.f32 %v2641, %v2803
  %2805 = vmatmul.bf16.gmra.mxu0 0
  %v2806 = vpop.f32.mrf.mxu0
  %v2807 = vadd.f32 %v2644, %v2806
  %v2808 = vpop.f32.mrf.mxu0
  %v2809 = vadd.f32 %v2646, %v2808
  %2810 = vmatmul.bf16.gmra.mxu0 0
  %v2811 = vpop.f32.mrf.mxu0
  %v2812 = vadd.f32 %v2649, %v2811
  %v2813 = vpop.f32.mrf.mxu0
  %v2814 = vadd.f32 %v2651, %v2813
  %2815 = vmatmul.bf16.gmra.mxu0 0
  %v2816 = vpop.f32.mrf.mxu0
  %v2817 = vadd.f32 %v2654, %v2816
  %v2818 = vpop.f32.mrf.mxu0
  %v2819 = vadd.f32 %v2656, %v2818
  %2820 = vmatmul.bf16.gmra.mxu0 %v2366
  %v2821 = vpop.f32.mrf.mxu0
  %v2822 = vadd.f32 %v2659, %v2821
  %v2823 = vpop.f32.mrf.mxu0
  %v2824 = vadd.f32 %v2661, %v2823
  %2825 = vmatmul.bf16.gmra.mxu0 %v2369
  %v2826 = vpop.f32.mrf.mxu0
  %v2827 = vadd.f32 %v2664, %v2826
  %v2828 = vpop.f32.mrf.mxu0
  %v2829 = vadd.f32 %v2666, %v2828
  %2830 = vmatmul.bf16.gmra.mxu0 %v2372
  %v2831 = vpop.f32.mrf.mxu0
  %v2832 = vadd.f32 %v2669, %v2831
  %v2833 = vpop.f32.mrf.mxu0
  %v2834 = vadd.f32 %v2671, %v2833
  %2835 = vmatmul.bf16.gmra.mxu0 %v2375
  %v2836 = vpop.f32.mrf.mxu0
  %v2837 = vadd.f32 %v2674, %v2836
  %v2838 = vpop.f32.mrf.mxu0
  %v2839 = vadd.f32 %v2676, %v2838
  %2840 = vmatmul.bf16.gmra.mxu0 %v2379
  %v2841 = vpop.f32.mrf.mxu0
  %v2842 = vadd.f32 %v2679, %v2841
  %v2843 = vpop.f32.mrf.mxu0
  %v2844 = vadd.f32 %v2681, %v2843
  %2845 = vmatmul.bf16.gmra.mxu0 %v2383
  %v2846 = vpop.f32.mrf.mxu0
  %v2847 = vadd.f32 %v2684, %v2846
  %v2848 = vpop.f32.mrf.mxu0
  %v2849 = vadd.f32 %v2686, %v2848
  %2850 = vmatmul.bf16.gmra.mxu0 %v2387
  %v2851 = vpop.f32.mrf.mxu0
  %v2852 = vadd.f32 %v2689, %v2851
  %v2853 = vpop.f32.mrf.mxu0
  %v2854 = vadd.f32 %v2691, %v2853
  %2855 = vmatmul.bf16.gmra.mxu0 %v2391
  %v2856 = vpop.f32.mrf.mxu0
  %v2857 = vadd.f32 %v2694, %v2856
  %v2858 = vpop.f32.mrf.mxu0
  %v2859 = vadd.f32 %v2696, %v2858
  %2860 = vdwg.mxu0
  %2861 = vmatpush.bf16.msra.mxu0 0
  %2862 = vmatpush.bf16.msra.mxu0 0
  %2863 = vmatpush.bf16.msra.mxu0 0
  %2864 = vmatpush.bf16.msra.mxu0 0
  %2865 = vmatpush.bf16.msra.mxu0 %v2757
  %2866 = vmatpush.bf16.msra.mxu0 %v2756
  %2867 = vmatpush.bf16.msra.mxu0 %v2755
  %2868 = vmatpush.bf16.msra.mxu0 %v2754
  %2869 = vmatmul.bf16.gmra.mxu0 %v2770
  %v2870 = vpop.f32.mrf.mxu0
  %v2871 = vadd.f32 %v2782, %v2870
  %v2872 = vpop.f32.mrf.mxu0
  %v2873 = vadd.f32 %v2784, %v2872
  %2874 = vmatmul.bf16.gmra.mxu0 %v2770
  %v2875 = vpop.f32.mrf.mxu0
  %v2876 = vadd.f32 %v2787, %v2875
  %v2877 = vpop.f32.mrf.mxu0
  %v2878 = vadd.f32 %v2789, %v2877
  %2879 = vmatmul.bf16.gmra.mxu0 %v2770
  %v2880 = vpop.f32.mrf.mxu0
  %v2881 = vadd.f32 %v2792, %v2880
  %v2882 = vpop.f32.mrf.mxu0
  %v2883 = vadd.f32 %v2794, %v2882
  %2884 = vmatmul.bf16.gmra.mxu0 %v2770
  %v2885 = vpop.f32.mrf.mxu0
  %v2886 = vadd.f32 %v2797, %v2885
  %v2887 = vpop.f32.mrf.mxu0
  %v2888 = vadd.f32 %v2799, %v2887
  %2889 = vmatmul.bf16.gmra.mxu0 %v2770
  %v2890 = vpop.f32.mrf.mxu0
  %v2891 = vadd.f32 %v2802, %v2890
  %v2892 = vpop.f32.mrf.mxu0
  %v2893 = vadd.f32 %v2804, %v2892
  %2894 = vmatmul.bf16.gmra.mxu0 %v2770
  %v2895 = vpop.f32.mrf.mxu0
  %v2896 = vadd.f32 %v2807, %v2895
  %v2897 = vpop.f32.mrf.mxu0
  %v2898 = vadd.f32 %v2809, %v2897
  %2899 = vmatmul.bf16.gmra.mxu0 %v2770
  %v2900 = vpop.f32.mrf.mxu0
  %v2901 = vadd.f32 %v2812, %v2900
  %v2902 = vpop.f32.mrf.mxu0
  %v2903 = vadd.f32 %v2814, %v2902
  %2904 = vmatmul.bf16.gmra.mxu0 %v2770
  %v2905 = vpop.f32.mrf.mxu0
  %v2906 = vadd.f32 %v2817, %v2905
  %v2907 = vpop.f32.mrf.mxu0
  %v2908 = vadd.f32 %v2819, %v2907
  %2909 = vmatmul.bf16.gmra.mxu0 %v2494
  %v2910 = vpop.f32.mrf.mxu0
  %v2911 = vadd.f32 %v2822, %v2910
  %v2912 = vpop.f32.mrf.mxu0
  %v2913 = vadd.f32 %v2824, %v2912
  %2914 = vmatmul.bf16.gmra.mxu0 %v2497
  %v2915 = vpop.f32.mrf.mxu0
  %v2916 = vadd.f32 %v2827, %v2915
  %v2917 = vpop.f32.mrf.mxu0
  %v2918 = vadd.f32 %v2829, %v2917
  %2919 = vmatmul.bf16.gmra.mxu0 %v2500
  %v2920 = vpop.f32.mrf.mxu0
  %v2921 = vadd.f32 %v2832, %v2920
  %v2922 = vpop.f32.mrf.mxu0
  %v2923 = vadd.f32 %v2834, %v2922
  %2924 = vmatmul.bf16.gmra.mxu0 %v2503
  %v2925 = vpop.f32.mrf.mxu0
  %v2926 = vadd.f32 %v2837, %v2925
  %v2927 = vpop.f32.mrf.mxu0
  %v2928 = vadd.f32 %v2839, %v2927
  %2929 = vmatmul.bf16.gmra.mxu0 %v2506
  %v2930 = vpop.f32.mrf.mxu0
  %v2931 = vadd.f32 %v2842, %v2930
  %v2932 = vpop.f32.mrf.mxu0
  %v2933 = vadd.f32 %v2844, %v2932
  %2934 = vmatmul.bf16.gmra.mxu0 %v2506
  %v2935 = vpop.f32.mrf.mxu0
  %v2936 = vadd.f32 %v2847, %v2935
  %v2937 = vpop.f32.mrf.mxu0
  %v2938 = vadd.f32 %v2849, %v2937
  %2939 = vmatmul.bf16.gmra.mxu0 %v2506
  %v2940 = vpop.f32.mrf.mxu0
  %v2941 = vadd.f32 %v2852, %v2940
  %v2942 = vpop.f32.mrf.mxu0
  %v2943 = vadd.f32 %v2854, %v2942
  %2944 = vmatmul.bf16.gmra.mxu0 %v2506
  %v2945 = vpop.f32.mrf.mxu0
  %v2946 = vadd.f32 %v2857, %v2945
  %v2947 = vpop.f32.mrf.mxu0
  %v2948 = vadd.f32 %v2859, %v2947
  %2949 = vdwg.mxu0
  %v2974 = vunpack.c.l.b16 %v247
  %v2975 = vunpack.c.l.b16 %v248
  %v2976 = vunpack.c.l.b16 %v249
  %v2977 = vunpack.c.l.b16 %v250
  %v2978 = vunpack.c.l.b16 %v251
  %v2979 = vunpack.c.l.b16 %v252
  %v2980 = vunpack.c.l.b16 %v253
  %v2981 = vunpack.c.l.b16 %v254
  %v2982 = vunpack.c.l.b16 %v255
  %v2983 = vunpack.c.l.b16 %v256
  %v2984 = vunpack.c.l.b16 %v257
  %v2985 = vunpack.c.l.b16 %v258
  %v2986 = vunpack.c.l.b16 %v259
  %v2987 = vunpack.c.l.b16 %v260
  %v2988 = vunpack.c.l.b16 %v261
  %v2989 = vunpack.c.l.b16 %v262
  %v2990 = vunpack.c.l.b16 %v263
  %v2991 = vunpack.c.l.b16 %v264
  %v2992 = vunpack.c.l.b16 %v265
  %v2993 = vunpack.c.l.b16 %v266
  %v2994 = vunpack.c.l.b16 %v267
  %v2995 = vunpack.c.l.b16 %v268
  %v2996 = vunpack.c.l.b16 %v269
  %v2997 = vunpack.c.l.b16 %v270
  %v2998 = vpack.c.b16 %v2975, %v2974
  %v2999 = vpack.c.b16 %v2977, %v2976
  %v3000 = vpack.c.b16 %v2979, %v2978
  %v3001 = vpack.c.b16 %v2981, %v2980
  %v3002 = vpack.c.b16 %v2983, %v2982
  %v3003 = vpack.c.b16 %v2985, %v2984
  %v3004 = vpack.c.b16 %v2987, %v2986
  %v3005 = vpack.c.b16 %v2989, %v2988
  %v3006 = vpack.c.b16 %v2991, %v2990
  %v3007 = vpack.c.b16 %v2993, %v2992
  %v3008 = vpack.c.b16 %v2995, %v2994
  %v3009 = vpack.c.b16 %v2997, %v2996
  %3022 = vmatpush.bf16.msra.mxu0 %v3005
  %3023 = vmatpush.bf16.msra.mxu0 %v3004
  %3024 = vmatpush.bf16.msra.mxu0 %v3003
  %3025 = vmatpush.bf16.msra.mxu0 %v3002
  %3026 = vmatpush.bf16.msra.mxu0 %v3001
  %3027 = vmatpush.bf16.msra.mxu0 %v3000
  %3028 = vmatpush.bf16.msra.mxu0 %v2999
  %3029 = vmatpush.bf16.msra.mxu0 %v2998
  %3030 = vmatmul.bf16.gmra.mxu0 %v2394
  %v3031 = vpop.f32.mrf.mxu0
  %v3032 = vadd.f32 0.0, %v3031
  %v3033 = vpop.f32.mrf.mxu0
  %v3034 = vadd.f32 0.0, %v3033
  %3035 = vmatmul.bf16.gmra.mxu0 %v2397
  %v3036 = vpop.f32.mrf.mxu0
  %v3037 = vadd.f32 0.0, %v3036
  %v3038 = vpop.f32.mrf.mxu0
  %v3039 = vadd.f32 0.0, %v3038
  %3040 = vmatmul.bf16.gmra.mxu0 %v2400
  %v3041 = vpop.f32.mrf.mxu0
  %v3042 = vadd.f32 0.0, %v3041
  %v3043 = vpop.f32.mrf.mxu0
  %v3044 = vadd.f32 0.0, %v3043
  %3045 = vmatmul.bf16.gmra.mxu0 %v2403
  %v3046 = vpop.f32.mrf.mxu0
  %v3047 = vadd.f32 0.0, %v3046
  %v3048 = vpop.f32.mrf.mxu0
  %v3049 = vadd.f32 0.0, %v3048
  %3050 = vmatmul.bf16.gmra.mxu0 %v2407
  %v3051 = vpop.f32.mrf.mxu0
  %v3052 = vadd.f32 0.0, %v3051
  %v3053 = vpop.f32.mrf.mxu0
  %v3054 = vadd.f32 0.0, %v3053
  %3055 = vmatmul.bf16.gmra.mxu0 %v2411
  %v3056 = vpop.f32.mrf.mxu0
  %v3057 = vadd.f32 0.0, %v3056
  %v3058 = vpop.f32.mrf.mxu0
  %v3059 = vadd.f32 0.0, %v3058
  %3060 = vmatmul.bf16.gmra.mxu0 %v2415
  %v3061 = vpop.f32.mrf.mxu0
  %v3062 = vadd.f32 0.0, %v3061
  %v3063 = vpop.f32.mrf.mxu0
  %v3064 = vadd.f32 0.0, %v3063
  %3065 = vmatmul.bf16.gmra.mxu0 %v2419
  %v3066 = vpop.f32.mrf.mxu0
  %v3067 = vadd.f32 0.0, %v3066
  %v3068 = vpop.f32.mrf.mxu0
  %v3069 = vadd.f32 0.0, %v3068
  %3070 = vmatmul.bf16.gmra.mxu0 0
  %v3071 = vpop.f32.mrf.mxu0
  %v3072 = vadd.f32 0.0, %v3071
  %v3073 = vpop.f32.mrf.mxu0
  %v3074 = vadd.f32 0.0, %v3073
  %3075 = vmatmul.bf16.gmra.mxu0 0
  %v3076 = vpop.f32.mrf.mxu0
  %v3077 = vadd.f32 0.0, %v3076
  %v3078 = vpop.f32.mrf.mxu0
  %v3079 = vadd.f32 0.0, %v3078
  %3080 = vmatmul.bf16.gmra.mxu0 0
  %v3081 = vpop.f32.mrf.mxu0
  %v3082 = vadd.f32 0.0, %v3081
  %v3083 = vpop.f32.mrf.mxu0
  %v3084 = vadd.f32 0.0, %v3083
  %3085 = vmatmul.bf16.gmra.mxu0 0
  %v3086 = vpop.f32.mrf.mxu0
  %v3087 = vadd.f32 0.0, %v3086
  %v3088 = vpop.f32.mrf.mxu0
  %v3089 = vadd.f32 0.0, %v3088
  %3090 = vmatmul.bf16.gmra.mxu0 0
  %v3091 = vpop.f32.mrf.mxu0
  %v3092 = vadd.f32 0.0, %v3091
  %v3093 = vpop.f32.mrf.mxu0
  %v3094 = vadd.f32 0.0, %v3093
  %3095 = vmatmul.bf16.gmra.mxu0 0
  %v3096 = vpop.f32.mrf.mxu0
  %v3097 = vadd.f32 0.0, %v3096
  %v3098 = vpop.f32.mrf.mxu0
  %v3099 = vadd.f32 0.0, %v3098
  %3100 = vmatmul.bf16.gmra.mxu0 0
  %v3101 = vpop.f32.mrf.mxu0
  %v3102 = vadd.f32 0.0, %v3101
  %v3103 = vpop.f32.mrf.mxu0
  %v3104 = vadd.f32 0.0, %v3103
  %3105 = vmatmul.bf16.gmra.mxu0 0
  %v3106 = vpop.f32.mrf.mxu0
  %v3107 = vadd.f32 0.0, %v3106
  %v3108 = vpop.f32.mrf.mxu0
  %v3109 = vadd.f32 0.0, %v3108
  %3110 = vdwg.mxu0
  %3111 = vmatpush.bf16.msra.mxu0 0
  %3112 = vmatpush.bf16.msra.mxu0 0
  %3113 = vmatpush.bf16.msra.mxu0 0
  %3114 = vmatpush.bf16.msra.mxu0 0
  %3115 = vmatpush.bf16.msra.mxu0 %v3009
  %3116 = vmatpush.bf16.msra.mxu0 %v3008
  %3117 = vmatpush.bf16.msra.mxu0 %v3007
  %3118 = vmatpush.bf16.msra.mxu0 %v3006
  %3119 = vmatmul.bf16.gmra.mxu0 %v2509
  %v3120 = vpop.f32.mrf.mxu0
  %v3121 = vadd.f32 %v3032, %v3120
  %v3122 = vpop.f32.mrf.mxu0
  %v3123 = vadd.f32 %v3034, %v3122
  %3124 = vmatmul.bf16.gmra.mxu0 %v2512
  %v3125 = vpop.f32.mrf.mxu0
  %v3126 = vadd.f32 %v3037, %v3125
  %v3127 = vpop.f32.mrf.mxu0
  %v3128 = vadd.f32 %v3039, %v3127
  %3129 = vmatmul.bf16.gmra.mxu0 %v2515
  %v3130 = vpop.f32.mrf.mxu0
  %v3131 = vadd.f32 %v3042, %v3130
  %v3132 = vpop.f32.mrf.mxu0
  %v3133 = vadd.f32 %v3044, %v3132
  %3134 = vmatmul.bf16.gmra.mxu0 %v2518
  %v3135 = vpop.f32.mrf.mxu0
  %v3136 = vadd.f32 %v3047, %v3135
  %v3137 = vpop.f32.mrf.mxu0
  %v3138 = vadd.f32 %v3049, %v3137
  %3139 = vmatmul.bf16.gmra.mxu0 %v2506
  %v3140 = vpop.f32.mrf.mxu0
  %v3141 = vadd.f32 %v3052, %v3140
  %v3142 = vpop.f32.mrf.mxu0
  %v3143 = vadd.f32 %v3054, %v3142
  %3144 = vmatmul.bf16.gmra.mxu0 %v2506
  %v3145 = vpop.f32.mrf.mxu0
  %v3146 = vadd.f32 %v3057, %v3145
  %v3147 = vpop.f32.mrf.mxu0
  %v3148 = vadd.f32 %v3059, %v3147
  %3149 = vmatmul.bf16.gmra.mxu0 %v2506
  %v3150 = vpop.f32.mrf.mxu0
  %v3151 = vadd.f32 %v3062, %v3150
  %v3152 = vpop.f32.mrf.mxu0
  %v3153 = vadd.f32 %v3064, %v3152
  %3154 = vmatmul.bf16.gmra.mxu0 %v2506
  %v3155 = vpop.f32.mrf.mxu0
  %v3156 = vadd.f32 %v3067, %v3155
  %v3157 = vpop.f32.mrf.mxu0
  %v3158 = vadd.f32 %v3069, %v3157
  %3159 = vmatmul.bf16.gmra.mxu0 %v2770
  %v3160 = vpop.f32.mrf.mxu0
  %v3161 = vadd.f32 %v3072, %v3160
  %v3162 = vpop.f32.mrf.mxu0
  %v3163 = vadd.f32 %v3074, %v3162
  %3164 = vmatmul.bf16.gmra.mxu0 %v2770
  %v3165 = vpop.f32.mrf.mxu0
  %v3166 = vadd.f32 %v3077, %v3165
  %v3167 = vpop.f32.mrf.mxu0
  %v3168 = vadd.f32 %v3079, %v3167
  %3169 = vmatmul.bf16.gmra.mxu0 %v2770
  %v3170 = vpop.f32.mrf.mxu0
  %v3171 = vadd.f32 %v3082, %v3170
  %v3172 = vpop.f32.mrf.mxu0
  %v3173 = vadd.f32 %v3084, %v3172
  %3174 = vmatmul.bf16.gmra.mxu0 %v2770
  %v3175 = vpop.f32.mrf.mxu0
  %v3176 = vadd.f32 %v3087, %v3175
  %v3177 = vpop.f32.mrf.mxu0
  %v3178 = vadd.f32 %v3089, %v3177
  %3179 = vmatmul.bf16.gmra.mxu0 %v2770
  %v3180 = vpop.f32.mrf.mxu0
  %v3181 = vadd.f32 %v3092, %v3180
  %v3182 = vpop.f32.mrf.mxu0
  %v3183 = vadd.f32 %v3094, %v3182
  %3184 = vmatmul.bf16.gmra.mxu0 %v2770
  %v3185 = vpop.f32.mrf.mxu0
  %v3186 = vadd.f32 %v3097, %v3185
  %v3187 = vpop.f32.mrf.mxu0
  %v3188 = vadd.f32 %v3099, %v3187
  %3189 = vmatmul.bf16.gmra.mxu0 %v2770
  %v3190 = vpop.f32.mrf.mxu0
  %v3191 = vadd.f32 %v3102, %v3190
  %v3192 = vpop.f32.mrf.mxu0
  %v3193 = vadd.f32 %v3104, %v3192
  %3194 = vmatmul.bf16.gmra.mxu0 %v2770
  %v3195 = vpop.f32.mrf.mxu0
  %v3196 = vadd.f32 %v3107, %v3195
  %v3197 = vpop.f32.mrf.mxu0
  %v3198 = vadd.f32 %v3109, %v3197
  %3199 = vdwg.mxu0
  %v3200 = vadd.f32 %v2871, %v3121
  %v3201 = vadd.f32 %v2873, %v3123
  %v3202 = vadd.f32 %v2876, %v3126
  %v3203 = vadd.f32 %v2878, %v3128
  %v3204 = vadd.f32 %v2881, %v3131
  %v3205 = vadd.f32 %v2883, %v3133
  %v3206 = vadd.f32 %v2886, %v3136
  %v3207 = vadd.f32 %v2888, %v3138
  %v3208 = vadd.f32 %v2891, %v3141
  %v3209 = vadd.f32 %v2893, %v3143
  %v3210 = vadd.f32 %v2896, %v3146
  %v3211 = vadd.f32 %v2898, %v3148
  %v3212 = vadd.f32 %v2901, %v3151
  %v3213 = vadd.f32 %v2903, %v3153
  %v3214 = vadd.f32 %v2906, %v3156
  %v3215 = vadd.f32 %v2908, %v3158
  %v3216 = vadd.f32 %v2911, %v3161
  %v3217 = vadd.f32 %v2913, %v3163
  %v3218 = vadd.f32 %v2916, %v3166
  %v3219 = vadd.f32 %v2918, %v3168
  %v3220 = vadd.f32 %v2921, %v3171
  %v3221 = vadd.f32 %v2923, %v3173
  %v3222 = vadd.f32 %v2926, %v3176
  %v3223 = vadd.f32 %v2928, %v3178
  %v3224 = vadd.f32 %v2931, %v3181
  %v3225 = vadd.f32 %v2933, %v3183
  %v3226 = vadd.f32 %v2936, %v3186
  %v3227 = vadd.f32 %v2938, %v3188
  %v3228 = vadd.f32 %v2941, %v3191
  %v3229 = vadd.f32 %v2943, %v3193
  %v3230 = vadd.f32 %v2946, %v3196
  %v3231 = vadd.f32 %v2948, %v3198
  %v3233 = vperm.slane %v343, 0
  %v3235 = vadd.f32 %v3200, %v3233
  %v3236 = vadd.f32 %v3201, %v3233
  %v3237 = vadd.f32 %v3202, %v3233
  %v3238 = vadd.f32 %v3203, %v3233
  %v3239 = vadd.f32 %v3204, %v3233
  %v3240 = vadd.f32 %v3205, %v3233
  %v3241 = vadd.f32 %v3206, %v3233
  %v3242 = vadd.f32 %v3207, %v3233
  %v3243 = vadd.f32 %v3208, %v3233
  %v3244 = vadd.f32 %v3209, %v3233
  %v3245 = vadd.f32 %v3210, %v3233
  %v3246 = vadd.f32 %v3211, %v3233
  %v3247 = vadd.f32 %v3212, %v3233
  %v3248 = vadd.f32 %v3213, %v3233
  %v3249 = vadd.f32 %v3214, %v3233
  %v3250 = vadd.f32 %v3215, %v3233
  %v3251 = vadd.f32 %v3216, %v3233
  %v3252 = vadd.f32 %v3217, %v3233
  %v3253 = vadd.f32 %v3218, %v3233
  %v3254 = vadd.f32 %v3219, %v3233
  %v3255 = vadd.f32 %v3220, %v3233
  %v3256 = vadd.f32 %v3221, %v3233
  %v3257 = vadd.f32 %v3222, %v3233
  %v3258 = vadd.f32 %v3223, %v3233
  %v3259 = vadd.f32 %v3224, %v3233
  %v3260 = vadd.f32 %v3225, %v3233
  %v3261 = vadd.f32 %v3226, %v3233
  %v3262 = vadd.f32 %v3227, %v3233
  %v3263 = vadd.f32 %v3228, %v3233
  %v3264 = vadd.f32 %v3229, %v3233
  %v3265 = vadd.f32 %v3230, %v3233
  %v3266 = vadd.f32 %v3231, %v3233
  %v3267 = vmax.f32 %v3235, 0.0
  %v3268 = vmax.f32 %v3236, 0.0
  %v3269 = vmax.f32 %v3237, 0.0
  %v3270 = vmax.f32 %v3238, 0.0
  %v3271 = vmax.f32 %v3239, 0.0
  %v3272 = vmax.f32 %v3240, 0.0
  %v3273 = vmax.f32 %v3241, 0.0
  %v3274 = vmax.f32 %v3242, 0.0
  %v3275 = vmax.f32 %v3243, 0.0
  %v3276 = vmax.f32 %v3244, 0.0
  %v3277 = vmax.f32 %v3245, 0.0
  %v3278 = vmax.f32 %v3246, 0.0
  %v3279 = vmax.f32 %v3247, 0.0
  %v3280 = vmax.f32 %v3248, 0.0
  %v3281 = vmax.f32 %v3249, 0.0
  %v3282 = vmax.f32 %v3250, 0.0
  %v3283 = vmax.f32 %v3251, 0.0
  %v3284 = vmax.f32 %v3252, 0.0
  %v3285 = vmax.f32 %v3253, 0.0
  %v3286 = vmax.f32 %v3254, 0.0
  %v3287 = vmax.f32 %v3255, 0.0
  %v3288 = vmax.f32 %v3256, 0.0
  %v3289 = vmax.f32 %v3257, 0.0
  %v3290 = vmax.f32 %v3258, 0.0
  %v3291 = vmax.f32 %v3259, 0.0
  %v3292 = vmax.f32 %v3260, 0.0
  %v3293 = vmax.f32 %v3261, 0.0
  %v3294 = vmax.f32 %v3262, 0.0
  %v3295 = vmax.f32 %v3263, 0.0
  %v3296 = vmax.f32 %v3264, 0.0
  %v3297 = vmax.f32 %v3265, 0.0
  %v3298 = vmax.f32 %v3266, 0.0
  %v3299 = vpack.c.bf16 %v3267, %v3267
  %v3300 = vpack.c.bf16 %v3268, %v3268
  %v3301 = vpack.c.bf16 %v3269, %v3269
  %v3302 = vpack.c.bf16 %v3270, %v3270
  %v3303 = vpack.c.bf16 %v3271, %v3271
  %v3304 = vpack.c.bf16 %v3272, %v3272
  %v3305 = vpack.c.bf16 %v3273, %v3273
  %v3306 = vpack.c.bf16 %v3274, %v3274
  %v3307 = vpack.c.bf16 %v3275, %v3275
  %v3308 = vpack.c.bf16 %v3276, %v3276
  %v3309 = vpack.c.bf16 %v3277, %v3277
  %v3310 = vpack.c.bf16 %v3278, %v3278
  %v3311 = vpack.c.bf16 %v3279, %v3279
  %v3312 = vpack.c.bf16 %v3280, %v3280
  %v3313 = vpack.c.bf16 %v3281, %v3281
  %v3314 = vpack.c.bf16 %v3282, %v3282
  %v3315 = vpack.c.bf16 %v3283, %v3283
  %v3316 = vpack.c.bf16 %v3284, %v3284
  %v3317 = vpack.c.bf16 %v3285, %v3285
  %v3318 = vpack.c.bf16 %v3286, %v3286
  %v3319 = vpack.c.bf16 %v3287, %v3287
  %v3320 = vpack.c.bf16 %v3288, %v3288
  %v3321 = vpack.c.bf16 %v3289, %v3289
  %v3322 = vpack.c.bf16 %v3290, %v3290
  %v3323 = vpack.c.bf16 %v3291, %v3291
  %v3324 = vpack.c.bf16 %v3292, %v3292
  %v3325 = vpack.c.bf16 %v3293, %v3293
  %v3326 = vpack.c.bf16 %v3294, %v3294
  %v3327 = vpack.c.bf16 %v3295, %v3295
  %v3328 = vpack.c.bf16 %v3296, %v3296
  %v3329 = vpack.c.bf16 %v3297, %v3297
  %v3330 = vpack.c.bf16 %v3298, %v3298
  %v3363 = vunpack.c.l.b16 %v3299
  %v3364 = vunpack.c.l.b16 %v3300
  %v3365 = vunpack.c.l.b16 %v3301
  %v3366 = vunpack.c.l.b16 %v3302
  %v3367 = vunpack.c.l.b16 %v3303
  %v3368 = vunpack.c.l.b16 %v3304
  %v3369 = vunpack.c.l.b16 %v3305
  %v3370 = vunpack.c.l.b16 %v3306
  %v3371 = vunpack.c.l.b16 %v3307
  %v3372 = vunpack.c.l.b16 %v3308
  %v3373 = vunpack.c.l.b16 %v3309
  %v3374 = vunpack.c.l.b16 %v3310
  %v3375 = vunpack.c.l.b16 %v3311
  %v3376 = vunpack.c.l.b16 %v3312
  %v3377 = vunpack.c.l.b16 %v3313
  %v3378 = vunpack.c.l.b16 %v3314
  %v3379 = vunpack.c.l.b16 %v3315
  %v3380 = vunpack.c.l.b16 %v3316
  %v3381 = vunpack.c.l.b16 %v3317
  %v3382 = vunpack.c.l.b16 %v3318
  %v3383 = vunpack.c.l.b16 %v3319
  %v3384 = vunpack.c.l.b16 %v3320
  %v3385 = vunpack.c.l.b16 %v3321
  %v3386 = vunpack.c.l.b16 %v3322
  %v3387 = vunpack.c.l.b16 %v3323
  %v3388 = vunpack.c.l.b16 %v3324
  %v3389 = vunpack.c.l.b16 %v3325
  %v3390 = vunpack.c.l.b16 %v3326
  %v3391 = vunpack.c.l.b16 %v3327
  %v3392 = vunpack.c.l.b16 %v3328
  %v3393 = vunpack.c.l.b16 %v3329
  %v3394 = vunpack.c.l.b16 %v3330
  %v3395 = vpack.c.b16 %v3363, %v3363
  %v3396 = vpack.c.b16 %v3364, %v3364
  %v3397 = vpack.c.b16 %v3365, %v3365
  %v3398 = vpack.c.b16 %v3366, %v3366
  %v3399 = vpack.c.b16 %v3367, %v3367
  %v3400 = vpack.c.b16 %v3368, %v3368
  %v3401 = vpack.c.b16 %v3369, %v3369
  %v3402 = vpack.c.b16 %v3370, %v3370
  %v3403 = vpack.c.b16 %v3371, %v3371
  %v3404 = vpack.c.b16 %v3372, %v3372
  %v3405 = vpack.c.b16 %v3373, %v3373
  %v3406 = vpack.c.b16 %v3374, %v3374
  %v3407 = vpack.c.b16 %v3375, %v3375
  %v3408 = vpack.c.b16 %v3376, %v3376
  %v3409 = vpack.c.b16 %v3377, %v3377
  %v3410 = vpack.c.b16 %v3378, %v3378
  %v3411 = vpack.c.b16 %v3379, %v3379
  %v3412 = vpack.c.b16 %v3380, %v3380
  %v3413 = vpack.c.b16 %v3381, %v3381
  %v3414 = vpack.c.b16 %v3382, %v3382
  %v3415 = vpack.c.b16 %v3383, %v3383
  %v3416 = vpack.c.b16 %v3384, %v3384
  %v3417 = vpack.c.b16 %v3385, %v3385
  %v3418 = vpack.c.b16 %v3386, %v3386
  %v3419 = vpack.c.b16 %v3387, %v3387
  %v3420 = vpack.c.b16 %v3388, %v3388
  %v3421 = vpack.c.b16 %v3389, %v3389
  %v3422 = vpack.c.b16 %v3390, %v3390
  %v3423 = vpack.c.b16 %v3391, %v3391
  %v3424 = vpack.c.b16 %v3392, %v3392
  %v3425 = vpack.c.b16 %v3393, %v3393
  %v3426 = vpack.c.b16 %v3394, %v3394
  %v3428 = vshrl.u32 %v3395, 16
  %v3430 = vrot.slane %v3428, 7
  %v3431 = vshll.u32 %v3395, 16
  %v3433 = vor.u32 %v3430, %v3431
  %v3435 = vshrl.u32 %v3396, 16
  %v3437 = vrot.slane %v3435, 7
  %v3438 = vshll.u32 %v3396, 16
  %v3440 = vor.u32 %v3437, %v3438
  %v3442 = vshrl.u32 %v3397, 16
  %v3444 = vrot.slane %v3442, 7
  %v3445 = vshll.u32 %v3397, 16
  %v3447 = vor.u32 %v3444, %v3445
  %v3449 = vshrl.u32 %v3398, 16
  %v3451 = vrot.slane %v3449, 7
  %v3452 = vshll.u32 %v3398, 16
  %v3454 = vor.u32 %v3451, %v3452
  %v3456 = vshrl.u32 %v3399, 16
  %v3458 = vrot.slane %v3456, 7
  %v3459 = vshll.u32 %v3399, 16
  %v3461 = vor.u32 %v3458, %v3459
  %v3463 = vshrl.u32 %v3400, 16
  %v3465 = vrot.slane %v3463, 7
  %v3466 = vshll.u32 %v3400, 16
  %v3468 = vor.u32 %v3465, %v3466
  %v3470 = vshrl.u32 %v3401, 16
  %v3472 = vrot.slane %v3470, 7
  %v3473 = vshll.u32 %v3401, 16
  %v3475 = vor.u32 %v3472, %v3473
  %v3477 = vshrl.u32 %v3402, 16
  %v3479 = vrot.slane %v3477, 7
  %v3480 = vshll.u32 %v3402, 16
  %v3482 = vor.u32 %v3479, %v3480
  %v3484 = vshrl.u32 %v3403, 16
  %v3486 = vrot.slane %v3484, 7
  %v3487 = vshll.u32 %v3403, 16
  %v3489 = vor.u32 %v3486, %v3487
  %v3491 = vshrl.u32 %v3404, 16
  %v3493 = vrot.slane %v3491, 7
  %v3494 = vshll.u32 %v3404, 16
  %v3496 = vor.u32 %v3493, %v3494
  %v3498 = vshrl.u32 %v3405, 16
  %v3500 = vrot.slane %v3498, 7
  %v3501 = vshll.u32 %v3405, 16
  %v3503 = vor.u32 %v3500, %v3501
  %v3505 = vshrl.u32 %v3406, 16
  %v3507 = vrot.slane %v3505, 7
  %v3508 = vshll.u32 %v3406, 16
  %v3510 = vor.u32 %v3507, %v3508
  %v3512 = vshrl.u32 %v3407, 16
  %v3514 = vrot.slane %v3512, 7
  %v3515 = vshll.u32 %v3407, 16
  %v3517 = vor.u32 %v3514, %v3515
  %v3519 = vshrl.u32 %v3408, 16
  %v3521 = vrot.slane %v3519, 7
  %v3522 = vshll.u32 %v3408, 16
  %v3524 = vor.u32 %v3521, %v3522
  %v3526 = vshrl.u32 %v3409, 16
  %v3528 = vrot.slane %v3526, 7
  %v3529 = vshll.u32 %v3409, 16
  %v3531 = vor.u32 %v3528, %v3529
  %v3533 = vshrl.u32 %v3410, 16
  %v3535 = vrot.slane %v3533, 7
  %v3536 = vshll.u32 %v3410, 16
  %v3538 = vor.u32 %v3535, %v3536
  %v3540 = vshrl.u32 %v3411, 16
  %v3542 = vrot.slane %v3540, 7
  %v3543 = vshll.u32 %v3411, 16
  %v3545 = vor.u32 %v3542, %v3543
  %v3547 = vshrl.u32 %v3412, 16
  %v3549 = vrot.slane %v3547, 7
  %v3550 = vshll.u32 %v3412, 16
  %v3552 = vor.u32 %v3549, %v3550
  %v3554 = vshrl.u32 %v3413, 16
  %v3556 = vrot.slane %v3554, 7
  %v3557 = vshll.u32 %v3413, 16
  %v3559 = vor.u32 %v3556, %v3557
  %v3561 = vshrl.u32 %v3414, 16
  %v3563 = vrot.slane %v3561, 7
  %v3564 = vshll.u32 %v3414, 16
  %v3566 = vor.u32 %v3563, %v3564
  %v3568 = vshrl.u32 %v3415, 16
  %v3570 = vrot.slane %v3568, 7
  %v3571 = vshll.u32 %v3415, 16
  %v3573 = vor.u32 %v3570, %v3571
  %v3575 = vshrl.u32 %v3416, 16
  %v3577 = vrot.slane %v3575, 7
  %v3578 = vshll.u32 %v3416, 16
  %v3580 = vor.u32 %v3577, %v3578
  %v3582 = vshrl.u32 %v3417, 16
  %v3584 = vrot.slane %v3582, 7
  %v3585 = vshll.u32 %v3417, 16
  %v3587 = vor.u32 %v3584, %v3585
  %v3589 = vshrl.u32 %v3418, 16
  %v3591 = vrot.slane %v3589, 7
  %v3592 = vshll.u32 %v3418, 16
  %v3594 = vor.u32 %v3591, %v3592
  %v3596 = vshrl.u32 %v3419, 16
  %v3598 = vrot.slane %v3596, 7
  %v3599 = vshll.u32 %v3419, 16
  %v3601 = vor.u32 %v3598, %v3599
  %v3603 = vshrl.u32 %v3420, 16
  %v3605 = vrot.slane %v3603, 7
  %v3606 = vshll.u32 %v3420, 16
  %v3608 = vor.u32 %v3605, %v3606
  %v3610 = vshrl.u32 %v3421, 16
  %v3612 = vrot.slane %v3610, 7
  %v3613 = vshll.u32 %v3421, 16
  %v3615 = vor.u32 %v3612, %v3613
  %v3617 = vshrl.u32 %v3422, 16
  %v3619 = vrot.slane %v3617, 7
  %v3620 = vshll.u32 %v3422, 16
  %v3622 = vor.u32 %v3619, %v3620
  %v3624 = vshrl.u32 %v3423, 16
  %v3626 = vrot.slane %v3624, 7
  %v3627 = vshll.u32 %v3423, 16
  %v3629 = vor.u32 %v3626, %v3627
  %v3631 = vshrl.u32 %v3424, 16
  %v3633 = vrot.slane %v3631, 7
  %v3634 = vshll.u32 %v3424, 16
  %v3636 = vor.u32 %v3633, %v3634
  %v3638 = vshrl.u32 %v3425, 16
  %v3640 = vrot.slane %v3638, 7
  %v3641 = vshll.u32 %v3425, 16
  %v3643 = vor.u32 %v3640, %v3641
  %v3645 = vshrl.u32 %v3426, 16
  %v3647 = vrot.slane %v3645, 7
  %v3648 = vshll.u32 %v3426, 16
  %v3650 = vor.u32 %v3647, %v3648
  %v3683 = vsel %vm699, 0, %v3433
  %v3684 = vsel %vm699, 0, %v3440
  %v3685 = vsel %vm699, 0, %v3447
  %v3686 = vsel %vm699, 0, %v3454
  %v3687 = vsel %vm699, 0, %v3461
  %v3688 = vsel %vm699, 0, %v3468
  %v3689 = vsel %vm699, 0, %v3475
  %v3690 = vsel %vm699, 0, %v3482
  %v3691 = vsel %vm699, 0, %v3489
  %v3692 = vsel %vm699, 0, %v3496
  %v3693 = vsel %vm699, 0, %v3503
  %v3694 = vsel %vm699, 0, %v3510
  %v3695 = vsel %vm699, 0, %v3517
  %v3696 = vsel %vm699, 0, %v3524
  %v3697 = vsel %vm699, 0, %v3531
  %v3698 = vsel %vm699, 0, %v3538
  %v3699 = vsel %vm699, 0, %v3545
  %v3700 = vsel %vm699, 0, %v3552
  %v3701 = vsel %vm699, 0, %v3559
  %v3702 = vsel %vm699, 0, %v3566
  %v3703 = vsel %vm699, 0, %v3573
  %v3704 = vsel %vm699, 0, %v3580
  %v3705 = vsel %vm699, 0, %v3587
  %v3706 = vsel %vm699, 0, %v3594
  %v3707 = vsel %vm699, 0, %v3601
  %v3708 = vsel %vm699, 0, %v3608
  %v3709 = vsel %vm699, 0, %v3615
  %v3710 = vsel %vm699, 0, %v3622
  %v3711 = vsel %vm699, 0, %v3629
  %v3712 = vsel %vm699, 0, %v3636
  %v3713 = vsel %vm699, 0, %v3643
  %v3714 = vsel %vm699, 0, %v3650
  %v3715 = vrot.slane %v3431, 1
  %v3716 = vor.u32 %v3428, %v3715
  %v3717 = vrot.slane %v3438, 1
  %v3718 = vor.u32 %v3435, %v3717
  %v3719 = vrot.slane %v3445, 1
  %v3720 = vor.u32 %v3442, %v3719
  %v3721 = vrot.slane %v3452, 1
  %v3722 = vor.u32 %v3449, %v3721
  %v3723 = vrot.slane %v3459, 1
  %v3724 = vor.u32 %v3456, %v3723
  %v3725 = vrot.slane %v3466, 1
  %v3726 = vor.u32 %v3463, %v3725
  %v3727 = vrot.slane %v3473, 1
  %v3728 = vor.u32 %v3470, %v3727
  %v3729 = vrot.slane %v3480, 1
  %v3730 = vor.u32 %v3477, %v3729
  %v3731 = vrot.slane %v3487, 1
  %v3732 = vor.u32 %v3484, %v3731
  %v3733 = vrot.slane %v3494, 1
  %v3734 = vor.u32 %v3491, %v3733
  %v3735 = vrot.slane %v3501, 1
  %v3736 = vor.u32 %v3498, %v3735
  %v3737 = vrot.slane %v3508, 1
  %v3738 = vor.u32 %v3505, %v3737
  %v3739 = vrot.slane %v3515, 1
  %v3740 = vor.u32 %v3512, %v3739
  %v3741 = vrot.slane %v3522, 1
  %v3742 = vor.u32 %v3519, %v3741
  %v3743 = vrot.slane %v3529, 1
  %v3744 = vor.u32 %v3526, %v3743
  %v3745 = vrot.slane %v3536, 1
  %v3746 = vor.u32 %v3533, %v3745
  %v3747 = vrot.slane %v3543, 1
  %v3748 = vor.u32 %v3540, %v3747
  %v3749 = vrot.slane %v3550, 1
  %v3750 = vor.u32 %v3547, %v3749
  %v3751 = vrot.slane %v3557, 1
  %v3752 = vor.u32 %v3554, %v3751
  %v3753 = vrot.slane %v3564, 1
  %v3754 = vor.u32 %v3561, %v3753
  %v3755 = vrot.slane %v3571, 1
  %v3756 = vor.u32 %v3568, %v3755
  %v3757 = vrot.slane %v3578, 1
  %v3758 = vor.u32 %v3575, %v3757
  %v3759 = vrot.slane %v3585, 1
  %v3760 = vor.u32 %v3582, %v3759
  %v3761 = vrot.slane %v3592, 1
  %v3762 = vor.u32 %v3589, %v3761
  %v3763 = vrot.slane %v3599, 1
  %v3764 = vor.u32 %v3596, %v3763
  %v3765 = vrot.slane %v3606, 1
  %v3766 = vor.u32 %v3603, %v3765
  %v3767 = vrot.slane %v3613, 1
  %v3768 = vor.u32 %v3610, %v3767
  %v3769 = vrot.slane %v3620, 1
  %v3770 = vor.u32 %v3617, %v3769
  %v3771 = vrot.slane %v3627, 1
  %v3772 = vor.u32 %v3624, %v3771
  %v3773 = vrot.slane %v3634, 1
  %v3774 = vor.u32 %v3631, %v3773
  %v3775 = vrot.slane %v3641, 1
  %v3776 = vor.u32 %v3638, %v3775
  %v3777 = vrot.slane %v3648, 1
  %v3778 = vor.u32 %v3645, %v3777
  %v3811 = vsel %vm830, %v3716, 0
  %v3812 = vsel %vm830, %v3718, 0
  %v3813 = vsel %vm830, %v3720, 0
  %v3814 = vsel %vm830, %v3722, 0
  %v3815 = vsel %vm830, %v3724, 0
  %v3816 = vsel %vm830, %v3726, 0
  %v3817 = vsel %vm830, %v3728, 0
  %v3818 = vsel %vm830, %v3730, 0
  %v3819 = vsel %vm830, %v3732, 0
  %v3820 = vsel %vm830, %v3734, 0
  %v3821 = vsel %vm830, %v3736, 0
  %v3822 = vsel %vm830, %v3738, 0
  %v3823 = vsel %vm830, %v3740, 0
  %v3824 = vsel %vm830, %v3742, 0
  %v3825 = vsel %vm830, %v3744, 0
  %v3826 = vsel %vm830, %v3746, 0
  %v3827 = vsel %vm830, %v3748, 0
  %v3828 = vsel %vm830, %v3750, 0
  %v3829 = vsel %vm830, %v3752, 0
  %v3830 = vsel %vm830, %v3754, 0
  %v3831 = vsel %vm830, %v3756, 0
  %v3832 = vsel %vm830, %v3758, 0
  %v3833 = vsel %vm830, %v3760, 0
  %v3834 = vsel %vm830, %v3762, 0
  %v3835 = vsel %vm830, %v3764, 0
  %v3836 = vsel %vm830, %v3766, 0
  %v3837 = vsel %vm830, %v3768, 0
  %v3838 = vsel %vm830, %v3770, 0
  %v3839 = vsel %vm830, %v3772, 0
  %v3840 = vsel %vm830, %v3774, 0
  %v3841 = vsel %vm830, %v3776, 0
  %v3842 = vsel %vm830, %v3778, 0
  %3843 = vrot.lane.b32.xlu0 %v3395, 64
  %v3844 = vpop.permute.xlu0 %3843
  %3845 = vrot.lane.b32.xlu0 %v3396, 64
  %v3846 = vpop.permute.xlu0 %3845
  %3847 = vrot.lane.b32.xlu0 %v3397, 64
  %v3848 = vpop.permute.xlu0 %3847
  %3849 = vrot.lane.b32.xlu0 %v3398, 64
  %v3850 = vpop.permute.xlu0 %3849
  %3851 = vrot.lane.b32.xlu0 %v3399, 64
  %v3852 = vpop.permute.xlu0 %3851
  %3853 = vrot.lane.b32.xlu0 %v3400, 64
  %v3854 = vpop.permute.xlu0 %3853
  %3855 = vrot.lane.b32.xlu0 %v3401, 64
  %v3856 = vpop.permute.xlu0 %3855
  %3857 = vrot.lane.b32.xlu0 %v3402, 64
  %v3858 = vpop.permute.xlu0 %3857
  %3859 = vrot.lane.b32.xlu0 %v3403, 64
  %v3860 = vpop.permute.xlu0 %3859
  %3861 = vrot.lane.b32.xlu0 %v3404, 64
  %v3862 = vpop.permute.xlu0 %3861
  %3863 = vrot.lane.b32.xlu0 %v3405, 64
  %v3864 = vpop.permute.xlu0 %3863
  %3865 = vrot.lane.b32.xlu0 %v3406, 64
  %v3866 = vpop.permute.xlu0 %3865
  %3867 = vrot.lane.b32.xlu0 %v3407, 64
  %v3868 = vpop.permute.xlu0 %3867
  %3869 = vrot.lane.b32.xlu0 %v3408, 64
  %v3870 = vpop.permute.xlu0 %3869
  %3871 = vrot.lane.b32.xlu0 %v3409, 64
  %v3872 = vpop.permute.xlu0 %3871
  %3873 = vrot.lane.b32.xlu0 %v3410, 64
  %v3874 = vpop.permute.xlu0 %3873
  %3875 = vrot.lane.b32.xlu0 %v3411, 64
  %v3876 = vpop.permute.xlu0 %3875
  %3877 = vrot.lane.b32.xlu0 %v3412, 64
  %v3878 = vpop.permute.xlu0 %3877
  %3879 = vrot.lane.b32.xlu0 %v3413, 64
  %v3880 = vpop.permute.xlu0 %3879
  %3881 = vrot.lane.b32.xlu0 %v3414, 64
  %v3882 = vpop.permute.xlu0 %3881
  %3883 = vrot.lane.b32.xlu0 %v3415, 64
  %v3884 = vpop.permute.xlu0 %3883
  %3885 = vrot.lane.b32.xlu0 %v3416, 64
  %v3886 = vpop.permute.xlu0 %3885
  %3887 = vrot.lane.b32.xlu0 %v3417, 64
  %v3888 = vpop.permute.xlu0 %3887
  %3889 = vrot.lane.b32.xlu0 %v3418, 64
  %v3890 = vpop.permute.xlu0 %3889
  %3891 = vrot.lane.b32.xlu0 %v3419, 64
  %v3892 = vpop.permute.xlu0 %3891
  %3893 = vrot.lane.b32.xlu0 %v3420, 64
  %v3894 = vpop.permute.xlu0 %3893
  %3895 = vrot.lane.b32.xlu0 %v3421, 64
  %v3896 = vpop.permute.xlu0 %3895
  %3897 = vrot.lane.b32.xlu0 %v3422, 64
  %v3898 = vpop.permute.xlu0 %3897
  %3899 = vrot.lane.b32.xlu0 %v3423, 64
  %v3900 = vpop.permute.xlu0 %3899
  %3901 = vrot.lane.b32.xlu0 %v3424, 64
  %v3902 = vpop.permute.xlu0 %3901
  %3903 = vrot.lane.b32.xlu0 %v3425, 64
  %v3904 = vpop.permute.xlu0 %3903
  %3905 = vrot.lane.b32.xlu0 %v3426, 64
  %v3906 = vpop.permute.xlu0 %3905
  %v3909 = vsel %vm927, %v3683, %v3844
  %v3912 = vsel %vm927, %v3684, %v3846
  %v3915 = vsel %vm927, %v3685, %v3848
  %v3918 = vsel %vm927, %v3686, %v3850
  %v3921 = vsel %vm927, %v3687, %v3852
  %v3924 = vsel %vm927, %v3688, %v3854
  %v3927 = vsel %vm927, %v3689, %v3856
  %v3930 = vsel %vm927, %v3690, %v3858
  %v3933 = vsel %vm927, %v3691, %v3860
  %v3936 = vsel %vm927, %v3692, %v3862
  %v3939 = vsel %vm927, %v3693, %v3864
  %v3942 = vsel %vm927, %v3694, %v3866
  %v3945 = vsel %vm927, %v3695, %v3868
  %v3948 = vsel %vm927, %v3696, %v3870
  %v3951 = vsel %vm927, %v3697, %v3872
  %v3954 = vsel %vm927, %v3698, %v3874
  %v3957 = vsel %vm927, %v3699, %v3876
  %v3960 = vsel %vm927, %v3700, %v3878
  %v3963 = vsel %vm927, %v3701, %v3880
  %v3966 = vsel %vm927, %v3702, %v3882
  %v3969 = vsel %vm927, %v3703, %v3884
  %v3972 = vsel %vm927, %v3704, %v3886
  %v3975 = vsel %vm927, %v3705, %v3888
  %v3978 = vsel %vm927, %v3706, %v3890
  %v3981 = vsel %vm927, %v3707, %v3892
  %v3984 = vsel %vm927, %v3708, %v3894
  %v3987 = vsel %vm927, %v3709, %v3896
  %v3990 = vsel %vm927, %v3710, %v3898
  %v3993 = vsel %vm927, %v3711, %v3900
  %v3996 = vsel %vm927, %v3712, %v3902
  %v3999 = vsel %vm927, %v3713, %v3904
  %v4002 = vsel %vm927, %v3714, %v3906
  %v4059 = vunpack.c.l.b16 %v3909
  %v4060 = vunpack.c.l.b16 %v3811
  %v4061 = vunpack.c.l.b16 %v3912
  %v4062 = vunpack.c.l.b16 %v3812
  %v4063 = vunpack.c.l.b16 %v3915
  %v4064 = vunpack.c.l.b16 %v3813
  %v4065 = vunpack.c.l.b16 %v3918
  %v4066 = vunpack.c.l.b16 %v3814
  %v4067 = vunpack.c.l.b16 %v3921
  %v4068 = vunpack.c.l.b16 %v3815
  %v4069 = vunpack.c.l.b16 %v3924
  %v4070 = vunpack.c.l.b16 %v3816
  %v4071 = vunpack.c.l.b16 %v3927
  %v4072 = vunpack.c.l.b16 %v3817
  %v4073 = vunpack.c.l.b16 %v3933
  %v4074 = vunpack.c.l.b16 %v3819
  %v4075 = vunpack.c.l.b16 %v3936
  %v4076 = vunpack.c.l.b16 %v3820
  %v4077 = vunpack.c.l.b16 %v3939
  %v4078 = vunpack.c.l.b16 %v3821
  %v4079 = vunpack.c.l.b16 %v3942
  %v4080 = vunpack.c.l.b16 %v3822
  %v4081 = vunpack.c.l.b16 %v3945
  %v4082 = vunpack.c.l.b16 %v3823
  %v4083 = vunpack.c.l.b16 %v3948
  %v4084 = vunpack.c.l.b16 %v3824
  %v4085 = vunpack.c.l.b16 %v3951
  %v4086 = vunpack.c.l.b16 %v3825
  %v4087 = vunpack.c.l.b16 %v3957
  %v4088 = vunpack.c.l.b16 %v3827
  %v4089 = vunpack.c.l.b16 %v3960
  %v4090 = vunpack.c.l.b16 %v3828
  %v4091 = vunpack.c.l.b16 %v3963
  %v4092 = vunpack.c.l.b16 %v3829
  %v4093 = vunpack.c.l.b16 %v3966
  %v4094 = vunpack.c.l.b16 %v3830
  %v4095 = vunpack.c.l.b16 %v3969
  %v4096 = vunpack.c.l.b16 %v3831
  %v4097 = vunpack.c.l.b16 %v3972
  %v4098 = vunpack.c.l.b16 %v3832
  %v4099 = vunpack.c.l.b16 %v3975
  %v4100 = vunpack.c.l.b16 %v3833
  %v4101 = vunpack.c.l.b16 %v3981
  %v4102 = vunpack.c.l.b16 %v3835
  %v4103 = vunpack.c.l.b16 %v3984
  %v4104 = vunpack.c.l.b16 %v3836
  %v4105 = vunpack.c.l.b16 %v3987
  %v4106 = vunpack.c.l.b16 %v3837
  %v4107 = vunpack.c.l.b16 %v3990
  %v4108 = vunpack.c.l.b16 %v3838
  %v4109 = vunpack.c.l.b16 %v3993
  %v4110 = vunpack.c.l.b16 %v3839
  %v4111 = vunpack.c.l.b16 %v3996
  %v4112 = vunpack.c.l.b16 %v3840
  %v4113 = vunpack.c.l.b16 %v3999
  %v4114 = vunpack.c.l.b16 %v3841
  %v4123 = vunpack.c.l.b16 %v3930
  %v4124 = vunpack.c.l.b16 %v3818
  %v4125 = vunpack.c.l.b16 %v3954
  %v4126 = vunpack.c.l.b16 %v3826
  %v4127 = vunpack.c.l.b16 %v3978
  %v4128 = vunpack.c.l.b16 %v3834
  %v4129 = vunpack.c.l.b16 %v4002
  %v4130 = vunpack.c.l.b16 %v3842
  %v4131 = vpack.c.b16 %v4061, %v4059
  %v4132 = vpack.c.b16 %v4062, %v4060
  %v4133 = vpack.c.b16 %v4065, %v4063
  %v4134 = vpack.c.b16 %v4066, %v4064
  %v4135 = vpack.c.b16 %v4069, %v4067
  %v4136 = vpack.c.b16 %v4070, %v4068
  %v4137 = vpack.c.b16 %v4123, %v4071
  %v4138 = vpack.c.b16 %v4124, %v4072
  %v4139 = vpack.c.b16 %v4075, %v4073
  %v4140 = vpack.c.b16 %v4076, %v4074
  %v4141 = vpack.c.b16 %v4079, %v4077
  %v4142 = vpack.c.b16 %v4080, %v4078
  %v4143 = vpack.c.b16 %v4083, %v4081
  %v4144 = vpack.c.b16 %v4084, %v4082
  %v4145 = vpack.c.b16 %v4125, %v4085
  %v4146 = vpack.c.b16 %v4126, %v4086
  %v4147 = vpack.c.b16 %v4089, %v4087
  %v4148 = vpack.c.b16 %v4090, %v4088
  %v4149 = vpack.c.b16 %v4093, %v4091
  %v4150 = vpack.c.b16 %v4094, %v4092
  %v4151 = vpack.c.b16 %v4097, %v4095
  %v4152 = vpack.c.b16 %v4098, %v4096
  %v4153 = vpack.c.b16 %v4127, %v4099
  %v4154 = vpack.c.b16 %v4128, %v4100
  %v4155 = vpack.c.b16 %v4103, %v4101
  %v4156 = vpack.c.b16 %v4104, %v4102
  %v4157 = vpack.c.b16 %v4107, %v4105
  %v4158 = vpack.c.b16 %v4108, %v4106
  %v4159 = vpack.c.b16 %v4111, %v4109
  %v4160 = vpack.c.b16 %v4112, %v4110
  %v4161 = vpack.c.b16 %v4129, %v4113
  %v4162 = vpack.c.b16 %v4130, %v4114
  %v4203 = vunpack.c.l.b16 %v149
  %v4204 = vunpack.c.l.b16 %v150
  %v4205 = vunpack.c.l.b16 %v151
  %v4206 = vunpack.c.l.b16 %v152
  %v4207 = vunpack.c.l.b16 %v153
  %v4208 = vunpack.c.l.b16 %v154
  %v4209 = vunpack.c.l.b16 %v155
  %v4210 = vunpack.c.l.b16 %v156
  %v4211 = vunpack.c.l.b16 %v157
  %v4212 = vunpack.c.l.b16 %v158
  %v4213 = vunpack.c.l.b16 %v159
  %v4214 = vunpack.c.l.b16 %v160
  %v4215 = vunpack.c.l.b16 %v161
  %v4216 = vunpack.c.l.b16 %v162
  %v4217 = vunpack.c.l.b16 %v163
  %v4218 = vunpack.c.l.b16 %v164
  %v4219 = vunpack.c.l.b16 %v165
  %v4220 = vunpack.c.l.b16 %v166
  %v4221 = vunpack.c.l.b16 %v167
  %v4222 = vunpack.c.l.b16 %v168
  %v4223 = vunpack.c.l.b16 %v169
  %v4224 = vunpack.c.l.b16 %v170
  %v4225 = vunpack.c.l.b16 %v171
  %v4226 = vunpack.c.l.b16 %v172
  %v4227 = vpack.c.b16 %v4204, %v4203
  %v4228 = vpack.c.b16 %v4206, %v4205
  %v4229 = vpack.c.b16 %v4208, %v4207
  %v4230 = vpack.c.b16 %v4210, %v4209
  %v4231 = vpack.c.b16 %v4212, %v4211
  %v4232 = vpack.c.b16 %v4214, %v4213
  %v4233 = vpack.c.b16 %v4216, %v4215
  %v4234 = vpack.c.b16 %v4218, %v4217
  %v4235 = vpack.c.b16 %v4220, %v4219
  %v4236 = vpack.c.b16 %v4222, %v4221
  %v4237 = vpack.c.b16 %v4224, %v4223
  %v4238 = vpack.c.b16 %v4226, %v4225
  %v4252 = vsel %vm927, %v4132, 0
  %v4255 = vsel %vm927, %v4134, 0
  %v4258 = vsel %vm927, %v4136, 0
  %v4261 = vsel %vm927, %v4138, 0
  %v4264 = vsel %vm927, %v4140, 0
  %v4267 = vsel %vm927, %v4142, 0
  %v4270 = vsel %vm927, %v4144, 0
  %v4273 = vsel %vm927, %v4146, 0
  %v4276 = vsel %vm927, %v4148, 0
  %v4279 = vsel %vm927, %v4150, 0
  %v4282 = vsel %vm927, %v4152, 0
  %v4285 = vsel %vm927, %v4154, 0
  %v4288 = vsel %vm927, %v4156, 0
  %v4291 = vsel %vm927, %v4158, 0
  %v4294 = vsel %vm927, %v4160, 0
  %v4297 = vsel %vm927, %v4162, 0
  %4299 = vmatpush.bf16.msra.mxu0 %v4234
  %4300 = vmatpush.bf16.msra.mxu0 %v4233
  %4301 = vmatpush.bf16.msra.mxu0 %v4232
  %4302 = vmatpush.bf16.msra.mxu0 %v4231
  %4303 = vmatpush.bf16.msra.mxu0 %v4230
  %4304 = vmatpush.bf16.msra.mxu0 %v4229
  %4305 = vmatpush.bf16.msra.mxu0 %v4228
  %4306 = vmatpush.bf16.msra.mxu0 %v4227
  %4307 = vmatmul.bf16.gmra.mxu0 %v4131
  %v4308 = vpop.f32.mrf.mxu0
  %v4309 = vadd.f32 0.0, %v4308
  %v4310 = vpop.f32.mrf.mxu0
  %v4311 = vadd.f32 0.0, %v4310
  %4312 = vmatmul.bf16.gmra.mxu0 %v4133
  %v4313 = vpop.f32.mrf.mxu0
  %v4314 = vadd.f32 0.0, %v4313
  %v4315 = vpop.f32.mrf.mxu0
  %v4316 = vadd.f32 0.0, %v4315
  %4317 = vmatmul.bf16.gmra.mxu0 %v4135
  %v4318 = vpop.f32.mrf.mxu0
  %v4319 = vadd.f32 0.0, %v4318
  %v4320 = vpop.f32.mrf.mxu0
  %v4321 = vadd.f32 0.0, %v4320
  %4322 = vmatmul.bf16.gmra.mxu0 %v4137
  %v4323 = vpop.f32.mrf.mxu0
  %v4324 = vadd.f32 0.0, %v4323
  %v4325 = vpop.f32.mrf.mxu0
  %v4326 = vadd.f32 0.0, %v4325
  %4327 = vmatmul.bf16.gmra.mxu0 %v4139
  %v4328 = vpop.f32.mrf.mxu0
  %v4329 = vadd.f32 0.0, %v4328
  %v4330 = vpop.f32.mrf.mxu0
  %v4331 = vadd.f32 0.0, %v4330
  %4332 = vmatmul.bf16.gmra.mxu0 %v4141
  %v4333 = vpop.f32.mrf.mxu0
  %v4334 = vadd.f32 0.0, %v4333
  %v4335 = vpop.f32.mrf.mxu0
  %v4336 = vadd.f32 0.0, %v4335
  %4337 = vmatmul.bf16.gmra.mxu0 %v4143
  %v4338 = vpop.f32.mrf.mxu0
  %v4339 = vadd.f32 0.0, %v4338
  %v4340 = vpop.f32.mrf.mxu0
  %v4341 = vadd.f32 0.0, %v4340
  %4342 = vmatmul.bf16.gmra.mxu0 %v4145
  %v4343 = vpop.f32.mrf.mxu0
  %v4344 = vadd.f32 0.0, %v4343
  %v4345 = vpop.f32.mrf.mxu0
  %v4346 = vadd.f32 0.0, %v4345
  %4347 = vmatmul.bf16.gmra.mxu0 %v4147
  %v4348 = vpop.f32.mrf.mxu0
  %v4349 = vadd.f32 0.0, %v4348
  %v4350 = vpop.f32.mrf.mxu0
  %v4351 = vadd.f32 0.0, %v4350
  %4352 = vmatmul.bf16.gmra.mxu0 %v4149
  %v4353 = vpop.f32.mrf.mxu0
  %v4354 = vadd.f32 0.0, %v4353
  %v4355 = vpop.f32.mrf.mxu0
  %v4356 = vadd.f32 0.0, %v4355
  %4357 = vmatmul.bf16.gmra.mxu0 %v4151
  %v4358 = vpop.f32.mrf.mxu0
  %v4359 = vadd.f32 0.0, %v4358
  %v4360 = vpop.f32.mrf.mxu0
  %v4361 = vadd.f32 0.0, %v4360
  %4362 = vmatmul.bf16.gmra.mxu0 %v4153
  %v4363 = vpop.f32.mrf.mxu0
  %v4364 = vadd.f32 0.0, %v4363
  %v4365 = vpop.f32.mrf.mxu0
  %v4366 = vadd.f32 0.0, %v4365
  %4367 = vmatmul.bf16.gmra.mxu0 %v4155
  %v4368 = vpop.f32.mrf.mxu0
  %v4369 = vadd.f32 0.0, %v4368
  %v4370 = vpop.f32.mrf.mxu0
  %v4371 = vadd.f32 0.0, %v4370
  %4372 = vmatmul.bf16.gmra.mxu0 %v4157
  %v4373 = vpop.f32.mrf.mxu0
  %v4374 = vadd.f32 0.0, %v4373
  %v4375 = vpop.f32.mrf.mxu0
  %v4376 = vadd.f32 0.0, %v4375
  %4377 = vmatmul.bf16.gmra.mxu0 %v4159
  %v4378 = vpop.f32.mrf.mxu0
  %v4379 = vadd.f32 0.0, %v4378
  %v4380 = vpop.f32.mrf.mxu0
  %v4381 = vadd.f32 0.0, %v4380
  %4382 = vmatmul.bf16.gmra.mxu0 %v4161
  %v4383 = vpop.f32.mrf.mxu0
  %v4384 = vadd.f32 0.0, %v4383
  %v4385 = vpop.f32.mrf.mxu0
  %v4386 = vadd.f32 0.0, %v4385
  %4387 = vdwg.mxu0
  %4388 = vmatpush.bf16.msra.mxu0 0
  %4389 = vmatpush.bf16.msra.mxu0 0
  %4390 = vmatpush.bf16.msra.mxu0 0
  %4391 = vmatpush.bf16.msra.mxu0 0
  %4392 = vmatpush.bf16.msra.mxu0 %v4238
  %4393 = vmatpush.bf16.msra.mxu0 %v4237
  %4394 = vmatpush.bf16.msra.mxu0 %v4236
  %4395 = vmatpush.bf16.msra.mxu0 %v4235
  %4396 = vmatmul.bf16.gmra.mxu0 %v4252
  %v4397 = vpop.f32.mrf.mxu0
  %v4398 = vadd.f32 %v4309, %v4397
  %v4399 = vpop.f32.mrf.mxu0
  %v4400 = vadd.f32 %v4311, %v4399
  %4401 = vmatmul.bf16.gmra.mxu0 %v4255
  %v4402 = vpop.f32.mrf.mxu0
  %v4403 = vadd.f32 %v4314, %v4402
  %v4404 = vpop.f32.mrf.mxu0
  %v4405 = vadd.f32 %v4316, %v4404
  %4406 = vmatmul.bf16.gmra.mxu0 %v4258
  %v4407 = vpop.f32.mrf.mxu0
  %v4408 = vadd.f32 %v4319, %v4407
  %v4409 = vpop.f32.mrf.mxu0
  %v4410 = vadd.f32 %v4321, %v4409
  %4411 = vmatmul.bf16.gmra.mxu0 %v4261
  %v4412 = vpop.f32.mrf.mxu0
  %v4413 = vadd.f32 %v4324, %v4412
  %v4414 = vpop.f32.mrf.mxu0
  %v4415 = vadd.f32 %v4326, %v4414
  %4416 = vmatmul.bf16.gmra.mxu0 %v4264
  %v4417 = vpop.f32.mrf.mxu0
  %v4418 = vadd.f32 %v4329, %v4417
  %v4419 = vpop.f32.mrf.mxu0
  %v4420 = vadd.f32 %v4331, %v4419
  %4421 = vmatmul.bf16.gmra.mxu0 %v4267
  %v4422 = vpop.f32.mrf.mxu0
  %v4423 = vadd.f32 %v4334, %v4422
  %v4424 = vpop.f32.mrf.mxu0
  %v4425 = vadd.f32 %v4336, %v4424
  %4426 = vmatmul.bf16.gmra.mxu0 %v4270
  %v4427 = vpop.f32.mrf.mxu0
  %v4428 = vadd.f32 %v4339, %v4427
  %v4429 = vpop.f32.mrf.mxu0
  %v4430 = vadd.f32 %v4341, %v4429
  %4431 = vmatmul.bf16.gmra.mxu0 %v4273
  %v4432 = vpop.f32.mrf.mxu0
  %v4433 = vadd.f32 %v4344, %v4432
  %v4434 = vpop.f32.mrf.mxu0
  %v4435 = vadd.f32 %v4346, %v4434
  %4436 = vmatmul.bf16.gmra.mxu0 %v4276
  %v4437 = vpop.f32.mrf.mxu0
  %v4438 = vadd.f32 %v4349, %v4437
  %v4439 = vpop.f32.mrf.mxu0
  %v4440 = vadd.f32 %v4351, %v4439
  %4441 = vmatmul.bf16.gmra.mxu0 %v4279
  %v4442 = vpop.f32.mrf.mxu0
  %v4443 = vadd.f32 %v4354, %v4442
  %v4444 = vpop.f32.mrf.mxu0
  %v4445 = vadd.f32 %v4356, %v4444
  %4446 = vmatmul.bf16.gmra.mxu0 %v4282
  %v4447 = vpop.f32.mrf.mxu0
  %v4448 = vadd.f32 %v4359, %v4447
  %v4449 = vpop.f32.mrf.mxu0
  %v4450 = vadd.f32 %v4361, %v4449
  %4451 = vmatmul.bf16.gmra.mxu0 %v4285
  %v4452 = vpop.f32.mrf.mxu0
  %v4453 = vadd.f32 %v4364, %v4452
  %v4454 = vpop.f32.mrf.mxu0
  %v4455 = vadd.f32 %v4366, %v4454
  %4456 = vmatmul.bf16.gmra.mxu0 %v4288
  %v4457 = vpop.f32.mrf.mxu0
  %v4458 = vadd.f32 %v4369, %v4457
  %v4459 = vpop.f32.mrf.mxu0
  %v4460 = vadd.f32 %v4371, %v4459
  %4461 = vmatmul.bf16.gmra.mxu0 %v4291
  %v4462 = vpop.f32.mrf.mxu0
  %v4463 = vadd.f32 %v4374, %v4462
  %v4464 = vpop.f32.mrf.mxu0
  %v4465 = vadd.f32 %v4376, %v4464
  %4466 = vmatmul.bf16.gmra.mxu0 %v4294
  %v4467 = vpop.f32.mrf.mxu0
  %v4468 = vadd.f32 %v4379, %v4467
  %v4469 = vpop.f32.mrf.mxu0
  %v4470 = vadd.f32 %v4381, %v4469
  %4471 = vmatmul.bf16.gmra.mxu0 %v4297
  %v4472 = vpop.f32.mrf.mxu0
  %v4473 = vadd.f32 %v4384, %v4472
  %v4474 = vpop.f32.mrf.mxu0
  %v4475 = vadd.f32 %v4386, %v4474
  %4476 = vdwg.mxu0
  %v4477 = vpack.c.b16 %v4059, %v1081
  %v4478 = vpack.c.b16 %v4060, %v1081
  %v4479 = vpack.c.b16 %v4063, %v4061
  %v4480 = vpack.c.b16 %v4064, %v4062
  %v4481 = vpack.c.b16 %v4067, %v4065
  %v4482 = vpack.c.b16 %v4068, %v4066
  %v4483 = vpack.c.b16 %v4071, %v4069
  %v4484 = vpack.c.b16 %v4072, %v4070
  %v4485 = vpack.c.b16 %v4073, %v1081
  %v4486 = vpack.c.b16 %v4074, %v1081
  %v4487 = vpack.c.b16 %v4077, %v4075
  %v4488 = vpack.c.b16 %v4078, %v4076
  %v4489 = vpack.c.b16 %v4081, %v4079
  %v4490 = vpack.c.b16 %v4082, %v4080
  %v4491 = vpack.c.b16 %v4085, %v4083
  %v4492 = vpack.c.b16 %v4086, %v4084
  %v4493 = vpack.c.b16 %v4087, %v1081
  %v4494 = vpack.c.b16 %v4088, %v1081
  %v4495 = vpack.c.b16 %v4091, %v4089
  %v4496 = vpack.c.b16 %v4092, %v4090
  %v4497 = vpack.c.b16 %v4095, %v4093
  %v4498 = vpack.c.b16 %v4096, %v4094
  %v4499 = vpack.c.b16 %v4099, %v4097
  %v4500 = vpack.c.b16 %v4100, %v4098
  %v4501 = vpack.c.b16 %v4101, %v1081
  %v4502 = vpack.c.b16 %v4102, %v1081
  %v4503 = vpack.c.b16 %v4105, %v4103
  %v4504 = vpack.c.b16 %v4106, %v4104
  %v4505 = vpack.c.b16 %v4109, %v4107
  %v4506 = vpack.c.b16 %v4110, %v4108
  %v4507 = vpack.c.b16 %v4113, %v4111
  %v4508 = vpack.c.b16 %v4114, %v4112
  %v4549 = vunpack.c.l.b16 %v125
  %v4550 = vunpack.c.l.b16 %v126
  %v4551 = vunpack.c.l.b16 %v127
  %v4552 = vunpack.c.l.b16 %v128
  %v4553 = vunpack.c.l.b16 %v129
  %v4554 = vunpack.c.l.b16 %v130
  %v4555 = vunpack.c.l.b16 %v131
  %v4556 = vunpack.c.l.b16 %v132
  %v4557 = vunpack.c.l.b16 %v133
  %v4558 = vunpack.c.l.b16 %v134
  %v4559 = vunpack.c.l.b16 %v135
  %v4560 = vunpack.c.l.b16 %v136
  %v4561 = vunpack.c.l.b16 %v137
  %v4562 = vunpack.c.l.b16 %v138
  %v4563 = vunpack.c.l.b16 %v139
  %v4564 = vunpack.c.l.b16 %v140
  %v4565 = vunpack.c.l.b16 %v141
  %v4566 = vunpack.c.l.b16 %v142
  %v4567 = vunpack.c.l.b16 %v143
  %v4568 = vunpack.c.l.b16 %v144
  %v4569 = vunpack.c.l.b16 %v145
  %v4570 = vunpack.c.l.b16 %v146
  %v4571 = vunpack.c.l.b16 %v147
  %v4572 = vunpack.c.l.b16 %v148
  %v4573 = vpack.c.b16 %v4550, %v4549
  %v4574 = vpack.c.b16 %v4552, %v4551
  %v4575 = vpack.c.b16 %v4554, %v4553
  %v4576 = vpack.c.b16 %v4556, %v4555
  %v4577 = vpack.c.b16 %v4558, %v4557
  %v4578 = vpack.c.b16 %v4560, %v4559
  %v4579 = vpack.c.b16 %v4562, %v4561
  %v4580 = vpack.c.b16 %v4564, %v4563
  %v4581 = vpack.c.b16 %v4566, %v4565
  %v4582 = vpack.c.b16 %v4568, %v4567
  %v4583 = vpack.c.b16 %v4570, %v4569
  %v4584 = vpack.c.b16 %v4572, %v4571
  %v4598 = vsel %vm927, %v4478, 0
  %v4601 = vsel %vm927, %v4480, 0
  %v4604 = vsel %vm927, %v4482, 0
  %v4607 = vsel %vm927, %v4484, 0
  %v4610 = vsel %vm927, %v4486, 0
  %v4613 = vsel %vm927, %v4488, 0
  %v4616 = vsel %vm927, %v4490, 0
  %v4619 = vsel %vm927, %v4492, 0
  %v4622 = vsel %vm927, %v4494, 0
  %v4625 = vsel %vm927, %v4496, 0
  %v4628 = vsel %vm927, %v4498, 0
  %v4631 = vsel %vm927, %v4500, 0
  %v4634 = vsel %vm927, %v4502, 0
  %v4637 = vsel %vm927, %v4504, 0
  %v4640 = vsel %vm927, %v4506, 0
  %v4643 = vsel %vm927, %v4508, 0
  %4645 = vmatpush.bf16.msra.mxu0 %v4580
  %4646 = vmatpush.bf16.msra.mxu0 %v4579
  %4647 = vmatpush.bf16.msra.mxu0 %v4578
  %4648 = vmatpush.bf16.msra.mxu0 %v4577
  %4649 = vmatpush.bf16.msra.mxu0 %v4576
  %4650 = vmatpush.bf16.msra.mxu0 %v4575
  %4651 = vmatpush.bf16.msra.mxu0 %v4574
  %4652 = vmatpush.bf16.msra.mxu0 %v4573
  %4653 = vmatmul.bf16.gmra.mxu0 %v4477
  %v4654 = vpop.f32.mrf.mxu0
  %v4655 = vadd.f32 %v4398, %v4654
  %v4656 = vpop.f32.mrf.mxu0
  %v4657 = vadd.f32 %v4400, %v4656
  %4658 = vmatmul.bf16.gmra.mxu0 %v4479
  %v4659 = vpop.f32.mrf.mxu0
  %v4660 = vadd.f32 %v4403, %v4659
  %v4661 = vpop.f32.mrf.mxu0
  %v4662 = vadd.f32 %v4405, %v4661
  %4663 = vmatmul.bf16.gmra.mxu0 %v4481
  %v4664 = vpop.f32.mrf.mxu0
  %v4665 = vadd.f32 %v4408, %v4664
  %v4666 = vpop.f32.mrf.mxu0
  %v4667 = vadd.f32 %v4410, %v4666
  %4668 = vmatmul.bf16.gmra.mxu0 %v4483
  %v4669 = vpop.f32.mrf.mxu0
  %v4670 = vadd.f32 %v4413, %v4669
  %v4671 = vpop.f32.mrf.mxu0
  %v4672 = vadd.f32 %v4415, %v4671
  %4673 = vmatmul.bf16.gmra.mxu0 %v4485
  %v4674 = vpop.f32.mrf.mxu0
  %v4675 = vadd.f32 %v4418, %v4674
  %v4676 = vpop.f32.mrf.mxu0
  %v4677 = vadd.f32 %v4420, %v4676
  %4678 = vmatmul.bf16.gmra.mxu0 %v4487
  %v4679 = vpop.f32.mrf.mxu0
  %v4680 = vadd.f32 %v4423, %v4679
  %v4681 = vpop.f32.mrf.mxu0
  %v4682 = vadd.f32 %v4425, %v4681
  %4683 = vmatmul.bf16.gmra.mxu0 %v4489
  %v4684 = vpop.f32.mrf.mxu0
  %v4685 = vadd.f32 %v4428, %v4684
  %v4686 = vpop.f32.mrf.mxu0
  %v4687 = vadd.f32 %v4430, %v4686
  %4688 = vmatmul.bf16.gmra.mxu0 %v4491
  %v4689 = vpop.f32.mrf.mxu0
  %v4690 = vadd.f32 %v4433, %v4689
  %v4691 = vpop.f32.mrf.mxu0
  %v4692 = vadd.f32 %v4435, %v4691
  %4693 = vmatmul.bf16.gmra.mxu0 %v4493
  %v4694 = vpop.f32.mrf.mxu0
  %v4695 = vadd.f32 %v4438, %v4694
  %v4696 = vpop.f32.mrf.mxu0
  %v4697 = vadd.f32 %v4440, %v4696
  %4698 = vmatmul.bf16.gmra.mxu0 %v4495
  %v4699 = vpop.f32.mrf.mxu0
  %v4700 = vadd.f32 %v4443, %v4699
  %v4701 = vpop.f32.mrf.mxu0
  %v4702 = vadd.f32 %v4445, %v4701
  %4703 = vmatmul.bf16.gmra.mxu0 %v4497
  %v4704 = vpop.f32.mrf.mxu0
  %v4705 = vadd.f32 %v4448, %v4704
  %v4706 = vpop.f32.mrf.mxu0
  %v4707 = vadd.f32 %v4450, %v4706
  %4708 = vmatmul.bf16.gmra.mxu0 %v4499
  %v4709 = vpop.f32.mrf.mxu0
  %v4710 = vadd.f32 %v4453, %v4709
  %v4711 = vpop.f32.mrf.mxu0
  %v4712 = vadd.f32 %v4455, %v4711
  %4713 = vmatmul.bf16.gmra.mxu0 %v4501
  %v4714 = vpop.f32.mrf.mxu0
  %v4715 = vadd.f32 %v4458, %v4714
  %v4716 = vpop.f32.mrf.mxu0
  %v4717 = vadd.f32 %v4460, %v4716
  %4718 = vmatmul.bf16.gmra.mxu0 %v4503
  %v4719 = vpop.f32.mrf.mxu0
  %v4720 = vadd.f32 %v4463, %v4719
  %v4721 = vpop.f32.mrf.mxu0
  %v4722 = vadd.f32 %v4465, %v4721
  %4723 = vmatmul.bf16.gmra.mxu0 %v4505
  %v4724 = vpop.f32.mrf.mxu0
  %v4725 = vadd.f32 %v4468, %v4724
  %v4726 = vpop.f32.mrf.mxu0
  %v4727 = vadd.f32 %v4470, %v4726
  %4728 = vmatmul.bf16.gmra.mxu0 %v4507
  %v4729 = vpop.f32.mrf.mxu0
  %v4730 = vadd.f32 %v4473, %v4729
  %v4731 = vpop.f32.mrf.mxu0
  %v4732 = vadd.f32 %v4475, %v4731
  %4733 = vdwg.mxu0
  %4734 = vmatpush.bf16.msra.mxu0 0
  %4735 = vmatpush.bf16.msra.mxu0 0
  %4736 = vmatpush.bf16.msra.mxu0 0
  %4737 = vmatpush.bf16.msra.mxu0 0
  %4738 = vmatpush.bf16.msra.mxu0 %v4584
  %4739 = vmatpush.bf16.msra.mxu0 %v4583
  %4740 = vmatpush.bf16.msra.mxu0 %v4582
  %4741 = vmatpush.bf16.msra.mxu0 %v4581
  %4742 = vmatmul.bf16.gmra.mxu0 %v4598
  %v4743 = vpop.f32.mrf.mxu0
  %v4744 = vadd.f32 %v4655, %v4743
  %v4745 = vpop.f32.mrf.mxu0
  %v4746 = vadd.f32 %v4657, %v4745
  %4747 = vmatmul.bf16.gmra.mxu0 %v4601
  %v4748 = vpop.f32.mrf.mxu0
  %v4749 = vadd.f32 %v4660, %v4748
  %v4750 = vpop.f32.mrf.mxu0
  %v4751 = vadd.f32 %v4662, %v4750
  %4752 = vmatmul.bf16.gmra.mxu0 %v4604
  %v4753 = vpop.f32.mrf.mxu0
  %v4754 = vadd.f32 %v4665, %v4753
  %v4755 = vpop.f32.mrf.mxu0
  %v4756 = vadd.f32 %v4667, %v4755
  %4757 = vmatmul.bf16.gmra.mxu0 %v4607
  %v4758 = vpop.f32.mrf.mxu0
  %v4759 = vadd.f32 %v4670, %v4758
  %v4760 = vpop.f32.mrf.mxu0
  %v4761 = vadd.f32 %v4672, %v4760
  %4762 = vmatmul.bf16.gmra.mxu0 %v4610
  %v4763 = vpop.f32.mrf.mxu0
  %v4764 = vadd.f32 %v4675, %v4763
  %v4765 = vpop.f32.mrf.mxu0
  %v4766 = vadd.f32 %v4677, %v4765
  %4767 = vmatmul.bf16.gmra.mxu0 %v4613
  %v4768 = vpop.f32.mrf.mxu0
  %v4769 = vadd.f32 %v4680, %v4768
  %v4770 = vpop.f32.mrf.mxu0
  %v4771 = vadd.f32 %v4682, %v4770
  %4772 = vmatmul.bf16.gmra.mxu0 %v4616
  %v4773 = vpop.f32.mrf.mxu0
  %v4774 = vadd.f32 %v4685, %v4773
  %v4775 = vpop.f32.mrf.mxu0
  %v4776 = vadd.f32 %v4687, %v4775
  %4777 = vmatmul.bf16.gmra.mxu0 %v4619
  %v4778 = vpop.f32.mrf.mxu0
  %v4779 = vadd.f32 %v4690, %v4778
  %v4780 = vpop.f32.mrf.mxu0
  %v4781 = vadd.f32 %v4692, %v4780
  %4782 = vmatmul.bf16.gmra.mxu0 %v4622
  %v4783 = vpop.f32.mrf.mxu0
  %v4784 = vadd.f32 %v4695, %v4783
  %v4785 = vpop.f32.mrf.mxu0
  %v4786 = vadd.f32 %v4697, %v4785
  %4787 = vmatmul.bf16.gmra.mxu0 %v4625
  %v4788 = vpop.f32.mrf.mxu0
  %v4789 = vadd.f32 %v4700, %v4788
  %v4790 = vpop.f32.mrf.mxu0
  %v4791 = vadd.f32 %v4702, %v4790
  %4792 = vmatmul.bf16.gmra.mxu0 %v4628
  %v4793 = vpop.f32.mrf.mxu0
  %v4794 = vadd.f32 %v4705, %v4793
  %v4795 = vpop.f32.mrf.mxu0
  %v4796 = vadd.f32 %v4707, %v4795
  %4797 = vmatmul.bf16.gmra.mxu0 %v4631
  %v4798 = vpop.f32.mrf.mxu0
  %v4799 = vadd.f32 %v4710, %v4798
  %v4800 = vpop.f32.mrf.mxu0
  %v4801 = vadd.f32 %v4712, %v4800
  %4802 = vmatmul.bf16.gmra.mxu0 %v4634
  %v4803 = vpop.f32.mrf.mxu0
  %v4804 = vadd.f32 %v4715, %v4803
  %v4805 = vpop.f32.mrf.mxu0
  %v4806 = vadd.f32 %v4717, %v4805
  %4807 = vmatmul.bf16.gmra.mxu0 %v4637
  %v4808 = vpop.f32.mrf.mxu0
  %v4809 = vadd.f32 %v4720, %v4808
  %v4810 = vpop.f32.mrf.mxu0
  %v4811 = vadd.f32 %v4722, %v4810
  %4812 = vmatmul.bf16.gmra.mxu0 %v4640
  %v4813 = vpop.f32.mrf.mxu0
  %v4814 = vadd.f32 %v4725, %v4813
  %v4815 = vpop.f32.mrf.mxu0
  %v4816 = vadd.f32 %v4727, %v4815
  %4817 = vmatmul.bf16.gmra.mxu0 %v4643
  %v4818 = vpop.f32.mrf.mxu0
  %v4819 = vadd.f32 %v4730, %v4818
  %v4820 = vpop.f32.mrf.mxu0
  %v4821 = vadd.f32 %v4732, %v4820
  %4822 = vdwg.mxu0
  %v4823 = vpack.c.b16 %v1081, %v4123
  %v4824 = vpack.c.b16 %v1081, %v4124
  %v4825 = vpack.c.b16 %v1081, %v4125
  %v4826 = vpack.c.b16 %v1081, %v4126
  %v4827 = vpack.c.b16 %v1081, %v4127
  %v4828 = vpack.c.b16 %v1081, %v4128
  %v4829 = vpack.c.b16 %v1081, %v4129
  %v4830 = vpack.c.b16 %v1081, %v4130
  %v4859 = vunpack.c.l.b16 %v173
  %v4860 = vunpack.c.l.b16 %v174
  %v4861 = vunpack.c.l.b16 %v175
  %v4862 = vunpack.c.l.b16 %v176
  %v4863 = vunpack.c.l.b16 %v177
  %v4864 = vunpack.c.l.b16 %v178
  %v4865 = vunpack.c.l.b16 %v179
  %v4866 = vunpack.c.l.b16 %v180
  %v4867 = vunpack.c.l.b16 %v181
  %v4868 = vunpack.c.l.b16 %v182
  %v4869 = vunpack.c.l.b16 %v183
  %v4870 = vunpack.c.l.b16 %v184
  %v4871 = vunpack.c.l.b16 %v185
  %v4872 = vunpack.c.l.b16 %v186
  %v4873 = vunpack.c.l.b16 %v187
  %v4874 = vunpack.c.l.b16 %v188
  %v4875 = vunpack.c.l.b16 %v189
  %v4876 = vunpack.c.l.b16 %v190
  %v4877 = vunpack.c.l.b16 %v191
  %v4878 = vunpack.c.l.b16 %v192
  %v4879 = vunpack.c.l.b16 %v193
  %v4880 = vunpack.c.l.b16 %v194
  %v4881 = vunpack.c.l.b16 %v195
  %v4882 = vunpack.c.l.b16 %v196
  %v4883 = vpack.c.b16 %v4860, %v4859
  %v4884 = vpack.c.b16 %v4862, %v4861
  %v4885 = vpack.c.b16 %v4864, %v4863
  %v4886 = vpack.c.b16 %v4866, %v4865
  %v4887 = vpack.c.b16 %v4868, %v4867
  %v4888 = vpack.c.b16 %v4870, %v4869
  %v4889 = vpack.c.b16 %v4872, %v4871
  %v4890 = vpack.c.b16 %v4874, %v4873
  %v4891 = vpack.c.b16 %v4876, %v4875
  %v4892 = vpack.c.b16 %v4878, %v4877
  %v4893 = vpack.c.b16 %v4880, %v4879
  %v4894 = vpack.c.b16 %v4882, %v4881
  %v4908 = vsel %vm927, %v4824, 0
  %v4911 = vsel %vm927, %v4826, 0
  %v4914 = vsel %vm927, %v4828, 0
  %v4917 = vsel %vm927, %v4830, 0
  %4919 = vmatpush.bf16.msra.mxu0 %v4890
  %4920 = vmatpush.bf16.msra.mxu0 %v4889
  %4921 = vmatpush.bf16.msra.mxu0 %v4888
  %4922 = vmatpush.bf16.msra.mxu0 %v4887
  %4923 = vmatpush.bf16.msra.mxu0 %v4886
  %4924 = vmatpush.bf16.msra.mxu0 %v4885
  %4925 = vmatpush.bf16.msra.mxu0 %v4884
  %4926 = vmatpush.bf16.msra.mxu0 %v4883
  %4927 = vmatmul.bf16.gmra.mxu0 %v4479
  %v4928 = vpop.f32.mrf.mxu0
  %v4929 = vadd.f32 0.0, %v4928
  %v4930 = vpop.f32.mrf.mxu0
  %v4931 = vadd.f32 0.0, %v4930
  %4932 = vmatmul.bf16.gmra.mxu0 %v4481
  %v4933 = vpop.f32.mrf.mxu0
  %v4934 = vadd.f32 0.0, %v4933
  %v4935 = vpop.f32.mrf.mxu0
  %v4936 = vadd.f32 0.0, %v4935
  %4937 = vmatmul.bf16.gmra.mxu0 %v4483
  %v4938 = vpop.f32.mrf.mxu0
  %v4939 = vadd.f32 0.0, %v4938
  %v4940 = vpop.f32.mrf.mxu0
  %v4941 = vadd.f32 0.0, %v4940
  %4942 = vmatmul.bf16.gmra.mxu0 %v4823
  %v4943 = vpop.f32.mrf.mxu0
  %v4944 = vadd.f32 0.0, %v4943
  %v4945 = vpop.f32.mrf.mxu0
  %v4946 = vadd.f32 0.0, %v4945
  %4947 = vmatmul.bf16.gmra.mxu0 %v4487
  %v4948 = vpop.f32.mrf.mxu0
  %v4949 = vadd.f32 0.0, %v4948
  %v4950 = vpop.f32.mrf.mxu0
  %v4951 = vadd.f32 0.0, %v4950
  %4952 = vmatmul.bf16.gmra.mxu0 %v4489
  %v4953 = vpop.f32.mrf.mxu0
  %v4954 = vadd.f32 0.0, %v4953
  %v4955 = vpop.f32.mrf.mxu0
  %v4956 = vadd.f32 0.0, %v4955
  %4957 = vmatmul.bf16.gmra.mxu0 %v4491
  %v4958 = vpop.f32.mrf.mxu0
  %v4959 = vadd.f32 0.0, %v4958
  %v4960 = vpop.f32.mrf.mxu0
  %v4961 = vadd.f32 0.0, %v4960
  %4962 = vmatmul.bf16.gmra.mxu0 %v4825
  %v4963 = vpop.f32.mrf.mxu0
  %v4964 = vadd.f32 0.0, %v4963
  %v4965 = vpop.f32.mrf.mxu0
  %v4966 = vadd.f32 0.0, %v4965
  %4967 = vmatmul.bf16.gmra.mxu0 %v4495
  %v4968 = vpop.f32.mrf.mxu0
  %v4969 = vadd.f32 0.0, %v4968
  %v4970 = vpop.f32.mrf.mxu0
  %v4971 = vadd.f32 0.0, %v4970
  %4972 = vmatmul.bf16.gmra.mxu0 %v4497
  %v4973 = vpop.f32.mrf.mxu0
  %v4974 = vadd.f32 0.0, %v4973
  %v4975 = vpop.f32.mrf.mxu0
  %v4976 = vadd.f32 0.0, %v4975
  %4977 = vmatmul.bf16.gmra.mxu0 %v4499
  %v4978 = vpop.f32.mrf.mxu0
  %v4979 = vadd.f32 0.0, %v4978
  %v4980 = vpop.f32.mrf.mxu0
  %v4981 = vadd.f32 0.0, %v4980
  %4982 = vmatmul.bf16.gmra.mxu0 %v4827
  %v4983 = vpop.f32.mrf.mxu0
  %v4984 = vadd.f32 0.0, %v4983
  %v4985 = vpop.f32.mrf.mxu0
  %v4986 = vadd.f32 0.0, %v4985
  %4987 = vmatmul.bf16.gmra.mxu0 %v4503
  %v4988 = vpop.f32.mrf.mxu0
  %v4989 = vadd.f32 0.0, %v4988
  %v4990 = vpop.f32.mrf.mxu0
  %v4991 = vadd.f32 0.0, %v4990
  %4992 = vmatmul.bf16.gmra.mxu0 %v4505
  %v4993 = vpop.f32.mrf.mxu0
  %v4994 = vadd.f32 0.0, %v4993
  %v4995 = vpop.f32.mrf.mxu0
  %v4996 = vadd.f32 0.0, %v4995
  %4997 = vmatmul.bf16.gmra.mxu0 %v4507
  %v4998 = vpop.f32.mrf.mxu0
  %v4999 = vadd.f32 0.0, %v4998
  %v5000 = vpop.f32.mrf.mxu0
  %v5001 = vadd.f32 0.0, %v5000
  %5002 = vmatmul.bf16.gmra.mxu0 %v4829
  %v5003 = vpop.f32.mrf.mxu0
  %v5004 = vadd.f32 0.0, %v5003
  %v5005 = vpop.f32.mrf.mxu0
  %v5006 = vadd.f32 0.0, %v5005
  %5007 = vdwg.mxu0
  %5008 = vmatpush.bf16.msra.mxu0 0
  %5009 = vmatpush.bf16.msra.mxu0 0
  %5010 = vmatpush.bf16.msra.mxu0 0
  %5011 = vmatpush.bf16.msra.mxu0 0
  %5012 = vmatpush.bf16.msra.mxu0 %v4894
  %5013 = vmatpush.bf16.msra.mxu0 %v4893
  %5014 = vmatpush.bf16.msra.mxu0 %v4892
  %5015 = vmatpush.bf16.msra.mxu0 %v4891
  %5016 = vmatmul.bf16.gmra.mxu0 %v4601
  %v5017 = vpop.f32.mrf.mxu0
  %v5018 = vadd.f32 %v4929, %v5017
  %v5019 = vpop.f32.mrf.mxu0
  %v5020 = vadd.f32 %v4931, %v5019
  %5021 = vmatmul.bf16.gmra.mxu0 %v4604
  %v5022 = vpop.f32.mrf.mxu0
  %v5023 = vadd.f32 %v4934, %v5022
  %v5024 = vpop.f32.mrf.mxu0
  %v5025 = vadd.f32 %v4936, %v5024
  %5026 = vmatmul.bf16.gmra.mxu0 %v4607
  %v5027 = vpop.f32.mrf.mxu0
  %v5028 = vadd.f32 %v4939, %v5027
  %v5029 = vpop.f32.mrf.mxu0
  %v5030 = vadd.f32 %v4941, %v5029
  %5031 = vmatmul.bf16.gmra.mxu0 %v4908
  %v5032 = vpop.f32.mrf.mxu0
  %v5033 = vadd.f32 %v4944, %v5032
  %v5034 = vpop.f32.mrf.mxu0
  %v5035 = vadd.f32 %v4946, %v5034
  %5036 = vmatmul.bf16.gmra.mxu0 %v4613
  %v5037 = vpop.f32.mrf.mxu0
  %v5038 = vadd.f32 %v4949, %v5037
  %v5039 = vpop.f32.mrf.mxu0
  %v5040 = vadd.f32 %v4951, %v5039
  %5041 = vmatmul.bf16.gmra.mxu0 %v4616
  %v5042 = vpop.f32.mrf.mxu0
  %v5043 = vadd.f32 %v4954, %v5042
  %v5044 = vpop.f32.mrf.mxu0
  %v5045 = vadd.f32 %v4956, %v5044
  %5046 = vmatmul.bf16.gmra.mxu0 %v4619
  %v5047 = vpop.f32.mrf.mxu0
  %v5048 = vadd.f32 %v4959, %v5047
  %v5049 = vpop.f32.mrf.mxu0
  %v5050 = vadd.f32 %v4961, %v5049
  %5051 = vmatmul.bf16.gmra.mxu0 %v4911
  %v5052 = vpop.f32.mrf.mxu0
  %v5053 = vadd.f32 %v4964, %v5052
  %v5054 = vpop.f32.mrf.mxu0
  %v5055 = vadd.f32 %v4966, %v5054
  %5056 = vmatmul.bf16.gmra.mxu0 %v4625
  %v5057 = vpop.f32.mrf.mxu0
  %v5058 = vadd.f32 %v4969, %v5057
  %v5059 = vpop.f32.mrf.mxu0
  %v5060 = vadd.f32 %v4971, %v5059
  %5061 = vmatmul.bf16.gmra.mxu0 %v4628
  %v5062 = vpop.f32.mrf.mxu0
  %v5063 = vadd.f32 %v4974, %v5062
  %v5064 = vpop.f32.mrf.mxu0
  %v5065 = vadd.f32 %v4976, %v5064
  %5066 = vmatmul.bf16.gmra.mxu0 %v4631
  %v5067 = vpop.f32.mrf.mxu0
  %v5068 = vadd.f32 %v4979, %v5067
  %v5069 = vpop.f32.mrf.mxu0
  %v5070 = vadd.f32 %v4981, %v5069
  %5071 = vmatmul.bf16.gmra.mxu0 %v4914
  %v5072 = vpop.f32.mrf.mxu0
  %v5073 = vadd.f32 %v4984, %v5072
  %v5074 = vpop.f32.mrf.mxu0
  %v5075 = vadd.f32 %v4986, %v5074
  %5076 = vmatmul.bf16.gmra.mxu0 %v4637
  %v5077 = vpop.f32.mrf.mxu0
  %v5078 = vadd.f32 %v4989, %v5077
  %v5079 = vpop.f32.mrf.mxu0
  %v5080 = vadd.f32 %v4991, %v5079
  %5081 = vmatmul.bf16.gmra.mxu0 %v4640
  %v5082 = vpop.f32.mrf.mxu0
  %v5083 = vadd.f32 %v4994, %v5082
  %v5084 = vpop.f32.mrf.mxu0
  %v5085 = vadd.f32 %v4996, %v5084
  %5086 = vmatmul.bf16.gmra.mxu0 %v4643
  %v5087 = vpop.f32.mrf.mxu0
  %v5088 = vadd.f32 %v4999, %v5087
  %v5089 = vpop.f32.mrf.mxu0
  %v5090 = vadd.f32 %v5001, %v5089
  %5091 = vmatmul.bf16.gmra.mxu0 %v4917
  %v5092 = vpop.f32.mrf.mxu0
  %v5093 = vadd.f32 %v5004, %v5092
  %v5094 = vpop.f32.mrf.mxu0
  %v5095 = vadd.f32 %v5006, %v5094
  %5096 = vdwg.mxu0
  %v5097 = vadd.f32 %v4744, %v5018
  %v5098 = vadd.f32 %v4746, %v5020
  %v5099 = vadd.f32 %v4749, %v5023
  %v5100 = vadd.f32 %v4751, %v5025
  %v5101 = vadd.f32 %v4754, %v5028
  %v5102 = vadd.f32 %v4756, %v5030
  %v5103 = vadd.f32 %v4759, %v5033
  %v5104 = vadd.f32 %v4761, %v5035
  %v5105 = vadd.f32 %v4764, %v5038
  %v5106 = vadd.f32 %v4766, %v5040
  %v5107 = vadd.f32 %v4769, %v5043
  %v5108 = vadd.f32 %v4771, %v5045
  %v5109 = vadd.f32 %v4774, %v5048
  %v5110 = vadd.f32 %v4776, %v5050
  %v5111 = vadd.f32 %v4779, %v5053
  %v5112 = vadd.f32 %v4781, %v5055
  %v5113 = vadd.f32 %v4784, %v5058
  %v5114 = vadd.f32 %v4786, %v5060
  %v5115 = vadd.f32 %v4789, %v5063
  %v5116 = vadd.f32 %v4791, %v5065
  %v5117 = vadd.f32 %v4794, %v5068
  %v5118 = vadd.f32 %v4796, %v5070
  %v5119 = vadd.f32 %v4799, %v5073
  %v5120 = vadd.f32 %v4801, %v5075
  %v5121 = vadd.f32 %v4804, %v5078
  %v5122 = vadd.f32 %v4806, %v5080
  %v5123 = vadd.f32 %v4809, %v5083
  %v5124 = vadd.f32 %v4811, %v5085
  %v5125 = vadd.f32 %v4814, %v5088
  %v5126 = vadd.f32 %v4816, %v5090
  %v5127 = vadd.f32 %v4819, %v5093
  %v5128 = vadd.f32 %v4821, %v5095
  %v5130 = vperm.slane %v198, 0
  %v5132 = vadd.f32 %v5097, %v5130
  %v5133 = vadd.f32 %v5098, %v5130
  %v5134 = vadd.f32 %v5099, %v5130
  %v5135 = vadd.f32 %v5100, %v5130
  %v5136 = vadd.f32 %v5101, %v5130
  %v5137 = vadd.f32 %v5102, %v5130
  %v5138 = vadd.f32 %v5103, %v5130
  %v5139 = vadd.f32 %v5104, %v5130
  %v5140 = vadd.f32 %v5105, %v5130
  %v5141 = vadd.f32 %v5106, %v5130
  %v5142 = vadd.f32 %v5107, %v5130
  %v5143 = vadd.f32 %v5108, %v5130
  %v5144 = vadd.f32 %v5109, %v5130
  %v5145 = vadd.f32 %v5110, %v5130
  %v5146 = vadd.f32 %v5111, %v5130
  %v5147 = vadd.f32 %v5112, %v5130
  %v5148 = vadd.f32 %v5113, %v5130
  %v5149 = vadd.f32 %v5114, %v5130
  %v5150 = vadd.f32 %v5115, %v5130
  %v5151 = vadd.f32 %v5116, %v5130
  %v5152 = vadd.f32 %v5117, %v5130
  %v5153 = vadd.f32 %v5118, %v5130
  %v5154 = vadd.f32 %v5119, %v5130
  %v5155 = vadd.f32 %v5120, %v5130
  %v5156 = vadd.f32 %v5121, %v5130
  %v5157 = vadd.f32 %v5122, %v5130
  %v5158 = vadd.f32 %v5123, %v5130
  %v5159 = vadd.f32 %v5124, %v5130
  %v5160 = vadd.f32 %v5125, %v5130
  %v5161 = vadd.f32 %v5126, %v5130
  %v5162 = vadd.f32 %v5127, %v5130
  %v5163 = vadd.f32 %v5128, %v5130
  %v5164 = vmax.f32 %v5132, 0.0
  %v5165 = vmax.f32 %v5133, 0.0
  %v5166 = vmax.f32 %v5134, 0.0
  %v5167 = vmax.f32 %v5135, 0.0
  %v5168 = vmax.f32 %v5136, 0.0
  %v5169 = vmax.f32 %v5137, 0.0
  %v5170 = vmax.f32 %v5138, 0.0
  %v5171 = vmax.f32 %v5139, 0.0
  %v5172 = vmax.f32 %v5140, 0.0
  %v5173 = vmax.f32 %v5141, 0.0
  %v5174 = vmax.f32 %v5142, 0.0
  %v5175 = vmax.f32 %v5143, 0.0
  %v5176 = vmax.f32 %v5144, 0.0
  %v5177 = vmax.f32 %v5145, 0.0
  %v5178 = vmax.f32 %v5146, 0.0
  %v5179 = vmax.f32 %v5147, 0.0
  %v5180 = vmax.f32 %v5148, 0.0
  %v5181 = vmax.f32 %v5149, 0.0
  %v5182 = vmax.f32 %v5150, 0.0
  %v5183 = vmax.f32 %v5151, 0.0
  %v5184 = vmax.f32 %v5152, 0.0
  %v5185 = vmax.f32 %v5153, 0.0
  %v5186 = vmax.f32 %v5154, 0.0
  %v5187 = vmax.f32 %v5155, 0.0
  %v5188 = vmax.f32 %v5156, 0.0
  %v5189 = vmax.f32 %v5157, 0.0
  %v5190 = vmax.f32 %v5158, 0.0
  %v5191 = vmax.f32 %v5159, 0.0
  %v5192 = vmax.f32 %v5160, 0.0
  %v5193 = vmax.f32 %v5161, 0.0
  %v5194 = vmax.f32 %v5162, 0.0
  %v5195 = vmax.f32 %v5163, 0.0
  %v5196 = vpack.c.bf16 %v5164, %v5164
  %v5197 = vpack.c.bf16 %v5165, %v5165
  %v5198 = vpack.c.bf16 %v5166, %v5166
  %v5199 = vpack.c.bf16 %v5167, %v5167
  %v5200 = vpack.c.bf16 %v5168, %v5168
  %v5201 = vpack.c.bf16 %v5169, %v5169
  %v5202 = vpack.c.bf16 %v5170, %v5170
  %v5203 = vpack.c.bf16 %v5171, %v5171
  %v5204 = vpack.c.bf16 %v5172, %v5172
  %v5205 = vpack.c.bf16 %v5173, %v5173
  %v5206 = vpack.c.bf16 %v5174, %v5174
  %v5207 = vpack.c.bf16 %v5175, %v5175
  %v5208 = vpack.c.bf16 %v5176, %v5176
  %v5209 = vpack.c.bf16 %v5177, %v5177
  %v5210 = vpack.c.bf16 %v5178, %v5178
  %v5211 = vpack.c.bf16 %v5179, %v5179
  %v5212 = vpack.c.bf16 %v5180, %v5180
  %v5213 = vpack.c.bf16 %v5181, %v5181
  %v5214 = vpack.c.bf16 %v5182, %v5182
  %v5215 = vpack.c.bf16 %v5183, %v5183
  %v5216 = vpack.c.bf16 %v5184, %v5184
  %v5217 = vpack.c.bf16 %v5185, %v5185
  %v5218 = vpack.c.bf16 %v5186, %v5186
  %v5219 = vpack.c.bf16 %v5187, %v5187
  %v5220 = vpack.c.bf16 %v5188, %v5188
  %v5221 = vpack.c.bf16 %v5189, %v5189
  %v5222 = vpack.c.bf16 %v5190, %v5190
  %v5223 = vpack.c.bf16 %v5191, %v5191
  %v5224 = vpack.c.bf16 %v5192, %v5192
  %v5225 = vpack.c.bf16 %v5193, %v5193
  %v5226 = vpack.c.bf16 %v5194, %v5194
  %v5227 = vpack.c.bf16 %v5195, %v5195
  %v5244 = vunpack.c.l.b16 %v5196
  %v5245 = vunpack.c.l.b16 %v5197
  %v5246 = vunpack.c.l.b16 %v5198
  %v5247 = vunpack.c.l.b16 %v5199
  %v5248 = vunpack.c.l.b16 %v5200
  %v5249 = vunpack.c.l.b16 %v5201
  %v5250 = vunpack.c.l.b16 %v5202
  %v5251 = vunpack.c.l.b16 %v5203
  %v5252 = vunpack.c.l.b16 %v5212
  %v5253 = vunpack.c.l.b16 %v5213
  %v5254 = vunpack.c.l.b16 %v5214
  %v5255 = vunpack.c.l.b16 %v5215
  %v5256 = vunpack.c.l.b16 %v5216
  %v5257 = vunpack.c.l.b16 %v5217
  %v5258 = vunpack.c.l.b16 %v5218
  %v5259 = vunpack.c.l.b16 %v5219
  %v5260 = vpack.c.b16 %v5245, %v5244
  %v5261 = vpack.c.b16 %v5247, %v5246
  %v5262 = vpack.c.b16 %v5249, %v5248
  %v5263 = vpack.c.b16 %v5251, %v5250
  %v5264 = vpack.c.b16 %v5253, %v5252
  %v5265 = vpack.c.b16 %v5255, %v5254
  %v5266 = vpack.c.b16 %v5257, %v5256
  %v5267 = vpack.c.b16 %v5259, %v5258
  %v5284 = vunpack.c.l.b16 %v5204
  %v5285 = vunpack.c.l.b16 %v5205
  %v5286 = vunpack.c.l.b16 %v5206
  %v5287 = vunpack.c.l.b16 %v5207
  %v5288 = vunpack.c.l.b16 %v5208
  %v5289 = vunpack.c.l.b16 %v5209
  %v5290 = vunpack.c.l.b16 %v5210
  %v5291 = vunpack.c.l.b16 %v5211
  %v5292 = vunpack.c.l.b16 %v5220
  %v5293 = vunpack.c.l.b16 %v5221
  %v5294 = vunpack.c.l.b16 %v5222
  %v5295 = vunpack.c.l.b16 %v5223
  %v5296 = vunpack.c.l.b16 %v5224
  %v5297 = vunpack.c.l.b16 %v5225
  %v5298 = vunpack.c.l.b16 %v5226
  %v5299 = vunpack.c.l.b16 %v5227
  %v5300 = vpack.c.b16 %v5285, %v5284
  %v5301 = vpack.c.b16 %v5287, %v5286
  %v5302 = vpack.c.b16 %v5289, %v5288
  %v5303 = vpack.c.b16 %v5291, %v5290
  %v5304 = vpack.c.b16 %v5293, %v5292
  %v5305 = vpack.c.b16 %v5295, %v5294
  %v5306 = vpack.c.b16 %v5297, %v5296
  %v5307 = vpack.c.b16 %v5299, %v5298
  %5308 = vrot.lane.b32.xlu0 %v5260, 64
  %v5309 = vpop.permute.xlu0 %5308
  %5310 = vrot.lane.b32.xlu0 %v5261, 64
  %v5311 = vpop.permute.xlu0 %5310
  %5312 = vrot.lane.b32.xlu0 %v5262, 64
  %v5313 = vpop.permute.xlu0 %5312
  %5314 = vrot.lane.b32.xlu0 %v5263, 64
  %v5315 = vpop.permute.xlu0 %5314
  %5316 = vrot.lane.b32.xlu0 %v5300, 64
  %v5317 = vpop.permute.xlu0 %5316
  %5318 = vrot.lane.b32.xlu0 %v5301, 64
  %v5319 = vpop.permute.xlu0 %5318
  %5320 = vrot.lane.b32.xlu0 %v5302, 64
  %v5321 = vpop.permute.xlu0 %5320
  %5322 = vrot.lane.b32.xlu0 %v5303, 64
  %v5323 = vpop.permute.xlu0 %5322
  %5324 = vrot.lane.b32.xlu0 %v5264, 64
  %v5325 = vpop.permute.xlu0 %5324
  %5326 = vrot.lane.b32.xlu0 %v5265, 64
  %v5327 = vpop.permute.xlu0 %5326
  %5328 = vrot.lane.b32.xlu0 %v5266, 64
  %v5329 = vpop.permute.xlu0 %5328
  %5330 = vrot.lane.b32.xlu0 %v5267, 64
  %v5331 = vpop.permute.xlu0 %5330
  %5332 = vrot.lane.b32.xlu0 %v5304, 64
  %v5333 = vpop.permute.xlu0 %5332
  %5334 = vrot.lane.b32.xlu0 %v5305, 64
  %v5335 = vpop.permute.xlu0 %5334
  %5336 = vrot.lane.b32.xlu0 %v5306, 64
  %v5337 = vpop.permute.xlu0 %5336
  %5338 = vrot.lane.b32.xlu0 %v5307, 64
  %v5339 = vpop.permute.xlu0 %5338
  %v5341 = vsel %vm927, 0, %v5309
  %v5344 = vsel %vm927, 0, %v5311
  %v5347 = vsel %vm927, 0, %v5313
  %v5350 = vsel %vm927, 0, %v5315
  %v5354 = vsel %vm927, %v5260, %v5317
  %v5358 = vsel %vm927, %v5261, %v5319
  %v5362 = vsel %vm927, %v5262, %v5321
  %v5366 = vsel %vm927, %v5263, %v5323
  %v5369 = vsel %vm927, 0, %v5325
  %v5372 = vsel %vm927, 0, %v5327
  %v5375 = vsel %vm927, 0, %v5329
  %v5378 = vsel %vm927, 0, %v5331
  %v5382 = vsel %vm927, %v5264, %v5333
  %v5386 = vsel %vm927, %v5265, %v5335
  %v5390 = vsel %vm927, %v5266, %v5337
  %v5394 = vsel %vm927, %v5267, %v5339
  %v5420 = vunpack.c.l.b16 %v295
  %v5421 = vunpack.c.l.b16 %v296
  %v5422 = vunpack.c.l.b16 %v297
  %v5423 = vunpack.c.l.b16 %v298
  %v5424 = vunpack.c.l.b16 %v299
  %v5425 = vunpack.c.l.b16 %v300
  %v5426 = vunpack.c.l.b16 %v301
  %v5427 = vunpack.c.l.b16 %v302
  %v5428 = vunpack.c.l.b16 %v303
  %v5429 = vunpack.c.l.b16 %v304
  %v5430 = vunpack.c.l.b16 %v305
  %v5431 = vunpack.c.l.b16 %v306
  %v5432 = vunpack.c.l.b16 %v307
  %v5433 = vunpack.c.l.b16 %v308
  %v5434 = vunpack.c.l.b16 %v309
  %v5435 = vunpack.c.l.b16 %v310
  %v5436 = vunpack.c.l.b16 %v311
  %v5437 = vunpack.c.l.b16 %v312
  %v5438 = vunpack.c.l.b16 %v313
  %v5439 = vunpack.c.l.b16 %v314
  %v5440 = vunpack.c.l.b16 %v315
  %v5441 = vunpack.c.l.b16 %v316
  %v5442 = vunpack.c.l.b16 %v317
  %v5443 = vunpack.c.l.b16 %v318
  %v5444 = vpack.c.b16 %v5421, %v5420
  %v5445 = vpack.c.b16 %v5423, %v5422
  %v5446 = vpack.c.b16 %v5425, %v5424
  %v5447 = vpack.c.b16 %v5427, %v5426
  %v5448 = vpack.c.b16 %v5429, %v5428
  %v5449 = vpack.c.b16 %v5431, %v5430
  %v5450 = vpack.c.b16 %v5433, %v5432
  %v5451 = vpack.c.b16 %v5435, %v5434
  %v5452 = vpack.c.b16 %v5437, %v5436
  %v5453 = vpack.c.b16 %v5439, %v5438
  %v5454 = vpack.c.b16 %v5441, %v5440
  %v5455 = vpack.c.b16 %v5443, %v5442
  %v5469 = vsel %vm927, %v5300, 0
  %v5472 = vsel %vm927, %v5301, 0
  %v5475 = vsel %vm927, %v5302, 0
  %v5478 = vsel %vm927, %v5303, 0
  %v5481 = vsel %vm927, %v5304, 0
  %v5484 = vsel %vm927, %v5305, 0
  %v5487 = vsel %vm927, %v5306, 0
  %v5490 = vsel %vm927, %v5307, 0
  %5492 = vmatpush.bf16.msra.mxu0 %v5451
  %5493 = vmatpush.bf16.msra.mxu0 %v5450
  %5494 = vmatpush.bf16.msra.mxu0 %v5449
  %5495 = vmatpush.bf16.msra.mxu0 %v5448
  %5496 = vmatpush.bf16.msra.mxu0 %v5447
  %5497 = vmatpush.bf16.msra.mxu0 %v5446
  %5498 = vmatpush.bf16.msra.mxu0 %v5445
  %5499 = vmatpush.bf16.msra.mxu0 %v5444
  %5500 = vmatmul.bf16.gmra.mxu0 %v5341
  %v5501 = vpop.f32.mrf.mxu0
  %v5502 = vadd.f32 0.0, %v5501
  %v5503 = vpop.f32.mrf.mxu0
  %v5504 = vadd.f32 0.0, %v5503
  %5505 = vmatmul.bf16.gmra.mxu0 %v5344
  %v5506 = vpop.f32.mrf.mxu0
  %v5507 = vadd.f32 0.0, %v5506
  %v5508 = vpop.f32.mrf.mxu0
  %v5509 = vadd.f32 0.0, %v5508
  %5510 = vmatmul.bf16.gmra.mxu0 %v5347
  %v5511 = vpop.f32.mrf.mxu0
  %v5512 = vadd.f32 0.0, %v5511
  %v5513 = vpop.f32.mrf.mxu0
  %v5514 = vadd.f32 0.0, %v5513
  %5515 = vmatmul.bf16.gmra.mxu0 %v5350
  %v5516 = vpop.f32.mrf.mxu0
  %v5517 = vadd.f32 0.0, %v5516
  %v5518 = vpop.f32.mrf.mxu0
  %v5519 = vadd.f32 0.0, %v5518
  %5520 = vmatmul.bf16.gmra.mxu0 %v5354
  %v5521 = vpop.f32.mrf.mxu0
  %v5522 = vadd.f32 0.0, %v5521
  %v5523 = vpop.f32.mrf.mxu0
  %v5524 = vadd.f32 0.0, %v5523
  %5525 = vmatmul.bf16.gmra.mxu0 %v5358
  %v5526 = vpop.f32.mrf.mxu0
  %v5527 = vadd.f32 0.0, %v5526
  %v5528 = vpop.f32.mrf.mxu0
  %v5529 = vadd.f32 0.0, %v5528
  %5530 = vmatmul.bf16.gmra.mxu0 %v5362
  %v5531 = vpop.f32.mrf.mxu0
  %v5532 = vadd.f32 0.0, %v5531
  %v5533 = vpop.f32.mrf.mxu0
  %v5534 = vadd.f32 0.0, %v5533
  %5535 = vmatmul.bf16.gmra.mxu0 %v5366
  %v5536 = vpop.f32.mrf.mxu0
  %v5537 = vadd.f32 0.0, %v5536
  %v5538 = vpop.f32.mrf.mxu0
  %v5539 = vadd.f32 0.0, %v5538
  %5540 = vmatmul.bf16.gmra.mxu0 %v5369
  %v5541 = vpop.f32.mrf.mxu0
  %v5542 = vadd.f32 0.0, %v5541
  %v5543 = vpop.f32.mrf.mxu0
  %v5544 = vadd.f32 0.0, %v5543
  %5545 = vmatmul.bf16.gmra.mxu0 %v5372
  %v5546 = vpop.f32.mrf.mxu0
  %v5547 = vadd.f32 0.0, %v5546
  %v5548 = vpop.f32.mrf.mxu0
  %v5549 = vadd.f32 0.0, %v5548
  %5550 = vmatmul.bf16.gmra.mxu0 %v5375
  %v5551 = vpop.f32.mrf.mxu0
  %v5552 = vadd.f32 0.0, %v5551
  %v5553 = vpop.f32.mrf.mxu0
  %v5554 = vadd.f32 0.0, %v5553
  %5555 = vmatmul.bf16.gmra.mxu0 %v5378
  %v5556 = vpop.f32.mrf.mxu0
  %v5557 = vadd.f32 0.0, %v5556
  %v5558 = vpop.f32.mrf.mxu0
  %v5559 = vadd.f32 0.0, %v5558
  %5560 = vmatmul.bf16.gmra.mxu0 %v5382
  %v5561 = vpop.f32.mrf.mxu0
  %v5562 = vadd.f32 0.0, %v5561
  %v5563 = vpop.f32.mrf.mxu0
  %v5564 = vadd.f32 0.0, %v5563
  %5565 = vmatmul.bf16.gmra.mxu0 %v5386
  %v5566 = vpop.f32.mrf.mxu0
  %v5567 = vadd.f32 0.0, %v5566
  %v5568 = vpop.f32.mrf.mxu0
  %v5569 = vadd.f32 0.0, %v5568
  %5570 = vmatmul.bf16.gmra.mxu0 %v5390
  %v5571 = vpop.f32.mrf.mxu0
  %v5572 = vadd.f32 0.0, %v5571
  %v5573 = vpop.f32.mrf.mxu0
  %v5574 = vadd.f32 0.0, %v5573
  %5575 = vmatmul.bf16.gmra.mxu0 %v5394
  %v5576 = vpop.f32.mrf.mxu0
  %v5577 = vadd.f32 0.0, %v5576
  %v5578 = vpop.f32.mrf.mxu0
  %v5579 = vadd.f32 0.0, %v5578
  %5580 = vdwg.mxu0
  %5581 = vmatpush.bf16.msra.mxu0 0
  %5582 = vmatpush.bf16.msra.mxu0 0
  %5583 = vmatpush.bf16.msra.mxu0 0
  %5584 = vmatpush.bf16.msra.mxu0 0
  %5585 = vmatpush.bf16.msra.mxu0 %v5455
  %5586 = vmatpush.bf16.msra.mxu0 %v5454
  %5587 = vmatpush.bf16.msra.mxu0 %v5453
  %5588 = vmatpush.bf16.msra.mxu0 %v5452
  %5589 = vmatmul.bf16.gmra.mxu0 %v5469
  %v5590 = vpop.f32.mrf.mxu0
  %v5591 = vadd.f32 %v5502, %v5590
  %v5592 = vpop.f32.mrf.mxu0
  %v5593 = vadd.f32 %v5504, %v5592
  %5594 = vmatmul.bf16.gmra.mxu0 %v5472
  %v5595 = vpop.f32.mrf.mxu0
  %v5596 = vadd.f32 %v5507, %v5595
  %v5597 = vpop.f32.mrf.mxu0
  %v5598 = vadd.f32 %v5509, %v5597
  %5599 = vmatmul.bf16.gmra.mxu0 %v5475
  %v5600 = vpop.f32.mrf.mxu0
  %v5601 = vadd.f32 %v5512, %v5600
  %v5602 = vpop.f32.mrf.mxu0
  %v5603 = vadd.f32 %v5514, %v5602
  %5604 = vmatmul.bf16.gmra.mxu0 %v5478
  %v5605 = vpop.f32.mrf.mxu0
  %v5606 = vadd.f32 %v5517, %v5605
  %v5607 = vpop.f32.mrf.mxu0
  %v5608 = vadd.f32 %v5519, %v5607
  %5609 = vmatmul.bf16.gmra.mxu0 %v2506
  %v5610 = vpop.f32.mrf.mxu0
  %v5611 = vadd.f32 %v5522, %v5610
  %v5612 = vpop.f32.mrf.mxu0
  %v5613 = vadd.f32 %v5524, %v5612
  %5614 = vmatmul.bf16.gmra.mxu0 %v2506
  %v5615 = vpop.f32.mrf.mxu0
  %v5616 = vadd.f32 %v5527, %v5615
  %v5617 = vpop.f32.mrf.mxu0
  %v5618 = vadd.f32 %v5529, %v5617
  %5619 = vmatmul.bf16.gmra.mxu0 %v2506
  %v5620 = vpop.f32.mrf.mxu0
  %v5621 = vadd.f32 %v5532, %v5620
  %v5622 = vpop.f32.mrf.mxu0
  %v5623 = vadd.f32 %v5534, %v5622
  %5624 = vmatmul.bf16.gmra.mxu0 %v2506
  %v5625 = vpop.f32.mrf.mxu0
  %v5626 = vadd.f32 %v5537, %v5625
  %v5627 = vpop.f32.mrf.mxu0
  %v5628 = vadd.f32 %v5539, %v5627
  %5629 = vmatmul.bf16.gmra.mxu0 %v5481
  %v5630 = vpop.f32.mrf.mxu0
  %v5631 = vadd.f32 %v5542, %v5630
  %v5632 = vpop.f32.mrf.mxu0
  %v5633 = vadd.f32 %v5544, %v5632
  %5634 = vmatmul.bf16.gmra.mxu0 %v5484
  %v5635 = vpop.f32.mrf.mxu0
  %v5636 = vadd.f32 %v5547, %v5635
  %v5637 = vpop.f32.mrf.mxu0
  %v5638 = vadd.f32 %v5549, %v5637
  %5639 = vmatmul.bf16.gmra.mxu0 %v5487
  %v5640 = vpop.f32.mrf.mxu0
  %v5641 = vadd.f32 %v5552, %v5640
  %v5642 = vpop.f32.mrf.mxu0
  %v5643 = vadd.f32 %v5554, %v5642
  %5644 = vmatmul.bf16.gmra.mxu0 %v5490
  %v5645 = vpop.f32.mrf.mxu0
  %v5646 = vadd.f32 %v5557, %v5645
  %v5647 = vpop.f32.mrf.mxu0
  %v5648 = vadd.f32 %v5559, %v5647
  %5649 = vmatmul.bf16.gmra.mxu0 %v2506
  %v5650 = vpop.f32.mrf.mxu0
  %v5651 = vadd.f32 %v5562, %v5650
  %v5652 = vpop.f32.mrf.mxu0
  %v5653 = vadd.f32 %v5564, %v5652
  %5654 = vmatmul.bf16.gmra.mxu0 %v2506
  %v5655 = vpop.f32.mrf.mxu0
  %v5656 = vadd.f32 %v5567, %v5655
  %v5657 = vpop.f32.mrf.mxu0
  %v5658 = vadd.f32 %v5569, %v5657
  %5659 = vmatmul.bf16.gmra.mxu0 %v2506
  %v5660 = vpop.f32.mrf.mxu0
  %v5661 = vadd.f32 %v5572, %v5660
  %v5662 = vpop.f32.mrf.mxu0
  %v5663 = vadd.f32 %v5574, %v5662
  %5664 = vmatmul.bf16.gmra.mxu0 %v2506
  %v5665 = vpop.f32.mrf.mxu0
  %v5666 = vadd.f32 %v5577, %v5665
  %v5667 = vpop.f32.mrf.mxu0
  %v5668 = vadd.f32 %v5579, %v5667
  %5669 = vdwg.mxu0
  %v5694 = vunpack.c.l.b16 %v271
  %v5695 = vunpack.c.l.b16 %v272
  %v5696 = vunpack.c.l.b16 %v273
  %v5697 = vunpack.c.l.b16 %v274
  %v5698 = vunpack.c.l.b16 %v275
  %v5699 = vunpack.c.l.b16 %v276
  %v5700 = vunpack.c.l.b16 %v277
  %v5701 = vunpack.c.l.b16 %v278
  %v5702 = vunpack.c.l.b16 %v279
  %v5703 = vunpack.c.l.b16 %v280
  %v5704 = vunpack.c.l.b16 %v281
  %v5705 = vunpack.c.l.b16 %v282
  %v5706 = vunpack.c.l.b16 %v283
  %v5707 = vunpack.c.l.b16 %v284
  %v5708 = vunpack.c.l.b16 %v285
  %v5709 = vunpack.c.l.b16 %v286
  %v5710 = vunpack.c.l.b16 %v287
  %v5711 = vunpack.c.l.b16 %v288
  %v5712 = vunpack.c.l.b16 %v289
  %v5713 = vunpack.c.l.b16 %v290
  %v5714 = vunpack.c.l.b16 %v291
  %v5715 = vunpack.c.l.b16 %v292
  %v5716 = vunpack.c.l.b16 %v293
  %v5717 = vunpack.c.l.b16 %v294
  %v5718 = vpack.c.b16 %v5695, %v5694
  %v5719 = vpack.c.b16 %v5697, %v5696
  %v5720 = vpack.c.b16 %v5699, %v5698
  %v5721 = vpack.c.b16 %v5701, %v5700
  %v5722 = vpack.c.b16 %v5703, %v5702
  %v5723 = vpack.c.b16 %v5705, %v5704
  %v5724 = vpack.c.b16 %v5707, %v5706
  %v5725 = vpack.c.b16 %v5709, %v5708
  %v5726 = vpack.c.b16 %v5711, %v5710
  %v5727 = vpack.c.b16 %v5713, %v5712
  %v5728 = vpack.c.b16 %v5715, %v5714
  %v5729 = vpack.c.b16 %v5717, %v5716
  %5742 = vmatpush.bf16.msra.mxu0 %v5725
  %5743 = vmatpush.bf16.msra.mxu0 %v5724
  %5744 = vmatpush.bf16.msra.mxu0 %v5723
  %5745 = vmatpush.bf16.msra.mxu0 %v5722
  %5746 = vmatpush.bf16.msra.mxu0 %v5721
  %5747 = vmatpush.bf16.msra.mxu0 %v5720
  %5748 = vmatpush.bf16.msra.mxu0 %v5719
  %5749 = vmatpush.bf16.msra.mxu0 %v5718
  %5750 = vmatmul.bf16.gmra.mxu0 0
  %v5751 = vpop.f32.mrf.mxu0
  %v5752 = vadd.f32 %v5591, %v5751
  %v5753 = vpop.f32.mrf.mxu0
  %v5754 = vadd.f32 %v5593, %v5753
  %5755 = vmatmul.bf16.gmra.mxu0 0
  %v5756 = vpop.f32.mrf.mxu0
  %v5757 = vadd.f32 %v5596, %v5756
  %v5758 = vpop.f32.mrf.mxu0
  %v5759 = vadd.f32 %v5598, %v5758
  %5760 = vmatmul.bf16.gmra.mxu0 0
  %v5761 = vpop.f32.mrf.mxu0
  %v5762 = vadd.f32 %v5601, %v5761
  %v5763 = vpop.f32.mrf.mxu0
  %v5764 = vadd.f32 %v5603, %v5763
  %5765 = vmatmul.bf16.gmra.mxu0 0
  %v5766 = vpop.f32.mrf.mxu0
  %v5767 = vadd.f32 %v5606, %v5766
  %v5768 = vpop.f32.mrf.mxu0
  %v5769 = vadd.f32 %v5608, %v5768
  %5770 = vmatmul.bf16.gmra.mxu0 0
  %v5771 = vpop.f32.mrf.mxu0
  %v5772 = vadd.f32 %v5611, %v5771
  %v5773 = vpop.f32.mrf.mxu0
  %v5774 = vadd.f32 %v5613, %v5773
  %5775 = vmatmul.bf16.gmra.mxu0 0
  %v5776 = vpop.f32.mrf.mxu0
  %v5777 = vadd.f32 %v5616, %v5776
  %v5778 = vpop.f32.mrf.mxu0
  %v5779 = vadd.f32 %v5618, %v5778
  %5780 = vmatmul.bf16.gmra.mxu0 0
  %v5781 = vpop.f32.mrf.mxu0
  %v5782 = vadd.f32 %v5621, %v5781
  %v5783 = vpop.f32.mrf.mxu0
  %v5784 = vadd.f32 %v5623, %v5783
  %5785 = vmatmul.bf16.gmra.mxu0 0
  %v5786 = vpop.f32.mrf.mxu0
  %v5787 = vadd.f32 %v5626, %v5786
  %v5788 = vpop.f32.mrf.mxu0
  %v5789 = vadd.f32 %v5628, %v5788
  %5790 = vmatmul.bf16.gmra.mxu0 %v5341
  %v5791 = vpop.f32.mrf.mxu0
  %v5792 = vadd.f32 %v5631, %v5791
  %v5793 = vpop.f32.mrf.mxu0
  %v5794 = vadd.f32 %v5633, %v5793
  %5795 = vmatmul.bf16.gmra.mxu0 %v5344
  %v5796 = vpop.f32.mrf.mxu0
  %v5797 = vadd.f32 %v5636, %v5796
  %v5798 = vpop.f32.mrf.mxu0
  %v5799 = vadd.f32 %v5638, %v5798
  %5800 = vmatmul.bf16.gmra.mxu0 %v5347
  %v5801 = vpop.f32.mrf.mxu0
  %v5802 = vadd.f32 %v5641, %v5801
  %v5803 = vpop.f32.mrf.mxu0
  %v5804 = vadd.f32 %v5643, %v5803
  %5805 = vmatmul.bf16.gmra.mxu0 %v5350
  %v5806 = vpop.f32.mrf.mxu0
  %v5807 = vadd.f32 %v5646, %v5806
  %v5808 = vpop.f32.mrf.mxu0
  %v5809 = vadd.f32 %v5648, %v5808
  %5810 = vmatmul.bf16.gmra.mxu0 %v5354
  %v5811 = vpop.f32.mrf.mxu0
  %v5812 = vadd.f32 %v5651, %v5811
  %v5813 = vpop.f32.mrf.mxu0
  %v5814 = vadd.f32 %v5653, %v5813
  %5815 = vmatmul.bf16.gmra.mxu0 %v5358
  %v5816 = vpop.f32.mrf.mxu0
  %v5817 = vadd.f32 %v5656, %v5816
  %v5818 = vpop.f32.mrf.mxu0
  %v5819 = vadd.f32 %v5658, %v5818
  %5820 = vmatmul.bf16.gmra.mxu0 %v5362
  %v5821 = vpop.f32.mrf.mxu0
  %v5822 = vadd.f32 %v5661, %v5821
  %v5823 = vpop.f32.mrf.mxu0
  %v5824 = vadd.f32 %v5663, %v5823
  %5825 = vmatmul.bf16.gmra.mxu0 %v5366
  %v5826 = vpop.f32.mrf.mxu0
  %v5827 = vadd.f32 %v5666, %v5826
  %v5828 = vpop.f32.mrf.mxu0
  %v5829 = vadd.f32 %v5668, %v5828
  %5830 = vdwg.mxu0
  %5831 = vmatpush.bf16.msra.mxu0 0
  %5832 = vmatpush.bf16.msra.mxu0 0
  %5833 = vmatpush.bf16.msra.mxu0 0
  %5834 = vmatpush.bf16.msra.mxu0 0
  %5835 = vmatpush.bf16.msra.mxu0 %v5729
  %5836 = vmatpush.bf16.msra.mxu0 %v5728
  %5837 = vmatpush.bf16.msra.mxu0 %v5727
  %5838 = vmatpush.bf16.msra.mxu0 %v5726
  %5839 = vmatmul.bf16.gmra.mxu0 %v2770
  %v5840 = vpop.f32.mrf.mxu0
  %v5841 = vadd.f32 %v5752, %v5840
  %v5842 = vpop.f32.mrf.mxu0
  %v5843 = vadd.f32 %v5754, %v5842
  %5844 = vmatmul.bf16.gmra.mxu0 %v2770
  %v5845 = vpop.f32.mrf.mxu0
  %v5846 = vadd.f32 %v5757, %v5845
  %v5847 = vpop.f32.mrf.mxu0
  %v5848 = vadd.f32 %v5759, %v5847
  %5849 = vmatmul.bf16.gmra.mxu0 %v2770
  %v5850 = vpop.f32.mrf.mxu0
  %v5851 = vadd.f32 %v5762, %v5850
  %v5852 = vpop.f32.mrf.mxu0
  %v5853 = vadd.f32 %v5764, %v5852
  %5854 = vmatmul.bf16.gmra.mxu0 %v2770
  %v5855 = vpop.f32.mrf.mxu0
  %v5856 = vadd.f32 %v5767, %v5855
  %v5857 = vpop.f32.mrf.mxu0
  %v5858 = vadd.f32 %v5769, %v5857
  %5859 = vmatmul.bf16.gmra.mxu0 %v2770
  %v5860 = vpop.f32.mrf.mxu0
  %v5861 = vadd.f32 %v5772, %v5860
  %v5862 = vpop.f32.mrf.mxu0
  %v5863 = vadd.f32 %v5774, %v5862
  %5864 = vmatmul.bf16.gmra.mxu0 %v2770
  %v5865 = vpop.f32.mrf.mxu0
  %v5866 = vadd.f32 %v5777, %v5865
  %v5867 = vpop.f32.mrf.mxu0
  %v5868 = vadd.f32 %v5779, %v5867
  %5869 = vmatmul.bf16.gmra.mxu0 %v2770
  %v5870 = vpop.f32.mrf.mxu0
  %v5871 = vadd.f32 %v5782, %v5870
  %v5872 = vpop.f32.mrf.mxu0
  %v5873 = vadd.f32 %v5784, %v5872
  %5874 = vmatmul.bf16.gmra.mxu0 %v2770
  %v5875 = vpop.f32.mrf.mxu0
  %v5876 = vadd.f32 %v5787, %v5875
  %v5877 = vpop.f32.mrf.mxu0
  %v5878 = vadd.f32 %v5789, %v5877
  %5879 = vmatmul.bf16.gmra.mxu0 %v5469
  %v5880 = vpop.f32.mrf.mxu0
  %v5881 = vadd.f32 %v5792, %v5880
  %v5882 = vpop.f32.mrf.mxu0
  %v5883 = vadd.f32 %v5794, %v5882
  %5884 = vmatmul.bf16.gmra.mxu0 %v5472
  %v5885 = vpop.f32.mrf.mxu0
  %v5886 = vadd.f32 %v5797, %v5885
  %v5887 = vpop.f32.mrf.mxu0
  %v5888 = vadd.f32 %v5799, %v5887
  %5889 = vmatmul.bf16.gmra.mxu0 %v5475
  %v5890 = vpop.f32.mrf.mxu0
  %v5891 = vadd.f32 %v5802, %v5890
  %v5892 = vpop.f32.mrf.mxu0
  %v5893 = vadd.f32 %v5804, %v5892
  %5894 = vmatmul.bf16.gmra.mxu0 %v5478
  %v5895 = vpop.f32.mrf.mxu0
  %v5896 = vadd.f32 %v5807, %v5895
  %v5897 = vpop.f32.mrf.mxu0
  %v5898 = vadd.f32 %v5809, %v5897
  %5899 = vmatmul.bf16.gmra.mxu0 %v2506
  %v5900 = vpop.f32.mrf.mxu0
  %v5901 = vadd.f32 %v5812, %v5900
  %v5902 = vpop.f32.mrf.mxu0
  %v5903 = vadd.f32 %v5814, %v5902
  %5904 = vmatmul.bf16.gmra.mxu0 %v2506
  %v5905 = vpop.f32.mrf.mxu0
  %v5906 = vadd.f32 %v5817, %v5905
  %v5907 = vpop.f32.mrf.mxu0
  %v5908 = vadd.f32 %v5819, %v5907
  %5909 = vmatmul.bf16.gmra.mxu0 %v2506
  %v5910 = vpop.f32.mrf.mxu0
  %v5911 = vadd.f32 %v5822, %v5910
  %v5912 = vpop.f32.mrf.mxu0
  %v5913 = vadd.f32 %v5824, %v5912
  %5914 = vmatmul.bf16.gmra.mxu0 %v2506
  %v5915 = vpop.f32.mrf.mxu0
  %v5916 = vadd.f32 %v5827, %v5915
  %v5917 = vpop.f32.mrf.mxu0
  %v5918 = vadd.f32 %v5829, %v5917
  %5919 = vdwg.mxu0
  %v5944 = vunpack.c.l.b16 %v319
  %v5945 = vunpack.c.l.b16 %v320
  %v5946 = vunpack.c.l.b16 %v321
  %v5947 = vunpack.c.l.b16 %v322
  %v5948 = vunpack.c.l.b16 %v323
  %v5949 = vunpack.c.l.b16 %v324
  %v5950 = vunpack.c.l.b16 %v325
  %v5951 = vunpack.c.l.b16 %v326
  %v5952 = vunpack.c.l.b16 %v327
  %v5953 = vunpack.c.l.b16 %v328
  %v5954 = vunpack.c.l.b16 %v329
  %v5955 = vunpack.c.l.b16 %v330
  %v5956 = vunpack.c.l.b16 %v331
  %v5957 = vunpack.c.l.b16 %v332
  %v5958 = vunpack.c.l.b16 %v333
  %v5959 = vunpack.c.l.b16 %v334
  %v5960 = vunpack.c.l.b16 %v335
  %v5961 = vunpack.c.l.b16 %v336
  %v5962 = vunpack.c.l.b16 %v337
  %v5963 = vunpack.c.l.b16 %v338
  %v5964 = vunpack.c.l.b16 %v339
  %v5965 = vunpack.c.l.b16 %v340
  %v5966 = vunpack.c.l.b16 %v341
  %v5967 = vunpack.c.l.b16 %v342
  %v5968 = vpack.c.b16 %v5945, %v5944
  %v5969 = vpack.c.b16 %v5947, %v5946
  %v5970 = vpack.c.b16 %v5949, %v5948
  %v5971 = vpack.c.b16 %v5951, %v5950
  %v5972 = vpack.c.b16 %v5953, %v5952
  %v5973 = vpack.c.b16 %v5955, %v5954
  %v5974 = vpack.c.b16 %v5957, %v5956
  %v5975 = vpack.c.b16 %v5959, %v5958
  %v5976 = vpack.c.b16 %v5961, %v5960
  %v5977 = vpack.c.b16 %v5963, %v5962
  %v5978 = vpack.c.b16 %v5965, %v5964
  %v5979 = vpack.c.b16 %v5967, %v5966
  %5992 = vmatpush.bf16.msra.mxu0 %v5975
  %5993 = vmatpush.bf16.msra.mxu0 %v5974
  %5994 = vmatpush.bf16.msra.mxu0 %v5973
  %5995 = vmatpush.bf16.msra.mxu0 %v5972
  %5996 = vmatpush.bf16.msra.mxu0 %v5971
  %5997 = vmatpush.bf16.msra.mxu0 %v5970
  %5998 = vmatpush.bf16.msra.mxu0 %v5969
  %5999 = vmatpush.bf16.msra.mxu0 %v5968
  %6000 = vmatmul.bf16.gmra.mxu0 %v5369
  %v6001 = vpop.f32.mrf.mxu0
  %v6002 = vadd.f32 0.0, %v6001
  %v6003 = vpop.f32.mrf.mxu0
  %v6004 = vadd.f32 0.0, %v6003
  %6005 = vmatmul.bf16.gmra.mxu0 %v5372
  %v6006 = vpop.f32.mrf.mxu0
  %v6007 = vadd.f32 0.0, %v6006
  %v6008 = vpop.f32.mrf.mxu0
  %v6009 = vadd.f32 0.0, %v6008
  %6010 = vmatmul.bf16.gmra.mxu0 %v5375
  %v6011 = vpop.f32.mrf.mxu0
  %v6012 = vadd.f32 0.0, %v6011
  %v6013 = vpop.f32.mrf.mxu0
  %v6014 = vadd.f32 0.0, %v6013
  %6015 = vmatmul.bf16.gmra.mxu0 %v5378
  %v6016 = vpop.f32.mrf.mxu0
  %v6017 = vadd.f32 0.0, %v6016
  %v6018 = vpop.f32.mrf.mxu0
  %v6019 = vadd.f32 0.0, %v6018
  %6020 = vmatmul.bf16.gmra.mxu0 %v5382
  %v6021 = vpop.f32.mrf.mxu0
  %v6022 = vadd.f32 0.0, %v6021
  %v6023 = vpop.f32.mrf.mxu0
  %v6024 = vadd.f32 0.0, %v6023
  %6025 = vmatmul.bf16.gmra.mxu0 %v5386
  %v6026 = vpop.f32.mrf.mxu0
  %v6027 = vadd.f32 0.0, %v6026
  %v6028 = vpop.f32.mrf.mxu0
  %v6029 = vadd.f32 0.0, %v6028
  %6030 = vmatmul.bf16.gmra.mxu0 %v5390
  %v6031 = vpop.f32.mrf.mxu0
  %v6032 = vadd.f32 0.0, %v6031
  %v6033 = vpop.f32.mrf.mxu0
  %v6034 = vadd.f32 0.0, %v6033
  %6035 = vmatmul.bf16.gmra.mxu0 %v5394
  %v6036 = vpop.f32.mrf.mxu0
  %v6037 = vadd.f32 0.0, %v6036
  %v6038 = vpop.f32.mrf.mxu0
  %v6039 = vadd.f32 0.0, %v6038
  %6040 = vmatmul.bf16.gmra.mxu0 0
  %v6041 = vpop.f32.mrf.mxu0
  %v6042 = vadd.f32 0.0, %v6041
  %v6043 = vpop.f32.mrf.mxu0
  %v6044 = vadd.f32 0.0, %v6043
  %6045 = vmatmul.bf16.gmra.mxu0 0
  %v6046 = vpop.f32.mrf.mxu0
  %v6047 = vadd.f32 0.0, %v6046
  %v6048 = vpop.f32.mrf.mxu0
  %v6049 = vadd.f32 0.0, %v6048
  %6050 = vmatmul.bf16.gmra.mxu0 0
  %v6051 = vpop.f32.mrf.mxu0
  %v6052 = vadd.f32 0.0, %v6051
  %v6053 = vpop.f32.mrf.mxu0
  %v6054 = vadd.f32 0.0, %v6053
  %6055 = vmatmul.bf16.gmra.mxu0 0
  %v6056 = vpop.f32.mrf.mxu0
  %v6057 = vadd.f32 0.0, %v6056
  %v6058 = vpop.f32.mrf.mxu0
  %v6059 = vadd.f32 0.0, %v6058
  %6060 = vmatmul.bf16.gmra.mxu0 0
  %v6061 = vpop.f32.mrf.mxu0
  %v6062 = vadd.f32 0.0, %v6061
  %v6063 = vpop.f32.mrf.mxu0
  %v6064 = vadd.f32 0.0, %v6063
  %6065 = vmatmul.bf16.gmra.mxu0 0
  %v6066 = vpop.f32.mrf.mxu0
  %v6067 = vadd.f32 0.0, %v6066
  %v6068 = vpop.f32.mrf.mxu0
  %v6069 = vadd.f32 0.0, %v6068
  %6070 = vmatmul.bf16.gmra.mxu0 0
  %v6071 = vpop.f32.mrf.mxu0
  %v6072 = vadd.f32 0.0, %v6071
  %v6073 = vpop.f32.mrf.mxu0
  %v6074 = vadd.f32 0.0, %v6073
  %6075 = vmatmul.bf16.gmra.mxu0 0
  %v6076 = vpop.f32.mrf.mxu0
  %v6077 = vadd.f32 0.0, %v6076
  %v6078 = vpop.f32.mrf.mxu0
  %v6079 = vadd.f32 0.0, %v6078
  %6080 = vdwg.mxu0
  %6081 = vmatpush.bf16.msra.mxu0 0
  %6082 = vmatpush.bf16.msra.mxu0 0
  %6083 = vmatpush.bf16.msra.mxu0 0
  %6084 = vmatpush.bf16.msra.mxu0 0
  %6085 = vmatpush.bf16.msra.mxu0 %v5979
  %6086 = vmatpush.bf16.msra.mxu0 %v5978
  %6087 = vmatpush.bf16.msra.mxu0 %v5977
  %6088 = vmatpush.bf16.msra.mxu0 %v5976
  %6089 = vmatmul.bf16.gmra.mxu0 %v5481
  %v6090 = vpop.f32.mrf.mxu0
  %v6091 = vadd.f32 %v6002, %v6090
  %v6092 = vpop.f32.mrf.mxu0
  %v6093 = vadd.f32 %v6004, %v6092
  %6094 = vmatmul.bf16.gmra.mxu0 %v5484
  %v6095 = vpop.f32.mrf.mxu0
  %v6096 = vadd.f32 %v6007, %v6095
  %v6097 = vpop.f32.mrf.mxu0
  %v6098 = vadd.f32 %v6009, %v6097
  %6099 = vmatmul.bf16.gmra.mxu0 %v5487
  %v6100 = vpop.f32.mrf.mxu0
  %v6101 = vadd.f32 %v6012, %v6100
  %v6102 = vpop.f32.mrf.mxu0
  %v6103 = vadd.f32 %v6014, %v6102
  %6104 = vmatmul.bf16.gmra.mxu0 %v5490
  %v6105 = vpop.f32.mrf.mxu0
  %v6106 = vadd.f32 %v6017, %v6105
  %v6107 = vpop.f32.mrf.mxu0
  %v6108 = vadd.f32 %v6019, %v6107
  %6109 = vmatmul.bf16.gmra.mxu0 %v2506
  %v6110 = vpop.f32.mrf.mxu0
  %v6111 = vadd.f32 %v6022, %v6110
  %v6112 = vpop.f32.mrf.mxu0
  %v6113 = vadd.f32 %v6024, %v6112
  %6114 = vmatmul.bf16.gmra.mxu0 %v2506
  %v6115 = vpop.f32.mrf.mxu0
  %v6116 = vadd.f32 %v6027, %v6115
  %v6117 = vpop.f32.mrf.mxu0
  %v6118 = vadd.f32 %v6029, %v6117
  %6119 = vmatmul.bf16.gmra.mxu0 %v2506
  %v6120 = vpop.f32.mrf.mxu0
  %v6121 = vadd.f32 %v6032, %v6120
  %v6122 = vpop.f32.mrf.mxu0
  %v6123 = vadd.f32 %v6034, %v6122
  %6124 = vmatmul.bf16.gmra.mxu0 %v2506
  %v6125 = vpop.f32.mrf.mxu0
  %v6126 = vadd.f32 %v6037, %v6125
  %v6127 = vpop.f32.mrf.mxu0
  %v6128 = vadd.f32 %v6039, %v6127
  %6129 = vmatmul.bf16.gmra.mxu0 %v2770
  %v6130 = vpop.f32.mrf.mxu0
  %v6131 = vadd.f32 %v6042, %v6130
  %v6132 = vpop.f32.mrf.mxu0
  %v6133 = vadd.f32 %v6044, %v6132
  %6134 = vmatmul.bf16.gmra.mxu0 %v2770
  %v6135 = vpop.f32.mrf.mxu0
  %v6136 = vadd.f32 %v6047, %v6135
  %v6137 = vpop.f32.mrf.mxu0
  %v6138 = vadd.f32 %v6049, %v6137
  %6139 = vmatmul.bf16.gmra.mxu0 %v2770
  %v6140 = vpop.f32.mrf.mxu0
  %v6141 = vadd.f32 %v6052, %v6140
  %v6142 = vpop.f32.mrf.mxu0
  %v6143 = vadd.f32 %v6054, %v6142
  %6144 = vmatmul.bf16.gmra.mxu0 %v2770
  %v6145 = vpop.f32.mrf.mxu0
  %v6146 = vadd.f32 %v6057, %v6145
  %v6147 = vpop.f32.mrf.mxu0
  %v6148 = vadd.f32 %v6059, %v6147
  %6149 = vmatmul.bf16.gmra.mxu0 %v2770
  %v6150 = vpop.f32.mrf.mxu0
  %v6151 = vadd.f32 %v6062, %v6150
  %v6152 = vpop.f32.mrf.mxu0
  %v6153 = vadd.f32 %v6064, %v6152
  %6154 = vmatmul.bf16.gmra.mxu0 %v2770
  %v6155 = vpop.f32.mrf.mxu0
  %v6156 = vadd.f32 %v6067, %v6155
  %v6157 = vpop.f32.mrf.mxu0
  %v6158 = vadd.f32 %v6069, %v6157
  %6159 = vmatmul.bf16.gmra.mxu0 %v2770
  %v6160 = vpop.f32.mrf.mxu0
  %v6161 = vadd.f32 %v6072, %v6160
  %v6162 = vpop.f32.mrf.mxu0
  %v6163 = vadd.f32 %v6074, %v6162
  %6164 = vmatmul.bf16.gmra.mxu0 %v2770
  %v6165 = vpop.f32.mrf.mxu0
  %v6166 = vadd.f32 %v6077, %v6165
  %v6167 = vpop.f32.mrf.mxu0
  %v6168 = vadd.f32 %v6079, %v6167
  %6169 = vdwg.mxu0
  %v6170 = vadd.f32 %v5841, %v6091
  %v6171 = vadd.f32 %v5843, %v6093
  %v6172 = vadd.f32 %v5846, %v6096
  %v6173 = vadd.f32 %v5848, %v6098
  %v6174 = vadd.f32 %v5851, %v6101
  %v6175 = vadd.f32 %v5853, %v6103
  %v6176 = vadd.f32 %v5856, %v6106
  %v6177 = vadd.f32 %v5858, %v6108
  %v6178 = vadd.f32 %v5861, %v6111
  %v6179 = vadd.f32 %v5863, %v6113
  %v6180 = vadd.f32 %v5866, %v6116
  %v6181 = vadd.f32 %v5868, %v6118
  %v6182 = vadd.f32 %v5871, %v6121
  %v6183 = vadd.f32 %v5873, %v6123
  %v6184 = vadd.f32 %v5876, %v6126
  %v6185 = vadd.f32 %v5878, %v6128
  %v6186 = vadd.f32 %v5881, %v6131
  %v6187 = vadd.f32 %v5883, %v6133
  %v6188 = vadd.f32 %v5886, %v6136
  %v6189 = vadd.f32 %v5888, %v6138
  %v6190 = vadd.f32 %v5891, %v6141
  %v6191 = vadd.f32 %v5893, %v6143
  %v6192 = vadd.f32 %v5896, %v6146
  %v6193 = vadd.f32 %v5898, %v6148
  %v6194 = vadd.f32 %v5901, %v6151
  %v6195 = vadd.f32 %v5903, %v6153
  %v6196 = vadd.f32 %v5906, %v6156
  %v6197 = vadd.f32 %v5908, %v6158
  %v6198 = vadd.f32 %v5911, %v6161
  %v6199 = vadd.f32 %v5913, %v6163
  %v6200 = vadd.f32 %v5916, %v6166
  %v6201 = vadd.f32 %v5918, %v6168
  %v6203 = vperm.slane %v344, 0
  %v6205 = vadd.f32 %v6170, %v6203
  %v6206 = vadd.f32 %v6171, %v6203
  %v6207 = vadd.f32 %v6172, %v6203
  %v6208 = vadd.f32 %v6173, %v6203
  %v6209 = vadd.f32 %v6174, %v6203
  %v6210 = vadd.f32 %v6175, %v6203
  %v6211 = vadd.f32 %v6176, %v6203
  %v6212 = vadd.f32 %v6177, %v6203
  %v6213 = vadd.f32 %v6178, %v6203
  %v6214 = vadd.f32 %v6179, %v6203
  %v6215 = vadd.f32 %v6180, %v6203
  %v6216 = vadd.f32 %v6181, %v6203
  %v6217 = vadd.f32 %v6182, %v6203
  %v6218 = vadd.f32 %v6183, %v6203
  %v6219 = vadd.f32 %v6184, %v6203
  %v6220 = vadd.f32 %v6185, %v6203
  %v6221 = vadd.f32 %v6186, %v6203
  %v6222 = vadd.f32 %v6187, %v6203
  %v6223 = vadd.f32 %v6188, %v6203
  %v6224 = vadd.f32 %v6189, %v6203
  %v6225 = vadd.f32 %v6190, %v6203
  %v6226 = vadd.f32 %v6191, %v6203
  %v6227 = vadd.f32 %v6192, %v6203
  %v6228 = vadd.f32 %v6193, %v6203
  %v6229 = vadd.f32 %v6194, %v6203
  %v6230 = vadd.f32 %v6195, %v6203
  %v6231 = vadd.f32 %v6196, %v6203
  %v6232 = vadd.f32 %v6197, %v6203
  %v6233 = vadd.f32 %v6198, %v6203
  %v6234 = vadd.f32 %v6199, %v6203
  %v6235 = vadd.f32 %v6200, %v6203
  %v6236 = vadd.f32 %v6201, %v6203
  %v6237 = vmax.f32 %v6205, 0.0
  %v6238 = vmax.f32 %v6206, 0.0
  %v6239 = vmax.f32 %v6207, 0.0
  %v6240 = vmax.f32 %v6208, 0.0
  %v6241 = vmax.f32 %v6209, 0.0
  %v6242 = vmax.f32 %v6210, 0.0
  %v6243 = vmax.f32 %v6211, 0.0
  %v6244 = vmax.f32 %v6212, 0.0
  %v6245 = vmax.f32 %v6213, 0.0
  %v6246 = vmax.f32 %v6214, 0.0
  %v6247 = vmax.f32 %v6215, 0.0
  %v6248 = vmax.f32 %v6216, 0.0
  %v6249 = vmax.f32 %v6217, 0.0
  %v6250 = vmax.f32 %v6218, 0.0
  %v6251 = vmax.f32 %v6219, 0.0
  %v6252 = vmax.f32 %v6220, 0.0
  %v6253 = vmax.f32 %v6221, 0.0
  %v6254 = vmax.f32 %v6222, 0.0
  %v6255 = vmax.f32 %v6223, 0.0
  %v6256 = vmax.f32 %v6224, 0.0
  %v6257 = vmax.f32 %v6225, 0.0
  %v6258 = vmax.f32 %v6226, 0.0
  %v6259 = vmax.f32 %v6227, 0.0
  %v6260 = vmax.f32 %v6228, 0.0
  %v6261 = vmax.f32 %v6229, 0.0
  %v6262 = vmax.f32 %v6230, 0.0
  %v6263 = vmax.f32 %v6231, 0.0
  %v6264 = vmax.f32 %v6232, 0.0
  %v6265 = vmax.f32 %v6233, 0.0
  %v6266 = vmax.f32 %v6234, 0.0
  %v6267 = vmax.f32 %v6235, 0.0
  %v6268 = vmax.f32 %v6236, 0.0
  %v6269 = vpack.c.bf16 %v6237, %v6237
  %v6270 = vpack.c.bf16 %v6238, %v6238
  %v6271 = vpack.c.bf16 %v6239, %v6239
  %v6272 = vpack.c.bf16 %v6240, %v6240
  %v6273 = vpack.c.bf16 %v6241, %v6241
  %v6274 = vpack.c.bf16 %v6242, %v6242
  %v6275 = vpack.c.bf16 %v6243, %v6243
  %v6276 = vpack.c.bf16 %v6244, %v6244
  %v6277 = vpack.c.bf16 %v6245, %v6245
  %v6278 = vpack.c.bf16 %v6246, %v6246
  %v6279 = vpack.c.bf16 %v6247, %v6247
  %v6280 = vpack.c.bf16 %v6248, %v6248
  %v6281 = vpack.c.bf16 %v6249, %v6249
  %v6282 = vpack.c.bf16 %v6250, %v6250
  %v6283 = vpack.c.bf16 %v6251, %v6251
  %v6284 = vpack.c.bf16 %v6252, %v6252
  %v6285 = vpack.c.bf16 %v6253, %v6253
  %v6286 = vpack.c.bf16 %v6254, %v6254
  %v6287 = vpack.c.bf16 %v6255, %v6255
  %v6288 = vpack.c.bf16 %v6256, %v6256
  %v6289 = vpack.c.bf16 %v6257, %v6257
  %v6290 = vpack.c.bf16 %v6258, %v6258
  %v6291 = vpack.c.bf16 %v6259, %v6259
  %v6292 = vpack.c.bf16 %v6260, %v6260
  %v6293 = vpack.c.bf16 %v6261, %v6261
  %v6294 = vpack.c.bf16 %v6262, %v6262
  %v6295 = vpack.c.bf16 %v6263, %v6263
  %v6296 = vpack.c.bf16 %v6264, %v6264
  %v6297 = vpack.c.bf16 %v6265, %v6265
  %v6298 = vpack.c.bf16 %v6266, %v6266
  %v6299 = vpack.c.bf16 %v6267, %v6267
  %v6300 = vpack.c.bf16 %v6268, %v6268
  %vm6301 = vcmask 519168
  %6302 = vst.msk [vmem:[%s5] sm:$0xf] %vm6301, %v6269
  %6303 = vst.msk [vmem:[%s5 + $0x4] sm:$0xf] %vm6301, %v6270
  %6304 = vst.msk [vmem:[%s5 + $0x8] sm:$0xf] %vm6301, %v6271
  %6305 = vst.msk [vmem:[%s5 + $0xc] sm:$0xf] %vm6301, %v6272
  %6306 = vst.msk [vmem:[%s5 + $0x10] sm:$0xf] %vm6301, %v6273
  %6307 = vst.msk [vmem:[%s5 + $0x14] sm:$0xf] %vm6301, %v6274
  %6308 = vst.msk [vmem:[%s5 + $0x18] sm:$0xf] %vm6301, %v6275
  %6309 = vst.msk [vmem:[%s5 + $0x1c] sm:$0xf] %vm6301, %v6276
  %6310 = vst.msk [vmem:[%s5 + $0x20] sm:$0xf] %vm6301, %v6277
  %6311 = vst.msk [vmem:[%s5 + $0x24] sm:$0xf] %vm6301, %v6278
  %6312 = vst.msk [vmem:[%s5 + $0x28] sm:$0xf] %vm6301, %v6279
  %6313 = vst.msk [vmem:[%s5 + $0x2c] sm:$0xf] %vm6301, %v6280
  %6314 = vst.msk [vmem:[%s5 + $0x30] sm:$0xf] %vm6301, %v6281
  %6315 = vst.msk [vmem:[%s5 + $0x34] sm:$0xf] %vm6301, %v6282
  %6316 = vst.msk [vmem:[%s5 + $0x38] sm:$0xf] %vm6301, %v6283
  %6317 = vst.msk [vmem:[%s5 + $0x3c] sm:$0xf] %vm6301, %v6284
  %6318 = vst.msk [vmem:[%s5 + $0x40] sm:$0xf] %vm6301, %v6285
  %6319 = vst.msk [vmem:[%s5 + $0x44] sm:$0xf] %vm6301, %v6286
  %6320 = vst.msk [vmem:[%s5 + $0x48] sm:$0xf] %vm6301, %v6287
  %6321 = vst.msk [vmem:[%s5 + $0x4c] sm:$0xf] %vm6301, %v6288
  %6322 = vst.msk [vmem:[%s5 + $0x50] sm:$0xf] %vm6301, %v6289
  %6323 = vst.msk [vmem:[%s5 + $0x54] sm:$0xf] %vm6301, %v6290
  %6324 = vst.msk [vmem:[%s5 + $0x58] sm:$0xf] %vm6301, %v6291
  %6325 = vst.msk [vmem:[%s5 + $0x5c] sm:$0xf] %vm6301, %v6292
  %6326 = vst.msk [vmem:[%s5 + $0x60] sm:$0xf] %vm6301, %v6293
  %6327 = vst.msk [vmem:[%s5 + $0x64] sm:$0xf] %vm6301, %v6294
  %6328 = vst.msk [vmem:[%s5 + $0x68] sm:$0xf] %vm6301, %v6295
  %6329 = vst.msk [vmem:[%s5 + $0x6c] sm:$0xf] %vm6301, %v6296
  %6330 = vst.msk [vmem:[%s5 + $0x70] sm:$0xf] %vm6301, %v6297
  %6331 = vst.msk [vmem:[%s5 + $0x74] sm:$0xf] %vm6301, %v6298
  %6332 = vst.msk [vmem:[%s5 + $0x78] sm:$0xf] %vm6301, %v6299
  %6333 = vst.msk [vmem:[%s5 + $0x7c] sm:$0xf] %vm6301, %v6300
  // Predicated region
  $region22: #{net2x_forward.9} parent=0 // pred_check
    _
  $region23: #{net2x_forward.9} parent=0 // pred_check_branch
    %6335 = sbr.rel (0) target = $region25
  $region24: #{net2x_forward.9} parent=0 // pred_region
    _
  $region25: #{net2x_forward.9} parent=0 // pred_fallthru
    _
  // Predicated region
  $region26: #{net2x_forward.9} parent=0 // pred_check
    _
  $region27: #{net2x_forward.9} parent=0 // pred_check_branch
    %6337 = sbr.rel (0) target = $region29
  $region28: #{net2x_forward.9} parent=0 // pred_region
    _
  $region29: #{net2x_forward.9} parent=0 // pred_fallthru
    _

// kernel: net2x_forward.15
$region0: #{net2x_forward.15}
  #allocation0 [shape = 'u32[]', space=smem, size = 0x4, offset = 0x4, fixed_abs, tag = 'smem constant byte address 0x4 - core index']
  #allocation1 [shape = 'u32[72,128]{1,0:T(1,128)}', space=vmem, size = 0x9000, scoped, tag = 'internal scratch']
  #allocation2 [shape = 'f32[1,1]{1,0:T(1,128)S(1)}', space=vmem, size = 0x200, scoped, tag = 'scoped memory for net2x_forward.15']
  %s0 = inlined_call_operand.vmem [shape: bf16[4,16,16,64], index: 0, kind: input, shape index: {}]
  %s1 = inlined_call_operand.vmem [shape: f32[4,16,16,1], index: 1, kind: input, shape index: {}]
  %s2 = inlined_call_operand.vmem [shape: bf16[3,192,1], index: 2, kind: input, shape index: {}]
  %s3 = inlined_call_operand.<no memory space> [shape: f32[1,1], index: 3, kind: input, shape index: {}]
  %s4 = inlined_call_operand.vmem [shape: f32[4,16,16,1], index: 4, kind: output, shape index: {}]
  %s5 = sld [smem:[#allocation0]]
  $region49: #{net2x_forward.15} parent=0
    _
  %s7 = ssub.s32 1, %s5
  %s8 = scalar_select 0, %s7, %s5
  %v9 = vstv %s3
  %10 = vst [vmem:[#allocation2] sm:$0x1] %v9
  loop: start=0, step=1, limit=4
  $region2: #{net2x_forward.15} parent=0 // loop_pre_header
    _
  $region3: #{net2x_forward.15} parent=0 // loop_header
    %s12 = sphi 0, %s16
    %p13 = scmp.ge.s32.totalorder %s12, 4
    %s22 = sphi 0, %s24
    %s25 = sphi 0, %s22
    %s26 = sphi 0, %s25
    %s42 = sphi 0, %s26
    %s48 = sphi 0, %s50
    %s51 = sphi 0, %s48
    %s52 = sphi 0, %s51
    %s68 = sphi 0, %s52
    %s72 = sphi 0, %s72
    %s74 = sphi 0, %s72
    %s75 = sphi 0, %s74
    %s89 = sphi 0, %s75
    %s93 = sphi 0, %s93
    %s95 = sphi 0, %s93
    %s96 = sphi 0, %s95
    %s110 = sphi 0, %s96
    %s116 = sphi 0, %s118
    %s119 = sphi 0, %s116
    %s120 = sphi 0, %s119
    %s136 = sphi 0, %s120
  $region4: #{net2x_forward.15} parent=0 // loop_header_branch
    %15 = sbr.rel (%p13) target = $region8
  $region5: #{net2x_forward.15} parent=0 // loop_body
    %s17 = ssub.s32 %s12, 1
    %s18 = ssub.s32 %s12, 2
    %s19 = sadd.s32 %s12, 1
    %s20 = ssub.s32 %s12, %s19
    %p21 = scmp.eq.s32.totalorder %s20, 0
    %s23 = sadd.s32 %s22, 1
    %s24 = scalar_select %p21, %s22, %s23
    %p27 = pneg %p21
    %p28 = scmp.eq.s32.totalorder %s12, 1
    %p29 = por %p27, %p28
    %p30 = scmp.ne.s32.totalorder %s22, %s25
    %p31 = scmp.eq.s32.totalorder %s12, 0
    %p32 = por %p30, %p31
    %p33 = scmp.ne.s32.totalorder %s22, %s25
    %p34 = scmp.eq.s32.totalorder %s17, 1
    %p35 = por %p33, %p34
    %p36 = scmp.ne.s32.totalorder %s25, %s26
    %p37 = scmp.eq.s32.totalorder %s17, 0
    %p38 = por %p36, %p37
    %p39 = scmp.ne.s32.totalorder %s25, %s26
    %p40 = scmp.eq.s32.totalorder %s18, 1
    %p41 = por %p39, %p40
    %p43 = scmp.ne.s32.totalorder %s26, %s42
    %p44 = scmp.eq.s32.totalorder %s18, 0
    %p45 = por %p43, %p44
    %s46 = ssub.s32 %s12, %s19
    %p47 = scmp.eq.s32.totalorder %s46, 0
    %s49 = sadd.s32 %s48, 1
    %s50 = scalar_select %p47, %s48, %s49
    %p53 = pneg %p47
    %p54 = scmp.eq.s32.totalorder %s12, 1
    %p55 = por %p53, %p54
    %p56 = scmp.ne.s32.totalorder %s48, %s51
    %p57 = scmp.eq.s32.totalorder %s12, 0
    %p58 = por %p56, %p57
    %p59 = scmp.ne.s32.totalorder %s48, %s51
    %p60 = scmp.eq.s32.totalorder %s17, 1
    %p61 = por %p59, %p60
    %p62 = scmp.ne.s32.totalorder %s51, %s52
    %p63 = scmp.eq.s32.totalorder %s17, 0
    %p64 = por %p62, %p63
    %p65 = scmp.ne.s32.totalorder %s51, %s52
    %p66 = scmp.eq.s32.totalorder %s18, 1
    %p67 = por %p65, %p66
    %p69 = scmp.ne.s32.totalorder %s52, %s68
    %p70 = scmp.eq.s32.totalorder %s18, 0
    %p71 = por %p69, %p70
    %s73 = sadd.s32 %s72, 1
    %p76 = scmp.eq.s32.totalorder %s12, 1
    %p77 = scmp.ne.s32.totalorder %s72, %s74
    %p78 = scmp.eq.s32.totalorder %s12, 0
    %p79 = por %p77, %p78
    %p80 = scmp.ne.s32.totalorder %s72, %s74
    %p81 = scmp.eq.s32.totalorder %s17, 1
    %p82 = por %p80, %p81
    %p83 = scmp.ne.s32.totalorder %s74, %s75
    %p84 = scmp.eq.s32.totalorder %s17, 0
    %p85 = por %p83, %p84
    %p86 = scmp.ne.s32.totalorder %s74, %s75
    %p87 = scmp.eq.s32.totalorder %s18, 1
    %p88 = por %p86, %p87
    %p90 = scmp.ne.s32.totalorder %s75, %s89
    %p91 = scmp.eq.s32.totalorder %s18, 0
    %p92 = por %p90, %p91
    %s94 = sadd.s32 %s93, 1
    %p97 = scmp.eq.s32.totalorder %s12, 1
    %p98 = scmp.ne.s32.totalorder %s93, %s95
    %p99 = scmp.eq.s32.totalorder %s12, 0
    %p100 = por %p98, %p99
    %p101 = scmp.ne.s32.totalorder %s93, %s95
    %p102 = scmp.eq.s32.totalorder %s17, 1
    %p103 = por %p101, %p102
    %p104 = scmp.ne.s32.totalorder %s95, %s96
    %p105 = scmp.eq.s32.totalorder %s17, 0
    %p106 = por %p104, %p105
    %p107 = scmp.ne.s32.totalorder %s95, %s96
    %p108 = scmp.eq.s32.totalorder %s18, 1
    %p109 = por %p107, %p108
    %p111 = scmp.ne.s32.totalorder %s96, %s110
    %p112 = scmp.eq.s32.totalorder %s18, 0
    %p113 = por %p111, %p112
    %s114 = ssub.s32 %s12, %s19
    %p115 = scmp.eq.s32.totalorder %s114, 0
    %s117 = sadd.s32 %s116, 1
    %s118 = scalar_select %p115, %s116, %s117
    %p121 = pneg %p115
    %p122 = scmp.eq.s32.totalorder %s12, 1
    %p123 = por %p121, %p122
    %p124 = scmp.ne.s32.totalorder %s116, %s119
    %p125 = scmp.eq.s32.totalorder %s12, 0
    %p126 = por %p124, %p125
    %p127 = scmp.ne.s32.totalorder %s116, %s119
    %p128 = scmp.eq.s32.totalorder %s17, 1
    %p129 = por %p127, %p128
    %p130 = scmp.ne.s32.totalorder %s119, %s120
    %p131 = scmp.eq.s32.totalorder %s17, 0
    %p132 = por %p130, %p131
    %p133 = scmp.ne.s32.totalorder %s119, %s120
    %p134 = scmp.eq.s32.totalorder %s18, 1
    %p135 = por %p133, %p134
    %p137 = scmp.ne.s32.totalorder %s120, %s136
    %p138 = scmp.eq.s32.totalorder %s18, 0
    %p139 = por %p137, %p138
    %p140 = scmp.le.s32.totalorder 1, %s12
    %p141 = scmp.lt.s32.totalorder %s12, 3
    %p142 = pnand %p140, %p141
    %p143 = pneg %p142
    // Predicated region
    $region9: #{net2x_forward.15} parent=5 // pred_check
      _
    $region10: #{net2x_forward.15} parent=5 // pred_check_branch
      %145 = sbr.rel (%p142) target = $region12
    $region11: #{net2x_forward.15} parent=5 // pred_region
      %s146 = ssub.s32 %s12, 1
      // Predicated region
      $region13: #{net2x_forward.15} parent=11 // pred_check
        %p147 = pneg %p85
      $region14: #{net2x_forward.15} parent=11 // pred_check_branch
        %149 = sbr.rel (%p147) target = $region16
      $region15: #{net2x_forward.15} parent=11 // pred_region
        _
      $region16: #{net2x_forward.15} parent=11 // pred_fallthru
        _
      // Predicated region
      $region17: #{net2x_forward.15} parent=11 // pred_check
        %p150 = pneg %p106
      $region18: #{net2x_forward.15} parent=11 // pred_check_branch
        %152 = sbr.rel (%p150) target = $region20
      $region19: #{net2x_forward.15} parent=11 // pred_region
        _
      $region20: #{net2x_forward.15} parent=11 // pred_fallthru
        _
    $region12: #{net2x_forward.15} parent=5 // pred_fallthru
      _
    %p153 = scmp.lt.s32.totalorder %s12, 2
    // Predicated region
    $region21: #{net2x_forward.15} parent=5 // pred_check
      %p154 = pneg %p153
    $region22: #{net2x_forward.15} parent=5 // pred_check_branch
      %156 = sbr.rel (%p154) target = $region24
    $region23: #{net2x_forward.15} parent=5 // pred_region
      // Predicated region
      $region25: #{net2x_forward.15} parent=23 // pred_check
        %p157 = pneg %p32
      $region26: #{net2x_forward.15} parent=23 // pred_check_branch
        %159 = sbr.rel (%p157) target = $region28
      $region27: #{net2x_forward.15} parent=23 // pred_region
        %s160 = smul.u32 2, %s12
        %p161 = scmp.lt.s32.totalorder %s160, 3
        %s162 = scalar_select %p161, %s160, 3
        %s163 = smul.addr %s162, 32
        %s164 = smul.addr %s163, 4
        %s165 = scalar_lea.vmem %s0, %s164
        %s166 = smul.u32 2, %s12
      $region28: #{net2x_forward.15} parent=23 // pred_fallthru
        _
      // Predicated region
      $region29: #{net2x_forward.15} parent=23 // pred_check
        %p167 = pneg %p58
      $region30: #{net2x_forward.15} parent=23 // pred_check_branch
        %169 = sbr.rel (%p167) target = $region32
      $region31: #{net2x_forward.15} parent=23 // pred_region
        %s170 = smul.u32 2, %s12
        %p171 = scmp.lt.s32.totalorder %s170, 3
        %s172 = scalar_select %p171, %s170, 3
        %s173 = smul.addr %s172, 32
        %s174 = smul.addr %s173, 8
        %s175 = scalar_lea.vmem %s1, %s174
        %s176 = smul.u32 2, %s12
      $region32: #{net2x_forward.15} parent=23 // pred_fallthru
        _
    $region24: #{net2x_forward.15} parent=5 // pred_fallthru
      _
    %p177 = scmp.le.s32.totalorder 1, %s12
    %p178 = scmp.lt.s32.totalorder %s12, 3
    %p179 = pnand %p177, %p178
    %p180 = pneg %p179
    // Predicated region
    $region33: #{net2x_forward.15} parent=5 // pred_check
      _
    $region34: #{net2x_forward.15} parent=5 // pred_check_branch
      %182 = sbr.rel (%p179) target = $region36
    $region35: #{net2x_forward.15} parent=5 // pred_region
      %s183 = ssub.s32 %s12, 1
      %s184 = smul.u32 2, %s17
      %p185 = scmp.lt.s32.totalorder %s184, 3
      %s186 = scalar_select %p185, %s184, 3
      %s187 = smul.addr %s186, 32
      %s188 = smul.addr %s187, 4
      %s189 = scalar_lea.vmem %s0, %s188
      %p190 = pneg %p38
      %p191 = pneg %p35
      %s192 = smul.u32 2, %s17
      %p193 = scmp.lt.s32.totalorder %s192, 3
      %s194 = scalar_select %p193, %s192, 3
      %s195 = smul.addr %s194, 32
      %s196 = smul.addr %s195, 8
      %s197 = scalar_lea.vmem %s1, %s196
      %p198 = pneg %p64
      %p199 = pneg %p61
      %p200 = pneg %p85
      %p201 = pneg %p82
      %p202 = pneg %p106
      %p203 = pneg %p103
      %p204 = pneg %p132
      %p205 = pneg %p129
      %s206 = smul.u32 2, %s17
      %p207 = scmp.lt.s32.totalorder %s206, 3
      %s208 = scalar_select %p207, %s206, 3
      %s209 = smul.addr %s208, 32
      %s210 = smul.addr %s209, 8
      %s211 = scalar_lea.vmem %s4, %s210
      %s212 = smul.u32 2, %s17
      %p213 = scmp.lt.s32.totalorder %s212, 3
      %s214 = scalar_select %p213, %s212, 3
      %s215 = smul.addr %s214, 32
      %s216 = smul.addr %s215, 4
      %s217 = scalar_lea.vmem %s0, %s216
      %s218 = smul.u32 2, %s17
      %s219 = smul.u32 2, %s17
      %p220 = scmp.lt.s32.totalorder %s219, 3
      %s221 = scalar_select %p220, %s219, 3
      %s222 = smul.addr %s221, 32
      %s223 = smul.addr %s222, 8
      %s224 = scalar_lea.vmem %s1, %s223
      %s225 = smul.u32 2, %s17
      %s226 = smul.u32 2, %s17
      %p227 = scmp.lt.s32.totalorder %s226, 3
      %s228 = scalar_select %p227, %s226, 3
      %s229 = smul.addr %s228, 32
      %s230 = smul.addr %s229, 8
      %s231 = scalar_lea.vmem %s4, %s230
      %s232 = smul.u32 2, %s17
      %v234 = vld [vmem:[%s217] sm:$0xf]
      %v235 = vld [vmem:[%s217 + $0x4] sm:$0xf]
      %v236 = vld [vmem:[%s217 + $0x8] sm:$0xf]
      %v237 = vld [vmem:[%s217 + $0xc] sm:$0xf]
      %v238 = vld [vmem:[%s217 + $0x10] sm:$0xf]
      %v239 = vld [vmem:[%s217 + $0x14] sm:$0xf]
      %v240 = vld [vmem:[%s217 + $0x18] sm:$0xf]
      %v241 = vld [vmem:[%s217 + $0x1c] sm:$0xf]
      %v242 = vld [vmem:[%s217 + $0x20] sm:$0xf]
      %v243 = vld [vmem:[%s217 + $0x24] sm:$0xf]
      %v244 = vld [vmem:[%s217 + $0x28] sm:$0xf]
      %v245 = vld [vmem:[%s217 + $0x2c] sm:$0xf]
      %v246 = vld [vmem:[%s217 + $0x30] sm:$0xf]
      %v247 = vld [vmem:[%s217 + $0x34] sm:$0xf]
      %v248 = vld [vmem:[%s217 + $0x38] sm:$0xf]
      %v249 = vld [vmem:[%s217 + $0x3c] sm:$0xf]
      %v250 = vld [vmem:[%s217 + $0x40] sm:$0xf]
      %v251 = vld [vmem:[%s217 + $0x44] sm:$0xf]
      %v252 = vld [vmem:[%s217 + $0x48] sm:$0xf]
      %v253 = vld [vmem:[%s217 + $0x4c] sm:$0xf]
      %v254 = vld [vmem:[%s217 + $0x50] sm:$0xf]
      %v255 = vld [vmem:[%s217 + $0x54] sm:$0xf]
      %v256 = vld [vmem:[%s217 + $0x58] sm:$0xf]
      %v257 = vld [vmem:[%s217 + $0x5c] sm:$0xf]
      %v258 = vld [vmem:[%s217 + $0x60] sm:$0xf]
      %v259 = vld [vmem:[%s217 + $0x64] sm:$0xf]
      %v260 = vld [vmem:[%s217 + $0x68] sm:$0xf]
      %v261 = vld [vmem:[%s217 + $0x6c] sm:$0xf]
      %v262 = vld [vmem:[%s217 + $0x70] sm:$0xf]
      %v263 = vld [vmem:[%s217 + $0x74] sm:$0xf]
      %v264 = vld [vmem:[%s217 + $0x78] sm:$0xf]
      %v265 = vld [vmem:[%s217 + $0x7c] sm:$0xf]
      %v266 = vld [vmem:[%s217 + $0x80] sm:$0xf]
      %v267 = vld [vmem:[%s217 + $0x84] sm:$0xf]
      %v268 = vld [vmem:[%s217 + $0x88] sm:$0xf]
      %v269 = vld [vmem:[%s217 + $0x8c] sm:$0xf]
      %v270 = vld [vmem:[%s217 + $0x90] sm:$0xf]
      %v271 = vld [vmem:[%s217 + $0x94] sm:$0xf]
      %v272 = vld [vmem:[%s217 + $0x98] sm:$0xf]
      %v273 = vld [vmem:[%s217 + $0x9c] sm:$0xf]
      %v274 = vld [vmem:[%s217 + $0xa0] sm:$0xf]
      %v275 = vld [vmem:[%s217 + $0xa4] sm:$0xf]
      %v276 = vld [vmem:[%s217 + $0xa8] sm:$0xf]
      %v277 = vld [vmem:[%s217 + $0xac] sm:$0xf]
      %v278 = vld [vmem:[%s217 + $0xb0] sm:$0xf]
      %v279 = vld [vmem:[%s217 + $0xb4] sm:$0xf]
      %v280 = vld [vmem:[%s217 + $0xb8] sm:$0xf]
      %v281 = vld [vmem:[%s217 + $0xbc] sm:$0xf]
      %v282 = vld [vmem:[%s217 + $0xc0] sm:$0xf]
      %v283 = vld [vmem:[%s217 + $0xc4] sm:$0xf]
      %v284 = vld [vmem:[%s217 + $0xc8] sm:$0xf]
      %v285 = vld [vmem:[%s217 + $0xcc] sm:$0xf]
      %v286 = vld [vmem:[%s217 + $0xd0] sm:$0xf]
      %v287 = vld [vmem:[%s217 + $0xd4] sm:$0xf]
      %v288 = vld [vmem:[%s217 + $0xd8] sm:$0xf]
      %v289 = vld [vmem:[%s217 + $0xdc] sm:$0xf]
      %v290 = vld [vmem:[%s217 + $0xe0] sm:$0xf]
      %v291 = vld [vmem:[%s217 + $0xe4] sm:$0xf]
      %v292 = vld [vmem:[%s217 + $0xe8] sm:$0xf]
      %v293 = vld [vmem:[%s217 + $0xec] sm:$0xf]
      %v294 = vld [vmem:[%s217 + $0xf0] sm:$0xf]
      %v295 = vld [vmem:[%s217 + $0xf4] sm:$0xf]
      %v296 = vld [vmem:[%s217 + $0xf8] sm:$0xf]
      %v297 = vld [vmem:[%s217 + $0xfc] sm:$0xf]
      %v298 = vld [vmem:[%s2] sm:$0xf]
      %v299 = vld [vmem:[%s2 + $0x4] sm:$0xf]
      %v300 = vld [vmem:[%s2 + $0x8] sm:$0xf]
      %v301 = vld [vmem:[%s2 + $0xc] sm:$0xf]
      %v302 = vld [vmem:[%s2 + $0x10] sm:$0xf]
      %v303 = vld [vmem:[%s2 + $0x14] sm:$0xf]
      %v304 = vld [vmem:[%s2 + $0x18] sm:$0xf]
      %v305 = vld [vmem:[%s2 + $0x1c] sm:$0xf]
      %v306 = vld [vmem:[%s2 + $0x20] sm:$0xf]
      %v307 = vld [vmem:[%s2 + $0x24] sm:$0xf]
      %v308 = vld [vmem:[%s2 + $0x28] sm:$0xf]
      %v309 = vld [vmem:[%s2 + $0x2c] sm:$0xf]
      %v310 = vld [vmem:[%s2 + $0x30] sm:$0xf]
      %v311 = vld [vmem:[%s2 + $0x34] sm:$0xf]
      %v312 = vld [vmem:[%s2 + $0x38] sm:$0xf]
      %v313 = vld [vmem:[%s2 + $0x3c] sm:$0xf]
      %v314 = vld [vmem:[%s2 + $0x40] sm:$0xf]
      %v315 = vld [vmem:[%s2 + $0x44] sm:$0xf]
      %v316 = vld [vmem:[%s2 + $0x48] sm:$0xf]
      %v317 = vld [vmem:[%s2 + $0x4c] sm:$0xf]
      %v318 = vld [vmem:[%s2 + $0x50] sm:$0xf]
      %v319 = vld [vmem:[%s2 + $0x54] sm:$0xf]
      %v320 = vld [vmem:[%s2 + $0x58] sm:$0xf]
      %v321 = vld [vmem:[%s2 + $0x5c] sm:$0xf]
      %v322 = vld [vmem:[%s2 + $0x60] sm:$0xf]
      %v323 = vld [vmem:[%s2 + $0x64] sm:$0xf]
      %v324 = vld [vmem:[%s2 + $0x68] sm:$0xf]
      %v325 = vld [vmem:[%s2 + $0x6c] sm:$0xf]
      %v326 = vld [vmem:[%s2 + $0x70] sm:$0xf]
      %v327 = vld [vmem:[%s2 + $0x74] sm:$0xf]
      %v328 = vld [vmem:[%s2 + $0x78] sm:$0xf]
      %v329 = vld [vmem:[%s2 + $0x7c] sm:$0xf]
      %v330 = vld [vmem:[%s2 + $0x80] sm:$0xf]
      %v331 = vld [vmem:[%s2 + $0x84] sm:$0xf]
      %v332 = vld [vmem:[%s2 + $0x88] sm:$0xf]
      %v333 = vld [vmem:[%s2 + $0x8c] sm:$0xf]
      %v334 = vld [vmem:[%s2 + $0x90] sm:$0xf]
      %v335 = vld [vmem:[%s2 + $0x94] sm:$0xf]
      %v336 = vld [vmem:[%s2 + $0x98] sm:$0xf]
      %v337 = vld [vmem:[%s2 + $0x9c] sm:$0xf]
      %v338 = vld [vmem:[%s2 + $0xa0] sm:$0xf]
      %v339 = vld [vmem:[%s2 + $0xa4] sm:$0xf]
      %v340 = vld [vmem:[%s2 + $0xa8] sm:$0xf]
      %v341 = vld [vmem:[%s2 + $0xac] sm:$0xf]
      %v342 = vld [vmem:[%s2 + $0xb0] sm:$0xf]
      %v343 = vld [vmem:[%s2 + $0xb4] sm:$0xf]
      %v344 = vld [vmem:[%s2 + $0xb8] sm:$0xf]
      %v345 = vld [vmem:[%s2 + $0xbc] sm:$0xf]
      %v346 = vld [vmem:[%s2 + $0xc0] sm:$0xf]
      %v347 = vld [vmem:[%s2 + $0xc4] sm:$0xf]
      %v348 = vld [vmem:[%s2 + $0xc8] sm:$0xf]
      %v349 = vld [vmem:[%s2 + $0xcc] sm:$0xf]
      %v350 = vld [vmem:[%s2 + $0xd0] sm:$0xf]
      %v351 = vld [vmem:[%s2 + $0xd4] sm:$0xf]
      %v352 = vld [vmem:[%s2 + $0xd8] sm:$0xf]
      %v353 = vld [vmem:[%s2 + $0xdc] sm:$0xf]
      %v354 = vld [vmem:[%s2 + $0xe0] sm:$0xf]
      %v355 = vld [vmem:[%s2 + $0xe4] sm:$0xf]
      %v356 = vld [vmem:[%s2 + $0xe8] sm:$0xf]
      %v357 = vld [vmem:[%s2 + $0xec] sm:$0xf]
      %v358 = vld [vmem:[%s2 + $0xf0] sm:$0xf]
      %v359 = vld [vmem:[%s2 + $0xf4] sm:$0xf]
      %v360 = vld [vmem:[%s2 + $0xf8] sm:$0xf]
      %v361 = vld [vmem:[%s2 + $0xfc] sm:$0xf]
      %v362 = vld [vmem:[%s2 + $0x100] sm:$0xf]
      %v363 = vld [vmem:[%s2 + $0x104] sm:$0xf]
      %v364 = vld [vmem:[%s2 + $0x108] sm:$0xf]
      %v365 = vld [vmem:[%s2 + $0x10c] sm:$0xf]
      %v366 = vld [vmem:[%s2 + $0x110] sm:$0xf]
      %v367 = vld [vmem:[%s2 + $0x114] sm:$0xf]
      %v368 = vld [vmem:[%s2 + $0x118] sm:$0xf]
      %v369 = vld [vmem:[%s2 + $0x11c] sm:$0xf]
      %v370 = vld [vmem:[#allocation2] sm:$0x1]
      %v435 = vunpack.c.l.b16 %v234
      %v436 = vunpack.c.l.b16 %v235
      %v437 = vunpack.c.l.b16 %v236
      %v438 = vunpack.c.l.b16 %v237
      %v439 = vunpack.c.l.b16 %v238
      %v440 = vunpack.c.l.b16 %v239
      %v441 = vunpack.c.l.b16 %v240
      %v442 = vunpack.c.l.b16 %v241
      %v443 = vunpack.c.l.b16 %v242
      %v444 = vunpack.c.l.b16 %v243
      %v445 = vunpack.c.l.b16 %v244
      %v446 = vunpack.c.l.b16 %v245
      %v447 = vunpack.c.l.b16 %v246
      %v448 = vunpack.c.l.b16 %v247
      %v449 = vunpack.c.l.b16 %v248
      %v450 = vunpack.c.l.b16 %v249
      %v451 = vunpack.c.l.b16 %v250
      %v452 = vunpack.c.l.b16 %v251
      %v453 = vunpack.c.l.b16 %v252
      %v454 = vunpack.c.l.b16 %v253
      %v455 = vunpack.c.l.b16 %v254
      %v456 = vunpack.c.l.b16 %v255
      %v457 = vunpack.c.l.b16 %v256
      %v458 = vunpack.c.l.b16 %v257
      %v459 = vunpack.c.l.b16 %v258
      %v460 = vunpack.c.l.b16 %v259
      %v461 = vunpack.c.l.b16 %v260
      %v462 = vunpack.c.l.b16 %v261
      %v463 = vunpack.c.l.b16 %v262
      %v464 = vunpack.c.l.b16 %v263
      %v465 = vunpack.c.l.b16 %v264
      %v466 = vunpack.c.l.b16 %v265
      %v467 = vunpack.c.l.b16 %v266
      %v468 = vunpack.c.l.b16 %v267
      %v469 = vunpack.c.l.b16 %v268
      %v470 = vunpack.c.l.b16 %v269
      %v471 = vunpack.c.l.b16 %v270
      %v472 = vunpack.c.l.b16 %v271
      %v473 = vunpack.c.l.b16 %v272
      %v474 = vunpack.c.l.b16 %v273
      %v475 = vunpack.c.l.b16 %v274
      %v476 = vunpack.c.l.b16 %v275
      %v477 = vunpack.c.l.b16 %v276
      %v478 = vunpack.c.l.b16 %v277
      %v479 = vunpack.c.l.b16 %v278
      %v480 = vunpack.c.l.b16 %v279
      %v481 = vunpack.c.l.b16 %v280
      %v482 = vunpack.c.l.b16 %v281
      %v483 = vunpack.c.l.b16 %v282
      %v484 = vunpack.c.l.b16 %v283
      %v485 = vunpack.c.l.b16 %v284
      %v486 = vunpack.c.l.b16 %v285
      %v487 = vunpack.c.l.b16 %v286
      %v488 = vunpack.c.l.b16 %v287
      %v489 = vunpack.c.l.b16 %v288
      %v490 = vunpack.c.l.b16 %v289
      %v491 = vunpack.c.l.b16 %v290
      %v492 = vunpack.c.l.b16 %v291
      %v493 = vunpack.c.l.b16 %v292
      %v494 = vunpack.c.l.b16 %v293
      %v495 = vunpack.c.l.b16 %v294
      %v496 = vunpack.c.l.b16 %v295
      %v497 = vunpack.c.l.b16 %v296
      %v498 = vunpack.c.l.b16 %v297
      %v499 = vpack.c.b16 %v436, %v435
      %v500 = vpack.c.b16 %v438, %v437
      %v501 = vpack.c.b16 %v440, %v439
      %v502 = vpack.c.b16 %v442, %v441
      %v503 = vpack.c.b16 %v444, %v443
      %v504 = vpack.c.b16 %v446, %v445
      %v505 = vpack.c.b16 %v448, %v447
      %v506 = vpack.c.b16 %v450, %v449
      %v507 = vpack.c.b16 %v452, %v451
      %v508 = vpack.c.b16 %v454, %v453
      %v509 = vpack.c.b16 %v456, %v455
      %v510 = vpack.c.b16 %v458, %v457
      %v511 = vpack.c.b16 %v460, %v459
      %v512 = vpack.c.b16 %v462, %v461
      %v513 = vpack.c.b16 %v464, %v463
      %v514 = vpack.c.b16 %v466, %v465
      %v515 = vpack.c.b16 %v468, %v467
      %v516 = vpack.c.b16 %v470, %v469
      %v517 = vpack.c.b16 %v472, %v471
      %v518 = vpack.c.b16 %v474, %v473
      %v519 = vpack.c.b16 %v476, %v475
      %v520 = vpack.c.b16 %v478, %v477
      %v521 = vpack.c.b16 %v480, %v479
      %v522 = vpack.c.b16 %v482, %v481
      %v523 = vpack.c.b16 %v484, %v483
      %v524 = vpack.c.b16 %v486, %v485
      %v525 = vpack.c.b16 %v488, %v487
      %v526 = vpack.c.b16 %v490, %v489
      %v527 = vpack.c.b16 %v492, %v491
      %v528 = vpack.c.b16 %v494, %v493
      %v529 = vpack.c.b16 %v496, %v495
      %v530 = vpack.c.b16 %v498, %v497
      %v532 = vshrl.u32 %v499, 16
      %v534 = vrot.slane %v532, 7
      %v535 = vshll.u32 %v499, 16
      %v537 = vor.u32 %v534, %v535
      %v539 = vshrl.u32 %v500, 16
      %v541 = vrot.slane %v539, 7
      %v542 = vshll.u32 %v500, 16
      %v544 = vor.u32 %v541, %v542
      %v546 = vshrl.u32 %v501, 16
      %v548 = vrot.slane %v546, 7
      %v549 = vshll.u32 %v501, 16
      %v551 = vor.u32 %v548, %v549
      %v553 = vshrl.u32 %v502, 16
      %v555 = vrot.slane %v553, 7
      %v556 = vshll.u32 %v502, 16
      %v558 = vor.u32 %v555, %v556
      %v560 = vshrl.u32 %v503, 16
      %v562 = vrot.slane %v560, 7
      %v563 = vshll.u32 %v503, 16
      %v565 = vor.u32 %v562, %v563
      %v567 = vshrl.u32 %v504, 16
      %v569 = vrot.slane %v567, 7
      %v570 = vshll.u32 %v504, 16
      %v572 = vor.u32 %v569, %v570
      %v574 = vshrl.u32 %v505, 16
      %v576 = vrot.slane %v574, 7
      %v577 = vshll.u32 %v505, 16
      %v579 = vor.u32 %v576, %v577
      %v581 = vshrl.u32 %v506, 16
      %v583 = vrot.slane %v581, 7
      %v584 = vshll.u32 %v506, 16
      %v586 = vor.u32 %v583, %v584
      %v588 = vshrl.u32 %v507, 16
      %v590 = vrot.slane %v588, 7
      %v591 = vshll.u32 %v507, 16
      %v593 = vor.u32 %v590, %v591
      %v595 = vshrl.u32 %v508, 16
      %v597 = vrot.slane %v595, 7
      %v598 = vshll.u32 %v508, 16
      %v600 = vor.u32 %v597, %v598
      %v602 = vshrl.u32 %v509, 16
      %v604 = vrot.slane %v602, 7
      %v605 = vshll.u32 %v509, 16
      %v607 = vor.u32 %v604, %v605
      %v609 = vshrl.u32 %v510, 16
      %v611 = vrot.slane %v609, 7
      %v612 = vshll.u32 %v510, 16
      %v614 = vor.u32 %v611, %v612
      %v616 = vshrl.u32 %v511, 16
      %v618 = vrot.slane %v616, 7
      %v619 = vshll.u32 %v511, 16
      %v621 = vor.u32 %v618, %v619
      %v623 = vshrl.u32 %v512, 16
      %v625 = vrot.slane %v623, 7
      %v626 = vshll.u32 %v512, 16
      %v628 = vor.u32 %v625, %v626
      %v630 = vshrl.u32 %v513, 16
      %v632 = vrot.slane %v630, 7
      %v633 = vshll.u32 %v513, 16
      %v635 = vor.u32 %v632, %v633
      %v637 = vshrl.u32 %v514, 16
      %v639 = vrot.slane %v637, 7
      %v640 = vshll.u32 %v514, 16
      %v642 = vor.u32 %v639, %v640
      %v644 = vshrl.u32 %v515, 16
      %v646 = vrot.slane %v644, 7
      %v647 = vshll.u32 %v515, 16
      %v649 = vor.u32 %v646, %v647
      %v651 = vshrl.u32 %v516, 16
      %v653 = vrot.slane %v651, 7
      %v654 = vshll.u32 %v516, 16
      %v656 = vor.u32 %v653, %v654
      %v658 = vshrl.u32 %v517, 16
      %v660 = vrot.slane %v658, 7
      %v661 = vshll.u32 %v517, 16
      %v663 = vor.u32 %v660, %v661
      %v665 = vshrl.u32 %v518, 16
      %v667 = vrot.slane %v665, 7
      %v668 = vshll.u32 %v518, 16
      %v670 = vor.u32 %v667, %v668
      %v672 = vshrl.u32 %v519, 16
      %v674 = vrot.slane %v672, 7
      %v675 = vshll.u32 %v519, 16
      %v677 = vor.u32 %v674, %v675
      %v679 = vshrl.u32 %v520, 16
      %v681 = vrot.slane %v679, 7
      %v682 = vshll.u32 %v520, 16
      %v684 = vor.u32 %v681, %v682
      %v686 = vshrl.u32 %v521, 16
      %v688 = vrot.slane %v686, 7
      %v689 = vshll.u32 %v521, 16
      %v691 = vor.u32 %v688, %v689
      %v693 = vshrl.u32 %v522, 16
      %v695 = vrot.slane %v693, 7
      %v696 = vshll.u32 %v522, 16
      %v698 = vor.u32 %v695, %v696
      %v700 = vshrl.u32 %v523, 16
      %v702 = vrot.slane %v700, 7
      %v703 = vshll.u32 %v523, 16
      %v705 = vor.u32 %v702, %v703
      %v707 = vshrl.u32 %v524, 16
      %v709 = vrot.slane %v707, 7
      %v710 = vshll.u32 %v524, 16
      %v712 = vor.u32 %v709, %v710
      %v714 = vshrl.u32 %v525, 16
      %v716 = vrot.slane %v714, 7
      %v717 = vshll.u32 %v525, 16
      %v719 = vor.u32 %v716, %v717
      %v721 = vshrl.u32 %v526, 16
      %v723 = vrot.slane %v721, 7
      %v724 = vshll.u32 %v526, 16
      %v726 = vor.u32 %v723, %v724
      %v728 = vshrl.u32 %v527, 16
      %v730 = vrot.slane %v728, 7
      %v731 = vshll.u32 %v527, 16
      %v733 = vor.u32 %v730, %v731
      %v735 = vshrl.u32 %v528, 16
      %v737 = vrot.slane %v735, 7
      %v738 = vshll.u32 %v528, 16
      %v740 = vor.u32 %v737, %v738
      %v742 = vshrl.u32 %v529, 16
      %v744 = vrot.slane %v742, 7
      %v745 = vshll.u32 %v529, 16
      %v747 = vor.u32 %v744, %v745
      %v749 = vshrl.u32 %v530, 16
      %v751 = vrot.slane %v749, 7
      %v752 = vshll.u32 %v530, 16
      %v754 = vor.u32 %v751, %v752
      %vm787 = vcmask 1040384
      %vm788 = vsmask.f32 256
      %vm789 = vmand %vm787, %vm788
      %v790 = vsel %vm789, 0, %v537
      %v791 = vsel %vm789, 0, %v544
      %v792 = vsel %vm789, 0, %v551
      %v793 = vsel %vm789, 0, %v558
      %v794 = vsel %vm789, 0, %v565
      %v795 = vsel %vm789, 0, %v572
      %v796 = vsel %vm789, 0, %v579
      %v797 = vsel %vm789, 0, %v586
      %v798 = vsel %vm789, 0, %v593
      %v799 = vsel %vm789, 0, %v600
      %v800 = vsel %vm789, 0, %v607
      %v801 = vsel %vm789, 0, %v614
      %v802 = vsel %vm789, 0, %v621
      %v803 = vsel %vm789, 0, %v628
      %v804 = vsel %vm789, 0, %v635
      %v805 = vsel %vm789, 0, %v642
      %v806 = vsel %vm789, 0, %v649
      %v807 = vsel %vm789, 0, %v656
      %v808 = vsel %vm789, 0, %v663
      %v809 = vsel %vm789, 0, %v670
      %v810 = vsel %vm789, 0, %v677
      %v811 = vsel %vm789, 0, %v684
      %v812 = vsel %vm789, 0, %v691
      %v813 = vsel %vm789, 0, %v698
      %v814 = vsel %vm789, 0, %v705
      %v815 = vsel %vm789, 0, %v712
      %v816 = vsel %vm789, 0, %v719
      %v817 = vsel %vm789, 0, %v726
      %v818 = vsel %vm789, 0, %v733
      %v819 = vsel %vm789, 0, %v740
      %v820 = vsel %vm789, 0, %v747
      %v821 = vsel %vm789, 0, %v754
      %v822 = vrot.slane %v535, 1
      %v823 = vor.u32 %v532, %v822
      %v824 = vrot.slane %v542, 1
      %v825 = vor.u32 %v539, %v824
      %v826 = vrot.slane %v549, 1
      %v827 = vor.u32 %v546, %v826
      %v828 = vrot.slane %v556, 1
      %v829 = vor.u32 %v553, %v828
      %v830 = vrot.slane %v563, 1
      %v831 = vor.u32 %v560, %v830
      %v832 = vrot.slane %v570, 1
      %v833 = vor.u32 %v567, %v832
      %v834 = vrot.slane %v577, 1
      %v835 = vor.u32 %v574, %v834
      %v836 = vrot.slane %v584, 1
      %v837 = vor.u32 %v581, %v836
      %v838 = vrot.slane %v591, 1
      %v839 = vor.u32 %v588, %v838
      %v840 = vrot.slane %v598, 1
      %v841 = vor.u32 %v595, %v840
      %v842 = vrot.slane %v605, 1
      %v843 = vor.u32 %v602, %v842
      %v844 = vrot.slane %v612, 1
      %v845 = vor.u32 %v609, %v844
      %v846 = vrot.slane %v619, 1
      %v847 = vor.u32 %v616, %v846
      %v848 = vrot.slane %v626, 1
      %v849 = vor.u32 %v623, %v848
      %v850 = vrot.slane %v633, 1
      %v851 = vor.u32 %v630, %v850
      %v852 = vrot.slane %v640, 1
      %v853 = vor.u32 %v637, %v852
      %v854 = vrot.slane %v647, 1
      %v855 = vor.u32 %v644, %v854
      %v856 = vrot.slane %v654, 1
      %v857 = vor.u32 %v651, %v856
      %v858 = vrot.slane %v661, 1
      %v859 = vor.u32 %v658, %v858
      %v860 = vrot.slane %v668, 1
      %v861 = vor.u32 %v665, %v860
      %v862 = vrot.slane %v675, 1
      %v863 = vor.u32 %v672, %v862
      %v864 = vrot.slane %v682, 1
      %v865 = vor.u32 %v679, %v864
      %v866 = vrot.slane %v689, 1
      %v867 = vor.u32 %v686, %v866
      %v868 = vrot.slane %v696, 1
      %v869 = vor.u32 %v693, %v868
      %v870 = vrot.slane %v703, 1
      %v871 = vor.u32 %v700, %v870
      %v872 = vrot.slane %v710, 1
      %v873 = vor.u32 %v707, %v872
      %v874 = vrot.slane %v717, 1
      %v875 = vor.u32 %v714, %v874
      %v876 = vrot.slane %v724, 1
      %v877 = vor.u32 %v721, %v876
      %v878 = vrot.slane %v731, 1
      %v879 = vor.u32 %v728, %v878
      %v880 = vrot.slane %v738, 1
      %v881 = vor.u32 %v735, %v880
      %v882 = vrot.slane %v745, 1
      %v883 = vor.u32 %v742, %v882
      %v884 = vrot.slane %v752, 1
      %v885 = vor.u32 %v749, %v884
      %vm918 = vcmask 1047552
      %vm919 = vsmask.f32 7424
      %vm920 = vmand %vm918, %vm919
      %v921 = vsel %vm920, %v823, 0
      %v922 = vsel %vm920, %v825, 0
      %v923 = vsel %vm920, %v827, 0
      %v924 = vsel %vm920, %v829, 0
      %v925 = vsel %vm920, %v831, 0
      %v926 = vsel %vm920, %v833, 0
      %v927 = vsel %vm920, %v835, 0
      %v928 = vsel %vm920, %v837, 0
      %v929 = vsel %vm920, %v839, 0
      %v930 = vsel %vm920, %v841, 0
      %v931 = vsel %vm920, %v843, 0
      %v932 = vsel %vm920, %v845, 0
      %v933 = vsel %vm920, %v847, 0
      %v934 = vsel %vm920, %v849, 0
      %v935 = vsel %vm920, %v851, 0
      %v936 = vsel %vm920, %v853, 0
      %v937 = vsel %vm920, %v855, 0
      %v938 = vsel %vm920, %v857, 0
      %v939 = vsel %vm920, %v859, 0
      %v940 = vsel %vm920, %v861, 0
      %v941 = vsel %vm920, %v863, 0
      %v942 = vsel %vm920, %v865, 0
      %v943 = vsel %vm920, %v867, 0
      %v944 = vsel %vm920, %v869, 0
      %v945 = vsel %vm920, %v871, 0
      %v946 = vsel %vm920, %v873, 0
      %v947 = vsel %vm920, %v875, 0
      %v948 = vsel %vm920, %v877, 0
      %v949 = vsel %vm920, %v879, 0
      %v950 = vsel %vm920, %v881, 0
      %v951 = vsel %vm920, %v883, 0
      %v952 = vsel %vm920, %v885, 0
      %953 = vrot.lane.b32.xlu0 %v499, 64
      %v954 = vpop.permute.xlu0 %953
      %955 = vrot.lane.b32.xlu0 %v500, 64
      %v956 = vpop.permute.xlu0 %955
      %957 = vrot.lane.b32.xlu0 %v501, 64
      %v958 = vpop.permute.xlu0 %957
      %959 = vrot.lane.b32.xlu0 %v502, 64
      %v960 = vpop.permute.xlu0 %959
      %961 = vrot.lane.b32.xlu0 %v503, 64
      %v962 = vpop.permute.xlu0 %961
      %963 = vrot.lane.b32.xlu0 %v504, 64
      %v964 = vpop.permute.xlu0 %963
      %965 = vrot.lane.b32.xlu0 %v505, 64
      %v966 = vpop.permute.xlu0 %965
      %967 = vrot.lane.b32.xlu0 %v506, 64
      %v968 = vpop.permute.xlu0 %967
      %969 = vrot.lane.b32.xlu0 %v507, 64
      %v970 = vpop.permute.xlu0 %969
      %971 = vrot.lane.b32.xlu0 %v508, 64
      %v972 = vpop.permute.xlu0 %971
      %973 = vrot.lane.b32.xlu0 %v509, 64
      %v974 = vpop.permute.xlu0 %973
      %975 = vrot.lane.b32.xlu0 %v510, 64
      %v976 = vpop.permute.xlu0 %975
      %977 = vrot.lane.b32.xlu0 %v511, 64
      %v978 = vpop.permute.xlu0 %977
      %979 = vrot.lane.b32.xlu0 %v512, 64
      %v980 = vpop.permute.xlu0 %979
      %981 = vrot.lane.b32.xlu0 %v513, 64
      %v982 = vpop.permute.xlu0 %981
      %983 = vrot.lane.b32.xlu0 %v514, 64
      %v984 = vpop.permute.xlu0 %983
      %985 = vrot.lane.b32.xlu0 %v515, 64
      %v986 = vpop.permute.xlu0 %985
      %987 = vrot.lane.b32.xlu0 %v516, 64
      %v988 = vpop.permute.xlu0 %987
      %989 = vrot.lane.b32.xlu0 %v517, 64
      %v990 = vpop.permute.xlu0 %989
      %991 = vrot.lane.b32.xlu0 %v518, 64
      %v992 = vpop.permute.xlu0 %991
      %993 = vrot.lane.b32.xlu0 %v519, 64
      %v994 = vpop.permute.xlu0 %993
      %995 = vrot.lane.b32.xlu0 %v520, 64
      %v996 = vpop.permute.xlu0 %995
      %997 = vrot.lane.b32.xlu0 %v521, 64
      %v998 = vpop.permute.xlu0 %997
      %999 = vrot.lane.b32.xlu0 %v522, 64
      %v1000 = vpop.permute.xlu0 %999
      %1001 = vrot.lane.b32.xlu0 %v523, 64
      %v1002 = vpop.permute.xlu0 %1001
      %1003 = vrot.lane.b32.xlu0 %v524, 64
      %v1004 = vpop.permute.xlu0 %1003
      %1005 = vrot.lane.b32.xlu0 %v525, 64
      %v1006 = vpop.permute.xlu0 %1005
      %1007 = vrot.lane.b32.xlu0 %v526, 64
      %v1008 = vpop.permute.xlu0 %1007
      %1009 = vrot.lane.b32.xlu0 %v527, 64
      %v1010 = vpop.permute.xlu0 %1009
      %1011 = vrot.lane.b32.xlu0 %v528, 64
      %v1012 = vpop.permute.xlu0 %1011
      %1013 = vrot.lane.b32.xlu0 %v529, 64
      %v1014 = vpop.permute.xlu0 %1013
      %1015 = vrot.lane.b32.xlu0 %v530, 64
      %v1016 = vpop.permute.xlu0 %1015
      %vm1017 = vcmask 523264
      %v1020 = vsel %vm1017, %v790, %v954
      %v1024 = vsel %vm1017, %v791, %v956
      %v1028 = vsel %vm1017, %v792, %v958
      %v1032 = vsel %vm1017, %v793, %v960
      %v1036 = vsel %vm1017, %v794, %v962
      %v1040 = vsel %vm1017, %v795, %v964
      %v1044 = vsel %vm1017, %v796, %v966
      %v1048 = vsel %vm1017, %v797, %v968
      %v1052 = vsel %vm1017, %v798, %v970
      %v1056 = vsel %vm1017, %v799, %v972
      %v1060 = vsel %vm1017, %v800, %v974
      %v1064 = vsel %vm1017, %v801, %v976
      %v1068 = vsel %vm1017, %v802, %v978
      %v1072 = vsel %vm1017, %v803, %v980
      %v1076 = vsel %vm1017, %v804, %v982
      %v1080 = vsel %vm1017, %v805, %v984
      %v1084 = vsel %vm1017, %v806, %v986
      %v1088 = vsel %vm1017, %v807, %v988
      %v1092 = vsel %vm1017, %v808, %v990
      %v1096 = vsel %vm1017, %v809, %v992
      %v1100 = vsel %vm1017, %v810, %v994
      %v1104 = vsel %vm1017, %v811, %v996
      %v1108 = vsel %vm1017, %v812, %v998
      %v1112 = vsel %vm1017, %v813, %v1000
      %v1116 = vsel %vm1017, %v814, %v1002
      %v1120 = vsel %vm1017, %v815, %v1004
      %v1124 = vsel %vm1017, %v816, %v1006
      %v1128 = vsel %vm1017, %v817, %v1008
      %v1132 = vsel %vm1017, %v818, %v1010
      %v1136 = vsel %vm1017, %v819, %v1012
      %v1140 = vsel %vm1017, %v820, %v1014
      %v1144 = vsel %vm1017, %v821, %v1016
      %v1170 = vunpack.c.l.b16 %v322
      %v1171 = vunpack.c.l.b16 %v323
      %v1172 = vunpack.c.l.b16 %v324
      %v1173 = vunpack.c.l.b16 %v325
      %v1174 = vunpack.c.l.b16 %v326
      %v1175 = vunpack.c.l.b16 %v327
      %v1176 = vunpack.c.l.b16 %v328
      %v1177 = vunpack.c.l.b16 %v329
      %v1178 = vunpack.c.l.b16 %v330
      %v1179 = vunpack.c.l.b16 %v331
      %v1180 = vunpack.c.l.b16 %v332
      %v1181 = vunpack.c.l.b16 %v333
      %v1182 = vunpack.c.l.b16 %v334
      %v1183 = vunpack.c.l.b16 %v335
      %v1184 = vunpack.c.l.b16 %v336
      %v1185 = vunpack.c.l.b16 %v337
      %v1186 = vunpack.c.l.b16 %v338
      %v1187 = vunpack.c.l.b16 %v339
      %v1188 = vunpack.c.l.b16 %v340
      %v1189 = vunpack.c.l.b16 %v341
      %v1190 = vunpack.c.l.b16 %v342
      %v1191 = vunpack.c.l.b16 %v343
      %v1192 = vunpack.c.l.b16 %v344
      %v1193 = vunpack.c.l.b16 %v345
      %v1194 = vpack.c.b16 %v1171, %v1170
      %v1195 = vpack.c.b16 %v1173, %v1172
      %v1196 = vpack.c.b16 %v1175, %v1174
      %v1197 = vpack.c.b16 %v1177, %v1176
      %v1198 = vpack.c.b16 %v1179, %v1178
      %v1199 = vpack.c.b16 %v1181, %v1180
      %v1200 = vpack.c.b16 %v1183, %v1182
      %v1201 = vpack.c.b16 %v1185, %v1184
      %v1202 = vpack.c.b16 %v1187, %v1186
      %v1203 = vpack.c.b16 %v1189, %v1188
      %v1204 = vpack.c.b16 %v1191, %v1190
      %v1205 = vpack.c.b16 %v1193, %v1192
      %v1219 = vsel %vm1017, %v921, 0
      %v1222 = vsel %vm1017, %v922, 0
      %v1225 = vsel %vm1017, %v923, 0
      %v1228 = vsel %vm1017, %v924, 0
      %v1231 = vsel %vm1017, %v925, 0
      %v1234 = vsel %vm1017, %v926, 0
      %v1237 = vsel %vm1017, %v927, 0
      %v1240 = vsel %vm1017, %v928, 0
      %v1243 = vsel %vm1017, %v929, 0
      %v1246 = vsel %vm1017, %v930, 0
      %v1249 = vsel %vm1017, %v931, 0
      %v1252 = vsel %vm1017, %v932, 0
      %v1255 = vsel %vm1017, %v933, 0
      %v1258 = vsel %vm1017, %v934, 0
      %v1261 = vsel %vm1017, %v935, 0
      %v1264 = vsel %vm1017, %v936, 0
      %v1267 = vsel %vm1017, %v937, 0
      %v1270 = vsel %vm1017, %v938, 0
      %v1273 = vsel %vm1017, %v939, 0
      %v1276 = vsel %vm1017, %v940, 0
      %v1279 = vsel %vm1017, %v941, 0
      %v1282 = vsel %vm1017, %v942, 0
      %v1285 = vsel %vm1017, %v943, 0
      %v1288 = vsel %vm1017, %v944, 0
      %v1291 = vsel %vm1017, %v945, 0
      %v1294 = vsel %vm1017, %v946, 0
      %v1297 = vsel %vm1017, %v947, 0
      %v1300 = vsel %vm1017, %v948, 0
      %v1303 = vsel %vm1017, %v949, 0
      %v1306 = vsel %vm1017, %v950, 0
      %v1309 = vsel %vm1017, %v951, 0
      %v1312 = vsel %vm1017, %v952, 0
      %1314 = vmatpush.bf16.msra.mxu0 %v1201
      %1315 = vmatpush.bf16.msra.mxu0 %v1200
      %1316 = vmatpush.bf16.msra.mxu0 %v1199
      %1317 = vmatpush.bf16.msra.mxu0 %v1198
      %1318 = vmatpush.bf16.msra.mxu0 %v1197
      %1319 = vmatpush.bf16.msra.mxu0 %v1196
      %1320 = vmatpush.bf16.msra.mxu0 %v1195
      %1321 = vmatpush.bf16.msra.mxu0 %v1194
      %1322 = vmatmul.bf16.gmra.mxu0 %v1020
      %v1323 = vpop.f32.mrf.mxu0
      %v1324 = vadd.f32 0.0, %v1323
      %v1325 = vpop.f32.mrf.mxu0
      %v1326 = vadd.f32 0.0, %v1325
      %1327 = vmatmul.bf16.gmra.mxu0 %v1024
      %v1328 = vpop.f32.mrf.mxu0
      %v1329 = vadd.f32 0.0, %v1328
      %v1330 = vpop.f32.mrf.mxu0
      %v1331 = vadd.f32 0.0, %v1330
      %1332 = vmatmul.bf16.gmra.mxu0 %v1028
      %v1333 = vpop.f32.mrf.mxu0
      %v1334 = vadd.f32 0.0, %v1333
      %v1335 = vpop.f32.mrf.mxu0
      %v1336 = vadd.f32 0.0, %v1335
      %1337 = vmatmul.bf16.gmra.mxu0 %v1032
      %v1338 = vpop.f32.mrf.mxu0
      %v1339 = vadd.f32 0.0, %v1338
      %v1340 = vpop.f32.mrf.mxu0
      %v1341 = vadd.f32 0.0, %v1340
      %1342 = vmatmul.bf16.gmra.mxu0 %v1036
      %v1343 = vpop.f32.mrf.mxu0
      %v1344 = vadd.f32 0.0, %v1343
      %v1345 = vpop.f32.mrf.mxu0
      %v1346 = vadd.f32 0.0, %v1345
      %1347 = vmatmul.bf16.gmra.mxu0 %v1040
      %v1348 = vpop.f32.mrf.mxu0
      %v1349 = vadd.f32 0.0, %v1348
      %v1350 = vpop.f32.mrf.mxu0
      %v1351 = vadd.f32 0.0, %v1350
      %1352 = vmatmul.bf16.gmra.mxu0 %v1044
      %v1353 = vpop.f32.mrf.mxu0
      %v1354 = vadd.f32 0.0, %v1353
      %v1355 = vpop.f32.mrf.mxu0
      %v1356 = vadd.f32 0.0, %v1355
      %1357 = vmatmul.bf16.gmra.mxu0 %v1048
      %v1358 = vpop.f32.mrf.mxu0
      %v1359 = vadd.f32 0.0, %v1358
      %v1360 = vpop.f32.mrf.mxu0
      %v1361 = vadd.f32 0.0, %v1360
      %1362 = vmatmul.bf16.gmra.mxu0 %v1052
      %v1363 = vpop.f32.mrf.mxu0
      %v1364 = vadd.f32 0.0, %v1363
      %v1365 = vpop.f32.mrf.mxu0
      %v1366 = vadd.f32 0.0, %v1365
      %1367 = vmatmul.bf16.gmra.mxu0 %v1056
      %v1368 = vpop.f32.mrf.mxu0
      %v1369 = vadd.f32 0.0, %v1368
      %v1370 = vpop.f32.mrf.mxu0
      %v1371 = vadd.f32 0.0, %v1370
      %1372 = vmatmul.bf16.gmra.mxu0 %v1060
      %v1373 = vpop.f32.mrf.mxu0
      %v1374 = vadd.f32 0.0, %v1373
      %v1375 = vpop.f32.mrf.mxu0
      %v1376 = vadd.f32 0.0, %v1375
      %1377 = vmatmul.bf16.gmra.mxu0 %v1064
      %v1378 = vpop.f32.mrf.mxu0
      %v1379 = vadd.f32 0.0, %v1378
      %v1380 = vpop.f32.mrf.mxu0
      %v1381 = vadd.f32 0.0, %v1380
      %1382 = vmatmul.bf16.gmra.mxu0 %v1068
      %v1383 = vpop.f32.mrf.mxu0
      %v1384 = vadd.f32 0.0, %v1383
      %v1385 = vpop.f32.mrf.mxu0
      %v1386 = vadd.f32 0.0, %v1385
      %1387 = vmatmul.bf16.gmra.mxu0 %v1072
      %v1388 = vpop.f32.mrf.mxu0
      %v1389 = vadd.f32 0.0, %v1388
      %v1390 = vpop.f32.mrf.mxu0
      %v1391 = vadd.f32 0.0, %v1390
      %1392 = vmatmul.bf16.gmra.mxu0 %v1076
      %v1393 = vpop.f32.mrf.mxu0
      %v1394 = vadd.f32 0.0, %v1393
      %v1395 = vpop.f32.mrf.mxu0
      %v1396 = vadd.f32 0.0, %v1395
      %1397 = vmatmul.bf16.gmra.mxu0 %v1080
      %v1398 = vpop.f32.mrf.mxu0
      %v1399 = vadd.f32 0.0, %v1398
      %v1400 = vpop.f32.mrf.mxu0
      %v1401 = vadd.f32 0.0, %v1400
      %1402 = vmatmul.bf16.gmra.mxu0 %v1084
      %v1403 = vpop.f32.mrf.mxu0
      %v1404 = vadd.f32 0.0, %v1403
      %v1405 = vpop.f32.mrf.mxu0
      %v1406 = vadd.f32 0.0, %v1405
      %1407 = vmatmul.bf16.gmra.mxu0 %v1088
      %v1408 = vpop.f32.mrf.mxu0
      %v1409 = vadd.f32 0.0, %v1408
      %v1410 = vpop.f32.mrf.mxu0
      %v1411 = vadd.f32 0.0, %v1410
      %1412 = vmatmul.bf16.gmra.mxu0 %v1092
      %v1413 = vpop.f32.mrf.mxu0
      %v1414 = vadd.f32 0.0, %v1413
      %v1415 = vpop.f32.mrf.mxu0
      %v1416 = vadd.f32 0.0, %v1415
      %1417 = vmatmul.bf16.gmra.mxu0 %v1096
      %v1418 = vpop.f32.mrf.mxu0
      %v1419 = vadd.f32 0.0, %v1418
      %v1420 = vpop.f32.mrf.mxu0
      %v1421 = vadd.f32 0.0, %v1420
      %1422 = vmatmul.bf16.gmra.mxu0 %v1100
      %v1423 = vpop.f32.mrf.mxu0
      %v1424 = vadd.f32 0.0, %v1423
      %v1425 = vpop.f32.mrf.mxu0
      %v1426 = vadd.f32 0.0, %v1425
      %1427 = vmatmul.bf16.gmra.mxu0 %v1104
      %v1428 = vpop.f32.mrf.mxu0
      %v1429 = vadd.f32 0.0, %v1428
      %v1430 = vpop.f32.mrf.mxu0
      %v1431 = vadd.f32 0.0, %v1430
      %1432 = vmatmul.bf16.gmra.mxu0 %v1108
      %v1433 = vpop.f32.mrf.mxu0
      %v1434 = vadd.f32 0.0, %v1433
      %v1435 = vpop.f32.mrf.mxu0
      %v1436 = vadd.f32 0.0, %v1435
      %1437 = vmatmul.bf16.gmra.mxu0 %v1112
      %v1438 = vpop.f32.mrf.mxu0
      %v1439 = vadd.f32 0.0, %v1438
      %v1440 = vpop.f32.mrf.mxu0
      %v1441 = vadd.f32 0.0, %v1440
      %1442 = vmatmul.bf16.gmra.mxu0 %v1116
      %v1443 = vpop.f32.mrf.mxu0
      %v1444 = vadd.f32 0.0, %v1443
      %v1445 = vpop.f32.mrf.mxu0
      %v1446 = vadd.f32 0.0, %v1445
      %1447 = vmatmul.bf16.gmra.mxu0 %v1120
      %v1448 = vpop.f32.mrf.mxu0
      %v1449 = vadd.f32 0.0, %v1448
      %v1450 = vpop.f32.mrf.mxu0
      %v1451 = vadd.f32 0.0, %v1450
      %1452 = vmatmul.bf16.gmra.mxu0 %v1124
      %v1453 = vpop.f32.mrf.mxu0
      %v1454 = vadd.f32 0.0, %v1453
      %v1455 = vpop.f32.mrf.mxu0
      %v1456 = vadd.f32 0.0, %v1455
      %1457 = vmatmul.bf16.gmra.mxu0 %v1128
      %v1458 = vpop.f32.mrf.mxu0
      %v1459 = vadd.f32 0.0, %v1458
      %v1460 = vpop.f32.mrf.mxu0
      %v1461 = vadd.f32 0.0, %v1460
      %1462 = vmatmul.bf16.gmra.mxu0 %v1132
      %v1463 = vpop.f32.mrf.mxu0
      %v1464 = vadd.f32 0.0, %v1463
      %v1465 = vpop.f32.mrf.mxu0
      %v1466 = vadd.f32 0.0, %v1465
      %1467 = vmatmul.bf16.gmra.mxu0 %v1136
      %v1468 = vpop.f32.mrf.mxu0
      %v1469 = vadd.f32 0.0, %v1468
      %v1470 = vpop.f32.mrf.mxu0
      %v1471 = vadd.f32 0.0, %v1470
      %1472 = vmatmul.bf16.gmra.mxu0 %v1140
      %v1473 = vpop.f32.mrf.mxu0
      %v1474 = vadd.f32 0.0, %v1473
      %v1475 = vpop.f32.mrf.mxu0
      %v1476 = vadd.f32 0.0, %v1475
      %1477 = vmatmul.bf16.gmra.mxu0 %v1144
      %v1478 = vpop.f32.mrf.mxu0
      %v1479 = vadd.f32 0.0, %v1478
      %v1480 = vpop.f32.mrf.mxu0
      %v1481 = vadd.f32 0.0, %v1480
      %1482 = vdwg.mxu0
      %1483 = vmatpush.bf16.msra.mxu0 0
      %1484 = vmatpush.bf16.msra.mxu0 0
      %1485 = vmatpush.bf16.msra.mxu0 0
      %1486 = vmatpush.bf16.msra.mxu0 0
      %1487 = vmatpush.bf16.msra.mxu0 %v1205
      %1488 = vmatpush.bf16.msra.mxu0 %v1204
      %1489 = vmatpush.bf16.msra.mxu0 %v1203
      %1490 = vmatpush.bf16.msra.mxu0 %v1202
      %1491 = vmatmul.bf16.gmra.mxu0 %v1219
      %v1492 = vpop.f32.mrf.mxu0
      %v1493 = vadd.f32 %v1324, %v1492
      %v1494 = vpop.f32.mrf.mxu0
      %v1495 = vadd.f32 %v1326, %v1494
      %1496 = vmatmul.bf16.gmra.mxu0 %v1222
      %v1497 = vpop.f32.mrf.mxu0
      %v1498 = vadd.f32 %v1329, %v1497
      %v1499 = vpop.f32.mrf.mxu0
      %v1500 = vadd.f32 %v1331, %v1499
      %1501 = vmatmul.bf16.gmra.mxu0 %v1225
      %v1502 = vpop.f32.mrf.mxu0
      %v1503 = vadd.f32 %v1334, %v1502
      %v1504 = vpop.f32.mrf.mxu0
      %v1505 = vadd.f32 %v1336, %v1504
      %1506 = vmatmul.bf16.gmra.mxu0 %v1228
      %v1507 = vpop.f32.mrf.mxu0
      %v1508 = vadd.f32 %v1339, %v1507
      %v1509 = vpop.f32.mrf.mxu0
      %v1510 = vadd.f32 %v1341, %v1509
      %1511 = vmatmul.bf16.gmra.mxu0 %v1231
      %v1512 = vpop.f32.mrf.mxu0
      %v1513 = vadd.f32 %v1344, %v1512
      %v1514 = vpop.f32.mrf.mxu0
      %v1515 = vadd.f32 %v1346, %v1514
      %1516 = vmatmul.bf16.gmra.mxu0 %v1234
      %v1517 = vpop.f32.mrf.mxu0
      %v1518 = vadd.f32 %v1349, %v1517
      %v1519 = vpop.f32.mrf.mxu0
      %v1520 = vadd.f32 %v1351, %v1519
      %1521 = vmatmul.bf16.gmra.mxu0 %v1237
      %v1522 = vpop.f32.mrf.mxu0
      %v1523 = vadd.f32 %v1354, %v1522
      %v1524 = vpop.f32.mrf.mxu0
      %v1525 = vadd.f32 %v1356, %v1524
      %1526 = vmatmul.bf16.gmra.mxu0 %v1240
      %v1527 = vpop.f32.mrf.mxu0
      %v1528 = vadd.f32 %v1359, %v1527
      %v1529 = vpop.f32.mrf.mxu0
      %v1530 = vadd.f32 %v1361, %v1529
      %1531 = vmatmul.bf16.gmra.mxu0 %v1243
      %v1532 = vpop.f32.mrf.mxu0
      %v1533 = vadd.f32 %v1364, %v1532
      %v1534 = vpop.f32.mrf.mxu0
      %v1535 = vadd.f32 %v1366, %v1534
      %1536 = vmatmul.bf16.gmra.mxu0 %v1246
      %v1537 = vpop.f32.mrf.mxu0
      %v1538 = vadd.f32 %v1369, %v1537
      %v1539 = vpop.f32.mrf.mxu0
      %v1540 = vadd.f32 %v1371, %v1539
      %1541 = vmatmul.bf16.gmra.mxu0 %v1249
      %v1542 = vpop.f32.mrf.mxu0
      %v1543 = vadd.f32 %v1374, %v1542
      %v1544 = vpop.f32.mrf.mxu0
      %v1545 = vadd.f32 %v1376, %v1544
      %1546 = vmatmul.bf16.gmra.mxu0 %v1252
      %v1547 = vpop.f32.mrf.mxu0
      %v1548 = vadd.f32 %v1379, %v1547
      %v1549 = vpop.f32.mrf.mxu0
      %v1550 = vadd.f32 %v1381, %v1549
      %1551 = vmatmul.bf16.gmra.mxu0 %v1255
      %v1552 = vpop.f32.mrf.mxu0
      %v1553 = vadd.f32 %v1384, %v1552
      %v1554 = vpop.f32.mrf.mxu0
      %v1555 = vadd.f32 %v1386, %v1554
      %1556 = vmatmul.bf16.gmra.mxu0 %v1258
      %v1557 = vpop.f32.mrf.mxu0
      %v1558 = vadd.f32 %v1389, %v1557
      %v1559 = vpop.f32.mrf.mxu0
      %v1560 = vadd.f32 %v1391, %v1559
      %1561 = vmatmul.bf16.gmra.mxu0 %v1261
      %v1562 = vpop.f32.mrf.mxu0
      %v1563 = vadd.f32 %v1394, %v1562
      %v1564 = vpop.f32.mrf.mxu0
      %v1565 = vadd.f32 %v1396, %v1564
      %1566 = vmatmul.bf16.gmra.mxu0 %v1264
      %v1567 = vpop.f32.mrf.mxu0
      %v1568 = vadd.f32 %v1399, %v1567
      %v1569 = vpop.f32.mrf.mxu0
      %v1570 = vadd.f32 %v1401, %v1569
      %1571 = vmatmul.bf16.gmra.mxu0 %v1267
      %v1572 = vpop.f32.mrf.mxu0
      %v1573 = vadd.f32 %v1404, %v1572
      %v1574 = vpop.f32.mrf.mxu0
      %v1575 = vadd.f32 %v1406, %v1574
      %1576 = vmatmul.bf16.gmra.mxu0 %v1270
      %v1577 = vpop.f32.mrf.mxu0
      %v1578 = vadd.f32 %v1409, %v1577
      %v1579 = vpop.f32.mrf.mxu0
      %v1580 = vadd.f32 %v1411, %v1579
      %1581 = vmatmul.bf16.gmra.mxu0 %v1273
      %v1582 = vpop.f32.mrf.mxu0
      %v1583 = vadd.f32 %v1414, %v1582
      %v1584 = vpop.f32.mrf.mxu0
      %v1585 = vadd.f32 %v1416, %v1584
      %1586 = vmatmul.bf16.gmra.mxu0 %v1276
      %v1587 = vpop.f32.mrf.mxu0
      %v1588 = vadd.f32 %v1419, %v1587
      %v1589 = vpop.f32.mrf.mxu0
      %v1590 = vadd.f32 %v1421, %v1589
      %1591 = vmatmul.bf16.gmra.mxu0 %v1279
      %v1592 = vpop.f32.mrf.mxu0
      %v1593 = vadd.f32 %v1424, %v1592
      %v1594 = vpop.f32.mrf.mxu0
      %v1595 = vadd.f32 %v1426, %v1594
      %1596 = vmatmul.bf16.gmra.mxu0 %v1282
      %v1597 = vpop.f32.mrf.mxu0
      %v1598 = vadd.f32 %v1429, %v1597
      %v1599 = vpop.f32.mrf.mxu0
      %v1600 = vadd.f32 %v1431, %v1599
      %1601 = vmatmul.bf16.gmra.mxu0 %v1285
      %v1602 = vpop.f32.mrf.mxu0
      %v1603 = vadd.f32 %v1434, %v1602
      %v1604 = vpop.f32.mrf.mxu0
      %v1605 = vadd.f32 %v1436, %v1604
      %1606 = vmatmul.bf16.gmra.mxu0 %v1288
      %v1607 = vpop.f32.mrf.mxu0
      %v1608 = vadd.f32 %v1439, %v1607
      %v1609 = vpop.f32.mrf.mxu0
      %v1610 = vadd.f32 %v1441, %v1609
      %1611 = vmatmul.bf16.gmra.mxu0 %v1291
      %v1612 = vpop.f32.mrf.mxu0
      %v1613 = vadd.f32 %v1444, %v1612
      %v1614 = vpop.f32.mrf.mxu0
      %v1615 = vadd.f32 %v1446, %v1614
      %1616 = vmatmul.bf16.gmra.mxu0 %v1294
      %v1617 = vpop.f32.mrf.mxu0
      %v1618 = vadd.f32 %v1449, %v1617
      %v1619 = vpop.f32.mrf.mxu0
      %v1620 = vadd.f32 %v1451, %v1619
      %1621 = vmatmul.bf16.gmra.mxu0 %v1297
      %v1622 = vpop.f32.mrf.mxu0
      %v1623 = vadd.f32 %v1454, %v1622
      %v1624 = vpop.f32.mrf.mxu0
      %v1625 = vadd.f32 %v1456, %v1624
      %1626 = vmatmul.bf16.gmra.mxu0 %v1300
      %v1627 = vpop.f32.mrf.mxu0
      %v1628 = vadd.f32 %v1459, %v1627
      %v1629 = vpop.f32.mrf.mxu0
      %v1630 = vadd.f32 %v1461, %v1629
      %1631 = vmatmul.bf16.gmra.mxu0 %v1303
      %v1632 = vpop.f32.mrf.mxu0
      %v1633 = vadd.f32 %v1464, %v1632
      %v1634 = vpop.f32.mrf.mxu0
      %v1635 = vadd.f32 %v1466, %v1634
      %1636 = vmatmul.bf16.gmra.mxu0 %v1306
      %v1637 = vpop.f32.mrf.mxu0
      %v1638 = vadd.f32 %v1469, %v1637
      %v1639 = vpop.f32.mrf.mxu0
      %v1640 = vadd.f32 %v1471, %v1639
      %1641 = vmatmul.bf16.gmra.mxu0 %v1309
      %v1642 = vpop.f32.mrf.mxu0
      %v1643 = vadd.f32 %v1474, %v1642
      %v1644 = vpop.f32.mrf.mxu0
      %v1645 = vadd.f32 %v1476, %v1644
      %1646 = vmatmul.bf16.gmra.mxu0 %v1312
      %v1647 = vpop.f32.mrf.mxu0
      %v1648 = vadd.f32 %v1479, %v1647
      %v1649 = vpop.f32.mrf.mxu0
      %v1650 = vadd.f32 %v1481, %v1649
      %1651 = vdwg.mxu0
      %v1676 = vunpack.c.l.b16 %v298
      %v1677 = vunpack.c.l.b16 %v299
      %v1678 = vunpack.c.l.b16 %v300
      %v1679 = vunpack.c.l.b16 %v301
      %v1680 = vunpack.c.l.b16 %v302
      %v1681 = vunpack.c.l.b16 %v303
      %v1682 = vunpack.c.l.b16 %v304
      %v1683 = vunpack.c.l.b16 %v305
      %v1684 = vunpack.c.l.b16 %v306
      %v1685 = vunpack.c.l.b16 %v307
      %v1686 = vunpack.c.l.b16 %v308
      %v1687 = vunpack.c.l.b16 %v309
      %v1688 = vunpack.c.l.b16 %v310
      %v1689 = vunpack.c.l.b16 %v311
      %v1690 = vunpack.c.l.b16 %v312
      %v1691 = vunpack.c.l.b16 %v313
      %v1692 = vunpack.c.l.b16 %v314
      %v1693 = vunpack.c.l.b16 %v315
      %v1694 = vunpack.c.l.b16 %v316
      %v1695 = vunpack.c.l.b16 %v317
      %v1696 = vunpack.c.l.b16 %v318
      %v1697 = vunpack.c.l.b16 %v319
      %v1698 = vunpack.c.l.b16 %v320
      %v1699 = vunpack.c.l.b16 %v321
      %v1700 = vpack.c.b16 %v1677, %v1676
      %v1701 = vpack.c.b16 %v1679, %v1678
      %v1702 = vpack.c.b16 %v1681, %v1680
      %v1703 = vpack.c.b16 %v1683, %v1682
      %v1704 = vpack.c.b16 %v1685, %v1684
      %v1705 = vpack.c.b16 %v1687, %v1686
      %v1706 = vpack.c.b16 %v1689, %v1688
      %v1707 = vpack.c.b16 %v1691, %v1690
      %v1708 = vpack.c.b16 %v1693, %v1692
      %v1709 = vpack.c.b16 %v1695, %v1694
      %v1710 = vpack.c.b16 %v1697, %v1696
      %v1711 = vpack.c.b16 %v1699, %v1698
      %v1725 = vsel %vm1017, 0, 0
      %1727 = vmatpush.bf16.msra.mxu0 %v1707
      %1728 = vmatpush.bf16.msra.mxu0 %v1706
      %1729 = vmatpush.bf16.msra.mxu0 %v1705
      %1730 = vmatpush.bf16.msra.mxu0 %v1704
      %1731 = vmatpush.bf16.msra.mxu0 %v1703
      %1732 = vmatpush.bf16.msra.mxu0 %v1702
      %1733 = vmatpush.bf16.msra.mxu0 %v1701
      %1734 = vmatpush.bf16.msra.mxu0 %v1700
      %1735 = vmatmul.bf16.gmra.mxu0 0
      %v1736 = vpop.f32.mrf.mxu0
      %v1737 = vadd.f32 %v1493, %v1736
      %v1738 = vpop.f32.mrf.mxu0
      %v1739 = vadd.f32 %v1495, %v1738
      %1740 = vmatmul.bf16.gmra.mxu0 %v1020
      %v1741 = vpop.f32.mrf.mxu0
      %v1742 = vadd.f32 %v1498, %v1741
      %v1743 = vpop.f32.mrf.mxu0
      %v1744 = vadd.f32 %v1500, %v1743
      %1745 = vmatmul.bf16.gmra.mxu0 %v1024
      %v1746 = vpop.f32.mrf.mxu0
      %v1747 = vadd.f32 %v1503, %v1746
      %v1748 = vpop.f32.mrf.mxu0
      %v1749 = vadd.f32 %v1505, %v1748
      %1750 = vmatmul.bf16.gmra.mxu0 %v1028
      %v1751 = vpop.f32.mrf.mxu0
      %v1752 = vadd.f32 %v1508, %v1751
      %v1753 = vpop.f32.mrf.mxu0
      %v1754 = vadd.f32 %v1510, %v1753
      %1755 = vmatmul.bf16.gmra.mxu0 %v1032
      %v1756 = vpop.f32.mrf.mxu0
      %v1757 = vadd.f32 %v1513, %v1756
      %v1758 = vpop.f32.mrf.mxu0
      %v1759 = vadd.f32 %v1515, %v1758
      %1760 = vmatmul.bf16.gmra.mxu0 %v1036
      %v1761 = vpop.f32.mrf.mxu0
      %v1762 = vadd.f32 %v1518, %v1761
      %v1763 = vpop.f32.mrf.mxu0
      %v1764 = vadd.f32 %v1520, %v1763
      %1765 = vmatmul.bf16.gmra.mxu0 %v1040
      %v1766 = vpop.f32.mrf.mxu0
      %v1767 = vadd.f32 %v1523, %v1766
      %v1768 = vpop.f32.mrf.mxu0
      %v1769 = vadd.f32 %v1525, %v1768
      %1770 = vmatmul.bf16.gmra.mxu0 %v1044
      %v1771 = vpop.f32.mrf.mxu0
      %v1772 = vadd.f32 %v1528, %v1771
      %v1773 = vpop.f32.mrf.mxu0
      %v1774 = vadd.f32 %v1530, %v1773
      %1775 = vmatmul.bf16.gmra.mxu0 %v1048
      %v1776 = vpop.f32.mrf.mxu0
      %v1777 = vadd.f32 %v1533, %v1776
      %v1778 = vpop.f32.mrf.mxu0
      %v1779 = vadd.f32 %v1535, %v1778
      %1780 = vmatmul.bf16.gmra.mxu0 %v1052
      %v1781 = vpop.f32.mrf.mxu0
      %v1782 = vadd.f32 %v1538, %v1781
      %v1783 = vpop.f32.mrf.mxu0
      %v1784 = vadd.f32 %v1540, %v1783
      %1785 = vmatmul.bf16.gmra.mxu0 %v1056
      %v1786 = vpop.f32.mrf.mxu0
      %v1787 = vadd.f32 %v1543, %v1786
      %v1788 = vpop.f32.mrf.mxu0
      %v1789 = vadd.f32 %v1545, %v1788
      %1790 = vmatmul.bf16.gmra.mxu0 %v1060
      %v1791 = vpop.f32.mrf.mxu0
      %v1792 = vadd.f32 %v1548, %v1791
      %v1793 = vpop.f32.mrf.mxu0
      %v1794 = vadd.f32 %v1550, %v1793
      %1795 = vmatmul.bf16.gmra.mxu0 %v1064
      %v1796 = vpop.f32.mrf.mxu0
      %v1797 = vadd.f32 %v1553, %v1796
      %v1798 = vpop.f32.mrf.mxu0
      %v1799 = vadd.f32 %v1555, %v1798
      %1800 = vmatmul.bf16.gmra.mxu0 %v1068
      %v1801 = vpop.f32.mrf.mxu0
      %v1802 = vadd.f32 %v1558, %v1801
      %v1803 = vpop.f32.mrf.mxu0
      %v1804 = vadd.f32 %v1560, %v1803
      %1805 = vmatmul.bf16.gmra.mxu0 %v1072
      %v1806 = vpop.f32.mrf.mxu0
      %v1807 = vadd.f32 %v1563, %v1806
      %v1808 = vpop.f32.mrf.mxu0
      %v1809 = vadd.f32 %v1565, %v1808
      %1810 = vmatmul.bf16.gmra.mxu0 %v1076
      %v1811 = vpop.f32.mrf.mxu0
      %v1812 = vadd.f32 %v1568, %v1811
      %v1813 = vpop.f32.mrf.mxu0
      %v1814 = vadd.f32 %v1570, %v1813
      %1815 = vmatmul.bf16.gmra.mxu0 0
      %v1816 = vpop.f32.mrf.mxu0
      %v1817 = vadd.f32 %v1573, %v1816
      %v1818 = vpop.f32.mrf.mxu0
      %v1819 = vadd.f32 %v1575, %v1818
      %1820 = vmatmul.bf16.gmra.mxu0 %v1084
      %v1821 = vpop.f32.mrf.mxu0
      %v1822 = vadd.f32 %v1578, %v1821
      %v1823 = vpop.f32.mrf.mxu0
      %v1824 = vadd.f32 %v1580, %v1823
      %1825 = vmatmul.bf16.gmra.mxu0 %v1088
      %v1826 = vpop.f32.mrf.mxu0
      %v1827 = vadd.f32 %v1583, %v1826
      %v1828 = vpop.f32.mrf.mxu0
      %v1829 = vadd.f32 %v1585, %v1828
      %1830 = vmatmul.bf16.gmra.mxu0 %v1092
      %v1831 = vpop.f32.mrf.mxu0
      %v1832 = vadd.f32 %v1588, %v1831
      %v1833 = vpop.f32.mrf.mxu0
      %v1834 = vadd.f32 %v1590, %v1833
      %1835 = vmatmul.bf16.gmra.mxu0 %v1096
      %v1836 = vpop.f32.mrf.mxu0
      %v1837 = vadd.f32 %v1593, %v1836
      %v1838 = vpop.f32.mrf.mxu0
      %v1839 = vadd.f32 %v1595, %v1838
      %1840 = vmatmul.bf16.gmra.mxu0 %v1100
      %v1841 = vpop.f32.mrf.mxu0
      %v1842 = vadd.f32 %v1598, %v1841
      %v1843 = vpop.f32.mrf.mxu0
      %v1844 = vadd.f32 %v1600, %v1843
      %1845 = vmatmul.bf16.gmra.mxu0 %v1104
      %v1846 = vpop.f32.mrf.mxu0
      %v1847 = vadd.f32 %v1603, %v1846
      %v1848 = vpop.f32.mrf.mxu0
      %v1849 = vadd.f32 %v1605, %v1848
      %1850 = vmatmul.bf16.gmra.mxu0 %v1108
      %v1851 = vpop.f32.mrf.mxu0
      %v1852 = vadd.f32 %v1608, %v1851
      %v1853 = vpop.f32.mrf.mxu0
      %v1854 = vadd.f32 %v1610, %v1853
      %1855 = vmatmul.bf16.gmra.mxu0 %v1112
      %v1856 = vpop.f32.mrf.mxu0
      %v1857 = vadd.f32 %v1613, %v1856
      %v1858 = vpop.f32.mrf.mxu0
      %v1859 = vadd.f32 %v1615, %v1858
      %1860 = vmatmul.bf16.gmra.mxu0 %v1116
      %v1861 = vpop.f32.mrf.mxu0
      %v1862 = vadd.f32 %v1618, %v1861
      %v1863 = vpop.f32.mrf.mxu0
      %v1864 = vadd.f32 %v1620, %v1863
      %1865 = vmatmul.bf16.gmra.mxu0 %v1120
      %v1866 = vpop.f32.mrf.mxu0
      %v1867 = vadd.f32 %v1623, %v1866
      %v1868 = vpop.f32.mrf.mxu0
      %v1869 = vadd.f32 %v1625, %v1868
      %1870 = vmatmul.bf16.gmra.mxu0 %v1124
      %v1871 = vpop.f32.mrf.mxu0
      %v1872 = vadd.f32 %v1628, %v1871
      %v1873 = vpop.f32.mrf.mxu0
      %v1874 = vadd.f32 %v1630, %v1873
      %1875 = vmatmul.bf16.gmra.mxu0 %v1128
      %v1876 = vpop.f32.mrf.mxu0
      %v1877 = vadd.f32 %v1633, %v1876
      %v1878 = vpop.f32.mrf.mxu0
      %v1879 = vadd.f32 %v1635, %v1878
      %1880 = vmatmul.bf16.gmra.mxu0 %v1132
      %v1881 = vpop.f32.mrf.mxu0
      %v1882 = vadd.f32 %v1638, %v1881
      %v1883 = vpop.f32.mrf.mxu0
      %v1884 = vadd.f32 %v1640, %v1883
      %1885 = vmatmul.bf16.gmra.mxu0 %v1136
      %v1886 = vpop.f32.mrf.mxu0
      %v1887 = vadd.f32 %v1643, %v1886
      %v1888 = vpop.f32.mrf.mxu0
      %v1889 = vadd.f32 %v1645, %v1888
      %1890 = vmatmul.bf16.gmra.mxu0 %v1140
      %v1891 = vpop.f32.mrf.mxu0
      %v1892 = vadd.f32 %v1648, %v1891
      %v1893 = vpop.f32.mrf.mxu0
      %v1894 = vadd.f32 %v1650, %v1893
      %1895 = vdwg.mxu0
      %1896 = vmatpush.bf16.msra.mxu0 0
      %1897 = vmatpush.bf16.msra.mxu0 0
      %1898 = vmatpush.bf16.msra.mxu0 0
      %1899 = vmatpush.bf16.msra.mxu0 0
      %1900 = vmatpush.bf16.msra.mxu0 %v1711
      %1901 = vmatpush.bf16.msra.mxu0 %v1710
      %1902 = vmatpush.bf16.msra.mxu0 %v1709
      %1903 = vmatpush.bf16.msra.mxu0 %v1708
      %1904 = vmatmul.bf16.gmra.mxu0 %v1725
      %v1905 = vpop.f32.mrf.mxu0
      %v1906 = vadd.f32 %v1737, %v1905
      %v1907 = vpop.f32.mrf.mxu0
      %v1908 = vadd.f32 %v1739, %v1907
      %1909 = vmatmul.bf16.gmra.mxu0 %v1219
      %v1910 = vpop.f32.mrf.mxu0
      %v1911 = vadd.f32 %v1742, %v1910
      %v1912 = vpop.f32.mrf.mxu0
      %v1913 = vadd.f32 %v1744, %v1912
      %1914 = vmatmul.bf16.gmra.mxu0 %v1222
      %v1915 = vpop.f32.mrf.mxu0
      %v1916 = vadd.f32 %v1747, %v1915
      %v1917 = vpop.f32.mrf.mxu0
      %v1918 = vadd.f32 %v1749, %v1917
      %1919 = vmatmul.bf16.gmra.mxu0 %v1225
      %v1920 = vpop.f32.mrf.mxu0
      %v1921 = vadd.f32 %v1752, %v1920
      %v1922 = vpop.f32.mrf.mxu0
      %v1923 = vadd.f32 %v1754, %v1922
      %1924 = vmatmul.bf16.gmra.mxu0 %v1228
      %v1925 = vpop.f32.mrf.mxu0
      %v1926 = vadd.f32 %v1757, %v1925
      %v1927 = vpop.f32.mrf.mxu0
      %v1928 = vadd.f32 %v1759, %v1927
      %1929 = vmatmul.bf16.gmra.mxu0 %v1231
      %v1930 = vpop.f32.mrf.mxu0
      %v1931 = vadd.f32 %v1762, %v1930
      %v1932 = vpop.f32.mrf.mxu0
      %v1933 = vadd.f32 %v1764, %v1932
      %1934 = vmatmul.bf16.gmra.mxu0 %v1234
      %v1935 = vpop.f32.mrf.mxu0
      %v1936 = vadd.f32 %v1767, %v1935
      %v1937 = vpop.f32.mrf.mxu0
      %v1938 = vadd.f32 %v1769, %v1937
      %1939 = vmatmul.bf16.gmra.mxu0 %v1237
      %v1940 = vpop.f32.mrf.mxu0
      %v1941 = vadd.f32 %v1772, %v1940
      %v1942 = vpop.f32.mrf.mxu0
      %v1943 = vadd.f32 %v1774, %v1942
      %1944 = vmatmul.bf16.gmra.mxu0 %v1240
      %v1945 = vpop.f32.mrf.mxu0
      %v1946 = vadd.f32 %v1777, %v1945
      %v1947 = vpop.f32.mrf.mxu0
      %v1948 = vadd.f32 %v1779, %v1947
      %1949 = vmatmul.bf16.gmra.mxu0 %v1243
      %v1950 = vpop.f32.mrf.mxu0
      %v1951 = vadd.f32 %v1782, %v1950
      %v1952 = vpop.f32.mrf.mxu0
      %v1953 = vadd.f32 %v1784, %v1952
      %1954 = vmatmul.bf16.gmra.mxu0 %v1246
      %v1955 = vpop.f32.mrf.mxu0
      %v1956 = vadd.f32 %v1787, %v1955
      %v1957 = vpop.f32.mrf.mxu0
      %v1958 = vadd.f32 %v1789, %v1957
      %1959 = vmatmul.bf16.gmra.mxu0 %v1249
      %v1960 = vpop.f32.mrf.mxu0
      %v1961 = vadd.f32 %v1792, %v1960
      %v1962 = vpop.f32.mrf.mxu0
      %v1963 = vadd.f32 %v1794, %v1962
      %1964 = vmatmul.bf16.gmra.mxu0 %v1252
      %v1965 = vpop.f32.mrf.mxu0
      %v1966 = vadd.f32 %v1797, %v1965
      %v1967 = vpop.f32.mrf.mxu0
      %v1968 = vadd.f32 %v1799, %v1967
      %1969 = vmatmul.bf16.gmra.mxu0 %v1255
      %v1970 = vpop.f32.mrf.mxu0
      %v1971 = vadd.f32 %v1802, %v1970
      %v1972 = vpop.f32.mrf.mxu0
      %v1973 = vadd.f32 %v1804, %v1972
      %1974 = vmatmul.bf16.gmra.mxu0 %v1258
      %v1975 = vpop.f32.mrf.mxu0
      %v1976 = vadd.f32 %v1807, %v1975
      %v1977 = vpop.f32.mrf.mxu0
      %v1978 = vadd.f32 %v1809, %v1977
      %1979 = vmatmul.bf16.gmra.mxu0 %v1261
      %v1980 = vpop.f32.mrf.mxu0
      %v1981 = vadd.f32 %v1812, %v1980
      %v1982 = vpop.f32.mrf.mxu0
      %v1983 = vadd.f32 %v1814, %v1982
      %1984 = vmatmul.bf16.gmra.mxu0 %v1725
      %v1985 = vpop.f32.mrf.mxu0
      %v1986 = vadd.f32 %v1817, %v1985
      %v1987 = vpop.f32.mrf.mxu0
      %v1988 = vadd.f32 %v1819, %v1987
      %1989 = vmatmul.bf16.gmra.mxu0 %v1267
      %v1990 = vpop.f32.mrf.mxu0
      %v1991 = vadd.f32 %v1822, %v1990
      %v1992 = vpop.f32.mrf.mxu0
      %v1993 = vadd.f32 %v1824, %v1992
      %1994 = vmatmul.bf16.gmra.mxu0 %v1270
      %v1995 = vpop.f32.mrf.mxu0
      %v1996 = vadd.f32 %v1827, %v1995
      %v1997 = vpop.f32.mrf.mxu0
      %v1998 = vadd.f32 %v1829, %v1997
      %1999 = vmatmul.bf16.gmra.mxu0 %v1273
      %v2000 = vpop.f32.mrf.mxu0
      %v2001 = vadd.f32 %v1832, %v2000
      %v2002 = vpop.f32.mrf.mxu0
      %v2003 = vadd.f32 %v1834, %v2002
      %2004 = vmatmul.bf16.gmra.mxu0 %v1276
      %v2005 = vpop.f32.mrf.mxu0
      %v2006 = vadd.f32 %v1837, %v2005
      %v2007 = vpop.f32.mrf.mxu0
      %v2008 = vadd.f32 %v1839, %v2007
      %2009 = vmatmul.bf16.gmra.mxu0 %v1279
      %v2010 = vpop.f32.mrf.mxu0
      %v2011 = vadd.f32 %v1842, %v2010
      %v2012 = vpop.f32.mrf.mxu0
      %v2013 = vadd.f32 %v1844, %v2012
      %2014 = vmatmul.bf16.gmra.mxu0 %v1282
      %v2015 = vpop.f32.mrf.mxu0
      %v2016 = vadd.f32 %v1847, %v2015
      %v2017 = vpop.f32.mrf.mxu0
      %v2018 = vadd.f32 %v1849, %v2017
      %2019 = vmatmul.bf16.gmra.mxu0 %v1285
      %v2020 = vpop.f32.mrf.mxu0
      %v2021 = vadd.f32 %v1852, %v2020
      %v2022 = vpop.f32.mrf.mxu0
      %v2023 = vadd.f32 %v1854, %v2022
      %2024 = vmatmul.bf16.gmra.mxu0 %v1288
      %v2025 = vpop.f32.mrf.mxu0
      %v2026 = vadd.f32 %v1857, %v2025
      %v2027 = vpop.f32.mrf.mxu0
      %v2028 = vadd.f32 %v1859, %v2027
      %2029 = vmatmul.bf16.gmra.mxu0 %v1291
      %v2030 = vpop.f32.mrf.mxu0
      %v2031 = vadd.f32 %v1862, %v2030
      %v2032 = vpop.f32.mrf.mxu0
      %v2033 = vadd.f32 %v1864, %v2032
      %2034 = vmatmul.bf16.gmra.mxu0 %v1294
      %v2035 = vpop.f32.mrf.mxu0
      %v2036 = vadd.f32 %v1867, %v2035
      %v2037 = vpop.f32.mrf.mxu0
      %v2038 = vadd.f32 %v1869, %v2037
      %2039 = vmatmul.bf16.gmra.mxu0 %v1297
      %v2040 = vpop.f32.mrf.mxu0
      %v2041 = vadd.f32 %v1872, %v2040
      %v2042 = vpop.f32.mrf.mxu0
      %v2043 = vadd.f32 %v1874, %v2042
      %2044 = vmatmul.bf16.gmra.mxu0 %v1300
      %v2045 = vpop.f32.mrf.mxu0
      %v2046 = vadd.f32 %v1877, %v2045
      %v2047 = vpop.f32.mrf.mxu0
      %v2048 = vadd.f32 %v1879, %v2047
      %2049 = vmatmul.bf16.gmra.mxu0 %v1303
      %v2050 = vpop.f32.mrf.mxu0
      %v2051 = vadd.f32 %v1882, %v2050
      %v2052 = vpop.f32.mrf.mxu0
      %v2053 = vadd.f32 %v1884, %v2052
      %2054 = vmatmul.bf16.gmra.mxu0 %v1306
      %v2055 = vpop.f32.mrf.mxu0
      %v2056 = vadd.f32 %v1887, %v2055
      %v2057 = vpop.f32.mrf.mxu0
      %v2058 = vadd.f32 %v1889, %v2057
      %2059 = vmatmul.bf16.gmra.mxu0 %v1309
      %v2060 = vpop.f32.mrf.mxu0
      %v2061 = vadd.f32 %v1892, %v2060
      %v2062 = vpop.f32.mrf.mxu0
      %v2063 = vadd.f32 %v1894, %v2062
      %2064 = vdwg.mxu0
      %v2089 = vunpack.c.l.b16 %v346
      %v2090 = vunpack.c.l.b16 %v347
      %v2091 = vunpack.c.l.b16 %v348
      %v2092 = vunpack.c.l.b16 %v349
      %v2093 = vunpack.c.l.b16 %v350
      %v2094 = vunpack.c.l.b16 %v351
      %v2095 = vunpack.c.l.b16 %v352
      %v2096 = vunpack.c.l.b16 %v353
      %v2097 = vunpack.c.l.b16 %v354
      %v2098 = vunpack.c.l.b16 %v355
      %v2099 = vunpack.c.l.b16 %v356
      %v2100 = vunpack.c.l.b16 %v357
      %v2101 = vunpack.c.l.b16 %v358
      %v2102 = vunpack.c.l.b16 %v359
      %v2103 = vunpack.c.l.b16 %v360
      %v2104 = vunpack.c.l.b16 %v361
      %v2105 = vunpack.c.l.b16 %v362
      %v2106 = vunpack.c.l.b16 %v363
      %v2107 = vunpack.c.l.b16 %v364
      %v2108 = vunpack.c.l.b16 %v365
      %v2109 = vunpack.c.l.b16 %v366
      %v2110 = vunpack.c.l.b16 %v367
      %v2111 = vunpack.c.l.b16 %v368
      %v2112 = vunpack.c.l.b16 %v369
      %v2113 = vpack.c.b16 %v2090, %v2089
      %v2114 = vpack.c.b16 %v2092, %v2091
      %v2115 = vpack.c.b16 %v2094, %v2093
      %v2116 = vpack.c.b16 %v2096, %v2095
      %v2117 = vpack.c.b16 %v2098, %v2097
      %v2118 = vpack.c.b16 %v2100, %v2099
      %v2119 = vpack.c.b16 %v2102, %v2101
      %v2120 = vpack.c.b16 %v2104, %v2103
      %v2121 = vpack.c.b16 %v2106, %v2105
      %v2122 = vpack.c.b16 %v2108, %v2107
      %v2123 = vpack.c.b16 %v2110, %v2109
      %v2124 = vpack.c.b16 %v2112, %v2111
      %2137 = vmatpush.bf16.msra.mxu0 %v2120
      %2138 = vmatpush.bf16.msra.mxu0 %v2119
      %2139 = vmatpush.bf16.msra.mxu0 %v2118
      %2140 = vmatpush.bf16.msra.mxu0 %v2117
      %2141 = vmatpush.bf16.msra.mxu0 %v2116
      %2142 = vmatpush.bf16.msra.mxu0 %v2115
      %2143 = vmatpush.bf16.msra.mxu0 %v2114
      %2144 = vmatpush.bf16.msra.mxu0 %v2113
      %2145 = vmatmul.bf16.gmra.mxu0 %v1024
      %v2146 = vpop.f32.mrf.mxu0
      %v2147 = vadd.f32 0.0, %v2146
      %v2148 = vpop.f32.mrf.mxu0
      %v2149 = vadd.f32 0.0, %v2148
      %2150 = vmatmul.bf16.gmra.mxu0 %v1028
      %v2151 = vpop.f32.mrf.mxu0
      %v2152 = vadd.f32 0.0, %v2151
      %v2153 = vpop.f32.mrf.mxu0
      %v2154 = vadd.f32 0.0, %v2153
      %2155 = vmatmul.bf16.gmra.mxu0 %v1032
      %v2156 = vpop.f32.mrf.mxu0
      %v2157 = vadd.f32 0.0, %v2156
      %v2158 = vpop.f32.mrf.mxu0
      %v2159 = vadd.f32 0.0, %v2158
      %2160 = vmatmul.bf16.gmra.mxu0 %v1036
      %v2161 = vpop.f32.mrf.mxu0
      %v2162 = vadd.f32 0.0, %v2161
      %v2163 = vpop.f32.mrf.mxu0
      %v2164 = vadd.f32 0.0, %v2163
      %2165 = vmatmul.bf16.gmra.mxu0 %v1040
      %v2166 = vpop.f32.mrf.mxu0
      %v2167 = vadd.f32 0.0, %v2166
      %v2168 = vpop.f32.mrf.mxu0
      %v2169 = vadd.f32 0.0, %v2168
      %2170 = vmatmul.bf16.gmra.mxu0 %v1044
      %v2171 = vpop.f32.mrf.mxu0
      %v2172 = vadd.f32 0.0, %v2171
      %v2173 = vpop.f32.mrf.mxu0
      %v2174 = vadd.f32 0.0, %v2173
      %2175 = vmatmul.bf16.gmra.mxu0 %v1048
      %v2176 = vpop.f32.mrf.mxu0
      %v2177 = vadd.f32 0.0, %v2176
      %v2178 = vpop.f32.mrf.mxu0
      %v2179 = vadd.f32 0.0, %v2178
      %2180 = vmatmul.bf16.gmra.mxu0 %v1052
      %v2181 = vpop.f32.mrf.mxu0
      %v2182 = vadd.f32 0.0, %v2181
      %v2183 = vpop.f32.mrf.mxu0
      %v2184 = vadd.f32 0.0, %v2183
      %2185 = vmatmul.bf16.gmra.mxu0 %v1056
      %v2186 = vpop.f32.mrf.mxu0
      %v2187 = vadd.f32 0.0, %v2186
      %v2188 = vpop.f32.mrf.mxu0
      %v2189 = vadd.f32 0.0, %v2188
      %2190 = vmatmul.bf16.gmra.mxu0 %v1060
      %v2191 = vpop.f32.mrf.mxu0
      %v2192 = vadd.f32 0.0, %v2191
      %v2193 = vpop.f32.mrf.mxu0
      %v2194 = vadd.f32 0.0, %v2193
      %2195 = vmatmul.bf16.gmra.mxu0 %v1064
      %v2196 = vpop.f32.mrf.mxu0
      %v2197 = vadd.f32 0.0, %v2196
      %v2198 = vpop.f32.mrf.mxu0
      %v2199 = vadd.f32 0.0, %v2198
      %2200 = vmatmul.bf16.gmra.mxu0 %v1068
      %v2201 = vpop.f32.mrf.mxu0
      %v2202 = vadd.f32 0.0, %v2201
      %v2203 = vpop.f32.mrf.mxu0
      %v2204 = vadd.f32 0.0, %v2203
      %2205 = vmatmul.bf16.gmra.mxu0 %v1072
      %v2206 = vpop.f32.mrf.mxu0
      %v2207 = vadd.f32 0.0, %v2206
      %v2208 = vpop.f32.mrf.mxu0
      %v2209 = vadd.f32 0.0, %v2208
      %2210 = vmatmul.bf16.gmra.mxu0 %v1076
      %v2211 = vpop.f32.mrf.mxu0
      %v2212 = vadd.f32 0.0, %v2211
      %v2213 = vpop.f32.mrf.mxu0
      %v2214 = vadd.f32 0.0, %v2213
      %2215 = vmatmul.bf16.gmra.mxu0 %v1080
      %v2216 = vpop.f32.mrf.mxu0
      %v2217 = vadd.f32 0.0, %v2216
      %v2218 = vpop.f32.mrf.mxu0
      %v2219 = vadd.f32 0.0, %v2218
      %2220 = vmatmul.bf16.gmra.mxu0 0
      %v2221 = vpop.f32.mrf.mxu0
      %v2222 = vadd.f32 0.0, %v2221
      %v2223 = vpop.f32.mrf.mxu0
      %v2224 = vadd.f32 0.0, %v2223
      %2225 = vmatmul.bf16.gmra.mxu0 %v1088
      %v2226 = vpop.f32.mrf.mxu0
      %v2227 = vadd.f32 0.0, %v2226
      %v2228 = vpop.f32.mrf.mxu0
      %v2229 = vadd.f32 0.0, %v2228
      %2230 = vmatmul.bf16.gmra.mxu0 %v1092
      %v2231 = vpop.f32.mrf.mxu0
      %v2232 = vadd.f32 0.0, %v2231
      %v2233 = vpop.f32.mrf.mxu0
      %v2234 = vadd.f32 0.0, %v2233
      %2235 = vmatmul.bf16.gmra.mxu0 %v1096
      %v2236 = vpop.f32.mrf.mxu0
      %v2237 = vadd.f32 0.0, %v2236
      %v2238 = vpop.f32.mrf.mxu0
      %v2239 = vadd.f32 0.0, %v2238
      %2240 = vmatmul.bf16.gmra.mxu0 %v1100
      %v2241 = vpop.f32.mrf.mxu0
      %v2242 = vadd.f32 0.0, %v2241
      %v2243 = vpop.f32.mrf.mxu0
      %v2244 = vadd.f32 0.0, %v2243
      %2245 = vmatmul.bf16.gmra.mxu0 %v1104
      %v2246 = vpop.f32.mrf.mxu0
      %v2247 = vadd.f32 0.0, %v2246
      %v2248 = vpop.f32.mrf.mxu0
      %v2249 = vadd.f32 0.0, %v2248
      %2250 = vmatmul.bf16.gmra.mxu0 %v1108
      %v2251 = vpop.f32.mrf.mxu0
      %v2252 = vadd.f32 0.0, %v2251
      %v2253 = vpop.f32.mrf.mxu0
      %v2254 = vadd.f32 0.0, %v2253
      %2255 = vmatmul.bf16.gmra.mxu0 %v1112
      %v2256 = vpop.f32.mrf.mxu0
      %v2257 = vadd.f32 0.0, %v2256
      %v2258 = vpop.f32.mrf.mxu0
      %v2259 = vadd.f32 0.0, %v2258
      %2260 = vmatmul.bf16.gmra.mxu0 %v1116
      %v2261 = vpop.f32.mrf.mxu0
      %v2262 = vadd.f32 0.0, %v2261
      %v2263 = vpop.f32.mrf.mxu0
      %v2264 = vadd.f32 0.0, %v2263
      %2265 = vmatmul.bf16.gmra.mxu0 %v1120
      %v2266 = vpop.f32.mrf.mxu0
      %v2267 = vadd.f32 0.0, %v2266
      %v2268 = vpop.f32.mrf.mxu0
      %v2269 = vadd.f32 0.0, %v2268
      %2270 = vmatmul.bf16.gmra.mxu0 %v1124
      %v2271 = vpop.f32.mrf.mxu0
      %v2272 = vadd.f32 0.0, %v2271
      %v2273 = vpop.f32.mrf.mxu0
      %v2274 = vadd.f32 0.0, %v2273
      %2275 = vmatmul.bf16.gmra.mxu0 %v1128
      %v2276 = vpop.f32.mrf.mxu0
      %v2277 = vadd.f32 0.0, %v2276
      %v2278 = vpop.f32.mrf.mxu0
      %v2279 = vadd.f32 0.0, %v2278
      %2280 = vmatmul.bf16.gmra.mxu0 %v1132
      %v2281 = vpop.f32.mrf.mxu0
      %v2282 = vadd.f32 0.0, %v2281
      %v2283 = vpop.f32.mrf.mxu0
      %v2284 = vadd.f32 0.0, %v2283
      %2285 = vmatmul.bf16.gmra.mxu0 %v1136
      %v2286 = vpop.f32.mrf.mxu0
      %v2287 = vadd.f32 0.0, %v2286
      %v2288 = vpop.f32.mrf.mxu0
      %v2289 = vadd.f32 0.0, %v2288
      %2290 = vmatmul.bf16.gmra.mxu0 %v1140
      %v2291 = vpop.f32.mrf.mxu0
      %v2292 = vadd.f32 0.0, %v2291
      %v2293 = vpop.f32.mrf.mxu0
      %v2294 = vadd.f32 0.0, %v2293
      %2295 = vmatmul.bf16.gmra.mxu0 %v1144
      %v2296 = vpop.f32.mrf.mxu0
      %v2297 = vadd.f32 0.0, %v2296
      %v2298 = vpop.f32.mrf.mxu0
      %v2299 = vadd.f32 0.0, %v2298
      %2300 = vmatmul.bf16.gmra.mxu0 0
      %v2301 = vpop.f32.mrf.mxu0
      %v2302 = vadd.f32 0.0, %v2301
      %v2303 = vpop.f32.mrf.mxu0
      %v2304 = vadd.f32 0.0, %v2303
      %2305 = vdwg.mxu0
      %2306 = vmatpush.bf16.msra.mxu0 0
      %2307 = vmatpush.bf16.msra.mxu0 0
      %2308 = vmatpush.bf16.msra.mxu0 0
      %2309 = vmatpush.bf16.msra.mxu0 0
      %2310 = vmatpush.bf16.msra.mxu0 %v2124
      %2311 = vmatpush.bf16.msra.mxu0 %v2123
      %2312 = vmatpush.bf16.msra.mxu0 %v2122
      %2313 = vmatpush.bf16.msra.mxu0 %v2121
      %2314 = vmatmul.bf16.gmra.mxu0 %v1222
      %v2315 = vpop.f32.mrf.mxu0
      %v2316 = vadd.f32 %v2147, %v2315
      %v2317 = vpop.f32.mrf.mxu0
      %v2318 = vadd.f32 %v2149, %v2317
      %2319 = vmatmul.bf16.gmra.mxu0 %v1225
      %v2320 = vpop.f32.mrf.mxu0
      %v2321 = vadd.f32 %v2152, %v2320
      %v2322 = vpop.f32.mrf.mxu0
      %v2323 = vadd.f32 %v2154, %v2322
      %2324 = vmatmul.bf16.gmra.mxu0 %v1228
      %v2325 = vpop.f32.mrf.mxu0
      %v2326 = vadd.f32 %v2157, %v2325
      %v2327 = vpop.f32.mrf.mxu0
      %v2328 = vadd.f32 %v2159, %v2327
      %2329 = vmatmul.bf16.gmra.mxu0 %v1231
      %v2330 = vpop.f32.mrf.mxu0
      %v2331 = vadd.f32 %v2162, %v2330
      %v2332 = vpop.f32.mrf.mxu0
      %v2333 = vadd.f32 %v2164, %v2332
      %2334 = vmatmul.bf16.gmra.mxu0 %v1234
      %v2335 = vpop.f32.mrf.mxu0
      %v2336 = vadd.f32 %v2167, %v2335
      %v2337 = vpop.f32.mrf.mxu0
      %v2338 = vadd.f32 %v2169, %v2337
      %2339 = vmatmul.bf16.gmra.mxu0 %v1237
      %v2340 = vpop.f32.mrf.mxu0
      %v2341 = vadd.f32 %v2172, %v2340
      %v2342 = vpop.f32.mrf.mxu0
      %v2343 = vadd.f32 %v2174, %v2342
      %2344 = vmatmul.bf16.gmra.mxu0 %v1240
      %v2345 = vpop.f32.mrf.mxu0
      %v2346 = vadd.f32 %v2177, %v2345
      %v2347 = vpop.f32.mrf.mxu0
      %v2348 = vadd.f32 %v2179, %v2347
      %2349 = vmatmul.bf16.gmra.mxu0 %v1243
      %v2350 = vpop.f32.mrf.mxu0
      %v2351 = vadd.f32 %v2182, %v2350
      %v2352 = vpop.f32.mrf.mxu0
      %v2353 = vadd.f32 %v2184, %v2352
      %2354 = vmatmul.bf16.gmra.mxu0 %v1246
      %v2355 = vpop.f32.mrf.mxu0
      %v2356 = vadd.f32 %v2187, %v2355
      %v2357 = vpop.f32.mrf.mxu0
      %v2358 = vadd.f32 %v2189, %v2357
      %2359 = vmatmul.bf16.gmra.mxu0 %v1249
      %v2360 = vpop.f32.mrf.mxu0
      %v2361 = vadd.f32 %v2192, %v2360
      %v2362 = vpop.f32.mrf.mxu0
      %v2363 = vadd.f32 %v2194, %v2362
      %2364 = vmatmul.bf16.gmra.mxu0 %v1252
      %v2365 = vpop.f32.mrf.mxu0
      %v2366 = vadd.f32 %v2197, %v2365
      %v2367 = vpop.f32.mrf.mxu0
      %v2368 = vadd.f32 %v2199, %v2367
      %2369 = vmatmul.bf16.gmra.mxu0 %v1255
      %v2370 = vpop.f32.mrf.mxu0
      %v2371 = vadd.f32 %v2202, %v2370
      %v2372 = vpop.f32.mrf.mxu0
      %v2373 = vadd.f32 %v2204, %v2372
      %2374 = vmatmul.bf16.gmra.mxu0 %v1258
      %v2375 = vpop.f32.mrf.mxu0
      %v2376 = vadd.f32 %v2207, %v2375
      %v2377 = vpop.f32.mrf.mxu0
      %v2378 = vadd.f32 %v2209, %v2377
      %2379 = vmatmul.bf16.gmra.mxu0 %v1261
      %v2380 = vpop.f32.mrf.mxu0
      %v2381 = vadd.f32 %v2212, %v2380
      %v2382 = vpop.f32.mrf.mxu0
      %v2383 = vadd.f32 %v2214, %v2382
      %2384 = vmatmul.bf16.gmra.mxu0 %v1264
      %v2385 = vpop.f32.mrf.mxu0
      %v2386 = vadd.f32 %v2217, %v2385
      %v2387 = vpop.f32.mrf.mxu0
      %v2388 = vadd.f32 %v2219, %v2387
      %2389 = vmatmul.bf16.gmra.mxu0 %v1725
      %v2390 = vpop.f32.mrf.mxu0
      %v2391 = vadd.f32 %v2222, %v2390
      %v2392 = vpop.f32.mrf.mxu0
      %v2393 = vadd.f32 %v2224, %v2392
      %2394 = vmatmul.bf16.gmra.mxu0 %v1270
      %v2395 = vpop.f32.mrf.mxu0
      %v2396 = vadd.f32 %v2227, %v2395
      %v2397 = vpop.f32.mrf.mxu0
      %v2398 = vadd.f32 %v2229, %v2397
      %2399 = vmatmul.bf16.gmra.mxu0 %v1273
      %v2400 = vpop.f32.mrf.mxu0
      %v2401 = vadd.f32 %v2232, %v2400
      %v2402 = vpop.f32.mrf.mxu0
      %v2403 = vadd.f32 %v2234, %v2402
      %2404 = vmatmul.bf16.gmra.mxu0 %v1276
      %v2405 = vpop.f32.mrf.mxu0
      %v2406 = vadd.f32 %v2237, %v2405
      %v2407 = vpop.f32.mrf.mxu0
      %v2408 = vadd.f32 %v2239, %v2407
      %2409 = vmatmul.bf16.gmra.mxu0 %v1279
      %v2410 = vpop.f32.mrf.mxu0
      %v2411 = vadd.f32 %v2242, %v2410
      %v2412 = vpop.f32.mrf.mxu0
      %v2413 = vadd.f32 %v2244, %v2412
      %2414 = vmatmul.bf16.gmra.mxu0 %v1282
      %v2415 = vpop.f32.mrf.mxu0
      %v2416 = vadd.f32 %v2247, %v2415
      %v2417 = vpop.f32.mrf.mxu0
      %v2418 = vadd.f32 %v2249, %v2417
      %2419 = vmatmul.bf16.gmra.mxu0 %v1285
      %v2420 = vpop.f32.mrf.mxu0
      %v2421 = vadd.f32 %v2252, %v2420
      %v2422 = vpop.f32.mrf.mxu0
      %v2423 = vadd.f32 %v2254, %v2422
      %2424 = vmatmul.bf16.gmra.mxu0 %v1288
      %v2425 = vpop.f32.mrf.mxu0
      %v2426 = vadd.f32 %v2257, %v2425
      %v2427 = vpop.f32.mrf.mxu0
      %v2428 = vadd.f32 %v2259, %v2427
      %2429 = vmatmul.bf16.gmra.mxu0 %v1291
      %v2430 = vpop.f32.mrf.mxu0
      %v2431 = vadd.f32 %v2262, %v2430
      %v2432 = vpop.f32.mrf.mxu0
      %v2433 = vadd.f32 %v2264, %v2432
      %2434 = vmatmul.bf16.gmra.mxu0 %v1294
      %v2435 = vpop.f32.mrf.mxu0
      %v2436 = vadd.f32 %v2267, %v2435
      %v2437 = vpop.f32.mrf.mxu0
      %v2438 = vadd.f32 %v2269, %v2437
      %2439 = vmatmul.bf16.gmra.mxu0 %v1297
      %v2440 = vpop.f32.mrf.mxu0
      %v2441 = vadd.f32 %v2272, %v2440
      %v2442 = vpop.f32.mrf.mxu0
      %v2443 = vadd.f32 %v2274, %v2442
      %2444 = vmatmul.bf16.gmra.mxu0 %v1300
      %v2445 = vpop.f32.mrf.mxu0
      %v2446 = vadd.f32 %v2277, %v2445
      %v2447 = vpop.f32.mrf.mxu0
      %v2448 = vadd.f32 %v2279, %v2447
      %2449 = vmatmul.bf16.gmra.mxu0 %v1303
      %v2450 = vpop.f32.mrf.mxu0
      %v2451 = vadd.f32 %v2282, %v2450
      %v2452 = vpop.f32.mrf.mxu0
      %v2453 = vadd.f32 %v2284, %v2452
      %2454 = vmatmul.bf16.gmra.mxu0 %v1306
      %v2455 = vpop.f32.mrf.mxu0
      %v2456 = vadd.f32 %v2287, %v2455
      %v2457 = vpop.f32.mrf.mxu0
      %v2458 = vadd.f32 %v2289, %v2457
      %2459 = vmatmul.bf16.gmra.mxu0 %v1309
      %v2460 = vpop.f32.mrf.mxu0
      %v2461 = vadd.f32 %v2292, %v2460
      %v2462 = vpop.f32.mrf.mxu0
      %v2463 = vadd.f32 %v2294, %v2462
      %2464 = vmatmul.bf16.gmra.mxu0 %v1312
      %v2465 = vpop.f32.mrf.mxu0
      %v2466 = vadd.f32 %v2297, %v2465
      %v2467 = vpop.f32.mrf.mxu0
      %v2468 = vadd.f32 %v2299, %v2467
      %2469 = vmatmul.bf16.gmra.mxu0 %v1725
      %v2470 = vpop.f32.mrf.mxu0
      %v2471 = vadd.f32 %v2302, %v2470
      %v2472 = vpop.f32.mrf.mxu0
      %v2473 = vadd.f32 %v2304, %v2472
      %2474 = vdwg.mxu0
      %v2475 = vadd.f32 %v1906, %v2316
      %v2476 = vadd.f32 %v1908, %v2318
      %v2477 = vadd.f32 %v1911, %v2321
      %v2478 = vadd.f32 %v1913, %v2323
      %v2479 = vadd.f32 %v1916, %v2326
      %v2480 = vadd.f32 %v1918, %v2328
      %v2481 = vadd.f32 %v1921, %v2331
      %v2482 = vadd.f32 %v1923, %v2333
      %v2483 = vadd.f32 %v1926, %v2336
      %v2484 = vadd.f32 %v1928, %v2338
      %v2485 = vadd.f32 %v1931, %v2341
      %v2486 = vadd.f32 %v1933, %v2343
      %v2487 = vadd.f32 %v1936, %v2346
      %v2488 = vadd.f32 %v1938, %v2348
      %v2489 = vadd.f32 %v1941, %v2351
      %v2490 = vadd.f32 %v1943, %v2353
      %v2491 = vadd.f32 %v1946, %v2356
      %v2492 = vadd.f32 %v1948, %v2358
      %v2493 = vadd.f32 %v1951, %v2361
      %v2494 = vadd.f32 %v1953, %v2363
      %v2495 = vadd.f32 %v1956, %v2366
      %v2496 = vadd.f32 %v1958, %v2368
      %v2497 = vadd.f32 %v1961, %v2371
      %v2498 = vadd.f32 %v1963, %v2373
      %v2499 = vadd.f32 %v1966, %v2376
      %v2500 = vadd.f32 %v1968, %v2378
      %v2501 = vadd.f32 %v1971, %v2381
      %v2502 = vadd.f32 %v1973, %v2383
      %v2503 = vadd.f32 %v1976, %v2386
      %v2504 = vadd.f32 %v1978, %v2388
      %v2505 = vadd.f32 %v1981, %v2391
      %v2506 = vadd.f32 %v1983, %v2393
      %v2507 = vadd.f32 %v1986, %v2396
      %v2508 = vadd.f32 %v1988, %v2398
      %v2509 = vadd.f32 %v1991, %v2401
      %v2510 = vadd.f32 %v1993, %v2403
      %v2511 = vadd.f32 %v1996, %v2406
      %v2512 = vadd.f32 %v1998, %v2408
      %v2513 = vadd.f32 %v2001, %v2411
      %v2514 = vadd.f32 %v2003, %v2413
      %v2515 = vadd.f32 %v2006, %v2416
      %v2516 = vadd.f32 %v2008, %v2418
      %v2517 = vadd.f32 %v2011, %v2421
      %v2518 = vadd.f32 %v2013, %v2423
      %v2519 = vadd.f32 %v2016, %v2426
      %v2520 = vadd.f32 %v2018, %v2428
      %v2521 = vadd.f32 %v2021, %v2431
      %v2522 = vadd.f32 %v2023, %v2433
      %v2523 = vadd.f32 %v2026, %v2436
      %v2524 = vadd.f32 %v2028, %v2438
      %v2525 = vadd.f32 %v2031, %v2441
      %v2526 = vadd.f32 %v2033, %v2443
      %v2527 = vadd.f32 %v2036, %v2446
      %v2528 = vadd.f32 %v2038, %v2448
      %v2529 = vadd.f32 %v2041, %v2451
      %v2530 = vadd.f32 %v2043, %v2453
      %v2531 = vadd.f32 %v2046, %v2456
      %v2532 = vadd.f32 %v2048, %v2458
      %v2533 = vadd.f32 %v2051, %v2461
      %v2534 = vadd.f32 %v2053, %v2463
      %v2535 = vadd.f32 %v2056, %v2466
      %v2536 = vadd.f32 %v2058, %v2468
      %v2537 = vadd.f32 %v2061, %v2471
      %v2538 = vadd.f32 %v2063, %v2473
      %v2540 = vperm.slane %v370, 0
      %v2542 = vadd.f32 %v2475, %v2540
      %v2543 = vadd.f32 %v2476, %v2540
      %v2544 = vadd.f32 %v2477, %v2540
      %v2545 = vadd.f32 %v2478, %v2540
      %v2546 = vadd.f32 %v2479, %v2540
      %v2547 = vadd.f32 %v2480, %v2540
      %v2548 = vadd.f32 %v2481, %v2540
      %v2549 = vadd.f32 %v2482, %v2540
      %v2550 = vadd.f32 %v2483, %v2540
      %v2551 = vadd.f32 %v2484, %v2540
      %v2552 = vadd.f32 %v2485, %v2540
      %v2553 = vadd.f32 %v2486, %v2540
      %v2554 = vadd.f32 %v2487, %v2540
      %v2555 = vadd.f32 %v2488, %v2540
      %v2556 = vadd.f32 %v2489, %v2540
      %v2557 = vadd.f32 %v2490, %v2540
      %v2558 = vadd.f32 %v2491, %v2540
      %v2559 = vadd.f32 %v2492, %v2540
      %v2560 = vadd.f32 %v2493, %v2540
      %v2561 = vadd.f32 %v2494, %v2540
      %v2562 = vadd.f32 %v2495, %v2540
      %v2563 = vadd.f32 %v2496, %v2540
      %v2564 = vadd.f32 %v2497, %v2540
      %v2565 = vadd.f32 %v2498, %v2540
      %v2566 = vadd.f32 %v2499, %v2540
      %v2567 = vadd.f32 %v2500, %v2540
      %v2568 = vadd.f32 %v2501, %v2540
      %v2569 = vadd.f32 %v2502, %v2540
      %v2570 = vadd.f32 %v2503, %v2540
      %v2571 = vadd.f32 %v2504, %v2540
      %v2572 = vadd.f32 %v2505, %v2540
      %v2573 = vadd.f32 %v2506, %v2540
      %v2574 = vadd.f32 %v2507, %v2540
      %v2575 = vadd.f32 %v2508, %v2540
      %v2576 = vadd.f32 %v2509, %v2540
      %v2577 = vadd.f32 %v2510, %v2540
      %v2578 = vadd.f32 %v2511, %v2540
      %v2579 = vadd.f32 %v2512, %v2540
      %v2580 = vadd.f32 %v2513, %v2540
      %v2581 = vadd.f32 %v2514, %v2540
      %v2582 = vadd.f32 %v2515, %v2540
      %v2583 = vadd.f32 %v2516, %v2540
      %v2584 = vadd.f32 %v2517, %v2540
      %v2585 = vadd.f32 %v2518, %v2540
      %v2586 = vadd.f32 %v2519, %v2540
      %v2587 = vadd.f32 %v2520, %v2540
      %v2588 = vadd.f32 %v2521, %v2540
      %v2589 = vadd.f32 %v2522, %v2540
      %v2590 = vadd.f32 %v2523, %v2540
      %v2591 = vadd.f32 %v2524, %v2540
      %v2592 = vadd.f32 %v2525, %v2540
      %v2593 = vadd.f32 %v2526, %v2540
      %v2594 = vadd.f32 %v2527, %v2540
      %v2595 = vadd.f32 %v2528, %v2540
      %v2596 = vadd.f32 %v2529, %v2540
      %v2597 = vadd.f32 %v2530, %v2540
      %v2598 = vadd.f32 %v2531, %v2540
      %v2599 = vadd.f32 %v2532, %v2540
      %v2600 = vadd.f32 %v2533, %v2540
      %v2601 = vadd.f32 %v2534, %v2540
      %v2602 = vadd.f32 %v2535, %v2540
      %v2603 = vadd.f32 %v2536, %v2540
      %v2604 = vadd.f32 %v2537, %v2540
      %v2605 = vadd.f32 %v2538, %v2540
      %v2606 = vld [vmem:[%s224] sm:$0xff]
      %v2607 = vld [vmem:[%s224 + $0x8] sm:$0xff]
      %v2608 = vld [vmem:[%s224 + $0x10] sm:$0xff]
      %v2609 = vld [vmem:[%s224 + $0x18] sm:$0xff]
      %v2610 = vld [vmem:[%s224 + $0x20] sm:$0xff]
      %v2611 = vld [vmem:[%s224 + $0x28] sm:$0xff]
      %v2612 = vld [vmem:[%s224 + $0x30] sm:$0xff]
      %v2613 = vld [vmem:[%s224 + $0x38] sm:$0xff]
      %v2614 = vld [vmem:[%s224 + $0x40] sm:$0xff]
      %v2615 = vld [vmem:[%s224 + $0x48] sm:$0xff]
      %v2616 = vld [vmem:[%s224 + $0x50] sm:$0xff]
      %v2617 = vld [vmem:[%s224 + $0x58] sm:$0xff]
      %v2618 = vld [vmem:[%s224 + $0x60] sm:$0xff]
      %v2619 = vld [vmem:[%s224 + $0x68] sm:$0xff]
      %v2620 = vld [vmem:[%s224 + $0x70] sm:$0xff]
      %v2621 = vld [vmem:[%s224 + $0x78] sm:$0xff]
      %v2622 = vld [vmem:[%s224 + $0x80] sm:$0xff]
      %v2623 = vld [vmem:[%s224 + $0x88] sm:$0xff]
      %v2624 = vld [vmem:[%s224 + $0x90] sm:$0xff]
      %v2625 = vld [vmem:[%s224 + $0x98] sm:$0xff]
      %v2626 = vld [vmem:[%s224 + $0xa0] sm:$0xff]
      %v2627 = vld [vmem:[%s224 + $0xa8] sm:$0xff]
      %v2628 = vld [vmem:[%s224 + $0xb0] sm:$0xff]
      %v2629 = vld [vmem:[%s224 + $0xb8] sm:$0xff]
      %v2630 = vld [vmem:[%s224 + $0xc0] sm:$0xff]
      %v2631 = vld [vmem:[%s224 + $0xc8] sm:$0xff]
      %v2632 = vld [vmem:[%s224 + $0xd0] sm:$0xff]
      %v2633 = vld [vmem:[%s224 + $0xd8] sm:$0xff]
      %v2634 = vld [vmem:[%s224 + $0xe0] sm:$0xff]
      %v2635 = vld [vmem:[%s224 + $0xe8] sm:$0xff]
      %v2636 = vld [vmem:[%s224 + $0xf0] sm:$0xff]
      %v2637 = vld [vmem:[%s224 + $0xf8] sm:$0xff]
      %v2638 = vld [vmem:[%s224 + $0x100] sm:$0xff]
      %v2639 = vld [vmem:[%s224 + $0x108] sm:$0xff]
      %v2640 = vld [vmem:[%s224 + $0x110] sm:$0xff]
      %v2641 = vld [vmem:[%s224 + $0x118] sm:$0xff]
      %v2642 = vld [vmem:[%s224 + $0x120] sm:$0xff]
      %v2643 = vld [vmem:[%s224 + $0x128] sm:$0xff]
      %v2644 = vld [vmem:[%s224 + $0x130] sm:$0xff]
      %v2645 = vld [vmem:[%s224 + $0x138] sm:$0xff]
      %v2646 = vld [vmem:[%s224 + $0x140] sm:$0xff]
      %v2647 = vld [vmem:[%s224 + $0x148] sm:$0xff]
      %v2648 = vld [vmem:[%s224 + $0x150] sm:$0xff]
      %v2649 = vld [vmem:[%s224 + $0x158] sm:$0xff]
      %v2650 = vld [vmem:[%s224 + $0x160] sm:$0xff]
      %v2651 = vld [vmem:[%s224 + $0x168] sm:$0xff]
      %v2652 = vld [vmem:[%s224 + $0x170] sm:$0xff]
      %v2653 = vld [vmem:[%s224 + $0x178] sm:$0xff]
      %v2654 = vld [vmem:[%s224 + $0x180] sm:$0xff]
      %v2655 = vld [vmem:[%s224 + $0x188] sm:$0xff]
      %v2656 = vld [vmem:[%s224 + $0x190] sm:$0xff]
      %v2657 = vld [vmem:[%s224 + $0x198] sm:$0xff]
      %v2658 = vld [vmem:[%s224 + $0x1a0] sm:$0xff]
      %v2659 = vld [vmem:[%s224 + $0x1a8] sm:$0xff]
      %v2660 = vld [vmem:[%s224 + $0x1b0] sm:$0xff]
      %v2661 = vld [vmem:[%s224 + $0x1b8] sm:$0xff]
      %v2662 = vld [vmem:[%s224 + $0x1c0] sm:$0xff]
      %v2663 = vld [vmem:[%s224 + $0x1c8] sm:$0xff]
      %v2664 = vld [vmem:[%s224 + $0x1d0] sm:$0xff]
      %v2665 = vld [vmem:[%s224 + $0x1d8] sm:$0xff]
      %v2666 = vld [vmem:[%s224 + $0x1e0] sm:$0xff]
      %v2667 = vld [vmem:[%s224 + $0x1e8] sm:$0xff]
      %v2668 = vld [vmem:[%s224 + $0x1f0] sm:$0xff]
      %v2669 = vld [vmem:[%s224 + $0x1f8] sm:$0xff]
      %v2670 = vadd.f32 %v2542, %v2606
      %v2671 = vadd.f32 %v2543, %v2607
      %v2672 = vadd.f32 %v2544, %v2608
      %v2673 = vadd.f32 %v2545, %v2609
      %v2674 = vadd.f32 %v2546, %v2610
      %v2675 = vadd.f32 %v2547, %v2611
      %v2676 = vadd.f32 %v2548, %v2612
      %v2677 = vadd.f32 %v2549, %v2613
      %v2678 = vadd.f32 %v2550, %v2614
      %v2679 = vadd.f32 %v2551, %v2615
      %v2680 = vadd.f32 %v2552, %v2616
      %v2681 = vadd.f32 %v2553, %v2617
      %v2682 = vadd.f32 %v2554, %v2618
      %v2683 = vadd.f32 %v2555, %v2619
      %v2684 = vadd.f32 %v2556, %v2620
      %v2685 = vadd.f32 %v2557, %v2621
      %v2686 = vadd.f32 %v2558, %v2622
      %v2687 = vadd.f32 %v2559, %v2623
      %v2688 = vadd.f32 %v2560, %v2624
      %v2689 = vadd.f32 %v2561, %v2625
      %v2690 = vadd.f32 %v2562, %v2626
      %v2691 = vadd.f32 %v2563, %v2627
      %v2692 = vadd.f32 %v2564, %v2628
      %v2693 = vadd.f32 %v2565, %v2629
      %v2694 = vadd.f32 %v2566, %v2630
      %v2695 = vadd.f32 %v2567, %v2631
      %v2696 = vadd.f32 %v2568, %v2632
      %v2697 = vadd.f32 %v2569, %v2633
      %v2698 = vadd.f32 %v2570, %v2634
      %v2699 = vadd.f32 %v2571, %v2635
      %v2700 = vadd.f32 %v2572, %v2636
      %v2701 = vadd.f32 %v2573, %v2637
      %v2702 = vadd.f32 %v2574, %v2638
      %v2703 = vadd.f32 %v2575, %v2639
      %v2704 = vadd.f32 %v2576, %v2640
      %v2705 = vadd.f32 %v2577, %v2641
      %v2706 = vadd.f32 %v2578, %v2642
      %v2707 = vadd.f32 %v2579, %v2643
      %v2708 = vadd.f32 %v2580, %v2644
      %v2709 = vadd.f32 %v2581, %v2645
      %v2710 = vadd.f32 %v2582, %v2646
      %v2711 = vadd.f32 %v2583, %v2647
      %v2712 = vadd.f32 %v2584, %v2648
      %v2713 = vadd.f32 %v2585, %v2649
      %v2714 = vadd.f32 %v2586, %v2650
      %v2715 = vadd.f32 %v2587, %v2651
      %v2716 = vadd.f32 %v2588, %v2652
      %v2717 = vadd.f32 %v2589, %v2653
      %v2718 = vadd.f32 %v2590, %v2654
      %v2719 = vadd.f32 %v2591, %v2655
      %v2720 = vadd.f32 %v2592, %v2656
      %v2721 = vadd.f32 %v2593, %v2657
      %v2722 = vadd.f32 %v2594, %v2658
      %v2723 = vadd.f32 %v2595, %v2659
      %v2724 = vadd.f32 %v2596, %v2660
      %v2725 = vadd.f32 %v2597, %v2661
      %v2726 = vadd.f32 %v2598, %v2662
      %v2727 = vadd.f32 %v2599, %v2663
      %v2728 = vadd.f32 %v2600, %v2664
      %v2729 = vadd.f32 %v2601, %v2665
      %v2730 = vadd.f32 %v2602, %v2666
      %v2731 = vadd.f32 %v2603, %v2667
      %v2732 = vadd.f32 %v2604, %v2668
      %v2733 = vadd.f32 %v2605, %v2669
      %vm2734 = vcmask 7168
      %2735 = vst.msk [vmem:[%s231] sm:$0xff] %vm2734, %v2670
      %2736 = vst.msk [vmem:[%s231 + $0x8] sm:$0xff] %vm2734, %v2671
      %2737 = vst.msk [vmem:[%s231 + $0x10] sm:$0xff] %vm2734, %v2672
      %2738 = vst.msk [vmem:[%s231 + $0x18] sm:$0xff] %vm2734, %v2673
      %2739 = vst.msk [vmem:[%s231 + $0x20] sm:$0xff] %vm2734, %v2674
      %2740 = vst.msk [vmem:[%s231 + $0x28] sm:$0xff] %vm2734, %v2675
      %2741 = vst.msk [vmem:[%s231 + $0x30] sm:$0xff] %vm2734, %v2676
      %2742 = vst.msk [vmem:[%s231 + $0x38] sm:$0xff] %vm2734, %v2677
      %2743 = vst.msk [vmem:[%s231 + $0x40] sm:$0xff] %vm2734, %v2678
      %2744 = vst.msk [vmem:[%s231 + $0x48] sm:$0xff] %vm2734, %v2679
      %2745 = vst.msk [vmem:[%s231 + $0x50] sm:$0xff] %vm2734, %v2680
      %2746 = vst.msk [vmem:[%s231 + $0x58] sm:$0xff] %vm2734, %v2681
      %2747 = vst.msk [vmem:[%s231 + $0x60] sm:$0xff] %vm2734, %v2682
      %2748 = vst.msk [vmem:[%s231 + $0x68] sm:$0xff] %vm2734, %v2683
      %2749 = vst.msk [vmem:[%s231 + $0x70] sm:$0xff] %vm2734, %v2684
      %2750 = vst.msk [vmem:[%s231 + $0x78] sm:$0xff] %vm2734, %v2685
      %2751 = vst.msk [vmem:[%s231 + $0x80] sm:$0xff] %vm2734, %v2686
      %2752 = vst.msk [vmem:[%s231 + $0x88] sm:$0xff] %vm2734, %v2687
      %2753 = vst.msk [vmem:[%s231 + $0x90] sm:$0xff] %vm2734, %v2688
      %2754 = vst.msk [vmem:[%s231 + $0x98] sm:$0xff] %vm2734, %v2689
      %2755 = vst.msk [vmem:[%s231 + $0xa0] sm:$0xff] %vm2734, %v2690
      %2756 = vst.msk [vmem:[%s231 + $0xa8] sm:$0xff] %vm2734, %v2691
      %2757 = vst.msk [vmem:[%s231 + $0xb0] sm:$0xff] %vm2734, %v2692
      %2758 = vst.msk [vmem:[%s231 + $0xb8] sm:$0xff] %vm2734, %v2693
      %2759 = vst.msk [vmem:[%s231 + $0xc0] sm:$0xff] %vm2734, %v2694
      %2760 = vst.msk [vmem:[%s231 + $0xc8] sm:$0xff] %vm2734, %v2695
      %2761 = vst.msk [vmem:[%s231 + $0xd0] sm:$0xff] %vm2734, %v2696
      %2762 = vst.msk [vmem:[%s231 + $0xd8] sm:$0xff] %vm2734, %v2697
      %2763 = vst.msk [vmem:[%s231 + $0xe0] sm:$0xff] %vm2734, %v2698
      %2764 = vst.msk [vmem:[%s231 + $0xe8] sm:$0xff] %vm2734, %v2699
      %2765 = vst.msk [vmem:[%s231 + $0xf0] sm:$0xff] %vm2734, %v2700
      %2766 = vst.msk [vmem:[%s231 + $0xf8] sm:$0xff] %vm2734, %v2701
      %2767 = vst.msk [vmem:[%s231 + $0x100] sm:$0xff] %vm2734, %v2702
      %2768 = vst.msk [vmem:[%s231 + $0x108] sm:$0xff] %vm2734, %v2703
      %2769 = vst.msk [vmem:[%s231 + $0x110] sm:$0xff] %vm2734, %v2704
      %2770 = vst.msk [vmem:[%s231 + $0x118] sm:$0xff] %vm2734, %v2705
      %2771 = vst.msk [vmem:[%s231 + $0x120] sm:$0xff] %vm2734, %v2706
      %2772 = vst.msk [vmem:[%s231 + $0x128] sm:$0xff] %vm2734, %v2707
      %2773 = vst.msk [vmem:[%s231 + $0x130] sm:$0xff] %vm2734, %v2708
      %2774 = vst.msk [vmem:[%s231 + $0x138] sm:$0xff] %vm2734, %v2709
      %2775 = vst.msk [vmem:[%s231 + $0x140] sm:$0xff] %vm2734, %v2710
      %2776 = vst.msk [vmem:[%s231 + $0x148] sm:$0xff] %vm2734, %v2711
      %2777 = vst.msk [vmem:[%s231 + $0x150] sm:$0xff] %vm2734, %v2712
      %2778 = vst.msk [vmem:[%s231 + $0x158] sm:$0xff] %vm2734, %v2713
      %2779 = vst.msk [vmem:[%s231 + $0x160] sm:$0xff] %vm2734, %v2714
      %2780 = vst.msk [vmem:[%s231 + $0x168] sm:$0xff] %vm2734, %v2715
      %2781 = vst.msk [vmem:[%s231 + $0x170] sm:$0xff] %vm2734, %v2716
      %2782 = vst.msk [vmem:[%s231 + $0x178] sm:$0xff] %vm2734, %v2717
      %2783 = vst.msk [vmem:[%s231 + $0x180] sm:$0xff] %vm2734, %v2718
      %2784 = vst.msk [vmem:[%s231 + $0x188] sm:$0xff] %vm2734, %v2719
      %2785 = vst.msk [vmem:[%s231 + $0x190] sm:$0xff] %vm2734, %v2720
      %2786 = vst.msk [vmem:[%s231 + $0x198] sm:$0xff] %vm2734, %v2721
      %2787 = vst.msk [vmem:[%s231 + $0x1a0] sm:$0xff] %vm2734, %v2722
      %2788 = vst.msk [vmem:[%s231 + $0x1a8] sm:$0xff] %vm2734, %v2723
      %2789 = vst.msk [vmem:[%s231 + $0x1b0] sm:$0xff] %vm2734, %v2724
      %2790 = vst.msk [vmem:[%s231 + $0x1b8] sm:$0xff] %vm2734, %v2725
      %2791 = vst.msk [vmem:[%s231 + $0x1c0] sm:$0xff] %vm2734, %v2726
      %2792 = vst.msk [vmem:[%s231 + $0x1c8] sm:$0xff] %vm2734, %v2727
      %2793 = vst.msk [vmem:[%s231 + $0x1d0] sm:$0xff] %vm2734, %v2728
      %2794 = vst.msk [vmem:[%s231 + $0x1d8] sm:$0xff] %vm2734, %v2729
      %2795 = vst.msk [vmem:[%s231 + $0x1e0] sm:$0xff] %vm2734, %v2730
      %2796 = vst.msk [vmem:[%s231 + $0x1e8] sm:$0xff] %vm2734, %v2731
      %2797 = vst.msk [vmem:[%s231 + $0x1f0] sm:$0xff] %vm2734, %v2732
      %2798 = vst.msk [vmem:[%s231 + $0x1f8] sm:$0xff] %vm2734, %v2733
      %s2799 = smul.u32 2, %s17
      %p2800 = scmp.lt.s32.totalorder %s2799, 3
      %s2801 = scalar_select %p2800, %s2799, 3
      %s2802 = smul.addr %s2801, 32
      %s2803 = smul.addr %s2802, 8
      %s2804 = scalar_lea.vmem %s4, %s2803
      // Predicated region
      $region37: #{net2x_forward.15} parent=35 // pred_check
        %p2805 = pneg %p129
      $region38: #{net2x_forward.15} parent=35 // pred_check_branch
        %2807 = sbr.rel (%p2805) target = $region40
      $region39: #{net2x_forward.15} parent=35 // pred_region
        %s2808 = smul.u32 2, %s17
      $region40: #{net2x_forward.15} parent=35 // pred_fallthru
        _
    $region36: #{net2x_forward.15} parent=5 // pred_fallthru
      _
    %p2809 = scmp.le.s32.totalorder 2, %s12
    // Predicated region
    $region41: #{net2x_forward.15} parent=5 // pred_check
      %p2810 = pneg %p2809
    $region42: #{net2x_forward.15} parent=5 // pred_check_branch
      %2812 = sbr.rel (%p2810) target = $region44
    $region43: #{net2x_forward.15} parent=5 // pred_region
      %s2813 = ssub.s32 %s12, 2
      // Predicated region
      $region45: #{net2x_forward.15} parent=43 // pred_check
        %p2814 = pneg %p135
      $region46: #{net2x_forward.15} parent=43 // pred_check_branch
        %2816 = sbr.rel (%p2814) target = $region48
      $region47: #{net2x_forward.15} parent=43 // pred_region
        %s2817 = smul.u32 2, %s18
        %p2818 = scmp.lt.s32.totalorder %s2817, 3
        %s2819 = scalar_select %p2818, %s2817, 3
        %s2820 = smul.addr %s2819, 32
        %s2821 = smul.addr %s2820, 8
        %s2822 = scalar_lea.vmem %s4, %s2821
      $region48: #{net2x_forward.15} parent=43 // pred_fallthru
        _
    $region44: #{net2x_forward.15} parent=5 // pred_fallthru
      _
  $region6: #{net2x_forward.15} parent=0 // loop_footer
    %s16 = sadd.s32 1, %s12
  $region7: #{net2x_forward.15} parent=0 // loop_footer_branch
    %11 = sbr.rel target = $region3
  $region8: #{net2x_forward.15} parent=0 // loop_exit
    _

</llo_original>
